<compile_context>
chip_gen: v7x
topology: tpu7x:2x2x1
jax: 0.10.0
libtpu: 0.0.40
codegen_flags: <defaults>
</compile_context>

<pallas_src>
import functools

import numpy as np
import jax
import jax.numpy as jnp
from jax.experimental import pallas as pl
from jax.experimental.pallas import tpu as pltpu

BETA = 0.2   # commitment cost


# ---------------------------------------------------------------------------
# Precomputed 0/1 gather operators: fold zero-pad(1) + 3x3 tap shift + stride
# (encoder) or nearest 2x upsample (decoder) into constant matrices, so the
# in-kernel "im2col" is just MXU matmuls.
# ---------------------------------------------------------------------------

def _gather_ops(h_src, w_src, *, up, stride):
    h_in, w_in = up * h_src, up * w_src
    h_out = (h_in + 2 - 3) // stride + 1
    w_out = (w_in + 2 - 3) // stride + 1
    g = np.zeros((9, h_out * w_out, h_src * w_src), np.float32)
    for ki in range(3):
        for kj in range(3):
            t = ki * 3 + kj
            for i in range(h_out):
                r = stride * i + ki - 1
                if not (0 <= r < h_in):
                    continue
                for j in range(w_out):
                    c = stride * j + kj - 1
                    if not (0 <= c < w_in):
                        continue
                    g[t, i * w_out + j, (r // up) * w_src + (c // up)] = 1.0
    return jnp.asarray(g, jnp.bfloat16), (h_out, w_out)


# ---------------------------------------------------------------------------
# Fused VQVAE kernel (runs once per batch element; grid=(B,), "parallel")
# ---------------------------------------------------------------------------

def _vqvae_kernel(x_ref,
                  ge1_ref, ew1_ref, eb1_ref,
                  ge2_ref, ew2_ref, eb2_ref,
                  prew_ref, preb_ref,
                  cb_ref, e2_ref,
                  postw_ref, postb_ref,
                  gd1_ref, dw1_ref, db1_ref,
                  gd2_ref, dw2t_ref, db2_ref,
                  gen_ref, misc_ref):
    f32, bf16 = jnp.float32, jnp.bfloat16

    def patches_of(x_b, g_ref):
        # 9 gather matmuls (K = S_src) + lane concat -> (S_out, 9*Cin) bf16.
        cols = [jnp.dot(g_ref[t], x_b, preferred_element_type=f32).astype(bf16)
                for t in range(9)]
        return jnp.concatenate(cols, axis=-1)

    def conv(x_b, g_ref, w_ref, b_ref, relu):
        y = jnp.dot(patches_of(x_b, g_ref), w_ref[...],
                    preferred_element_type=f32) + b_ref[...]          # f32 epilogue
        return jnp.maximum(y, 0.0) if relu else y

    # ------------------------- encoder (stride-2 convs) -------------------
    x = x_ref[0]                                                      # (HW, Cin) bf16
    h1 = conv(x, ge1_ref, ew1_ref, eb1_ref, True).astype(bf16)        # (HW/4, hidden)
    z = conv(h1, ge2_ref, ew2_ref, eb2_ref, False)                    # (T, latent) f32

    # ------------------------- pre-quant fc -------------------------------
    zq = jnp.dot(z.astype(bf16), prew_ref[...],
                 preferred_element_type=f32) + preb_ref[...]          # (T, D) f32

    # ------------------------- vector quantization ------------------------
    e = cb_ref[...]                                                   # (Kc, D) f32
    kc = e.shape[0]
    # f32 distances (argmin is invariant to the dropped ||z||^2 term).
    zd = jax.lax.dot_general(zq, e, (((1,), (1,)), ((), ())),
                             preferred_element_type=f32)              # (T, Kc)
    dist = e2_ref[...] - 2.0 * zd
    min_d = jnp.min(dist, axis=-1, keepdims=True)
    iota = jax.lax.broadcasted_iota(jnp.int32, dist.shape, 1).astype(f32)
    # first index attaining the minimum (torch.argmin tie-break)
    idx = jnp.min(jnp.where(dist <= min_d, iota, float(kc)),
                  axis=-1, keepdims=True)                             # (T, 1) f32
    onehot = (iota == idx).astype(f32)
    q = jnp.dot(onehot, e, preferred_element_type=f32)                # exact rows
    d = q - zq
    dsum = jnp.sum(d * d, axis=-1, keepdims=True)                     # (T, 1)

    # ------------------------- post-quant fc ------------------------------
    dec = jnp.dot(q.astype(bf16), postw_ref[...],
                  preferred_element_type=f32) + postb_ref[...]        # (T, D)

    # --------------- decoder (fused nearest-2x upsample + convs) ----------
    h3 = conv(dec.astype(bf16), gd1_ref, dw1_ref, db1_ref, True).astype(bf16)
    pat = patches_of(h3, gd2_ref)                                     # (S_out, 9*hid)
    # channel-major epilogue so the store slab is lane-dense (Cout, 256 lanes)
    out_cm = jax.lax.dot_general(dw2t_ref[...], pat, (((1,), (1,)), ((), ())),
                                 preferred_element_type=f32) + db2_ref[...]
    gen_ref[0] = out_cm

    # packed lane-dense VQ slab: [ q | argmin idx | per-row ||q-zq||^2 | 0 ]
    t_rows, d_lat = q.shape
    misc_ref[0] = jnp.concatenate(
        [q,
         jnp.broadcast_to(idx, (t_rows, d_lat)),
         jnp.broadcast_to(dsum, (t_rows, d_lat)),
         jnp.zeros((t_rows, d_lat), f32)], axis=-1)


# ---------------------------------------------------------------------------
# Parameters (deterministic init; architecture mirrors the previous version)
# ---------------------------------------------------------------------------

def _uniform(key, shape, fan_in):
    bound = 1.0 / float(fan_in) ** 0.5
    return jax.random.uniform(key, shape, jnp.float32, -bound, bound)


def init_params(key, in_ch, hidden_ch, latent_dim, codebook_size):
    ks = jax.random.split(key, 13)
    p = {}
    # encoder: conv(in->hidden, s2) + ReLU, conv(hidden->latent, s2)
    p['enc_w1'] = _uniform(ks[0], (3, 3, in_ch, hidden_ch), 3 * 3 * in_ch)
    p['enc_b1'] = _uniform(ks[1], (hidden_ch,), 3 * 3 * in_ch)
    p['enc_w2'] = _uniform(ks[2], (3, 3, hidden_ch, latent_dim), 3 * 3 * hidden_ch)
    p['enc_b2'] = _uniform(ks[3], (latent_dim,), 3 * 3 * hidden_ch)
    # pre/post quant Linear(latent_dim, latent_dim), stored as (in, out)
    p['pre_w'] = _uniform(ks[4], (latent_dim, latent_dim), latent_dim)
    p['pre_b'] = _uniform(ks[5], (latent_dim,), latent_dim)
    p['post_w'] = _uniform(ks[6], (latent_dim, latent_dim), latent_dim)
    p['post_b'] = _uniform(ks[7], (latent_dim,), latent_dim)
    # codebook embedding (Kc, latent_dim)
    p['codebook'] = jax.random.uniform(
        ks[8], (codebook_size, latent_dim), jnp.float32,
        -1.0 / codebook_size, 1.0 / codebook_size)
    # decoder: up2x + conv(latent->hidden) + ReLU, up2x + conv(hidden->in)
    p['dec_w1'] = _uniform(ks[9], (3, 3, latent_dim, hidden_ch), 3 * 3 * latent_dim)
    p['dec_b1'] = _uniform(ks[10], (hidden_ch,), 3 * 3 * latent_dim)
    p['dec_w2'] = _uniform(ks[11], (3, 3, hidden_ch, in_ch), 3 * 3 * hidden_ch)
    p['dec_b2'] = _uniform(ks[12], (in_ch,), 3 * 3 * hidden_ch)
    return p


# ---------------------------------------------------------------------------
# Forward pass
# ---------------------------------------------------------------------------

def vqvae_forward(params, x_nchw):
    b, cin, h, w = x_nchw.shape
    assert h % 4 == 0 and w % 4 == 0, "two stride-2 convs need spatial % 4 == 0"
    hidden = params['enc_b1'].shape[0]
    latent = params['pre_b'].shape[0]
    kc = params['codebook'].shape[0]
    cout = params['dec_w2'].shape[3]
    bf, f32 = jnp.bfloat16, jnp.float32

    # constant gather operators (built at trace time, embedded as constants)
    ge1, (h1s, w1s) = _gather_ops(h, w, up=1, stride=2)      # e.g. 16x16 -> 8x8
    ge2, (h2s, w2s) = _gather_ops(h1s, w1s, up=1, stride=2)  # 8x8  -> 4x4
    gd1, (h3s, w3s) = _gather_ops(h2s, w2s, up=2, stride=1)  # 4x4  -> 8x8
    gd2, (h4s, w4s) = _gather_ops(h3s, w3s, up=2, stride=1)  # 8x8  -> 16x16
    t_tok = h2s * w2s
    s_out = h4s * w4s

    # NCHW -> (B, H*W, Cin) token rows in bf16 (the only XLA glue left)
    x_tok = jnp.transpose(x_nchw, (0, 2, 3, 1)).reshape(b, h * w, cin).astype(bf)

    ew1 = params['enc_w1'].reshape(9 * cin, hidden).astype(bf)
    eb1 = params['enc_b1'].reshape(1, hidden).astype(f32)
    ew2 = params['enc_w2'].reshape(9 * hidden, latent).astype(bf)
    eb2 = params['enc_b2'].reshape(1, latent).astype(f32)
    prew = params['pre_w'].astype(bf)
    preb = params['pre_b'].reshape(1, latent).astype(f32)
    cb = params['codebook'].astype(f32)
    e2 = jnp.sum(cb * cb, axis=-1).reshape(1, kc)
    postw = params['post_w'].astype(bf)
    postb = params['post_b'].reshape(1, latent).astype(f32)
    dw1 = params['dec_w1'].reshape(9 * latent, hidden).astype(bf)
    db1 = params['dec_b1'].reshape(1, hidden).astype(f32)
    dw2t = params['dec_w2'].reshape(9 * hidden, cout).T.astype(bf)
    db2 = params['dec_b2'].reshape(cout, 1).astype(f32)

    misc_w = 4 * latent
    c3 = lambda i: (0, 0, 0)
    c2 = lambda i: (0, 0)

    gen, misc = pl.pallas_call(
        _vqvae_kernel,
        out_shape=(jax.ShapeDtypeStruct((b, cout, s_out), f32),
                   jax.ShapeDtypeStruct((b, t_tok, misc_w), f32)),
        grid=(b,),
        in_specs=[
            pl.BlockSpec((1, h * w, cin), lambda i: (i, 0, 0)),
            pl.BlockSpec(ge1.shape, c3), pl.BlockSpec(ew1.shape, c2),
            pl.BlockSpec(eb1.shape, c2),
            pl.BlockSpec(ge2.shape, c3), pl.BlockSpec(ew2.shape, c2),
            pl.BlockSpec(eb2.shape, c2),
            pl.BlockSpec(prew.shape, c2), pl.BlockSpec(preb.shape, c2),
            pl.BlockSpec(cb.shape, c2), pl.BlockSpec(e2.shape, c2),
            pl.BlockSpec(postw.shape, c2), pl.BlockSpec(postb.shape, c2),
            pl.BlockSpec(gd1.shape, c3), pl.BlockSpec(dw1.shape, c2),
            pl.BlockSpec(db1.shape, c2),
            pl.BlockSpec(gd2.shape, c3), pl.BlockSpec(dw2t.shape, c2),
            pl.BlockSpec(db2.shape, c2),
        ],
        out_specs=(pl.BlockSpec((1, cout, s_out), lambda i: (i, 0, 0)),
                   pl.BlockSpec((1, t_tok, misc_w), lambda i: (i, 0, 0))),
        compiler_params=pltpu.CompilerParams(
            dimension_semantics=("parallel",)),
    )(x_tok, ge1, ew1, eb1, ge2, ew2, eb2, prew, preb, cb, e2, postw, postb,
      gd1, dw1, db1, gd2, dw2t, db2)

    q = misc[:, :, :latent]                                   # (B, T, D) f32 exact rows
    idx = misc[:, :, latent].astype(jnp.int32)                # (B, T)
    diff2 = jnp.sum(misc[:, :, 2 * latent]) / float(b * t_tok * latent)
    return {'generated_output': gen.reshape(b, cout, h4s, w4s),
            'quantized_output': q,
            'quantized_losses': {'codebook_loss': diff2,
                                 'commitment_loss': BETA * diff2},
            'quantized_indices': idx}


if __name__ == "__main__":
    key = jax.random.PRNGKey(0)
    kp, kx = jax.random.split(key)
    in_ch, hidden_ch, latent_dim, codebook_size = 4, 16, 32, 64
    params = init_params(kp, in_ch, hidden_ch, latent_dim, codebook_size)
    x = jax.random.normal(kx, (2, in_ch, 16, 16), jnp.float32)   # NCHW like PyTorch

    fwd = jax.jit(functools.partial(vqvae_forward, params))
    out = fwd(x)
    jax.block_until_ready(out)

    assert out['generated_output'].shape == (2, 4, 16, 16)
    assert out['quantized_output'].shape == (2, 16, 32)
    assert out['quantized_indices'].shape == (2, 16)
    assert out['quantized_indices'].dtype == jnp.int32
    assert bool(jnp.all(jnp.isfinite(out['generated_output'])))
    assert bool(jnp.all((out['quantized_indices'] >= 0) &
                        (out['quantized_indices'] < codebook_size)))
    print("KERNEL_OK")
</pallas_src>

<mosaic_0001>
module attributes {stable_mosaic.version = 11 : i64} {
  func.func @_vqvae_kernel(%arg0: i32, %arg1: memref<1x256x4xbf16, #tpu.memory_space<vmem>>, %arg2: memref<9x64x256xbf16, #tpu.memory_space<vmem>>, %arg3: memref<36x16xbf16, #tpu.memory_space<vmem>>, %arg4: memref<1x16xf32, #tpu.memory_space<vmem>>, %arg5: memref<9x16x64xbf16, #tpu.memory_space<vmem>>, %arg6: memref<144x32xbf16, #tpu.memory_space<vmem>>, %arg7: memref<1x32xf32, #tpu.memory_space<vmem>>, %arg8: memref<32x32xbf16, #tpu.memory_space<vmem>>, %arg9: memref<1x32xf32, #tpu.memory_space<vmem>>, %arg10: memref<64x32xf32, #tpu.memory_space<vmem>>, %arg11: memref<1x64xf32, #tpu.memory_space<vmem>>, %arg12: memref<32x32xbf16, #tpu.memory_space<vmem>>, %arg13: memref<1x32xf32, #tpu.memory_space<vmem>>, %arg14: memref<9x64x16xbf16, #tpu.memory_space<vmem>>, %arg15: memref<288x16xbf16, #tpu.memory_space<vmem>>, %arg16: memref<1x16xf32, #tpu.memory_space<vmem>>, %arg17: memref<9x256x64xbf16, #tpu.memory_space<vmem>>, %arg18: memref<4x144xbf16, #tpu.memory_space<vmem>>, %arg19: memref<4x1xf32, #tpu.memory_space<vmem>>, %arg20: memref<1x4x256xf32, #tpu.memory_space<vmem>>, %arg21: memref<1x16x128xf32, #tpu.memory_space<vmem>>) attributes {dimension_semantics = [#tpu.dimension_semantics<parallel>], iteration_bounds = array<i64: 2>, scalar_prefetch = 0 : i64, scratch_operands = 0 : i64, tpu.core_type = #tpu.core_type<tc>, window_params = [{transform_indices = @transform_0, window_bounds = array<i64: 1, 256, 4>}, {pipeline_mode = #tpu.pipeline_mode<synchronous>, transform_indices = @transform_1, window_bounds = array<i64: 9, 64, 256>}, {pipeline_mode = #tpu.pipeline_mode<synchronous>, transform_indices = @transform_2, window_bounds = array<i64: 36, 16>}, {pipeline_mode = #tpu.pipeline_mode<synchronous>, transform_indices = @transform_3, window_bounds = array<i64: 1, 16>}, {pipeline_mode = #tpu.pipeline_mode<synchronous>, transform_indices = @transform_4, window_bounds = array<i64: 9, 16, 64>}, {pipeline_mode = #tpu.pipeline_mode<synchronous>, transform_indices = @transform_5, window_bounds = array<i64: 144, 32>}, {pipeline_mode = #tpu.pipeline_mode<synchronous>, transform_indices = @transform_6, window_bounds = array<i64: 1, 32>}, {pipeline_mode = #tpu.pipeline_mode<synchronous>, transform_indices = @transform_7, window_bounds = array<i64: 32, 32>}, {pipeline_mode = #tpu.pipeline_mode<synchronous>, transform_indices = @transform_8, window_bounds = array<i64: 1, 32>}, {pipeline_mode = #tpu.pipeline_mode<synchronous>, transform_indices = @transform_9, window_bounds = array<i64: 64, 32>}, {pipeline_mode = #tpu.pipeline_mode<synchronous>, transform_indices = @transform_10, window_bounds = array<i64: 1, 64>}, {pipeline_mode = #tpu.pipeline_mode<synchronous>, transform_indices = @transform_11, window_bounds = array<i64: 32, 32>}, {pipeline_mode = #tpu.pipeline_mode<synchronous>, transform_indices = @transform_12, window_bounds = array<i64: 1, 32>}, {pipeline_mode = #tpu.pipeline_mode<synchronous>, transform_indices = @transform_13, window_bounds = array<i64: 9, 64, 16>}, {pipeline_mode = #tpu.pipeline_mode<synchronous>, transform_indices = @transform_14, window_bounds = array<i64: 288, 16>}, {pipeline_mode = #tpu.pipeline_mode<synchronous>, transform_indices = @transform_15, window_bounds = array<i64: 1, 16>}, {pipeline_mode = #tpu.pipeline_mode<synchronous>, transform_indices = @transform_16, window_bounds = array<i64: 9, 256, 64>}, {pipeline_mode = #tpu.pipeline_mode<synchronous>, transform_indices = @transform_17, window_bounds = array<i64: 4, 144>}, {pipeline_mode = #tpu.pipeline_mode<synchronous>, transform_indices = @transform_18, window_bounds = array<i64: 4, 1>}, {transform_indices = @transform_19, window_bounds = array<i64: 1, 4, 256>}, {transform_indices = @transform_20, window_bounds = array<i64: 1, 16, 128>}]} {
    %c0 = arith.constant 0 : index
    %c0_0 = arith.constant 0 : index
    %c0_1 = arith.constant 0 : index
    %0 = vector.load %arg1[%c0, %c0_0, %c0_1] : memref<1x256x4xbf16, #tpu.memory_space<vmem>>, vector<1x256x4xbf16>
    %1 = vector.shape_cast %0 : vector<1x256x4xbf16> to vector<256x4xbf16>
    %c0_2 = arith.constant 0 : index
    %c0_3 = arith.constant 0 : index
    %c0_4 = arith.constant 0 : index
    %2 = vector.load %arg2[%c0_2, %c0_3, %c0_4] : memref<9x64x256xbf16, #tpu.memory_space<vmem>>, vector<1x64x256xbf16>
    %3 = vector.shape_cast %2 : vector<1x64x256xbf16> to vector<64x256xbf16>
    %cst = arith.constant dense<0.000000e+00> : vector<64x4xf32>
    %4 = tpu.matmul %3, %1, %cst {dimension_numbers = #tpu.dot_dimension_numbers<[1], [0], [0], [1], [0, 0, 1, 1], [], []>} : vector<64x256xbf16>, vector<256x4xbf16>, vector<64x4xf32> -> vector<64x4xf32>
    %5 = arith.truncf %4 : vector<64x4xf32> to vector<64x4xbf16>
    %c1 = arith.constant 1 : index
    %c0_5 = arith.constant 0 : index
    %c0_6 = arith.constant 0 : index
    %6 = vector.load %arg2[%c1, %c0_5, %c0_6] : memref<9x64x256xbf16, #tpu.memory_space<vmem>>, vector<1x64x256xbf16>
    %7 = vector.shape_cast %6 : vector<1x64x256xbf16> to vector<64x256xbf16>
    %cst_7 = arith.constant dense<0.000000e+00> : vector<64x4xf32>
    %8 = tpu.matmul %7, %1, %cst_7 {dimension_numbers = #tpu.dot_dimension_numbers<[1], [0], [0], [1], [0, 0, 1, 1], [], []>} : vector<64x256xbf16>, vector<256x4xbf16>, vector<64x4xf32> -> vector<64x4xf32>
    %9 = arith.truncf %8 : vector<64x4xf32> to vector<64x4xbf16>
    %c2 = arith.constant 2 : index
    %c0_8 = arith.constant 0 : index
    %c0_9 = arith.constant 0 : index
    %10 = vector.load %arg2[%c2, %c0_8, %c0_9] : memref<9x64x256xbf16, #tpu.memory_space<vmem>>, vector<1x64x256xbf16>
    %11 = vector.shape_cast %10 : vector<1x64x256xbf16> to vector<64x256xbf16>
    %cst_10 = arith.constant dense<0.000000e+00> : vector<64x4xf32>
    %12 = tpu.matmul %11, %1, %cst_10 {dimension_numbers = #tpu.dot_dimension_numbers<[1], [0], [0], [1], [0, 0, 1, 1], [], []>} : vector<64x256xbf16>, vector<256x4xbf16>, vector<64x4xf32> -> vector<64x4xf32>
    %13 = arith.truncf %12 : vector<64x4xf32> to vector<64x4xbf16>
    %c3 = arith.constant 3 : index
    %c0_11 = arith.constant 0 : index
    %c0_12 = arith.constant 0 : index
    %14 = vector.load %arg2[%c3, %c0_11, %c0_12] : memref<9x64x256xbf16, #tpu.memory_space<vmem>>, vector<1x64x256xbf16>
    %15 = vector.shape_cast %14 : vector<1x64x256xbf16> to vector<64x256xbf16>
    %cst_13 = arith.constant dense<0.000000e+00> : vector<64x4xf32>
    %16 = tpu.matmul %15, %1, %cst_13 {dimension_numbers = #tpu.dot_dimension_numbers<[1], [0], [0], [1], [0, 0, 1, 1], [], []>} : vector<64x256xbf16>, vector<256x4xbf16>, vector<64x4xf32> -> vector<64x4xf32>
    %17 = arith.truncf %16 : vector<64x4xf32> to vector<64x4xbf16>
    %c4 = arith.constant 4 : index
    %c0_14 = arith.constant 0 : index
    %c0_15 = arith.constant 0 : index
    %18 = vector.load %arg2[%c4, %c0_14, %c0_15] : memref<9x64x256xbf16, #tpu.memory_space<vmem>>, vector<1x64x256xbf16>
    %19 = vector.shape_cast %18 : vector<1x64x256xbf16> to vector<64x256xbf16>
    %cst_16 = arith.constant dense<0.000000e+00> : vector<64x4xf32>
    %20 = tpu.matmul %19, %1, %cst_16 {dimension_numbers = #tpu.dot_dimension_numbers<[1], [0], [0], [1], [0, 0, 1, 1], [], []>} : vector<64x256xbf16>, vector<256x4xbf16>, vector<64x4xf32> -> vector<64x4xf32>
    %21 = arith.truncf %20 : vector<64x4xf32> to vector<64x4xbf16>
    %c5 = arith.constant 5 : index
    %c0_17 = arith.constant 0 : index
    %c0_18 = arith.constant 0 : index
    %22 = vector.load %arg2[%c5, %c0_17, %c0_18] : memref<9x64x256xbf16, #tpu.memory_space<vmem>>, vector<1x64x256xbf16>
    %23 = vector.shape_cast %22 : vector<1x64x256xbf16> to vector<64x256xbf16>
    %cst_19 = arith.constant dense<0.000000e+00> : vector<64x4xf32>
    %24 = tpu.matmul %23, %1, %cst_19 {dimension_numbers = #tpu.dot_dimension_numbers<[1], [0], [0], [1], [0, 0, 1, 1], [], []>} : vector<64x256xbf16>, vector<256x4xbf16>, vector<64x4xf32> -> vector<64x4xf32>
    %25 = arith.truncf %24 : vector<64x4xf32> to vector<64x4xbf16>
    %c6 = arith.constant 6 : index
    %c0_20 = arith.constant 0 : index
    %c0_21 = arith.constant 0 : index
    %26 = vector.load %arg2[%c6, %c0_20, %c0_21] : memref<9x64x256xbf16, #tpu.memory_space<vmem>>, vector<1x64x256xbf16>
    %27 = vector.shape_cast %26 : vector<1x64x256xbf16> to vector<64x256xbf16>
    %cst_22 = arith.constant dense<0.000000e+00> : vector<64x4xf32>
    %28 = tpu.matmul %27, %1, %cst_22 {dimension_numbers = #tpu.dot_dimension_numbers<[1], [0], [0], [1], [0, 0, 1, 1], [], []>} : vector<64x256xbf16>, vector<256x4xbf16>, vector<64x4xf32> -> vector<64x4xf32>
    %29 = arith.truncf %28 : vector<64x4xf32> to vector<64x4xbf16>
    %c7 = arith.constant 7 : index
    %c0_23 = arith.constant 0 : index
    %c0_24 = arith.constant 0 : index
    %30 = vector.load %arg2[%c7, %c0_23, %c0_24] : memref<9x64x256xbf16, #tpu.memory_space<vmem>>, vector<1x64x256xbf16>
    %31 = vector.shape_cast %30 : vector<1x64x256xbf16> to vector<64x256xbf16>
    %cst_25 = arith.constant dense<0.000000e+00> : vector<64x4xf32>
    %32 = tpu.matmul %31, %1, %cst_25 {dimension_numbers = #tpu.dot_dimension_numbers<[1], [0], [0], [1], [0, 0, 1, 1], [], []>} : vector<64x256xbf16>, vector<256x4xbf16>, vector<64x4xf32> -> vector<64x4xf32>
    %33 = arith.truncf %32 : vector<64x4xf32> to vector<64x4xbf16>
    %c8 = arith.constant 8 : index
    %c0_26 = arith.constant 0 : index
    %c0_27 = arith.constant 0 : index
    %34 = vector.load %arg2[%c8, %c0_26, %c0_27] : memref<9x64x256xbf16, #tpu.memory_space<vmem>>, vector<1x64x256xbf16>
    %35 = vector.shape_cast %34 : vector<1x64x256xbf16> to vector<64x256xbf16>
    %cst_28 = arith.constant dense<0.000000e+00> : vector<64x4xf32>
    %36 = tpu.matmul %35, %1, %cst_28 {dimension_numbers = #tpu.dot_dimension_numbers<[1], [0], [0], [1], [0, 0, 1, 1], [], []>} : vector<64x256xbf16>, vector<256x4xbf16>, vector<64x4xf32> -> vector<64x4xf32>
    %37 = arith.truncf %36 : vector<64x4xf32> to vector<64x4xbf16>
    %38 = tpu.concatenate %5, %9, %13, %17, %21, %25, %29, %33, %37 in 1 : vector<64x4xbf16>, vector<64x4xbf16>, vector<64x4xbf16>, vector<64x4xbf16>, vector<64x4xbf16>, vector<64x4xbf16>, vector<64x4xbf16>, vector<64x4xbf16>, vector<64x4xbf16> -> vector<64x36xbf16>
    %c0_29 = arith.constant 0 : index
    %c0_30 = arith.constant 0 : index
    %39 = vector.load %arg3[%c0_29, %c0_30] : memref<36x16xbf16, #tpu.memory_space<vmem>>, vector<36x16xbf16>
    %cst_31 = arith.constant dense<0.000000e+00> : vector<64x16xf32>
    %40 = tpu.matmul %38, %39, %cst_31 {dimension_numbers = #tpu.dot_dimension_numbers<[1], [0], [0], [1], [0, 0, 1, 1], [], []>} : vector<64x36xbf16>, vector<36x16xbf16>, vector<64x16xf32> -> vector<64x16xf32>
    %c0_32 = arith.constant 0 : index
    %c0_33 = arith.constant 0 : index
    %41 = vector.load %arg4[%c0_32, %c0_33] : memref<1x16xf32, #tpu.memory_space<vmem>>, vector<1x16xf32>
    %42 = vector.broadcast %41 : vector<1x16xf32> to vector<64x16xf32>
    %43 = arith.addf %40, %42 : vector<64x16xf32>
    %cst_34 = arith.constant 0.000000e+00 : f32
    %44 = vector.broadcast %cst_34 : f32 to vector<64x16xf32>
    %45 = arith.maximumf %43, %44 : vector<64x16xf32>
    %46 = arith.truncf %45 : vector<64x16xf32> to vector<64x16xbf16>
    %c0_35 = arith.constant 0 : index
    %c0_36 = arith.constant 0 : index
    %c0_37 = arith.constant 0 : index
    %47 = vector.load %arg5[%c0_35, %c0_36, %c0_37] : memref<9x16x64xbf16, #tpu.memory_space<vmem>>, vector<1x16x64xbf16>
    %48 = vector.shape_cast %47 : vector<1x16x64xbf16> to vector<16x64xbf16>
    %cst_38 = arith.constant dense<0.000000e+00> : vector<16x16xf32>
    %49 = tpu.matmul %48, %46, %cst_38 {dimension_numbers = #tpu.dot_dimension_numbers<[1], [0], [0], [1], [0, 0, 1, 1], [], []>} : vector<16x64xbf16>, vector<64x16xbf16>, vector<16x16xf32> -> vector<16x16xf32>
    %50 = arith.truncf %49 : vector<16x16xf32> to vector<16x16xbf16>
    %c1_39 = arith.constant 1 : index
    %c0_40 = arith.constant 0 : index
    %c0_41 = arith.constant 0 : index
    %51 = vector.load %arg5[%c1_39, %c0_40, %c0_41] : memref<9x16x64xbf16, #tpu.memory_space<vmem>>, vector<1x16x64xbf16>
    %52 = vector.shape_cast %51 : vector<1x16x64xbf16> to vector<16x64xbf16>
    %cst_42 = arith.constant dense<0.000000e+00> : vector<16x16xf32>
    %53 = tpu.matmul %52, %46, %cst_42 {dimension_numbers = #tpu.dot_dimension_numbers<[1], [0], [0], [1], [0, 0, 1, 1], [], []>} : vector<16x64xbf16>, vector<64x16xbf16>, vector<16x16xf32> -> vector<16x16xf32>
    %54 = arith.truncf %53 : vector<16x16xf32> to vector<16x16xbf16>
    %c2_43 = arith.constant 2 : index
    %c0_44 = arith.constant 0 : index
    %c0_45 = arith.constant 0 : index
    %55 = vector.load %arg5[%c2_43, %c0_44, %c0_45] : memref<9x16x64xbf16, #tpu.memory_space<vmem>>, vector<1x16x64xbf16>
    %56 = vector.shape_cast %55 : vector<1x16x64xbf16> to vector<16x64xbf16>
    %cst_46 = arith.constant dense<0.000000e+00> : vector<16x16xf32>
    %57 = tpu.matmul %56, %46, %cst_46 {dimension_numbers = #tpu.dot_dimension_numbers<[1], [0], [0], [1], [0, 0, 1, 1], [], []>} : vector<16x64xbf16>, vector<64x16xbf16>, vector<16x16xf32> -> vector<16x16xf32>
    %58 = arith.truncf %57 : vector<16x16xf32> to vector<16x16xbf16>
    %c3_47 = arith.constant 3 : index
    %c0_48 = arith.constant 0 : index
    %c0_49 = arith.constant 0 : index
    %59 = vector.load %arg5[%c3_47, %c0_48, %c0_49] : memref<9x16x64xbf16, #tpu.memory_space<vmem>>, vector<1x16x64xbf16>
    %60 = vector.shape_cast %59 : vector<1x16x64xbf16> to vector<16x64xbf16>
    %cst_50 = arith.constant dense<0.000000e+00> : vector<16x16xf32>
    %61 = tpu.matmul %60, %46, %cst_50 {dimension_numbers = #tpu.dot_dimension_numbers<[1], [0], [0], [1], [0, 0, 1, 1], [], []>} : vector<16x64xbf16>, vector<64x16xbf16>, vector<16x16xf32> -> vector<16x16xf32>
    %62 = arith.truncf %61 : vector<16x16xf32> to vector<16x16xbf16>
    %c4_51 = arith.constant 4 : index
    %c0_52 = arith.constant 0 : index
    %c0_53 = arith.constant 0 : index
    %63 = vector.load %arg5[%c4_51, %c0_52, %c0_53] : memref<9x16x64xbf16, #tpu.memory_space<vmem>>, vector<1x16x64xbf16>
    %64 = vector.shape_cast %63 : vector<1x16x64xbf16> to vector<16x64xbf16>
    %cst_54 = arith.constant dense<0.000000e+00> : vector<16x16xf32>
    %65 = tpu.matmul %64, %46, %cst_54 {dimension_numbers = #tpu.dot_dimension_numbers<[1], [0], [0], [1], [0, 0, 1, 1], [], []>} : vector<16x64xbf16>, vector<64x16xbf16>, vector<16x16xf32> -> vector<16x16xf32>
    %66 = arith.truncf %65 : vector<16x16xf32> to vector<16x16xbf16>
    %c5_55 = arith.constant 5 : index
    %c0_56 = arith.constant 0 : index
    %c0_57 = arith.constant 0 : index
    %67 = vector.load %arg5[%c5_55, %c0_56, %c0_57] : memref<9x16x64xbf16, #tpu.memory_space<vmem>>, vector<1x16x64xbf16>
    %68 = vector.shape_cast %67 : vector<1x16x64xbf16> to vector<16x64xbf16>
    %cst_58 = arith.constant dense<0.000000e+00> : vector<16x16xf32>
    %69 = tpu.matmul %68, %46, %cst_58 {dimension_numbers = #tpu.dot_dimension_numbers<[1], [0], [0], [1], [0, 0, 1, 1], [], []>} : vector<16x64xbf16>, vector<64x16xbf16>, vector<16x16xf32> -> vector<16x16xf32>
    %70 = arith.truncf %69 : vector<16x16xf32> to vector<16x16xbf16>
    %c6_59 = arith.constant 6 : index
    %c0_60 = arith.constant 0 : index
    %c0_61 = arith.constant 0 : index
    %71 = vector.load %arg5[%c6_59, %c0_60, %c0_61] : memref<9x16x64xbf16, #tpu.memory_space<vmem>>, vector<1x16x64xbf16>
    %72 = vector.shape_cast %71 : vector<1x16x64xbf16> to vector<16x64xbf16>
    %cst_62 = arith.constant dense<0.000000e+00> : vector<16x16xf32>
    %73 = tpu.matmul %72, %46, %cst_62 {dimension_numbers = #tpu.dot_dimension_numbers<[1], [0], [0], [1], [0, 0, 1, 1], [], []>} : vector<16x64xbf16>, vector<64x16xbf16>, vector<16x16xf32> -> vector<16x16xf32>
    %74 = arith.truncf %73 : vector<16x16xf32> to vector<16x16xbf16>
    %c7_63 = arith.constant 7 : index
    %c0_64 = arith.constant 0 : index
    %c0_65 = arith.constant 0 : index
    %75 = vector.load %arg5[%c7_63, %c0_64, %c0_65] : memref<9x16x64xbf16, #tpu.memory_space<vmem>>, vector<1x16x64xbf16>
    %76 = vector.shape_cast %75 : vector<1x16x64xbf16> to vector<16x64xbf16>
    %cst_66 = arith.constant dense<0.000000e+00> : vector<16x16xf32>
    %77 = tpu.matmul %76, %46, %cst_66 {dimension_numbers = #tpu.dot_dimension_numbers<[1], [0], [0], [1], [0, 0, 1, 1], [], []>} : vector<16x64xbf16>, vector<64x16xbf16>, vector<16x16xf32> -> vector<16x16xf32>
    %78 = arith.truncf %77 : vector<16x16xf32> to vector<16x16xbf16>
    %c8_67 = arith.constant 8 : index
    %c0_68 = arith.constant 0 : index
    %c0_69 = arith.constant 0 : index
    %79 = vector.load %arg5[%c8_67, %c0_68, %c0_69] : memref<9x16x64xbf16, #tpu.memory_space<vmem>>, vector<1x16x64xbf16>
    %80 = vector.shape_cast %79 : vector<1x16x64xbf16> to vector<16x64xbf16>
    %cst_70 = arith.constant dense<0.000000e+00> : vector<16x16xf32>
    %81 = tpu.matmul %80, %46, %cst_70 {dimension_numbers = #tpu.dot_dimension_numbers<[1], [0], [0], [1], [0, 0, 1, 1], [], []>} : vector<16x64xbf16>, vector<64x16xbf16>, vector<16x16xf32> -> vector<16x16xf32>
    %82 = arith.truncf %81 : vector<16x16xf32> to vector<16x16xbf16>
    %83 = tpu.concatenate %50, %54, %58, %62, %66, %70, %74, %78, %82 in 1 : vector<16x16xbf16>, vector<16x16xbf16>, vector<16x16xbf16>, vector<16x16xbf16>, vector<16x16xbf16>, vector<16x16xbf16>, vector<16x16xbf16>, vector<16x16xbf16>, vector<16x16xbf16> -> vector<16x144xbf16>
    %c0_71 = arith.constant 0 : index
    %c0_72 = arith.constant 0 : index
    %84 = vector.load %arg6[%c0_71, %c0_72] : memref<144x32xbf16, #tpu.memory_space<vmem>>, vector<144x32xbf16>
    %cst_73 = arith.constant dense<0.000000e+00> : vector<16x32xf32>
    %85 = tpu.matmul %83, %84, %cst_73 {dimension_numbers = #tpu.dot_dimension_numbers<[1], [0], [0], [1], [0, 0, 1, 1], [], []>} : vector<16x144xbf16>, vector<144x32xbf16>, vector<16x32xf32> -> vector<16x32xf32>
    %c0_74 = arith.constant 0 : index
    %c0_75 = arith.constant 0 : index
    %86 = vector.load %arg7[%c0_74, %c0_75] : memref<1x32xf32, #tpu.memory_space<vmem>>, vector<1x32xf32>
    %87 = vector.broadcast %86 : vector<1x32xf32> to vector<16x32xf32>
    %88 = arith.addf %85, %87 : vector<16x32xf32>
    %89 = arith.truncf %88 : vector<16x32xf32> to vector<16x32xbf16>
    %c0_76 = arith.constant 0 : index
    %c0_77 = arith.constant 0 : index
    %90 = vector.load %arg8[%c0_76, %c0_77] : memref<32x32xbf16, #tpu.memory_space<vmem>>, vector<32x32xbf16>
    %cst_78 = arith.constant dense<0.000000e+00> : vector<16x32xf32>
    %91 = tpu.matmul %89, %90, %cst_78 {dimension_numbers = #tpu.dot_dimension_numbers<[1], [0], [0], [1], [0, 0, 1, 1], [], []>} : vector<16x32xbf16>, vector<32x32xbf16>, vector<16x32xf32> -> vector<16x32xf32>
    %c0_79 = arith.constant 0 : index
    %c0_80 = arith.constant 0 : index
    %92 = vector.load %arg9[%c0_79, %c0_80] : memref<1x32xf32, #tpu.memory_space<vmem>>, vector<1x32xf32>
    %93 = vector.broadcast %92 : vector<1x32xf32> to vector<16x32xf32>
    %94 = arith.addf %91, %93 : vector<16x32xf32>
    %c0_81 = arith.constant 0 : index
    %c0_82 = arith.constant 0 : index
    %95 = vector.load %arg10[%c0_81, %c0_82] : memref<64x32xf32, #tpu.memory_space<vmem>>, vector<64x32xf32>
    %cst_83 = arith.constant dense<0.000000e+00> : vector<16x64xf32>
    %96 = tpu.matmul %94, %95, %cst_83 {dimension_numbers = #tpu.dot_dimension_numbers<[1], [1], [0], [0], [0, 0, 1, 0], [], []>} : vector<16x32xf32>, vector<64x32xf32>, vector<16x64xf32> -> vector<16x64xf32>
    %c0_84 = arith.constant 0 : index
    %c0_85 = arith.constant 0 : index
    %97 = vector.load %arg11[%c0_84, %c0_85] : memref<1x64xf32, #tpu.memory_space<vmem>>, vector<1x64xf32>
    %cst_86 = arith.constant 2.000000e+00 : f32
    %98 = vector.broadcast %cst_86 : f32 to vector<16x64xf32>
    %99 = arith.mulf %98, %96 : vector<16x64xf32>
    %100 = vector.broadcast %97 : vector<1x64xf32> to vector<16x64xf32>
    %101 = arith.subf %100, %99 : vector<16x64xf32>
    %cst_87 = arith.constant dense<0x7F800000> : vector<16xf32>
    %102 = vector.multi_reduction <minimumf>, %101, %cst_87 [1] : vector<16x64xf32> to vector<16xf32>
    %103 = vector.shape_cast %102 : vector<16xf32> to vector<16x1xf32>
    %104 = tpu.iota {dimensions = array<i32: 1>} : vector<16x64xi32>
    %105 = arith.sitofp %104 : vector<16x64xi32> to vector<16x64xf32>
    %106 = vector.broadcast %103 : vector<16x1xf32> to vector<16x64xf32>
    %107 = arith.cmpf ole, %101, %106 : vector<16x64xf32>
    %cst_88 = arith.constant 6.400000e+01 : f32
    %108 = vector.broadcast %cst_88 : f32 to vector<16x64xf32>
    %109 = arith.select %107, %105, %108 : vector<16x64xi1>, vector<16x64xf32>
    %cst_89 = arith.constant dense<0x7F800000> : vector<16xf32>
    %110 = vector.multi_reduction <minimumf>, %109, %cst_89 [1] : vector<16x64xf32> to vector<16xf32>
    %111 = vector.shape_cast %110 : vector<16xf32> to vector<16x1xf32>
    %112 = vector.broadcast %111 : vector<16x1xf32> to vector<16x64xf32>
    %113 = arith.cmpf oeq, %105, %112 : vector<16x64xf32>
    %114 = arith.extui %113 : vector<16x64xi1> to vector<16x64xi32>
    %115 = arith.sitofp %114 : vector<16x64xi32> to vector<16x64xf32>
    %cst_90 = arith.constant dense<0.000000e+00> : vector<16x32xf32>
    %116 = tpu.matmul %115, %95, %cst_90 {dimension_numbers = #tpu.dot_dimension_numbers<[1], [0], [0], [1], [0, 0, 1, 1], [], []>} : vector<16x64xf32>, vector<64x32xf32>, vector<16x32xf32> -> vector<16x32xf32>
    %117 = arith.subf %116, %94 : vector<16x32xf32>
    %118 = arith.mulf %117, %117 : vector<16x32xf32>
    %cst_91 = arith.constant dense<0.000000e+00> : vector<16xf32>
    %119 = vector.multi_reduction <add>, %118, %cst_91 [1] : vector<16x32xf32> to vector<16xf32>
    %120 = vector.shape_cast %119 : vector<16xf32> to vector<16x1xf32>
    %121 = arith.truncf %116 : vector<16x32xf32> to vector<16x32xbf16>
    %c0_92 = arith.constant 0 : index
    %c0_93 = arith.constant 0 : index
    %122 = vector.load %arg12[%c0_92, %c0_93] : memref<32x32xbf16, #tpu.memory_space<vmem>>, vector<32x32xbf16>
    %cst_94 = arith.constant dense<0.000000e+00> : vector<16x32xf32>
    %123 = tpu.matmul %121, %122, %cst_94 {dimension_numbers = #tpu.dot_dimension_numbers<[1], [0], [0], [1], [0, 0, 1, 1], [], []>} : vector<16x32xbf16>, vector<32x32xbf16>, vector<16x32xf32> -> vector<16x32xf32>
    %c0_95 = arith.constant 0 : index
    %c0_96 = arith.constant 0 : index
    %124 = vector.load %arg13[%c0_95, %c0_96] : memref<1x32xf32, #tpu.memory_space<vmem>>, vector<1x32xf32>
    %125 = vector.broadcast %124 : vector<1x32xf32> to vector<16x32xf32>
    %126 = arith.addf %123, %125 : vector<16x32xf32>
    %127 = arith.truncf %126 : vector<16x32xf32> to vector<16x32xbf16>
    %c0_97 = arith.constant 0 : index
    %c0_98 = arith.constant 0 : index
    %c0_99 = arith.constant 0 : index
    %128 = vector.load %arg14[%c0_97, %c0_98, %c0_99] : memref<9x64x16xbf16, #tpu.memory_space<vmem>>, vector<1x64x16xbf16>
    %129 = vector.shape_cast %128 : vector<1x64x16xbf16> to vector<64x16xbf16>
    %cst_100 = arith.constant dense<0.000000e+00> : vector<64x32xf32>
    %130 = tpu.matmul %129, %127, %cst_100 {dimension_numbers = #tpu.dot_dimension_numbers<[1], [0], [0], [1], [0, 0, 1, 1], [], []>} : vector<64x16xbf16>, vector<16x32xbf16>, vector<64x32xf32> -> vector<64x32xf32>
    %131 = arith.truncf %130 : vector<64x32xf32> to vector<64x32xbf16>
    %c1_101 = arith.constant 1 : index
    %c0_102 = arith.constant 0 : index
    %c0_103 = arith.constant 0 : index
    %132 = vector.load %arg14[%c1_101, %c0_102, %c0_103] : memref<9x64x16xbf16, #tpu.memory_space<vmem>>, vector<1x64x16xbf16>
    %133 = vector.shape_cast %132 : vector<1x64x16xbf16> to vector<64x16xbf16>
    %cst_104 = arith.constant dense<0.000000e+00> : vector<64x32xf32>
    %134 = tpu.matmul %133, %127, %cst_104 {dimension_numbers = #tpu.dot_dimension_numbers<[1], [0], [0], [1], [0, 0, 1, 1], [], []>} : vector<64x16xbf16>, vector<16x32xbf16>, vector<64x32xf32> -> vector<64x32xf32>
    %135 = arith.truncf %134 : vector<64x32xf32> to vector<64x32xbf16>
    %c2_105 = arith.constant 2 : index
    %c0_106 = arith.constant 0 : index
    %c0_107 = arith.constant 0 : index
    %136 = vector.load %arg14[%c2_105, %c0_106, %c0_107] : memref<9x64x16xbf16, #tpu.memory_space<vmem>>, vector<1x64x16xbf16>
    %137 = vector.shape_cast %136 : vector<1x64x16xbf16> to vector<64x16xbf16>
    %cst_108 = arith.constant dense<0.000000e+00> : vector<64x32xf32>
    %138 = tpu.matmul %137, %127, %cst_108 {dimension_numbers = #tpu.dot_dimension_numbers<[1], [0], [0], [1], [0, 0, 1, 1], [], []>} : vector<64x16xbf16>, vector<16x32xbf16>, vector<64x32xf32> -> vector<64x32xf32>
    %139 = arith.truncf %138 : vector<64x32xf32> to vector<64x32xbf16>
    %c3_109 = arith.constant 3 : index
    %c0_110 = arith.constant 0 : index
    %c0_111 = arith.constant 0 : index
    %140 = vector.load %arg14[%c3_109, %c0_110, %c0_111] : memref<9x64x16xbf16, #tpu.memory_space<vmem>>, vector<1x64x16xbf16>
    %141 = vector.shape_cast %140 : vector<1x64x16xbf16> to vector<64x16xbf16>
    %cst_112 = arith.constant dense<0.000000e+00> : vector<64x32xf32>
    %142 = tpu.matmul %141, %127, %cst_112 {dimension_numbers = #tpu.dot_dimension_numbers<[1], [0], [0], [1], [0, 0, 1, 1], [], []>} : vector<64x16xbf16>, vector<16x32xbf16>, vector<64x32xf32> -> vector<64x32xf32>
    %143 = arith.truncf %142 : vector<64x32xf32> to vector<64x32xbf16>
    %c4_113 = arith.constant 4 : index
    %c0_114 = arith.constant 0 : index
    %c0_115 = arith.constant 0 : index
    %144 = vector.load %arg14[%c4_113, %c0_114, %c0_115] : memref<9x64x16xbf16, #tpu.memory_space<vmem>>, vector<1x64x16xbf16>
    %145 = vector.shape_cast %144 : vector<1x64x16xbf16> to vector<64x16xbf16>
    %cst_116 = arith.constant dense<0.000000e+00> : vector<64x32xf32>
    %146 = tpu.matmul %145, %127, %cst_116 {dimension_numbers = #tpu.dot_dimension_numbers<[1], [0], [0], [1], [0, 0, 1, 1], [], []>} : vector<64x16xbf16>, vector<16x32xbf16>, vector<64x32xf32> -> vector<64x32xf32>
    %147 = arith.truncf %146 : vector<64x32xf32> to vector<64x32xbf16>
    %c5_117 = arith.constant 5 : index
    %c0_118 = arith.constant 0 : index
    %c0_119 = arith.constant 0 : index
    %148 = vector.load %arg14[%c5_117, %c0_118, %c0_119] : memref<9x64x16xbf16, #tpu.memory_space<vmem>>, vector<1x64x16xbf16>
    %149 = vector.shape_cast %148 : vector<1x64x16xbf16> to vector<64x16xbf16>
    %cst_120 = arith.constant dense<0.000000e+00> : vector<64x32xf32>
    %150 = tpu.matmul %149, %127, %cst_120 {dimension_numbers = #tpu.dot_dimension_numbers<[1], [0], [0], [1], [0, 0, 1, 1], [], []>} : vector<64x16xbf16>, vector<16x32xbf16>, vector<64x32xf32> -> vector<64x32xf32>
    %151 = arith.truncf %150 : vector<64x32xf32> to vector<64x32xbf16>
    %c6_121 = arith.constant 6 : index
    %c0_122 = arith.constant 0 : index
    %c0_123 = arith.constant 0 : index
    %152 = vector.load %arg14[%c6_121, %c0_122, %c0_123] : memref<9x64x16xbf16, #tpu.memory_space<vmem>>, vector<1x64x16xbf16>
    %153 = vector.shape_cast %152 : vector<1x64x16xbf16> to vector<64x16xbf16>
    %cst_124 = arith.constant dense<0.000000e+00> : vector<64x32xf32>
    %154 = tpu.matmul %153, %127, %cst_124 {dimension_numbers = #tpu.dot_dimension_numbers<[1], [0], [0], [1], [0, 0, 1, 1], [], []>} : vector<64x16xbf16>, vector<16x32xbf16>, vector<64x32xf32> -> vector<64x32xf32>
    %155 = arith.truncf %154 : vector<64x32xf32> to vector<64x32xbf16>
    %c7_125 = arith.constant 7 : index
    %c0_126 = arith.constant 0 : index
    %c0_127 = arith.constant 0 : index
    %156 = vector.load %arg14[%c7_125, %c0_126, %c0_127] : memref<9x64x16xbf16, #tpu.memory_space<vmem>>, vector<1x64x16xbf16>
    %157 = vector.shape_cast %156 : vector<1x64x16xbf16> to vector<64x16xbf16>
    %cst_128 = arith.constant dense<0.000000e+00> : vector<64x32xf32>
    %158 = tpu.matmul %157, %127, %cst_128 {dimension_numbers = #tpu.dot_dimension_numbers<[1], [0], [0], [1], [0, 0, 1, 1], [], []>} : vector<64x16xbf16>, vector<16x32xbf16>, vector<64x32xf32> -> vector<64x32xf32>
    %159 = arith.truncf %158 : vector<64x32xf32> to vector<64x32xbf16>
    %c8_129 = arith.constant 8 : index
    %c0_130 = arith.constant 0 : index
    %c0_131 = arith.constant 0 : index
    %160 = vector.load %arg14[%c8_129, %c0_130, %c0_131] : memref<9x64x16xbf16, #tpu.memory_space<vmem>>, vector<1x64x16xbf16>
    %161 = vector.shape_cast %160 : vector<1x64x16xbf16> to vector<64x16xbf16>
    %cst_132 = arith.constant dense<0.000000e+00> : vector<64x32xf32>
    %162 = tpu.matmul %161, %127, %cst_132 {dimension_numbers = #tpu.dot_dimension_numbers<[1], [0], [0], [1], [0, 0, 1, 1], [], []>} : vector<64x16xbf16>, vector<16x32xbf16>, vector<64x32xf32> -> vector<64x32xf32>
    %163 = arith.truncf %162 : vector<64x32xf32> to vector<64x32xbf16>
    %164 = tpu.concatenate %131, %135, %139, %143, %147, %151, %155, %159, %163 in 1 : vector<64x32xbf16>, vector<64x32xbf16>, vector<64x32xbf16>, vector<64x32xbf16>, vector<64x32xbf16>, vector<64x32xbf16>, vector<64x32xbf16>, vector<64x32xbf16>, vector<64x32xbf16> -> vector<64x288xbf16>
    %c0_133 = arith.constant 0 : index
    %c0_134 = arith.constant 0 : index
    %165 = vector.load %arg15[%c0_133, %c0_134] : memref<288x16xbf16, #tpu.memory_space<vmem>>, vector<288x16xbf16>
    %cst_135 = arith.constant dense<0.000000e+00> : vector<64x16xf32>
    %166 = tpu.matmul %164, %165, %cst_135 {dimension_numbers = #tpu.dot_dimension_numbers<[1], [0], [0], [1], [0, 0, 1, 1], [], []>} : vector<64x288xbf16>, vector<288x16xbf16>, vector<64x16xf32> -> vector<64x16xf32>
    %c0_136 = arith.constant 0 : index
    %c0_137 = arith.constant 0 : index
    %167 = vector.load %arg16[%c0_136, %c0_137] : memref<1x16xf32, #tpu.memory_space<vmem>>, vector<1x16xf32>
    %168 = vector.broadcast %167 : vector<1x16xf32> to vector<64x16xf32>
    %169 = arith.addf %166, %168 : vector<64x16xf32>
    %cst_138 = arith.constant 0.000000e+00 : f32
    %170 = vector.broadcast %cst_138 : f32 to vector<64x16xf32>
    %171 = arith.maximumf %169, %170 : vector<64x16xf32>
    %172 = arith.truncf %171 : vector<64x16xf32> to vector<64x16xbf16>
    %c0_139 = arith.constant 0 : index
    %c0_140 = arith.constant 0 : index
    %c0_141 = arith.constant 0 : index
    %173 = vector.load %arg17[%c0_139, %c0_140, %c0_141] : memref<9x256x64xbf16, #tpu.memory_space<vmem>>, vector<1x256x64xbf16>
    %174 = vector.shape_cast %173 : vector<1x256x64xbf16> to vector<256x64xbf16>
    %cst_142 = arith.constant dense<0.000000e+00> : vector<256x16xf32>
    %175 = tpu.matmul %174, %172, %cst_142 {dimension_numbers = #tpu.dot_dimension_numbers<[1], [0], [0], [1], [0, 0, 1, 1], [], []>} : vector<256x64xbf16>, vector<64x16xbf16>, vector<256x16xf32> -> vector<256x16xf32>
    %176 = arith.truncf %175 : vector<256x16xf32> to vector<256x16xbf16>
    %c1_143 = arith.constant 1 : index
    %c0_144 = arith.constant 0 : index
    %c0_145 = arith.constant 0 : index
    %177 = vector.load %arg17[%c1_143, %c0_144, %c0_145] : memref<9x256x64xbf16, #tpu.memory_space<vmem>>, vector<1x256x64xbf16>
    %178 = vector.shape_cast %177 : vector<1x256x64xbf16> to vector<256x64xbf16>
    %cst_146 = arith.constant dense<0.000000e+00> : vector<256x16xf32>
    %179 = tpu.matmul %178, %172, %cst_146 {dimension_numbers = #tpu.dot_dimension_numbers<[1], [0], [0], [1], [0, 0, 1, 1], [], []>} : vector<256x64xbf16>, vector<64x16xbf16>, vector<256x16xf32> -> vector<256x16xf32>
    %180 = arith.truncf %179 : vector<256x16xf32> to vector<256x16xbf16>
    %c2_147 = arith.constant 2 : index
    %c0_148 = arith.constant 0 : index
    %c0_149 = arith.constant 0 : index
    %181 = vector.load %arg17[%c2_147, %c0_148, %c0_149] : memref<9x256x64xbf16, #tpu.memory_space<vmem>>, vector<1x256x64xbf16>
    %182 = vector.shape_cast %181 : vector<1x256x64xbf16> to vector<256x64xbf16>
    %cst_150 = arith.constant dense<0.000000e+00> : vector<256x16xf32>
    %183 = tpu.matmul %182, %172, %cst_150 {dimension_numbers = #tpu.dot_dimension_numbers<[1], [0], [0], [1], [0, 0, 1, 1], [], []>} : vector<256x64xbf16>, vector<64x16xbf16>, vector<256x16xf32> -> vector<256x16xf32>
    %184 = arith.truncf %183 : vector<256x16xf32> to vector<256x16xbf16>
    %c3_151 = arith.constant 3 : index
    %c0_152 = arith.constant 0 : index
    %c0_153 = arith.constant 0 : index
    %185 = vector.load %arg17[%c3_151, %c0_152, %c0_153] : memref<9x256x64xbf16, #tpu.memory_space<vmem>>, vector<1x256x64xbf16>
    %186 = vector.shape_cast %185 : vector<1x256x64xbf16> to vector<256x64xbf16>
    %cst_154 = arith.constant dense<0.000000e+00> : vector<256x16xf32>
    %187 = tpu.matmul %186, %172, %cst_154 {dimension_numbers = #tpu.dot_dimension_numbers<[1], [0], [0], [1], [0, 0, 1, 1], [], []>} : vector<256x64xbf16>, vector<64x16xbf16>, vector<256x16xf32> -> vector<256x16xf32>
    %188 = arith.truncf %187 : vector<256x16xf32> to vector<256x16xbf16>
    %c4_155 = arith.constant 4 : index
    %c0_156 = arith.constant 0 : index
    %c0_157 = arith.constant 0 : index
    %189 = vector.load %arg17[%c4_155, %c0_156, %c0_157] : memref<9x256x64xbf16, #tpu.memory_space<vmem>>, vector<1x256x64xbf16>
    %190 = vector.shape_cast %189 : vector<1x256x64xbf16> to vector<256x64xbf16>
    %cst_158 = arith.constant dense<0.000000e+00> : vector<256x16xf32>
    %191 = tpu.matmul %190, %172, %cst_158 {dimension_numbers = #tpu.dot_dimension_numbers<[1], [0], [0], [1], [0, 0, 1, 1], [], []>} : vector<256x64xbf16>, vector<64x16xbf16>, vector<256x16xf32> -> vector<256x16xf32>
    %192 = arith.truncf %191 : vector<256x16xf32> to vector<256x16xbf16>
    %c5_159 = arith.constant 5 : index
    %c0_160 = arith.constant 0 : index
    %c0_161 = arith.constant 0 : index
    %193 = vector.load %arg17[%c5_159, %c0_160, %c0_161] : memref<9x256x64xbf16, #tpu.memory_space<vmem>>, vector<1x256x64xbf16>
    %194 = vector.shape_cast %193 : vector<1x256x64xbf16> to vector<256x64xbf16>
    %cst_162 = arith.constant dense<0.000000e+00> : vector<256x16xf32>
    %195 = tpu.matmul %194, %172, %cst_162 {dimension_numbers = #tpu.dot_dimension_numbers<[1], [0], [0], [1], [0, 0, 1, 1], [], []>} : vector<256x64xbf16>, vector<64x16xbf16>, vector<256x16xf32> -> vector<256x16xf32>
    %196 = arith.truncf %195 : vector<256x16xf32> to vector<256x16xbf16>
    %c6_163 = arith.constant 6 : index
    %c0_164 = arith.constant 0 : index
    %c0_165 = arith.constant 0 : index
    %197 = vector.load %arg17[%c6_163, %c0_164, %c0_165] : memref<9x256x64xbf16, #tpu.memory_space<vmem>>, vector<1x256x64xbf16>
    %198 = vector.shape_cast %197 : vector<1x256x64xbf16> to vector<256x64xbf16>
    %cst_166 = arith.constant dense<0.000000e+00> : vector<256x16xf32>
    %199 = tpu.matmul %198, %172, %cst_166 {dimension_numbers = #tpu.dot_dimension_numbers<[1], [0], [0], [1], [0, 0, 1, 1], [], []>} : vector<256x64xbf16>, vector<64x16xbf16>, vector<256x16xf32> -> vector<256x16xf32>
    %200 = arith.truncf %199 : vector<256x16xf32> to vector<256x16xbf16>
    %c7_167 = arith.constant 7 : index
    %c0_168 = arith.constant 0 : index
    %c0_169 = arith.constant 0 : index
    %201 = vector.load %arg17[%c7_167, %c0_168, %c0_169] : memref<9x256x64xbf16, #tpu.memory_space<vmem>>, vector<1x256x64xbf16>
    %202 = vector.shape_cast %201 : vector<1x256x64xbf16> to vector<256x64xbf16>
    %cst_170 = arith.constant dense<0.000000e+00> : vector<256x16xf32>
    %203 = tpu.matmul %202, %172, %cst_170 {dimension_numbers = #tpu.dot_dimension_numbers<[1], [0], [0], [1], [0, 0, 1, 1], [], []>} : vector<256x64xbf16>, vector<64x16xbf16>, vector<256x16xf32> -> vector<256x16xf32>
    %204 = arith.truncf %203 : vector<256x16xf32> to vector<256x16xbf16>
    %c8_171 = arith.constant 8 : index
    %c0_172 = arith.constant 0 : index
    %c0_173 = arith.constant 0 : index
    %205 = vector.load %arg17[%c8_171, %c0_172, %c0_173] : memref<9x256x64xbf16, #tpu.memory_space<vmem>>, vector<1x256x64xbf16>
    %206 = vector.shape_cast %205 : vector<1x256x64xbf16> to vector<256x64xbf16>
    %cst_174 = arith.constant dense<0.000000e+00> : vector<256x16xf32>
    %207 = tpu.matmul %206, %172, %cst_174 {dimension_numbers = #tpu.dot_dimension_numbers<[1], [0], [0], [1], [0, 0, 1, 1], [], []>} : vector<256x64xbf16>, vector<64x16xbf16>, vector<256x16xf32> -> vector<256x16xf32>
    %208 = arith.truncf %207 : vector<256x16xf32> to vector<256x16xbf16>
    %209 = tpu.concatenate %176, %180, %184, %188, %192, %196, %200, %204, %208 in 1 : vector<256x16xbf16>, vector<256x16xbf16>, vector<256x16xbf16>, vector<256x16xbf16>, vector<256x16xbf16>, vector<256x16xbf16>, vector<256x16xbf16>, vector<256x16xbf16>, vector<256x16xbf16> -> vector<256x144xbf16>
    %c0_175 = arith.constant 0 : index
    %c0_176 = arith.constant 0 : index
    %210 = vector.load %arg18[%c0_175, %c0_176] : memref<4x144xbf16, #tpu.memory_space<vmem>>, vector<4x144xbf16>
    %cst_177 = arith.constant dense<0.000000e+00> : vector<4x256xf32>
    %211 = tpu.matmul %210, %209, %cst_177 {dimension_numbers = #tpu.dot_dimension_numbers<[1], [1], [0], [0], [0, 0, 1, 0], [], []>} : vector<4x144xbf16>, vector<256x144xbf16>, vector<4x256xf32> -> vector<4x256xf32>
    %c0_178 = arith.constant 0 : index
    %c0_179 = arith.constant 0 : index
    %212 = vector.load %arg19[%c0_178, %c0_179] : memref<4x1xf32, #tpu.memory_space<vmem>>, vector<4x1xf32>
    %213 = vector.broadcast %212 : vector<4x1xf32> to vector<4x256xf32>
    %214 = arith.addf %211, %213 : vector<4x256xf32>
    %c0_180 = arith.constant 0 : index
    %c0_181 = arith.constant 0 : index
    %c0_182 = arith.constant 0 : index
    %215 = vector.load %arg20[%c0_180, %c0_181, %c0_182] : memref<1x4x256xf32, #tpu.memory_space<vmem>>, vector<1x4x256xf32>
    %216 = vector.shape_cast %215 : vector<1x4x256xf32> to vector<4x256xf32>
    %217 = vector.shape_cast %214 : vector<4x256xf32> to vector<1x4x256xf32>
    tpu.vector_store %arg20[%c0_180, %c0_181, %c0_182], %217 {strides = array<i32>} : memref<1x4x256xf32, #tpu.memory_space<vmem>>, vector<1x4x256xf32>,
    %218 = vector.shape_cast %111 : vector<16x1xf32> to vector<16x1xf32>
    %219 = vector.broadcast %218 : vector<16x1xf32> to vector<16x32xf32>
    %220 = vector.shape_cast %120 : vector<16x1xf32> to vector<16x1xf32>
    %221 = vector.broadcast %220 : vector<16x1xf32> to vector<16x32xf32>
    %cst_183 = arith.constant 0.000000e+00 : f32
    %222 = vector.broadcast %cst_183 : f32 to vector<16x32xf32>
    %223 = tpu.concatenate %116, %219, %221, %222 in 1 : vector<16x32xf32>, vector<16x32xf32>, vector<16x32xf32>, vector<16x32xf32> -> vector<16x128xf32>
    %c0_184 = arith.constant 0 : index
    %c0_185 = arith.constant 0 : index
    %c0_186 = arith.constant 0 : index
    %224 = vector.load %arg21[%c0_184, %c0_185, %c0_186] : memref<1x16x128xf32, #tpu.memory_space<vmem>>, vector<1x16x128xf32>
    %225 = vector.shape_cast %224 : vector<1x16x128xf32> to vector<16x128xf32>
    %226 = vector.shape_cast %223 : vector<16x128xf32> to vector<1x16x128xf32>
    tpu.vector_store %arg21[%c0_184, %c0_185, %c0_186], %226 {strides = array<i32>} : memref<1x16x128xf32, #tpu.memory_space<vmem>>, vector<1x16x128xf32>,
    return
  }
  func.func @transform_0(%arg0: i32) -> (i32, i32, i32) {
    %c0_i32 = arith.constant 0 : i32
    %c0_i32_0 = arith.constant 0 : i32
    %c0_i32_1 = arith.constant 0 : i32
    return %arg0, %c0_i32, %c0_i32_0 : i32, i32, i32
  }
  func.func @transform_1(%arg0: i32) -> (i32, i32, i32) {
    %c0_i32 = arith.constant 0 : i32
    %c0_i32_0 = arith.constant 0 : i32
    %c0_i32_1 = arith.constant 0 : i32
    %c0_i32_2 = arith.constant 0 : i32
    return %c0_i32, %c0_i32_0, %c0_i32_1 : i32, i32, i32
  }
  func.func @transform_2(%arg0: i32) -> (i32, i32) {
    %c0_i32 = arith.constant 0 : i32
    %c0_i32_0 = arith.constant 0 : i32
    %c0_i32_1 = arith.constant 0 : i32
    return %c0_i32, %c0_i32_0 : i32, i32
  }
  func.func @transform_3(%arg0: i32) -> (i32, i32) {
    %c0_i32 = arith.constant 0 : i32
    %c0_i32_0 = arith.constant 0 : i32
    %c0_i32_1 = arith.constant 0 : i32
    return %c0_i32, %c0_i32_0 : i32, i32
  }
  func.func @transform_4(%arg0: i32) -> (i32, i32, i32) {
    %c0_i32 = arith.constant 0 : i32
    %c0_i32_0 = arith.constant 0 : i32
    %c0_i32_1 = arith.constant 0 : i32
    %c0_i32_2 = arith.constant 0 : i32
    return %c0_i32, %c0_i32_0, %c0_i32_1 : i32, i32, i32
  }
  func.func @transform_5(%arg0: i32) -> (i32, i32) {
    %c0_i32 = arith.constant 0 : i32
    %c0_i32_0 = arith.constant 0 : i32
    %c0_i32_1 = arith.constant 0 : i32
    return %c0_i32, %c0_i32_0 : i32, i32
  }
  func.func @transform_6(%arg0: i32) -> (i32, i32) {
    %c0_i32 = arith.constant 0 : i32
    %c0_i32_0 = arith.constant 0 : i32
    %c0_i32_1 = arith.constant 0 : i32
    return %c0_i32, %c0_i32_0 : i32, i32
  }
  func.func @transform_7(%arg0: i32) -> (i32, i32) {
    %c0_i32 = arith.constant 0 : i32
    %c0_i32_0 = arith.constant 0 : i32
    %c0_i32_1 = arith.constant 0 : i32
    return %c0_i32, %c0_i32_0 : i32, i32
  }
  func.func @transform_8(%arg0: i32) -> (i32, i32) {
    %c0_i32 = arith.constant 0 : i32
    %c0_i32_0 = arith.constant 0 : i32
    %c0_i32_1 = arith.constant 0 : i32
    return %c0_i32, %c0_i32_0 : i32, i32
  }
  func.func @transform_9(%arg0: i32) -> (i32, i32) {
    %c0_i32 = arith.constant 0 : i32
    %c0_i32_0 = arith.constant 0 : i32
    %c0_i32_1 = arith.constant 0 : i32
    return %c0_i32, %c0_i32_0 : i32, i32
  }
  func.func @transform_10(%arg0: i32) -> (i32, i32) {
    %c0_i32 = arith.constant 0 : i32
    %c0_i32_0 = arith.constant 0 : i32
    %c0_i32_1 = arith.constant 0 : i32
    return %c0_i32, %c0_i32_0 : i32, i32
  }
  func.func @transform_11(%arg0: i32) -> (i32, i32) {
    %c0_i32 = arith.constant 0 : i32
    %c0_i32_0 = arith.constant 0 : i32
    %c0_i32_1 = arith.constant 0 : i32
    return %c0_i32, %c0_i32_0 : i32, i32
  }
  func.func @transform_12(%arg0: i32) -> (i32, i32) {
    %c0_i32 = arith.constant 0 : i32
    %c0_i32_0 = arith.constant 0 : i32
    %c0_i32_1 = arith.constant 0 : i32
    return %c0_i32, %c0_i32_0 : i32, i32
  }
  func.func @transform_13(%arg0: i32) -> (i32, i32, i32) {
    %c0_i32 = arith.constant 0 : i32
    %c0_i32_0 = arith.constant 0 : i32
    %c0_i32_1 = arith.constant 0 : i32
    %c0_i32_2 = arith.constant 0 : i32
    return %c0_i32, %c0_i32_0, %c0_i32_1 : i32, i32, i32
  }
  func.func @transform_14(%arg0: i32) -> (i32, i32) {
    %c0_i32 = arith.constant 0 : i32
    %c0_i32_0 = arith.constant 0 : i32
    %c0_i32_1 = arith.constant 0 : i32
    return %c0_i32, %c0_i32_0 : i32, i32
  }
  func.func @transform_15(%arg0: i32) -> (i32, i32) {
    %c0_i32 = arith.constant 0 : i32
    %c0_i32_0 = arith.constant 0 : i32
    %c0_i32_1 = arith.constant 0 : i32
    return %c0_i32, %c0_i32_0 : i32, i32
  }
  func.func @transform_16(%arg0: i32) -> (i32, i32, i32) {
    %c0_i32 = arith.constant 0 : i32
    %c0_i32_0 = arith.constant 0 : i32
    %c0_i32_1 = arith.constant 0 : i32
    %c0_i32_2 = arith.constant 0 : i32
    return %c0_i32, %c0_i32_0, %c0_i32_1 : i32, i32, i32
  }
  func.func @transform_17(%arg0: i32) -> (i32, i32) {
    %c0_i32 = arith.constant 0 : i32
    %c0_i32_0 = arith.constant 0 : i32
    %c0_i32_1 = arith.constant 0 : i32
    return %c0_i32, %c0_i32_0 : i32, i32
  }
  func.func @transform_18(%arg0: i32) -> (i32, i32) {
    %c0_i32 = arith.constant 0 : i32
    %c0_i32_0 = arith.constant 0 : i32
    %c0_i32_1 = arith.constant 0 : i32
    return %c0_i32, %c0_i32_0 : i32, i32
  }
  func.func @transform_19(%arg0: i32) -> (i32, i32, i32) {
    %c0_i32 = arith.constant 0 : i32
    %c0_i32_0 = arith.constant 0 : i32
    %c0_i32_1 = arith.constant 0 : i32
    return %arg0, %c0_i32, %c0_i32_0 : i32, i32, i32
  }
  func.func @transform_20(%arg0: i32) -> (i32, i32, i32) {
    %c0_i32 = arith.constant 0 : i32
    %c0_i32_0 = arith.constant 0 : i32
    %c0_i32_1 = arith.constant 0 : i32
    return %arg0, %c0_i32, %c0_i32_0 : i32, i32, i32
  }
}

</mosaic_0001>

<llo_original>
// kernel: vqvae_forward.1
$region0: #{vqvae_forward.1}
  #allocation0 [shape = 'u32[]', space=smem, size = 0x4, offset = 0x4, fixed_abs, tag = 'smem constant byte address 0x4 - core index']
  #allocation1 [shape = 'u32[144,128]{1,0:T(1,128)}', space=vmem, size = 0x12000, scoped, tag = 'internal scratch']
  %s0 = inlined_call_operand.vmem [shape: bf16[2,256,4], index: 0, kind: input, shape index: {}]
  %s1 = inlined_call_operand.vmem [shape: bf16[9,64,256], index: 1, kind: input, shape index: {}]
  %s2 = inlined_call_operand.vmem [shape: bf16[36,16], index: 2, kind: input, shape index: {}]
  %s3 = inlined_call_operand.hbm [shape: f32[1,16], index: 3, kind: input, shape index: {}]
  %s4 = inlined_call_operand.vmem [shape: bf16[9,16,64], index: 4, kind: input, shape index: {}]
  %s5 = inlined_call_operand.vmem [shape: bf16[144,32], index: 5, kind: input, shape index: {}]
  %s6 = inlined_call_operand.hbm [shape: f32[1,32], index: 6, kind: input, shape index: {}]
  %s7 = inlined_call_operand.vmem [shape: bf16[32,32], index: 7, kind: input, shape index: {}]
  %s8 = inlined_call_operand.hbm [shape: f32[1,32], index: 8, kind: input, shape index: {}]
  %s9 = inlined_call_operand.hbm [shape: f32[64,32], index: 9, kind: input, shape index: {}]
  %s10 = inlined_call_operand.vmem [shape: f32[1,64], index: 10, kind: input, shape index: {}]
  %s11 = inlined_call_operand.hbm [shape: bf16[32,32], index: 11, kind: input, shape index: {}]
  %s12 = inlined_call_operand.hbm [shape: f32[1,32], index: 12, kind: input, shape index: {}]
  %s13 = inlined_call_operand.vmem [shape: bf16[9,64,16], index: 13, kind: input, shape index: {}]
  %s14 = inlined_call_operand.vmem [shape: bf16[288,16], index: 14, kind: input, shape index: {}]
  %s15 = inlined_call_operand.hbm [shape: f32[1,16], index: 15, kind: input, shape index: {}]
  %s16 = inlined_call_operand.vmem [shape: bf16[9,256,64], index: 16, kind: input, shape index: {}]
  %s17 = inlined_call_operand.vmem [shape: bf16[4,144], index: 17, kind: input, shape index: {}]
  %s18 = inlined_call_operand.hbm [shape: f32[4,1], index: 18, kind: input, shape index: {}]
  %s19 = inlined_call_operand.vmem [shape: f32[2,4,256], index: 19, kind: output, shape index: {0}]
  %s20 = inlined_call_operand.vmem [shape: f32[2,16,128], index: 20, kind: output, shape index: {1}]
  %21 = xla_tuple %s19, %s20
  %s22 = sld [smem:[#allocation0]]
  $region149: #{vqvae_forward.1} parent=0
    _
  %s24 = ssub.s32 1, %s22
  %s25 = scalar_select 0, %s24, %s22
  $region1: #{vqvae_forward.1} parent=0
    #allocation2 [shape = 'u8[512]{0}', space=vmem, size = 0x400, scoped, tag = 'input window, operand 3, single buffered']
    #allocation3 [shape = 's32[2]{0}', space=sflag, size = 0x8, scoped, tag = 'scoped memory for vqvae_forward.1']
    #allocation4 [shape = 'u8[512]{0}', space=vmem, size = 0x400, scoped, tag = 'input window, operand 6, single buffered']
    #allocation5 [shape = 's32[1]{0}', space=sflag, size = 0x4, scoped, tag = 'scoped memory for vqvae_forward.1']
    #allocation6 [shape = 'u8[512]{0}', space=vmem, size = 0x400, scoped, tag = 'input window, operand 8, single buffered']
    #allocation7 [shape = 'u8[32768]{0}', space=vmem, size = 0x8000, scoped, tag = 'input window, operand 9, single buffered']
    #allocation8 [shape = 's32[1]{0}', space=sflag, size = 0x4, scoped, tag = 'scoped memory for vqvae_forward.1']
    #allocation9 [shape = 'u8[8192]{0}', space=vmem, size = 0x2000, scoped, tag = 'input window, operand 11, single buffered']
    #allocation10 [shape = 'u8[512]{0}', space=vmem, size = 0x400, scoped, tag = 'input window, operand 12, single buffered']
    #allocation11 [shape = 's32[1]{0}', space=sflag, size = 0x4, scoped, tag = 'scoped memory for vqvae_forward.1']
    #allocation12 [shape = 'u8[512]{0}', space=vmem, size = 0x400, scoped, tag = 'input window, operand 15, single buffered']
    #allocation13 [shape = 'u8[2048]{0}', space=vmem, size = 0x800, scoped, tag = 'input window, operand 18, single buffered']
    #allocation14 [shape = 's32[1]{0}', space=sflag, size = 0x4, scoped, tag = 'scoped memory for vqvae_forward.1']
    %26 = vsyncpa [#allocation3], 0
    %27 = vsyncpa [#allocation5], 0
    %28 = vsyncpa [#allocation8], 0
    %29 = vsyncpa [#allocation11], 0
    %30 = vsyncpa [#allocation14], 0
    loop: start=0, step=1, limit=4
    $region2: #{vqvae_forward.1} parent=1 // loop_pre_header
      _
    $region3: #{vqvae_forward.1} parent=1 // loop_header
      %s32 = sphi 0, %s36
      %p33 = scmp.ge.s32.totalorder %s32, 4
      %s42 = sphi 0, %s44
      %s45 = sphi 0, %s42
      %s46 = sphi 0, %s45
      %s62 = sphi 0, %s46
      %s66 = sphi 0, %s66
      %s68 = sphi 0, %s66
      %s69 = sphi 0, %s68
      %s83 = sphi 0, %s69
      %s87 = sphi 0, %s87
      %s89 = sphi 0, %s87
      %s90 = sphi 0, %s89
      %s104 = sphi 0, %s90
      %s108 = sphi 0, %s108
      %s110 = sphi 0, %s108
      %s111 = sphi 0, %s110
      %s125 = sphi 0, %s111
      %s129 = sphi 0, %s129
      %s131 = sphi 0, %s129
      %s132 = sphi 0, %s131
      %s146 = sphi 0, %s132
      %s150 = sphi 0, %s150
      %s152 = sphi 0, %s150
      %s153 = sphi 0, %s152
      %s167 = sphi 0, %s153
      %s171 = sphi 0, %s171
      %s173 = sphi 0, %s171
      %s174 = sphi 0, %s173
      %s188 = sphi 0, %s174
      %s192 = sphi 0, %s192
      %s194 = sphi 0, %s192
      %s195 = sphi 0, %s194
      %s209 = sphi 0, %s195
      %s213 = sphi 0, %s213
      %s215 = sphi 0, %s213
      %s216 = sphi 0, %s215
      %s230 = sphi 0, %s216
      %s234 = sphi 0, %s234
      %s236 = sphi 0, %s234
      %s237 = sphi 0, %s236
      %s251 = sphi 0, %s237
      %s255 = sphi 0, %s255
      %s257 = sphi 0, %s255
      %s258 = sphi 0, %s257
      %s272 = sphi 0, %s258
      %s276 = sphi 0, %s276
      %s278 = sphi 0, %s276
      %s279 = sphi 0, %s278
      %s293 = sphi 0, %s279
      %s297 = sphi 0, %s297
      %s299 = sphi 0, %s297
      %s300 = sphi 0, %s299
      %s314 = sphi 0, %s300
      %s318 = sphi 0, %s318
      %s320 = sphi 0, %s318
      %s321 = sphi 0, %s320
      %s335 = sphi 0, %s321
      %s339 = sphi 0, %s339
      %s341 = sphi 0, %s339
      %s342 = sphi 0, %s341
      %s356 = sphi 0, %s342
      %s360 = sphi 0, %s360
      %s362 = sphi 0, %s360
      %s363 = sphi 0, %s362
      %s377 = sphi 0, %s363
      %s381 = sphi 0, %s381
      %s383 = sphi 0, %s381
      %s384 = sphi 0, %s383
      %s398 = sphi 0, %s384
      %s402 = sphi 0, %s402
      %s404 = sphi 0, %s402
      %s405 = sphi 0, %s404
      %s419 = sphi 0, %s405
      %s423 = sphi 0, %s423
      %s425 = sphi 0, %s423
      %s426 = sphi 0, %s425
      %s440 = sphi 0, %s426
      %s446 = sphi 0, %s448
      %s449 = sphi 0, %s446
      %s450 = sphi 0, %s449
      %s466 = sphi 0, %s450
      %s472 = sphi 0, %s474
      %s475 = sphi 0, %s472
      %s476 = sphi 0, %s475
      %s492 = sphi 0, %s476
    $region4: #{vqvae_forward.1} parent=1 // loop_header_branch
      %35 = sbr.rel (%p33) target = $region8
    $region5: #{vqvae_forward.1} parent=1 // loop_body
      %s37 = ssub.s32 %s32, 1
      %s38 = ssub.s32 %s32, 2
      %s39 = sadd.s32 %s32, 1
      %s40 = ssub.s32 %s32, %s39
      %p41 = scmp.eq.s32.totalorder %s40, 0
      %s43 = sadd.s32 %s42, 1
      %s44 = scalar_select %p41, %s42, %s43
      %p47 = pneg %p41
      %p48 = scmp.eq.s32.totalorder %s32, 1
      %p49 = por %p47, %p48
      %p50 = scmp.ne.s32.totalorder %s42, %s45
      %p51 = scmp.eq.s32.totalorder %s32, 0
      %p52 = por %p50, %p51
      %p53 = scmp.ne.s32.totalorder %s42, %s45
      %p54 = scmp.eq.s32.totalorder %s37, 1
      %p55 = por %p53, %p54
      %p56 = scmp.ne.s32.totalorder %s45, %s46
      %p57 = scmp.eq.s32.totalorder %s37, 0
      %p58 = por %p56, %p57
      %p59 = scmp.ne.s32.totalorder %s45, %s46
      %p60 = scmp.eq.s32.totalorder %s38, 1
      %p61 = por %p59, %p60
      %p63 = scmp.ne.s32.totalorder %s46, %s62
      %p64 = scmp.eq.s32.totalorder %s38, 0
      %p65 = por %p63, %p64
      %s67 = sadd.s32 %s66, 1
      %p70 = scmp.eq.s32.totalorder %s32, 1
      %p71 = scmp.ne.s32.totalorder %s66, %s68
      %p72 = scmp.eq.s32.totalorder %s32, 0
      %p73 = por %p71, %p72
      %p74 = scmp.ne.s32.totalorder %s66, %s68
      %p75 = scmp.eq.s32.totalorder %s37, 1
      %p76 = por %p74, %p75
      %p77 = scmp.ne.s32.totalorder %s68, %s69
      %p78 = scmp.eq.s32.totalorder %s37, 0
      %p79 = por %p77, %p78
      %p80 = scmp.ne.s32.totalorder %s68, %s69
      %p81 = scmp.eq.s32.totalorder %s38, 1
      %p82 = por %p80, %p81
      %p84 = scmp.ne.s32.totalorder %s69, %s83
      %p85 = scmp.eq.s32.totalorder %s38, 0
      %p86 = por %p84, %p85
      %s88 = sadd.s32 %s87, 1
      %p91 = scmp.eq.s32.totalorder %s32, 1
      %p92 = scmp.ne.s32.totalorder %s87, %s89
      %p93 = scmp.eq.s32.totalorder %s32, 0
      %p94 = por %p92, %p93
      %p95 = scmp.ne.s32.totalorder %s87, %s89
      %p96 = scmp.eq.s32.totalorder %s37, 1
      %p97 = por %p95, %p96
      %p98 = scmp.ne.s32.totalorder %s89, %s90
      %p99 = scmp.eq.s32.totalorder %s37, 0
      %p100 = por %p98, %p99
      %p101 = scmp.ne.s32.totalorder %s89, %s90
      %p102 = scmp.eq.s32.totalorder %s38, 1
      %p103 = por %p101, %p102
      %p105 = scmp.ne.s32.totalorder %s90, %s104
      %p106 = scmp.eq.s32.totalorder %s38, 0
      %p107 = por %p105, %p106
      %s109 = sadd.s32 %s108, 1
      %p112 = scmp.eq.s32.totalorder %s32, 1
      %p113 = scmp.ne.s32.totalorder %s108, %s110
      %p114 = scmp.eq.s32.totalorder %s32, 0
      %p115 = por %p113, %p114
      %p116 = scmp.ne.s32.totalorder %s108, %s110
      %p117 = scmp.eq.s32.totalorder %s37, 1
      %p118 = por %p116, %p117
      %p119 = scmp.ne.s32.totalorder %s110, %s111
      %p120 = scmp.eq.s32.totalorder %s37, 0
      %p121 = por %p119, %p120
      %p122 = scmp.ne.s32.totalorder %s110, %s111
      %p123 = scmp.eq.s32.totalorder %s38, 1
      %p124 = por %p122, %p123
      %p126 = scmp.ne.s32.totalorder %s111, %s125
      %p127 = scmp.eq.s32.totalorder %s38, 0
      %p128 = por %p126, %p127
      %s130 = sadd.s32 %s129, 1
      %p133 = scmp.eq.s32.totalorder %s32, 1
      %p134 = scmp.ne.s32.totalorder %s129, %s131
      %p135 = scmp.eq.s32.totalorder %s32, 0
      %p136 = por %p134, %p135
      %p137 = scmp.ne.s32.totalorder %s129, %s131
      %p138 = scmp.eq.s32.totalorder %s37, 1
      %p139 = por %p137, %p138
      %p140 = scmp.ne.s32.totalorder %s131, %s132
      %p141 = scmp.eq.s32.totalorder %s37, 0
      %p142 = por %p140, %p141
      %p143 = scmp.ne.s32.totalorder %s131, %s132
      %p144 = scmp.eq.s32.totalorder %s38, 1
      %p145 = por %p143, %p144
      %p147 = scmp.ne.s32.totalorder %s132, %s146
      %p148 = scmp.eq.s32.totalorder %s38, 0
      %p149 = por %p147, %p148
      %s151 = sadd.s32 %s150, 1
      %p154 = scmp.eq.s32.totalorder %s32, 1
      %p155 = scmp.ne.s32.totalorder %s150, %s152
      %p156 = scmp.eq.s32.totalorder %s32, 0
      %p157 = por %p155, %p156
      %p158 = scmp.ne.s32.totalorder %s150, %s152
      %p159 = scmp.eq.s32.totalorder %s37, 1
      %p160 = por %p158, %p159
      %p161 = scmp.ne.s32.totalorder %s152, %s153
      %p162 = scmp.eq.s32.totalorder %s37, 0
      %p163 = por %p161, %p162
      %p164 = scmp.ne.s32.totalorder %s152, %s153
      %p165 = scmp.eq.s32.totalorder %s38, 1
      %p166 = por %p164, %p165
      %p168 = scmp.ne.s32.totalorder %s153, %s167
      %p169 = scmp.eq.s32.totalorder %s38, 0
      %p170 = por %p168, %p169
      %s172 = sadd.s32 %s171, 1
      %p175 = scmp.eq.s32.totalorder %s32, 1
      %p176 = scmp.ne.s32.totalorder %s171, %s173
      %p177 = scmp.eq.s32.totalorder %s32, 0
      %p178 = por %p176, %p177
      %p179 = scmp.ne.s32.totalorder %s171, %s173
      %p180 = scmp.eq.s32.totalorder %s37, 1
      %p181 = por %p179, %p180
      %p182 = scmp.ne.s32.totalorder %s173, %s174
      %p183 = scmp.eq.s32.totalorder %s37, 0
      %p184 = por %p182, %p183
      %p185 = scmp.ne.s32.totalorder %s173, %s174
      %p186 = scmp.eq.s32.totalorder %s38, 1
      %p187 = por %p185, %p186
      %p189 = scmp.ne.s32.totalorder %s174, %s188
      %p190 = scmp.eq.s32.totalorder %s38, 0
      %p191 = por %p189, %p190
      %s193 = sadd.s32 %s192, 1
      %p196 = scmp.eq.s32.totalorder %s32, 1
      %p197 = scmp.ne.s32.totalorder %s192, %s194
      %p198 = scmp.eq.s32.totalorder %s32, 0
      %p199 = por %p197, %p198
      %p200 = scmp.ne.s32.totalorder %s192, %s194
      %p201 = scmp.eq.s32.totalorder %s37, 1
      %p202 = por %p200, %p201
      %p203 = scmp.ne.s32.totalorder %s194, %s195
      %p204 = scmp.eq.s32.totalorder %s37, 0
      %p205 = por %p203, %p204
      %p206 = scmp.ne.s32.totalorder %s194, %s195
      %p207 = scmp.eq.s32.totalorder %s38, 1
      %p208 = por %p206, %p207
      %p210 = scmp.ne.s32.totalorder %s195, %s209
      %p211 = scmp.eq.s32.totalorder %s38, 0
      %p212 = por %p210, %p211
      %s214 = sadd.s32 %s213, 1
      %p217 = scmp.eq.s32.totalorder %s32, 1
      %p218 = scmp.ne.s32.totalorder %s213, %s215
      %p219 = scmp.eq.s32.totalorder %s32, 0
      %p220 = por %p218, %p219
      %p221 = scmp.ne.s32.totalorder %s213, %s215
      %p222 = scmp.eq.s32.totalorder %s37, 1
      %p223 = por %p221, %p222
      %p224 = scmp.ne.s32.totalorder %s215, %s216
      %p225 = scmp.eq.s32.totalorder %s37, 0
      %p226 = por %p224, %p225
      %p227 = scmp.ne.s32.totalorder %s215, %s216
      %p228 = scmp.eq.s32.totalorder %s38, 1
      %p229 = por %p227, %p228
      %p231 = scmp.ne.s32.totalorder %s216, %s230
      %p232 = scmp.eq.s32.totalorder %s38, 0
      %p233 = por %p231, %p232
      %s235 = sadd.s32 %s234, 1
      %p238 = scmp.eq.s32.totalorder %s32, 1
      %p239 = scmp.ne.s32.totalorder %s234, %s236
      %p240 = scmp.eq.s32.totalorder %s32, 0
      %p241 = por %p239, %p240
      %p242 = scmp.ne.s32.totalorder %s234, %s236
      %p243 = scmp.eq.s32.totalorder %s37, 1
      %p244 = por %p242, %p243
      %p245 = scmp.ne.s32.totalorder %s236, %s237
      %p246 = scmp.eq.s32.totalorder %s37, 0
      %p247 = por %p245, %p246
      %p248 = scmp.ne.s32.totalorder %s236, %s237
      %p249 = scmp.eq.s32.totalorder %s38, 1
      %p250 = por %p248, %p249
      %p252 = scmp.ne.s32.totalorder %s237, %s251
      %p253 = scmp.eq.s32.totalorder %s38, 0
      %p254 = por %p252, %p253
      %s256 = sadd.s32 %s255, 1
      %p259 = scmp.eq.s32.totalorder %s32, 1
      %p260 = scmp.ne.s32.totalorder %s255, %s257
      %p261 = scmp.eq.s32.totalorder %s32, 0
      %p262 = por %p260, %p261
      %p263 = scmp.ne.s32.totalorder %s255, %s257
      %p264 = scmp.eq.s32.totalorder %s37, 1
      %p265 = por %p263, %p264
      %p266 = scmp.ne.s32.totalorder %s257, %s258
      %p267 = scmp.eq.s32.totalorder %s37, 0
      %p268 = por %p266, %p267
      %p269 = scmp.ne.s32.totalorder %s257, %s258
      %p270 = scmp.eq.s32.totalorder %s38, 1
      %p271 = por %p269, %p270
      %p273 = scmp.ne.s32.totalorder %s258, %s272
      %p274 = scmp.eq.s32.totalorder %s38, 0
      %p275 = por %p273, %p274
      %s277 = sadd.s32 %s276, 1
      %p280 = scmp.eq.s32.totalorder %s32, 1
      %p281 = scmp.ne.s32.totalorder %s276, %s278
      %p282 = scmp.eq.s32.totalorder %s32, 0
      %p283 = por %p281, %p282
      %p284 = scmp.ne.s32.totalorder %s276, %s278
      %p285 = scmp.eq.s32.totalorder %s37, 1
      %p286 = por %p284, %p285
      %p287 = scmp.ne.s32.totalorder %s278, %s279
      %p288 = scmp.eq.s32.totalorder %s37, 0
      %p289 = por %p287, %p288
      %p290 = scmp.ne.s32.totalorder %s278, %s279
      %p291 = scmp.eq.s32.totalorder %s38, 1
      %p292 = por %p290, %p291
      %p294 = scmp.ne.s32.totalorder %s279, %s293
      %p295 = scmp.eq.s32.totalorder %s38, 0
      %p296 = por %p294, %p295
      %s298 = sadd.s32 %s297, 1
      %p301 = scmp.eq.s32.totalorder %s32, 1
      %p302 = scmp.ne.s32.totalorder %s297, %s299
      %p303 = scmp.eq.s32.totalorder %s32, 0
      %p304 = por %p302, %p303
      %p305 = scmp.ne.s32.totalorder %s297, %s299
      %p306 = scmp.eq.s32.totalorder %s37, 1
      %p307 = por %p305, %p306
      %p308 = scmp.ne.s32.totalorder %s299, %s300
      %p309 = scmp.eq.s32.totalorder %s37, 0
      %p310 = por %p308, %p309
      %p311 = scmp.ne.s32.totalorder %s299, %s300
      %p312 = scmp.eq.s32.totalorder %s38, 1
      %p313 = por %p311, %p312
      %p315 = scmp.ne.s32.totalorder %s300, %s314
      %p316 = scmp.eq.s32.totalorder %s38, 0
      %p317 = por %p315, %p316
      %s319 = sadd.s32 %s318, 1
      %p322 = scmp.eq.s32.totalorder %s32, 1
      %p323 = scmp.ne.s32.totalorder %s318, %s320
      %p324 = scmp.eq.s32.totalorder %s32, 0
      %p325 = por %p323, %p324
      %p326 = scmp.ne.s32.totalorder %s318, %s320
      %p327 = scmp.eq.s32.totalorder %s37, 1
      %p328 = por %p326, %p327
      %p329 = scmp.ne.s32.totalorder %s320, %s321
      %p330 = scmp.eq.s32.totalorder %s37, 0
      %p331 = por %p329, %p330
      %p332 = scmp.ne.s32.totalorder %s320, %s321
      %p333 = scmp.eq.s32.totalorder %s38, 1
      %p334 = por %p332, %p333
      %p336 = scmp.ne.s32.totalorder %s321, %s335
      %p337 = scmp.eq.s32.totalorder %s38, 0
      %p338 = por %p336, %p337
      %s340 = sadd.s32 %s339, 1
      %p343 = scmp.eq.s32.totalorder %s32, 1
      %p344 = scmp.ne.s32.totalorder %s339, %s341
      %p345 = scmp.eq.s32.totalorder %s32, 0
      %p346 = por %p344, %p345
      %p347 = scmp.ne.s32.totalorder %s339, %s341
      %p348 = scmp.eq.s32.totalorder %s37, 1
      %p349 = por %p347, %p348
      %p350 = scmp.ne.s32.totalorder %s341, %s342
      %p351 = scmp.eq.s32.totalorder %s37, 0
      %p352 = por %p350, %p351
      %p353 = scmp.ne.s32.totalorder %s341, %s342
      %p354 = scmp.eq.s32.totalorder %s38, 1
      %p355 = por %p353, %p354
      %p357 = scmp.ne.s32.totalorder %s342, %s356
      %p358 = scmp.eq.s32.totalorder %s38, 0
      %p359 = por %p357, %p358
      %s361 = sadd.s32 %s360, 1
      %p364 = scmp.eq.s32.totalorder %s32, 1
      %p365 = scmp.ne.s32.totalorder %s360, %s362
      %p366 = scmp.eq.s32.totalorder %s32, 0
      %p367 = por %p365, %p366
      %p368 = scmp.ne.s32.totalorder %s360, %s362
      %p369 = scmp.eq.s32.totalorder %s37, 1
      %p370 = por %p368, %p369
      %p371 = scmp.ne.s32.totalorder %s362, %s363
      %p372 = scmp.eq.s32.totalorder %s37, 0
      %p373 = por %p371, %p372
      %p374 = scmp.ne.s32.totalorder %s362, %s363
      %p375 = scmp.eq.s32.totalorder %s38, 1
      %p376 = por %p374, %p375
      %p378 = scmp.ne.s32.totalorder %s363, %s377
      %p379 = scmp.eq.s32.totalorder %s38, 0
      %p380 = por %p378, %p379
      %s382 = sadd.s32 %s381, 1
      %p385 = scmp.eq.s32.totalorder %s32, 1
      %p386 = scmp.ne.s32.totalorder %s381, %s383
      %p387 = scmp.eq.s32.totalorder %s32, 0
      %p388 = por %p386, %p387
      %p389 = scmp.ne.s32.totalorder %s381, %s383
      %p390 = scmp.eq.s32.totalorder %s37, 1
      %p391 = por %p389, %p390
      %p392 = scmp.ne.s32.totalorder %s383, %s384
      %p393 = scmp.eq.s32.totalorder %s37, 0
      %p394 = por %p392, %p393
      %p395 = scmp.ne.s32.totalorder %s383, %s384
      %p396 = scmp.eq.s32.totalorder %s38, 1
      %p397 = por %p395, %p396
      %p399 = scmp.ne.s32.totalorder %s384, %s398
      %p400 = scmp.eq.s32.totalorder %s38, 0
      %p401 = por %p399, %p400
      %s403 = sadd.s32 %s402, 1
      %p406 = scmp.eq.s32.totalorder %s32, 1
      %p407 = scmp.ne.s32.totalorder %s402, %s404
      %p408 = scmp.eq.s32.totalorder %s32, 0
      %p409 = por %p407, %p408
      %p410 = scmp.ne.s32.totalorder %s402, %s404
      %p411 = scmp.eq.s32.totalorder %s37, 1
      %p412 = por %p410, %p411
      %p413 = scmp.ne.s32.totalorder %s404, %s405
      %p414 = scmp.eq.s32.totalorder %s37, 0
      %p415 = por %p413, %p414
      %p416 = scmp.ne.s32.totalorder %s404, %s405
      %p417 = scmp.eq.s32.totalorder %s38, 1
      %p418 = por %p416, %p417
      %p420 = scmp.ne.s32.totalorder %s405, %s419
      %p421 = scmp.eq.s32.totalorder %s38, 0
      %p422 = por %p420, %p421
      %s424 = sadd.s32 %s423, 1
      %p427 = scmp.eq.s32.totalorder %s32, 1
      %p428 = scmp.ne.s32.totalorder %s423, %s425
      %p429 = scmp.eq.s32.totalorder %s32, 0
      %p430 = por %p428, %p429
      %p431 = scmp.ne.s32.totalorder %s423, %s425
      %p432 = scmp.eq.s32.totalorder %s37, 1
      %p433 = por %p431, %p432
      %p434 = scmp.ne.s32.totalorder %s425, %s426
      %p435 = scmp.eq.s32.totalorder %s37, 0
      %p436 = por %p434, %p435
      %p437 = scmp.ne.s32.totalorder %s425, %s426
      %p438 = scmp.eq.s32.totalorder %s38, 1
      %p439 = por %p437, %p438
      %p441 = scmp.ne.s32.totalorder %s426, %s440
      %p442 = scmp.eq.s32.totalorder %s38, 0
      %p443 = por %p441, %p442
      %s444 = ssub.s32 %s32, %s39
      %p445 = scmp.eq.s32.totalorder %s444, 0
      %s447 = sadd.s32 %s446, 1
      %s448 = scalar_select %p445, %s446, %s447
      %p451 = pneg %p445
      %p452 = scmp.eq.s32.totalorder %s32, 1
      %p453 = por %p451, %p452
      %p454 = scmp.ne.s32.totalorder %s446, %s449
      %p455 = scmp.eq.s32.totalorder %s32, 0
      %p456 = por %p454, %p455
      %p457 = scmp.ne.s32.totalorder %s446, %s449
      %p458 = scmp.eq.s32.totalorder %s37, 1
      %p459 = por %p457, %p458
      %p460 = scmp.ne.s32.totalorder %s449, %s450
      %p461 = scmp.eq.s32.totalorder %s37, 0
      %p462 = por %p460, %p461
      %p463 = scmp.ne.s32.totalorder %s449, %s450
      %p464 = scmp.eq.s32.totalorder %s38, 1
      %p465 = por %p463, %p464
      %p467 = scmp.ne.s32.totalorder %s450, %s466
      %p468 = scmp.eq.s32.totalorder %s38, 0
      %p469 = por %p467, %p468
      %s470 = ssub.s32 %s32, %s39
      %p471 = scmp.eq.s32.totalorder %s470, 0
      %s473 = sadd.s32 %s472, 1
      %s474 = scalar_select %p471, %s472, %s473
      %p477 = pneg %p471
      %p478 = scmp.eq.s32.totalorder %s32, 1
      %p479 = por %p477, %p478
      %p480 = scmp.ne.s32.totalorder %s472, %s475
      %p481 = scmp.eq.s32.totalorder %s32, 0
      %p482 = por %p480, %p481
      %p483 = scmp.ne.s32.totalorder %s472, %s475
      %p484 = scmp.eq.s32.totalorder %s37, 1
      %p485 = por %p483, %p484
      %p486 = scmp.ne.s32.totalorder %s475, %s476
      %p487 = scmp.eq.s32.totalorder %s37, 0
      %p488 = por %p486, %p487
      %p489 = scmp.ne.s32.totalorder %s475, %s476
      %p490 = scmp.eq.s32.totalorder %s38, 1
      %p491 = por %p489, %p490
      %p493 = scmp.ne.s32.totalorder %s476, %s492
      %p494 = scmp.eq.s32.totalorder %s38, 0
      %p495 = por %p493, %p494
      %p496 = scmp.le.s32.totalorder 1, %s32
      %p497 = scmp.lt.s32.totalorder %s32, 3
      %p498 = pnand %p496, %p497
      %p499 = pneg %p498
      // Predicated region
      $region9: #{vqvae_forward.1} parent=5 // pred_check
        _
      $region10: #{vqvae_forward.1} parent=5 // pred_check_branch
        %501 = sbr.rel (%p498) target = $region12
      $region11: #{vqvae_forward.1} parent=5 // pred_region
        %s502 = ssub.s32 %s32, 1
        // Predicated region
        $region13: #{vqvae_forward.1} parent=11 // pred_check
          %p503 = pneg %p79
        $region14: #{vqvae_forward.1} parent=11 // pred_check_branch
          %505 = sbr.rel (%p503) target = $region16
        $region15: #{vqvae_forward.1} parent=11 // pred_region
          _
        $region16: #{vqvae_forward.1} parent=11 // pred_fallthru
          _
        // Predicated region
        $region17: #{vqvae_forward.1} parent=11 // pred_check
          %p506 = pneg %p100
        $region18: #{vqvae_forward.1} parent=11 // pred_check_branch
          %508 = sbr.rel (%p506) target = $region20
        $region19: #{vqvae_forward.1} parent=11 // pred_region
          _
        $region20: #{vqvae_forward.1} parent=11 // pred_fallthru
          _
        // Predicated region
        $region21: #{vqvae_forward.1} parent=11 // pred_check
          %p509 = pneg %p121
        $region22: #{vqvae_forward.1} parent=11 // pred_check_branch
          %511 = sbr.rel (%p509) target = $region24
        $region23: #{vqvae_forward.1} parent=11 // pred_region
          %s513 = ssub.s32 16, 16
          %514 = vsyncadd [#allocation3], %s513
          %s516 = sshll.u32 [#allocation2], 4
          %s517 = int_to_ptr.vmem [resolvable:$true] %s516
          %519 = dma.hbm_to_vmem [thread:$0]  %s3, 16, %s517, [#allocation3]
        $region24: #{vqvae_forward.1} parent=11 // pred_fallthru
          _
        // Predicated region
        $region25: #{vqvae_forward.1} parent=11 // pred_check
          %p520 = pneg %p142
        $region26: #{vqvae_forward.1} parent=11 // pred_check_branch
          %522 = sbr.rel (%p520) target = $region28
        $region27: #{vqvae_forward.1} parent=11 // pred_region
          _
        $region28: #{vqvae_forward.1} parent=11 // pred_fallthru
          _
        // Predicated region
        $region29: #{vqvae_forward.1} parent=11 // pred_check
          %p523 = pneg %p163
        $region30: #{vqvae_forward.1} parent=11 // pred_check_branch
          %525 = sbr.rel (%p523) target = $region32
        $region31: #{vqvae_forward.1} parent=11 // pred_region
          _
        $region32: #{vqvae_forward.1} parent=11 // pred_fallthru
          _
        // Predicated region
        $region33: #{vqvae_forward.1} parent=11 // pred_check
          %p526 = pneg %p184
        $region34: #{vqvae_forward.1} parent=11 // pred_check_branch
          %528 = sbr.rel (%p526) target = $region36
        $region35: #{vqvae_forward.1} parent=11 // pred_region
          %s530 = ssub.s32 16, 16
          %531 = vsyncadd [#allocation5], %s530
          %s533 = sshll.u32 [#allocation4], 4
          %s534 = int_to_ptr.vmem [resolvable:$true] %s533
          %536 = dma.hbm_to_vmem [thread:$0]  %s6, 16, %s534, [#allocation5]
        $region36: #{vqvae_forward.1} parent=11 // pred_fallthru
          _
        // Predicated region
        $region37: #{vqvae_forward.1} parent=11 // pred_check
          %p537 = pneg %p205
        $region38: #{vqvae_forward.1} parent=11 // pred_check_branch
          %539 = sbr.rel (%p537) target = $region40
        $region39: #{vqvae_forward.1} parent=11 // pred_region
          _
        $region40: #{vqvae_forward.1} parent=11 // pred_fallthru
          _
        // Predicated region
        $region41: #{vqvae_forward.1} parent=11 // pred_check
          %p540 = pneg %p226
        $region42: #{vqvae_forward.1} parent=11 // pred_check_branch
          %542 = sbr.rel (%p540) target = $region44
        $region43: #{vqvae_forward.1} parent=11 // pred_region
          %s544 = ssub.s32 16, 16
          %545 = vsyncadd [#allocation5], %s544
          %s547 = sshll.u32 [#allocation6], 4
          %s548 = int_to_ptr.vmem [resolvable:$true] %s547
          %550 = dma.hbm_to_vmem [thread:$0]  %s8, 16, %s548, [#allocation5]
        $region44: #{vqvae_forward.1} parent=11 // pred_fallthru
          _
        // Predicated region
        $region45: #{vqvae_forward.1} parent=11 // pred_check
          %p551 = pneg %p247
        $region46: #{vqvae_forward.1} parent=11 // pred_check_branch
          %553 = sbr.rel (%p551) target = $region48
        $region47: #{vqvae_forward.1} parent=11 // pred_region
          %s555 = ssub.s32 1024, 1024
          %556 = vsyncadd [#allocation8], %s555
          %s557 = sshll.u32 [#allocation7], 4
          %s558 = int_to_ptr.vmem [resolvable:$true] %s557
          %563 = dma.hbm_to_vmem [thread:$0]  %s9, 1024, %s558, [#allocation8], 128, 128, 8
        $region48: #{vqvae_forward.1} parent=11 // pred_fallthru
          _
        // Predicated region
        $region49: #{vqvae_forward.1} parent=11 // pred_check
          %p564 = pneg %p268
        $region50: #{vqvae_forward.1} parent=11 // pred_check_branch
          %566 = sbr.rel (%p564) target = $region52
        $region51: #{vqvae_forward.1} parent=11 // pred_region
          _
        $region52: #{vqvae_forward.1} parent=11 // pred_fallthru
          _
        // Predicated region
        $region53: #{vqvae_forward.1} parent=11 // pred_check
          %p567 = pneg %p289
        $region54: #{vqvae_forward.1} parent=11 // pred_check_branch
          %569 = sbr.rel (%p567) target = $region56
        $region55: #{vqvae_forward.1} parent=11 // pred_region
          %s571 = ssub.s32 256, 256
          %572 = vsyncadd [#allocation8], %s571
          %s573 = sshll.u32 [#allocation9], 4
          %s574 = int_to_ptr.vmem [resolvable:$true] %s573
          %579 = dma.hbm_to_vmem [thread:$0]  %s11, 256, %s574, [#allocation8], 64, 64, 4
        $region56: #{vqvae_forward.1} parent=11 // pred_fallthru
          _
        // Predicated region
        $region57: #{vqvae_forward.1} parent=11 // pred_check
          %p580 = pneg %p310
        $region58: #{vqvae_forward.1} parent=11 // pred_check_branch
          %582 = sbr.rel (%p580) target = $region60
        $region59: #{vqvae_forward.1} parent=11 // pred_region
          %s584 = ssub.s32 16, 16
          %585 = vsyncadd [#allocation11], %s584
          %s587 = sshll.u32 [#allocation10], 4
          %s588 = int_to_ptr.vmem [resolvable:$true] %s587
          %590 = dma.hbm_to_vmem [thread:$0]  %s12, 16, %s588, [#allocation11]
        $region60: #{vqvae_forward.1} parent=11 // pred_fallthru
          _
        // Predicated region
        $region61: #{vqvae_forward.1} parent=11 // pred_check
          %p591 = pneg %p331
        $region62: #{vqvae_forward.1} parent=11 // pred_check_branch
          %593 = sbr.rel (%p591) target = $region64
        $region63: #{vqvae_forward.1} parent=11 // pred_region
          _
        $region64: #{vqvae_forward.1} parent=11 // pred_fallthru
          _
        // Predicated region
        $region65: #{vqvae_forward.1} parent=11 // pred_check
          %p594 = pneg %p352
        $region66: #{vqvae_forward.1} parent=11 // pred_check_branch
          %596 = sbr.rel (%p594) target = $region68
        $region67: #{vqvae_forward.1} parent=11 // pred_region
          _
        $region68: #{vqvae_forward.1} parent=11 // pred_fallthru
          _
        // Predicated region
        $region69: #{vqvae_forward.1} parent=11 // pred_check
          %p597 = pneg %p373
        $region70: #{vqvae_forward.1} parent=11 // pred_check_branch
          %599 = sbr.rel (%p597) target = $region72
        $region71: #{vqvae_forward.1} parent=11 // pred_region
          %s601 = ssub.s32 16, 16
          %602 = vsyncadd [#allocation11], %s601
          %s604 = sshll.u32 [#allocation12], 4
          %s605 = int_to_ptr.vmem [resolvable:$true] %s604
          %607 = dma.hbm_to_vmem [thread:$0]  %s15, 16, %s605, [#allocation11]
        $region72: #{vqvae_forward.1} parent=11 // pred_fallthru
          _
        // Predicated region
        $region73: #{vqvae_forward.1} parent=11 // pred_check
          %p608 = pneg %p394
        $region74: #{vqvae_forward.1} parent=11 // pred_check_branch
          %610 = sbr.rel (%p608) target = $region76
        $region75: #{vqvae_forward.1} parent=11 // pred_region
          _
        $region76: #{vqvae_forward.1} parent=11 // pred_fallthru
          _
        // Predicated region
        $region77: #{vqvae_forward.1} parent=11 // pred_check
          %p611 = pneg %p415
        $region78: #{vqvae_forward.1} parent=11 // pred_check_branch
          %613 = sbr.rel (%p611) target = $region80
        $region79: #{vqvae_forward.1} parent=11 // pred_region
          _
        $region80: #{vqvae_forward.1} parent=11 // pred_fallthru
          _
        // Predicated region
        $region81: #{vqvae_forward.1} parent=11 // pred_check
          %p614 = pneg %p436
        $region82: #{vqvae_forward.1} parent=11 // pred_check_branch
          %616 = sbr.rel (%p614) target = $region84
        $region83: #{vqvae_forward.1} parent=11 // pred_region
          %s618 = ssub.s32 64, 64
          %619 = vsyncadd [#allocation14], %s618
          %s621 = sshll.u32 [#allocation13], 4
          %s622 = int_to_ptr.vmem [resolvable:$true] %s621
          %624 = dma.hbm_to_vmem [thread:$0]  %s18, 64, %s622, [#allocation14]
        $region84: #{vqvae_forward.1} parent=11 // pred_fallthru
          _
      $region12: #{vqvae_forward.1} parent=5 // pred_fallthru
        _
      %p625 = scmp.lt.s32.totalorder %s32, 2
      // Predicated region
      $region85: #{vqvae_forward.1} parent=5 // pred_check
        %p626 = pneg %p625
      $region86: #{vqvae_forward.1} parent=5 // pred_check_branch
        %628 = sbr.rel (%p626) target = $region88
      $region87: #{vqvae_forward.1} parent=5 // pred_region
        // Predicated region
        $region89: #{vqvae_forward.1} parent=87 // pred_check
          %p629 = pneg %p52
        $region90: #{vqvae_forward.1} parent=87 // pred_check_branch
          %631 = sbr.rel (%p629) target = $region92
        $region91: #{vqvae_forward.1} parent=87 // pred_region
          %p632 = scmp.lt.s32.totalorder %s32, 1
          %s633 = scalar_select %p632, %s32, 1
          %s634 = smul.addr %s633, 32
          %s635 = smul.addr %s634, 4
          %s636 = scalar_lea.vmem %s0, %s635
        $region92: #{vqvae_forward.1} parent=87 // pred_fallthru
          _
      $region88: #{vqvae_forward.1} parent=5 // pred_fallthru
        _
      %p637 = scmp.le.s32.totalorder 1, %s32
      %p638 = scmp.lt.s32.totalorder %s32, 3
      %p639 = pnand %p637, %p638
      %p640 = pneg %p639
      // Predicated region
      $region93: #{vqvae_forward.1} parent=5 // pred_check
        _
      $region94: #{vqvae_forward.1} parent=5 // pred_check_branch
        %642 = sbr.rel (%p639) target = $region96
      $region95: #{vqvae_forward.1} parent=5 // pred_region
        %s643 = ssub.s32 %s32, 1
        // Predicated region
        $region97: #{vqvae_forward.1} parent=95 // pred_check
          %p644 = pneg %p121
        $region98: #{vqvae_forward.1} parent=95 // pred_check_branch
          %646 = sbr.rel (%p644) target = $region100
        $region99: #{vqvae_forward.1} parent=95 // pred_region
          %647 = dma.done [#allocation3], 16
        $region100: #{vqvae_forward.1} parent=95 // pred_fallthru
          _
        // Predicated region
        $region101: #{vqvae_forward.1} parent=95 // pred_check
          %p648 = pneg %p184
        $region102: #{vqvae_forward.1} parent=95 // pred_check_branch
          %650 = sbr.rel (%p648) target = $region104
        $region103: #{vqvae_forward.1} parent=95 // pred_region
          %651 = dma.done [#allocation5], 16
        $region104: #{vqvae_forward.1} parent=95 // pred_fallthru
          _
        // Predicated region
        $region105: #{vqvae_forward.1} parent=95 // pred_check
          %p652 = pneg %p226
        $region106: #{vqvae_forward.1} parent=95 // pred_check_branch
          %654 = sbr.rel (%p652) target = $region108
        $region107: #{vqvae_forward.1} parent=95 // pred_region
          %655 = dma.done [#allocation5], 16
        $region108: #{vqvae_forward.1} parent=95 // pred_fallthru
          _
        // Predicated region
        $region109: #{vqvae_forward.1} parent=95 // pred_check
          %p656 = pneg %p247
        $region110: #{vqvae_forward.1} parent=95 // pred_check_branch
          %658 = sbr.rel (%p656) target = $region112
        $region111: #{vqvae_forward.1} parent=95 // pred_region
          %659 = dma.done [#allocation8], 1024
        $region112: #{vqvae_forward.1} parent=95 // pred_fallthru
          _
        // Predicated region
        $region113: #{vqvae_forward.1} parent=95 // pred_check
          %p660 = pneg %p289
        $region114: #{vqvae_forward.1} parent=95 // pred_check_branch
          %662 = sbr.rel (%p660) target = $region116
        $region115: #{vqvae_forward.1} parent=95 // pred_region
          %663 = dma.done [#allocation8], 256
        $region116: #{vqvae_forward.1} parent=95 // pred_fallthru
          _
        // Predicated region
        $region117: #{vqvae_forward.1} parent=95 // pred_check
          %p664 = pneg %p310
        $region118: #{vqvae_forward.1} parent=95 // pred_check_branch
          %666 = sbr.rel (%p664) target = $region120
        $region119: #{vqvae_forward.1} parent=95 // pred_region
          %667 = dma.done [#allocation11], 16
        $region120: #{vqvae_forward.1} parent=95 // pred_fallthru
          _
        // Predicated region
        $region121: #{vqvae_forward.1} parent=95 // pred_check
          %p668 = pneg %p373
        $region122: #{vqvae_forward.1} parent=95 // pred_check_branch
          %670 = sbr.rel (%p668) target = $region124
        $region123: #{vqvae_forward.1} parent=95 // pred_region
          %671 = dma.done [#allocation11], 16
        $region124: #{vqvae_forward.1} parent=95 // pred_fallthru
          _
        // Predicated region
        $region125: #{vqvae_forward.1} parent=95 // pred_check
          %p672 = pneg %p436
        $region126: #{vqvae_forward.1} parent=95 // pred_check_branch
          %674 = sbr.rel (%p672) target = $region128
        $region127: #{vqvae_forward.1} parent=95 // pred_region
          %675 = dma.done [#allocation14], 64
        $region128: #{vqvae_forward.1} parent=95 // pred_fallthru
          _
        %p676 = scmp.lt.s32.totalorder %s37, 1
        %s677 = scalar_select %p676, %s37, 1
        %s678 = smul.addr %s677, 32
        %s679 = smul.addr %s678, 4
        %s680 = scalar_lea.vmem %s0, %s679
        %p681 = pneg %p58
        %p682 = pneg %p55
        %p683 = pneg %p79
        %p684 = pneg %p76
        %p685 = pneg %p100
        %p686 = pneg %p97
        %p687 = pneg %p121
        %p688 = pneg %p118
        %p689 = pneg %p142
        %p690 = pneg %p139
        %p691 = pneg %p163
        %p692 = pneg %p160
        %p693 = pneg %p184
        %p694 = pneg %p181
        %p695 = pneg %p205
        %p696 = pneg %p202
        %p697 = pneg %p226
        %p698 = pneg %p223
        %p699 = pneg %p247
        %p700 = pneg %p244
        %p701 = pneg %p268
        %p702 = pneg %p265
        %p703 = pneg %p289
        %p704 = pneg %p286
        %p705 = pneg %p310
        %p706 = pneg %p307
        %p707 = pneg %p331
        %p708 = pneg %p328
        %p709 = pneg %p352
        %p710 = pneg %p349
        %p711 = pneg %p373
        %p712 = pneg %p370
        %p713 = pneg %p394
        %p714 = pneg %p391
        %p715 = pneg %p415
        %p716 = pneg %p412
        %p717 = pneg %p436
        %p718 = pneg %p433
        %p719 = pneg %p462
        %p720 = pneg %p459
        %p721 = scmp.lt.s32.totalorder %s37, 1
        %s722 = scalar_select %p721, %s37, 1
        %s723 = smul.addr %s722, 2
        %s724 = smul.addr %s723, 4
        %s725 = scalar_lea.vmem %s19, %s724
        %p726 = pneg %p488
        %p727 = pneg %p485
        %p728 = scmp.lt.s32.totalorder %s37, 1
        %s729 = scalar_select %p728, %s37, 1
        %s730 = smul.addr %s729, 2
        %s731 = smul.addr %s730, 8
        %s732 = scalar_lea.vmem %s20, %s731
        %p733 = scmp.lt.s32.totalorder %s37, 1
        %s734 = scalar_select %p733, %s37, 1
        %s735 = smul.addr %s734, 32
        %s736 = smul.addr %s735, 4
        %s737 = scalar_lea.vmem %s0, %s736
        %p738 = scmp.lt.s32.totalorder %s37, 1
        %s739 = scalar_select %p738, %s37, 1
        %s740 = smul.addr %s739, 2
        %s741 = smul.addr %s740, 4
        %s742 = scalar_lea.vmem %s19, %s741
        %p743 = scmp.lt.s32.totalorder %s37, 1
        %s744 = scalar_select %p743, %s37, 1
        %s745 = smul.addr %s744, 2
        %s746 = smul.addr %s745, 8
        %s747 = scalar_lea.vmem %s20, %s746
        %v749 = vld [vmem:[%s737] sm:$0xf]
        %v750 = vld [vmem:[%s737 + $0x4] sm:$0xf]
        %v751 = vld [vmem:[%s737 + $0x8] sm:$0xf]
        %v752 = vld [vmem:[%s737 + $0xc] sm:$0xf]
        %v753 = vld [vmem:[%s737 + $0x10] sm:$0xf]
        %v754 = vld [vmem:[%s737 + $0x14] sm:$0xf]
        %v755 = vld [vmem:[%s737 + $0x18] sm:$0xf]
        %v756 = vld [vmem:[%s737 + $0x1c] sm:$0xf]
        %v757 = vld [vmem:[%s737 + $0x20] sm:$0xf]
        %v758 = vld [vmem:[%s737 + $0x24] sm:$0xf]
        %v759 = vld [vmem:[%s737 + $0x28] sm:$0xf]
        %v760 = vld [vmem:[%s737 + $0x2c] sm:$0xf]
        %v761 = vld [vmem:[%s737 + $0x30] sm:$0xf]
        %v762 = vld [vmem:[%s737 + $0x34] sm:$0xf]
        %v763 = vld [vmem:[%s737 + $0x38] sm:$0xf]
        %v764 = vld [vmem:[%s737 + $0x3c] sm:$0xf]
        %v765 = vld [vmem:[%s737 + $0x40] sm:$0xf]
        %v766 = vld [vmem:[%s737 + $0x44] sm:$0xf]
        %v767 = vld [vmem:[%s737 + $0x48] sm:$0xf]
        %v768 = vld [vmem:[%s737 + $0x4c] sm:$0xf]
        %v769 = vld [vmem:[%s737 + $0x50] sm:$0xf]
        %v770 = vld [vmem:[%s737 + $0x54] sm:$0xf]
        %v771 = vld [vmem:[%s737 + $0x58] sm:$0xf]
        %v772 = vld [vmem:[%s737 + $0x5c] sm:$0xf]
        %v773 = vld [vmem:[%s737 + $0x60] sm:$0xf]
        %v774 = vld [vmem:[%s737 + $0x64] sm:$0xf]
        %v775 = vld [vmem:[%s737 + $0x68] sm:$0xf]
        %v776 = vld [vmem:[%s737 + $0x6c] sm:$0xf]
        %v777 = vld [vmem:[%s737 + $0x70] sm:$0xf]
        %v778 = vld [vmem:[%s737 + $0x74] sm:$0xf]
        %v779 = vld [vmem:[%s737 + $0x78] sm:$0xf]
        %v780 = vld [vmem:[%s737 + $0x7c] sm:$0xf]
        %v781 = vld [vmem:[%s1] sm:$0xff]
        %v782 = vld [vmem:[%s1 + $0x8] sm:$0xff]
        %v783 = vld [vmem:[%s1 + $0x10] sm:$0xff]
        %v784 = vld [vmem:[%s1 + $0x18] sm:$0xff]
        %v785 = vld [vmem:[%s1 + $0x20] sm:$0xff]
        %v786 = vld [vmem:[%s1 + $0x28] sm:$0xff]
        %v787 = vld [vmem:[%s1 + $0x30] sm:$0xff]
        %v788 = vld [vmem:[%s1 + $0x38] sm:$0xff]
        %v797 = vunpack.c.l.b16 %v781
        %v798 = vunpack.c.h.b16 %v781
        %v799 = vunpack.c.l.b16 %v782
        %v800 = vunpack.c.h.b16 %v782
        %v801 = vunpack.c.l.b16 %v783
        %v802 = vunpack.c.h.b16 %v783
        %v803 = vunpack.c.l.b16 %v784
        %v804 = vunpack.c.h.b16 %v784
        %v805 = vunpack.c.l.b16 %v785
        %v806 = vunpack.c.h.b16 %v785
        %v807 = vunpack.c.l.b16 %v786
        %v808 = vunpack.c.h.b16 %v786
        %v809 = vunpack.c.l.b16 %v787
        %v810 = vunpack.c.h.b16 %v787
        %v811 = vunpack.c.l.b16 %v788
        %v812 = vunpack.c.h.b16 %v788
        %v813 = vpack.c.b16 %v799, %v797
        %v814 = vpack.c.b16 %v800, %v798
        %v815 = vpack.c.b16 %v803, %v801
        %v816 = vpack.c.b16 %v804, %v802
        %v817 = vpack.c.b16 %v807, %v805
        %v818 = vpack.c.b16 %v808, %v806
        %v819 = vpack.c.b16 %v811, %v809
        %v820 = vpack.c.b16 %v812, %v810
        %v861 = vunpack.c.l.b16 %v749
        %v862 = vunpack.c.l.b16 %v750
        %v863 = vunpack.c.l.b16 %v751
        %v864 = vunpack.c.l.b16 %v752
        %v865 = vunpack.c.l.b16 %v753
        %v866 = vunpack.c.l.b16 %v754
        %v867 = vunpack.c.l.b16 %v755
        %v868 = vunpack.c.l.b16 %v756
        %v869 = vunpack.c.l.b16 %v757
        %v870 = vunpack.c.l.b16 %v758
        %v871 = vunpack.c.l.b16 %v759
        %v872 = vunpack.c.l.b16 %v760
        %v873 = vunpack.c.l.b16 %v761
        %v874 = vunpack.c.l.b16 %v762
        %v875 = vunpack.c.l.b16 %v763
        %v876 = vunpack.c.l.b16 %v764
        %v877 = vunpack.c.l.b16 %v765
        %v878 = vunpack.c.l.b16 %v766
        %v879 = vunpack.c.l.b16 %v767
        %v880 = vunpack.c.l.b16 %v768
        %v881 = vunpack.c.l.b16 %v769
        %v882 = vunpack.c.l.b16 %v770
        %v883 = vunpack.c.l.b16 %v771
        %v884 = vunpack.c.l.b16 %v772
        %v885 = vunpack.c.l.b16 %v773
        %v886 = vunpack.c.l.b16 %v774
        %v887 = vunpack.c.l.b16 %v775
        %v888 = vunpack.c.l.b16 %v776
        %v889 = vunpack.c.l.b16 %v777
        %v890 = vunpack.c.l.b16 %v778
        %v891 = vunpack.c.l.b16 %v779
        %v892 = vunpack.c.l.b16 %v780
        %v893 = vpack.c.b16 %v862, %v861
        %v894 = vpack.c.b16 %v864, %v863
        %v895 = vpack.c.b16 %v866, %v865
        %v896 = vpack.c.b16 %v868, %v867
        %v897 = vpack.c.b16 %v870, %v869
        %v898 = vpack.c.b16 %v872, %v871
        %v899 = vpack.c.b16 %v874, %v873
        %v900 = vpack.c.b16 %v876, %v875
        %v901 = vpack.c.b16 %v878, %v877
        %v902 = vpack.c.b16 %v880, %v879
        %v903 = vpack.c.b16 %v882, %v881
        %v904 = vpack.c.b16 %v884, %v883
        %v905 = vpack.c.b16 %v886, %v885
        %v906 = vpack.c.b16 %v888, %v887
        %v907 = vpack.c.b16 %v890, %v889
        %v908 = vpack.c.b16 %v892, %v891
        %925 = vmatprep.subr.bf16.mxu0 0
        %926 = vmatpush1.bf16.msra.mxu0 %v893
        %927 = vmatprep.subr.bf16.mxu0 0
        %928 = vmatpush1.bf16.msra.mxu0 %v894
        %929 = vmatprep.subr.bf16.mxu0 0
        %930 = vmatpush1.bf16.msra.mxu0 %v895
        %931 = vmatprep.subr.bf16.mxu0 0
        %932 = vmatpush1.bf16.msra.mxu0 %v896
        %933 = vmatprep.subr.bf16.mxu0 0
        %934 = vmatpush1.bf16.msra.mxu0 %v897
        %935 = vmatprep.subr.bf16.mxu0 0
        %936 = vmatpush1.bf16.msra.mxu0 %v898
        %937 = vmatprep.subr.bf16.mxu0 0
        %938 = vmatpush1.bf16.msra.mxu0 %v899
        %939 = vmatprep.subr.bf16.mxu0 0
        %940 = vmatpush1.bf16.msra.mxu0 %v900
        %941 = vmatprep.subr.bf16.mxu0 0
        %942 = vmatpush1.bf16.msra.mxu0 %v901
        %943 = vmatprep.subr.bf16.mxu0 0
        %944 = vmatpush1.bf16.msra.mxu0 %v902
        %945 = vmatprep.subr.bf16.mxu0 0
        %946 = vmatpush1.bf16.msra.mxu0 %v903
        %947 = vmatprep.subr.bf16.mxu0 0
        %948 = vmatpush1.bf16.msra.mxu0 %v904
        %949 = vmatprep.subr.bf16.mxu0 0
        %950 = vmatpush1.bf16.msra.mxu0 %v905
        %951 = vmatprep.subr.bf16.mxu0 0
        %952 = vmatpush1.bf16.msra.mxu0 %v906
        %953 = vmatprep.subr.bf16.mxu0 0
        %954 = vmatpush1.bf16.msra.mxu0 %v907
        %955 = vmatprep.subr.bf16.mxu0 0
        %956 = vmatpush1.bf16.msra.mxu0 %v908
        %957 = vmatprep.mubr.bf16.mxu0 %v814
        %958 = vmatmul.mubr.bf16.gmra.mrb[0].mxu0 %v813
        %v959 = vpop.f32.mrb[0].mxu0
        %v960 = vadd.f32 0.0, %v959
        %v961 = vpop.f32.mrb[0].mxu0
        %v962 = vpop.f32.mrb[0].mxu0
        %v963 = vadd.f32 0.0, %v962
        %v964 = vpop.f32.mrb[0].mxu0
        %965 = vmatprep.mubr.bf16.mxu0 %v816
        %966 = vmatmul.mubr.bf16.gmra.mrb[0].mxu0 %v815
        %v967 = vpop.f32.mrb[0].mxu0
        %v968 = vadd.f32 0.0, %v967
        %v969 = vpop.f32.mrb[0].mxu0
        %v970 = vpop.f32.mrb[0].mxu0
        %v971 = vadd.f32 0.0, %v970
        %v972 = vpop.f32.mrb[0].mxu0
        %973 = vmatprep.mubr.bf16.mxu0 %v818
        %974 = vmatmul.mubr.bf16.gmra.mrb[0].mxu0 %v817
        %v975 = vpop.f32.mrb[0].mxu0
        %v976 = vadd.f32 0.0, %v975
        %v977 = vpop.f32.mrb[0].mxu0
        %v978 = vpop.f32.mrb[0].mxu0
        %v979 = vadd.f32 0.0, %v978
        %v980 = vpop.f32.mrb[0].mxu0
        %981 = vmatprep.mubr.bf16.mxu0 %v820
        %982 = vmatmul.mubr.bf16.gmra.mrb[0].mxu0 %v819
        %v983 = vpop.f32.mrb[0].mxu0
        %v984 = vadd.f32 0.0, %v983
        %v985 = vpop.f32.mrb[0].mxu0
        %v986 = vpop.f32.mrb[0].mxu0
        %v987 = vadd.f32 0.0, %v986
        %v988 = vpop.f32.mrb[0].mxu0
        %989 = vdwg.mxu0
        %v990 = vpack.c.bf16 %v963, %v960
        %v991 = vpack.c.bf16 %v971, %v968
        %v992 = vpack.c.bf16 %v979, %v976
        %v993 = vpack.c.bf16 %v987, %v984
        %s994 = scalar_lea.vmem %s1, 64
        %v995 = vld [vmem:[%s994] sm:$0xff]
        %v996 = vld [vmem:[%s994 + $0x8] sm:$0xff]
        %v997 = vld [vmem:[%s994 + $0x10] sm:$0xff]
        %v998 = vld [vmem:[%s994 + $0x18] sm:$0xff]
        %v999 = vld [vmem:[%s994 + $0x20] sm:$0xff]
        %v1000 = vld [vmem:[%s994 + $0x28] sm:$0xff]
        %v1001 = vld [vmem:[%s994 + $0x30] sm:$0xff]
        %v1002 = vld [vmem:[%s994 + $0x38] sm:$0xff]
        %v1011 = vunpack.c.l.b16 %v995
        %v1012 = vunpack.c.h.b16 %v995
        %v1013 = vunpack.c.l.b16 %v996
        %v1014 = vunpack.c.h.b16 %v996
        %v1015 = vunpack.c.l.b16 %v997
        %v1016 = vunpack.c.h.b16 %v997
        %v1017 = vunpack.c.l.b16 %v998
        %v1018 = vunpack.c.h.b16 %v998
        %v1019 = vunpack.c.l.b16 %v999
        %v1020 = vunpack.c.h.b16 %v999
        %v1021 = vunpack.c.l.b16 %v1000
        %v1022 = vunpack.c.h.b16 %v1000
        %v1023 = vunpack.c.l.b16 %v1001
        %v1024 = vunpack.c.h.b16 %v1001
        %v1025 = vunpack.c.l.b16 %v1002
        %v1026 = vunpack.c.h.b16 %v1002
        %v1027 = vpack.c.b16 %v1013, %v1011
        %v1028 = vpack.c.b16 %v1014, %v1012
        %v1029 = vpack.c.b16 %v1017, %v1015
        %v1030 = vpack.c.b16 %v1018, %v1016
        %v1031 = vpack.c.b16 %v1021, %v1019
        %v1032 = vpack.c.b16 %v1022, %v1020
        %v1033 = vpack.c.b16 %v1025, %v1023
        %v1034 = vpack.c.b16 %v1026, %v1024
        %1043 = vmatprep.subr.bf16.mxu0 0
        %1044 = vmatpush1.bf16.msra.mxu0 %v893
        %1045 = vmatprep.subr.bf16.mxu0 0
        %1046 = vmatpush1.bf16.msra.mxu0 %v894
        %1047 = vmatprep.subr.bf16.mxu0 0
        %1048 = vmatpush1.bf16.msra.mxu0 %v895
        %1049 = vmatprep.subr.bf16.mxu0 0
        %1050 = vmatpush1.bf16.msra.mxu0 %v896
        %1051 = vmatprep.subr.bf16.mxu0 0
        %1052 = vmatpush1.bf16.msra.mxu0 %v897
        %1053 = vmatprep.subr.bf16.mxu0 0
        %1054 = vmatpush1.bf16.msra.mxu0 %v898
        %1055 = vmatprep.subr.bf16.mxu0 0
        %1056 = vmatpush1.bf16.msra.mxu0 %v899
        %1057 = vmatprep.subr.bf16.mxu0 0
        %1058 = vmatpush1.bf16.msra.mxu0 %v900
        %1059 = vmatprep.subr.bf16.mxu0 0
        %1060 = vmatpush1.bf16.msra.mxu0 %v901
        %1061 = vmatprep.subr.bf16.mxu0 0
        %1062 = vmatpush1.bf16.msra.mxu0 %v902
        %1063 = vmatprep.subr.bf16.mxu0 0
        %1064 = vmatpush1.bf16.msra.mxu0 %v903
        %1065 = vmatprep.subr.bf16.mxu0 0
        %1066 = vmatpush1.bf16.msra.mxu0 %v904
        %1067 = vmatprep.subr.bf16.mxu0 0
        %1068 = vmatpush1.bf16.msra.mxu0 %v905
        %1069 = vmatprep.subr.bf16.mxu0 0
        %1070 = vmatpush1.bf16.msra.mxu0 %v906
        %1071 = vmatprep.subr.bf16.mxu0 0
        %1072 = vmatpush1.bf16.msra.mxu0 %v907
        %1073 = vmatprep.subr.bf16.mxu0 0
        %1074 = vmatpush1.bf16.msra.mxu0 %v908
        %1075 = vmatprep.mubr.bf16.mxu0 %v1028
        %1076 = vmatmul.mubr.bf16.gmra.mrb[0].mxu0 %v1027
        %v1077 = vpop.f32.mrb[0].mxu0
        %v1078 = vadd.f32 0.0, %v1077
        %v1079 = vpop.f32.mrb[0].mxu0
        %v1080 = vpop.f32.mrb[0].mxu0
        %v1081 = vadd.f32 0.0, %v1080
        %v1082 = vpop.f32.mrb[0].mxu0
        %1083 = vmatprep.mubr.bf16.mxu0 %v1030
        %1084 = vmatmul.mubr.bf16.gmra.mrb[0].mxu0 %v1029
        %v1085 = vpop.f32.mrb[0].mxu0
        %v1086 = vadd.f32 0.0, %v1085
        %v1087 = vpop.f32.mrb[0].mxu0
        %v1088 = vpop.f32.mrb[0].mxu0
        %v1089 = vadd.f32 0.0, %v1088
        %v1090 = vpop.f32.mrb[0].mxu0
        %1091 = vmatprep.mubr.bf16.mxu0 %v1032
        %1092 = vmatmul.mubr.bf16.gmra.mrb[0].mxu0 %v1031
        %v1093 = vpop.f32.mrb[0].mxu0
        %v1094 = vadd.f32 0.0, %v1093
        %v1095 = vpop.f32.mrb[0].mxu0
        %v1096 = vpop.f32.mrb[0].mxu0
        %v1097 = vadd.f32 0.0, %v1096
        %v1098 = vpop.f32.mrb[0].mxu0
        %1099 = vmatprep.mubr.bf16.mxu0 %v1034
        %1100 = vmatmul.mubr.bf16.gmra.mrb[0].mxu0 %v1033
        %v1101 = vpop.f32.mrb[0].mxu0
        %v1102 = vadd.f32 0.0, %v1101
        %v1103 = vpop.f32.mrb[0].mxu0
        %v1104 = vpop.f32.mrb[0].mxu0
        %v1105 = vadd.f32 0.0, %v1104
        %v1106 = vpop.f32.mrb[0].mxu0
        %1107 = vdwg.mxu0
        %v1108 = vpack.c.bf16 %v1081, %v1078
        %v1109 = vpack.c.bf16 %v1089, %v1086
        %v1110 = vpack.c.bf16 %v1097, %v1094
        %v1111 = vpack.c.bf16 %v1105, %v1102
        %s1112 = scalar_lea.vmem %s1, 128
        %v1113 = vld [vmem:[%s1112] sm:$0xff]
        %v1114 = vld [vmem:[%s1112 + $0x8] sm:$0xff]
        %v1115 = vld [vmem:[%s1112 + $0x10] sm:$0xff]
        %v1116 = vld [vmem:[%s1112 + $0x18] sm:$0xff]
        %v1117 = vld [vmem:[%s1112 + $0x20] sm:$0xff]
        %v1118 = vld [vmem:[%s1112 + $0x28] sm:$0xff]
        %v1119 = vld [vmem:[%s1112 + $0x30] sm:$0xff]
        %v1120 = vld [vmem:[%s1112 + $0x38] sm:$0xff]
        %v1129 = vunpack.c.l.b16 %v1113
        %v1130 = vunpack.c.h.b16 %v1113
        %v1131 = vunpack.c.l.b16 %v1114
        %v1132 = vunpack.c.h.b16 %v1114
        %v1133 = vunpack.c.l.b16 %v1115
        %v1134 = vunpack.c.h.b16 %v1115
        %v1135 = vunpack.c.l.b16 %v1116
        %v1136 = vunpack.c.h.b16 %v1116
        %v1137 = vunpack.c.l.b16 %v1117
        %v1138 = vunpack.c.h.b16 %v1117
        %v1139 = vunpack.c.l.b16 %v1118
        %v1140 = vunpack.c.h.b16 %v1118
        %v1141 = vunpack.c.l.b16 %v1119
        %v1142 = vunpack.c.h.b16 %v1119
        %v1143 = vunpack.c.l.b16 %v1120
        %v1144 = vunpack.c.h.b16 %v1120
        %v1145 = vpack.c.b16 %v1131, %v1129
        %v1146 = vpack.c.b16 %v1132, %v1130
        %v1147 = vpack.c.b16 %v1135, %v1133
        %v1148 = vpack.c.b16 %v1136, %v1134
        %v1149 = vpack.c.b16 %v1139, %v1137
        %v1150 = vpack.c.b16 %v1140, %v1138
        %v1151 = vpack.c.b16 %v1143, %v1141
        %v1152 = vpack.c.b16 %v1144, %v1142
        %1161 = vmatprep.subr.bf16.mxu0 0
        %1162 = vmatpush1.bf16.msra.mxu0 %v893
        %1163 = vmatprep.subr.bf16.mxu0 0
        %1164 = vmatpush1.bf16.msra.mxu0 %v894
        %1165 = vmatprep.subr.bf16.mxu0 0
        %1166 = vmatpush1.bf16.msra.mxu0 %v895
        %1167 = vmatprep.subr.bf16.mxu0 0
        %1168 = vmatpush1.bf16.msra.mxu0 %v896
        %1169 = vmatprep.subr.bf16.mxu0 0
        %1170 = vmatpush1.bf16.msra.mxu0 %v897
        %1171 = vmatprep.subr.bf16.mxu0 0
        %1172 = vmatpush1.bf16.msra.mxu0 %v898
        %1173 = vmatprep.subr.bf16.mxu0 0
        %1174 = vmatpush1.bf16.msra.mxu0 %v899
        %1175 = vmatprep.subr.bf16.mxu0 0
        %1176 = vmatpush1.bf16.msra.mxu0 %v900
        %1177 = vmatprep.subr.bf16.mxu0 0
        %1178 = vmatpush1.bf16.msra.mxu0 %v901
        %1179 = vmatprep.subr.bf16.mxu0 0
        %1180 = vmatpush1.bf16.msra.mxu0 %v902
        %1181 = vmatprep.subr.bf16.mxu0 0
        %1182 = vmatpush1.bf16.msra.mxu0 %v903
        %1183 = vmatprep.subr.bf16.mxu0 0
        %1184 = vmatpush1.bf16.msra.mxu0 %v904
        %1185 = vmatprep.subr.bf16.mxu0 0
        %1186 = vmatpush1.bf16.msra.mxu0 %v905
        %1187 = vmatprep.subr.bf16.mxu0 0
        %1188 = vmatpush1.bf16.msra.mxu0 %v906
        %1189 = vmatprep.subr.bf16.mxu0 0
        %1190 = vmatpush1.bf16.msra.mxu0 %v907
        %1191 = vmatprep.subr.bf16.mxu0 0
        %1192 = vmatpush1.bf16.msra.mxu0 %v908
        %1193 = vmatprep.mubr.bf16.mxu0 %v1146
        %1194 = vmatmul.mubr.bf16.gmra.mrb[0].mxu0 %v1145
        %v1195 = vpop.f32.mrb[0].mxu0
        %v1196 = vadd.f32 0.0, %v1195
        %v1197 = vpop.f32.mrb[0].mxu0
        %v1198 = vpop.f32.mrb[0].mxu0
        %v1199 = vadd.f32 0.0, %v1198
        %v1200 = vpop.f32.mrb[0].mxu0
        %1201 = vmatprep.mubr.bf16.mxu0 %v1148
        %1202 = vmatmul.mubr.bf16.gmra.mrb[0].mxu0 %v1147
        %v1203 = vpop.f32.mrb[0].mxu0
        %v1204 = vadd.f32 0.0, %v1203
        %v1205 = vpop.f32.mrb[0].mxu0
        %v1206 = vpop.f32.mrb[0].mxu0
        %v1207 = vadd.f32 0.0, %v1206
        %v1208 = vpop.f32.mrb[0].mxu0
        %1209 = vmatprep.mubr.bf16.mxu0 %v1150
        %1210 = vmatmul.mubr.bf16.gmra.mrb[0].mxu0 %v1149
        %v1211 = vpop.f32.mrb[0].mxu0
        %v1212 = vadd.f32 0.0, %v1211
        %v1213 = vpop.f32.mrb[0].mxu0
        %v1214 = vpop.f32.mrb[0].mxu0
        %v1215 = vadd.f32 0.0, %v1214
        %v1216 = vpop.f32.mrb[0].mxu0
        %1217 = vmatprep.mubr.bf16.mxu0 %v1152
        %1218 = vmatmul.mubr.bf16.gmra.mrb[0].mxu0 %v1151
        %v1219 = vpop.f32.mrb[0].mxu0
        %v1220 = vadd.f32 0.0, %v1219
        %v1221 = vpop.f32.mrb[0].mxu0
        %v1222 = vpop.f32.mrb[0].mxu0
        %v1223 = vadd.f32 0.0, %v1222
        %v1224 = vpop.f32.mrb[0].mxu0
        %1225 = vdwg.mxu0
        %v1226 = vpack.c.bf16 %v1199, %v1196
        %v1227 = vpack.c.bf16 %v1207, %v1204
        %v1228 = vpack.c.bf16 %v1215, %v1212
        %v1229 = vpack.c.bf16 %v1223, %v1220
        %s1230 = scalar_lea.vmem %s1, 192
        %v1231 = vld [vmem:[%s1230] sm:$0xff]
        %v1232 = vld [vmem:[%s1230 + $0x8] sm:$0xff]
        %v1233 = vld [vmem:[%s1230 + $0x10] sm:$0xff]
        %v1234 = vld [vmem:[%s1230 + $0x18] sm:$0xff]
        %v1235 = vld [vmem:[%s1230 + $0x20] sm:$0xff]
        %v1236 = vld [vmem:[%s1230 + $0x28] sm:$0xff]
        %v1237 = vld [vmem:[%s1230 + $0x30] sm:$0xff]
        %v1238 = vld [vmem:[%s1230 + $0x38] sm:$0xff]
        %v1247 = vunpack.c.l.b16 %v1231
        %v1248 = vunpack.c.h.b16 %v1231
        %v1249 = vunpack.c.l.b16 %v1232
        %v1250 = vunpack.c.h.b16 %v1232
        %v1251 = vunpack.c.l.b16 %v1233
        %v1252 = vunpack.c.h.b16 %v1233
        %v1253 = vunpack.c.l.b16 %v1234
        %v1254 = vunpack.c.h.b16 %v1234
        %v1255 = vunpack.c.l.b16 %v1235
        %v1256 = vunpack.c.h.b16 %v1235
        %v1257 = vunpack.c.l.b16 %v1236
        %v1258 = vunpack.c.h.b16 %v1236
        %v1259 = vunpack.c.l.b16 %v1237
        %v1260 = vunpack.c.h.b16 %v1237
        %v1261 = vunpack.c.l.b16 %v1238
        %v1262 = vunpack.c.h.b16 %v1238
        %v1263 = vpack.c.b16 %v1249, %v1247
        %v1264 = vpack.c.b16 %v1250, %v1248
        %v1265 = vpack.c.b16 %v1253, %v1251
        %v1266 = vpack.c.b16 %v1254, %v1252
        %v1267 = vpack.c.b16 %v1257, %v1255
        %v1268 = vpack.c.b16 %v1258, %v1256
        %v1269 = vpack.c.b16 %v1261, %v1259
        %v1270 = vpack.c.b16 %v1262, %v1260
        %1279 = vmatprep.subr.bf16.mxu0 0
        %1280 = vmatpush1.bf16.msra.mxu0 %v893
        %1281 = vmatprep.subr.bf16.mxu0 0
        %1282 = vmatpush1.bf16.msra.mxu0 %v894
        %1283 = vmatprep.subr.bf16.mxu0 0
        %1284 = vmatpush1.bf16.msra.mxu0 %v895
        %1285 = vmatprep.subr.bf16.mxu0 0
        %1286 = vmatpush1.bf16.msra.mxu0 %v896
        %1287 = vmatprep.subr.bf16.mxu0 0
        %1288 = vmatpush1.bf16.msra.mxu0 %v897
        %1289 = vmatprep.subr.bf16.mxu0 0
        %1290 = vmatpush1.bf16.msra.mxu0 %v898
        %1291 = vmatprep.subr.bf16.mxu0 0
        %1292 = vmatpush1.bf16.msra.mxu0 %v899
        %1293 = vmatprep.subr.bf16.mxu0 0
        %1294 = vmatpush1.bf16.msra.mxu0 %v900
        %1295 = vmatprep.subr.bf16.mxu0 0
        %1296 = vmatpush1.bf16.msra.mxu0 %v901
        %1297 = vmatprep.subr.bf16.mxu0 0
        %1298 = vmatpush1.bf16.msra.mxu0 %v902
        %1299 = vmatprep.subr.bf16.mxu0 0
        %1300 = vmatpush1.bf16.msra.mxu0 %v903
        %1301 = vmatprep.subr.bf16.mxu0 0
        %1302 = vmatpush1.bf16.msra.mxu0 %v904
        %1303 = vmatprep.subr.bf16.mxu0 0
        %1304 = vmatpush1.bf16.msra.mxu0 %v905
        %1305 = vmatprep.subr.bf16.mxu0 0
        %1306 = vmatpush1.bf16.msra.mxu0 %v906
        %1307 = vmatprep.subr.bf16.mxu0 0
        %1308 = vmatpush1.bf16.msra.mxu0 %v907
        %1309 = vmatprep.subr.bf16.mxu0 0
        %1310 = vmatpush1.bf16.msra.mxu0 %v908
        %1311 = vmatprep.mubr.bf16.mxu0 %v1264
        %1312 = vmatmul.mubr.bf16.gmra.mrb[0].mxu0 %v1263
        %v1313 = vpop.f32.mrb[0].mxu0
        %v1314 = vadd.f32 0.0, %v1313
        %v1315 = vpop.f32.mrb[0].mxu0
        %v1316 = vpop.f32.mrb[0].mxu0
        %v1317 = vadd.f32 0.0, %v1316
        %v1318 = vpop.f32.mrb[0].mxu0
        %1319 = vmatprep.mubr.bf16.mxu0 %v1266
        %1320 = vmatmul.mubr.bf16.gmra.mrb[0].mxu0 %v1265
        %v1321 = vpop.f32.mrb[0].mxu0
        %v1322 = vadd.f32 0.0, %v1321
        %v1323 = vpop.f32.mrb[0].mxu0
        %v1324 = vpop.f32.mrb[0].mxu0
        %v1325 = vadd.f32 0.0, %v1324
        %v1326 = vpop.f32.mrb[0].mxu0
        %1327 = vmatprep.mubr.bf16.mxu0 %v1268
        %1328 = vmatmul.mubr.bf16.gmra.mrb[0].mxu0 %v1267
        %v1329 = vpop.f32.mrb[0].mxu0
        %v1330 = vadd.f32 0.0, %v1329
        %v1331 = vpop.f32.mrb[0].mxu0
        %v1332 = vpop.f32.mrb[0].mxu0
        %v1333 = vadd.f32 0.0, %v1332
        %v1334 = vpop.f32.mrb[0].mxu0
        %1335 = vmatprep.mubr.bf16.mxu0 %v1270
        %1336 = vmatmul.mubr.bf16.gmra.mrb[0].mxu0 %v1269
        %v1337 = vpop.f32.mrb[0].mxu0
        %v1338 = vadd.f32 0.0, %v1337
        %v1339 = vpop.f32.mrb[0].mxu0
        %v1340 = vpop.f32.mrb[0].mxu0
        %v1341 = vadd.f32 0.0, %v1340
        %v1342 = vpop.f32.mrb[0].mxu0
        %1343 = vdwg.mxu0
        %v1344 = vpack.c.bf16 %v1317, %v1314
        %v1345 = vpack.c.bf16 %v1325, %v1322
        %v1346 = vpack.c.bf16 %v1333, %v1330
        %v1347 = vpack.c.bf16 %v1341, %v1338
        %s1348 = scalar_lea.vmem %s1, 256
        %v1349 = vld [vmem:[%s1348] sm:$0xff]
        %v1350 = vld [vmem:[%s1348 + $0x8] sm:$0xff]
        %v1351 = vld [vmem:[%s1348 + $0x10] sm:$0xff]
        %v1352 = vld [vmem:[%s1348 + $0x18] sm:$0xff]
        %v1353 = vld [vmem:[%s1348 + $0x20] sm:$0xff]
        %v1354 = vld [vmem:[%s1348 + $0x28] sm:$0xff]
        %v1355 = vld [vmem:[%s1348 + $0x30] sm:$0xff]
        %v1356 = vld [vmem:[%s1348 + $0x38] sm:$0xff]
        %v1365 = vunpack.c.l.b16 %v1349
        %v1366 = vunpack.c.h.b16 %v1349
        %v1367 = vunpack.c.l.b16 %v1350
        %v1368 = vunpack.c.h.b16 %v1350
        %v1369 = vunpack.c.l.b16 %v1351
        %v1370 = vunpack.c.h.b16 %v1351
        %v1371 = vunpack.c.l.b16 %v1352
        %v1372 = vunpack.c.h.b16 %v1352
        %v1373 = vunpack.c.l.b16 %v1353
        %v1374 = vunpack.c.h.b16 %v1353
        %v1375 = vunpack.c.l.b16 %v1354
        %v1376 = vunpack.c.h.b16 %v1354
        %v1377 = vunpack.c.l.b16 %v1355
        %v1378 = vunpack.c.h.b16 %v1355
        %v1379 = vunpack.c.l.b16 %v1356
        %v1380 = vunpack.c.h.b16 %v1356
        %v1381 = vpack.c.b16 %v1367, %v1365
        %v1382 = vpack.c.b16 %v1368, %v1366
        %v1383 = vpack.c.b16 %v1371, %v1369
        %v1384 = vpack.c.b16 %v1372, %v1370
        %v1385 = vpack.c.b16 %v1375, %v1373
        %v1386 = vpack.c.b16 %v1376, %v1374
        %v1387 = vpack.c.b16 %v1379, %v1377
        %v1388 = vpack.c.b16 %v1380, %v1378
        %1397 = vmatprep.subr.bf16.mxu0 0
        %1398 = vmatpush1.bf16.msra.mxu0 %v893
        %1399 = vmatprep.subr.bf16.mxu0 0
        %1400 = vmatpush1.bf16.msra.mxu0 %v894
        %1401 = vmatprep.subr.bf16.mxu0 0
        %1402 = vmatpush1.bf16.msra.mxu0 %v895
        %1403 = vmatprep.subr.bf16.mxu0 0
        %1404 = vmatpush1.bf16.msra.mxu0 %v896
        %1405 = vmatprep.subr.bf16.mxu0 0
        %1406 = vmatpush1.bf16.msra.mxu0 %v897
        %1407 = vmatprep.subr.bf16.mxu0 0
        %1408 = vmatpush1.bf16.msra.mxu0 %v898
        %1409 = vmatprep.subr.bf16.mxu0 0
        %1410 = vmatpush1.bf16.msra.mxu0 %v899
        %1411 = vmatprep.subr.bf16.mxu0 0
        %1412 = vmatpush1.bf16.msra.mxu0 %v900
        %1413 = vmatprep.subr.bf16.mxu0 0
        %1414 = vmatpush1.bf16.msra.mxu0 %v901
        %1415 = vmatprep.subr.bf16.mxu0 0
        %1416 = vmatpush1.bf16.msra.mxu0 %v902
        %1417 = vmatprep.subr.bf16.mxu0 0
        %1418 = vmatpush1.bf16.msra.mxu0 %v903
        %1419 = vmatprep.subr.bf16.mxu0 0
        %1420 = vmatpush1.bf16.msra.mxu0 %v904
        %1421 = vmatprep.subr.bf16.mxu0 0
        %1422 = vmatpush1.bf16.msra.mxu0 %v905
        %1423 = vmatprep.subr.bf16.mxu0 0
        %1424 = vmatpush1.bf16.msra.mxu0 %v906
        %1425 = vmatprep.subr.bf16.mxu0 0
        %1426 = vmatpush1.bf16.msra.mxu0 %v907
        %1427 = vmatprep.subr.bf16.mxu0 0
        %1428 = vmatpush1.bf16.msra.mxu0 %v908
        %1429 = vmatprep.mubr.bf16.mxu0 %v1382
        %1430 = vmatmul.mubr.bf16.gmra.mrb[0].mxu0 %v1381
        %v1431 = vpop.f32.mrb[0].mxu0
        %v1432 = vadd.f32 0.0, %v1431
        %v1433 = vpop.f32.mrb[0].mxu0
        %v1434 = vpop.f32.mrb[0].mxu0
        %v1435 = vadd.f32 0.0, %v1434
        %v1436 = vpop.f32.mrb[0].mxu0
        %1437 = vmatprep.mubr.bf16.mxu0 %v1384
        %1438 = vmatmul.mubr.bf16.gmra.mrb[0].mxu0 %v1383
        %v1439 = vpop.f32.mrb[0].mxu0
        %v1440 = vadd.f32 0.0, %v1439
        %v1441 = vpop.f32.mrb[0].mxu0
        %v1442 = vpop.f32.mrb[0].mxu0
        %v1443 = vadd.f32 0.0, %v1442
        %v1444 = vpop.f32.mrb[0].mxu0
        %1445 = vmatprep.mubr.bf16.mxu0 %v1386
        %1446 = vmatmul.mubr.bf16.gmra.mrb[0].mxu0 %v1385
        %v1447 = vpop.f32.mrb[0].mxu0
        %v1448 = vadd.f32 0.0, %v1447
        %v1449 = vpop.f32.mrb[0].mxu0
        %v1450 = vpop.f32.mrb[0].mxu0
        %v1451 = vadd.f32 0.0, %v1450
        %v1452 = vpop.f32.mrb[0].mxu0
        %1453 = vmatprep.mubr.bf16.mxu0 %v1388
        %1454 = vmatmul.mubr.bf16.gmra.mrb[0].mxu0 %v1387
        %v1455 = vpop.f32.mrb[0].mxu0
        %v1456 = vadd.f32 0.0, %v1455
        %v1457 = vpop.f32.mrb[0].mxu0
        %v1458 = vpop.f32.mrb[0].mxu0
        %v1459 = vadd.f32 0.0, %v1458
        %v1460 = vpop.f32.mrb[0].mxu0
        %1461 = vdwg.mxu0
        %v1462 = vpack.c.bf16 %v1435, %v1432
        %v1463 = vpack.c.bf16 %v1443, %v1440
        %v1464 = vpack.c.bf16 %v1451, %v1448
        %v1465 = vpack.c.bf16 %v1459, %v1456
        %s1466 = scalar_lea.vmem %s1, 320
        %v1467 = vld [vmem:[%s1466] sm:$0xff]
        %v1468 = vld [vmem:[%s1466 + $0x8] sm:$0xff]
        %v1469 = vld [vmem:[%s1466 + $0x10] sm:$0xff]
        %v1470 = vld [vmem:[%s1466 + $0x18] sm:$0xff]
        %v1471 = vld [vmem:[%s1466 + $0x20] sm:$0xff]
        %v1472 = vld [vmem:[%s1466 + $0x28] sm:$0xff]
        %v1473 = vld [vmem:[%s1466 + $0x30] sm:$0xff]
        %v1474 = vld [vmem:[%s1466 + $0x38] sm:$0xff]
        %v1483 = vunpack.c.l.b16 %v1467
        %v1484 = vunpack.c.h.b16 %v1467
        %v1485 = vunpack.c.l.b16 %v1468
        %v1486 = vunpack.c.h.b16 %v1468
        %v1487 = vunpack.c.l.b16 %v1469
        %v1488 = vunpack.c.h.b16 %v1469
        %v1489 = vunpack.c.l.b16 %v1470
        %v1490 = vunpack.c.h.b16 %v1470
        %v1491 = vunpack.c.l.b16 %v1471
        %v1492 = vunpack.c.h.b16 %v1471
        %v1493 = vunpack.c.l.b16 %v1472
        %v1494 = vunpack.c.h.b16 %v1472
        %v1495 = vunpack.c.l.b16 %v1473
        %v1496 = vunpack.c.h.b16 %v1473
        %v1497 = vunpack.c.l.b16 %v1474
        %v1498 = vunpack.c.h.b16 %v1474
        %v1499 = vpack.c.b16 %v1485, %v1483
        %v1500 = vpack.c.b16 %v1486, %v1484
        %v1501 = vpack.c.b16 %v1489, %v1487
        %v1502 = vpack.c.b16 %v1490, %v1488
        %v1503 = vpack.c.b16 %v1493, %v1491
        %v1504 = vpack.c.b16 %v1494, %v1492
        %v1505 = vpack.c.b16 %v1497, %v1495
        %v1506 = vpack.c.b16 %v1498, %v1496
        %1515 = vmatprep.subr.bf16.mxu0 0
        %1516 = vmatpush1.bf16.msra.mxu0 %v893
        %1517 = vmatprep.subr.bf16.mxu0 0
        %1518 = vmatpush1.bf16.msra.mxu0 %v894
        %1519 = vmatprep.subr.bf16.mxu0 0
        %1520 = vmatpush1.bf16.msra.mxu0 %v895
        %1521 = vmatprep.subr.bf16.mxu0 0
        %1522 = vmatpush1.bf16.msra.mxu0 %v896
        %1523 = vmatprep.subr.bf16.mxu0 0
        %1524 = vmatpush1.bf16.msra.mxu0 %v897
        %1525 = vmatprep.subr.bf16.mxu0 0
        %1526 = vmatpush1.bf16.msra.mxu0 %v898
        %1527 = vmatprep.subr.bf16.mxu0 0
        %1528 = vmatpush1.bf16.msra.mxu0 %v899
        %1529 = vmatprep.subr.bf16.mxu0 0
        %1530 = vmatpush1.bf16.msra.mxu0 %v900
        %1531 = vmatprep.subr.bf16.mxu0 0
        %1532 = vmatpush1.bf16.msra.mxu0 %v901
        %1533 = vmatprep.subr.bf16.mxu0 0
        %1534 = vmatpush1.bf16.msra.mxu0 %v902
        %1535 = vmatprep.subr.bf16.mxu0 0
        %1536 = vmatpush1.bf16.msra.mxu0 %v903
        %1537 = vmatprep.subr.bf16.mxu0 0
        %1538 = vmatpush1.bf16.msra.mxu0 %v904
        %1539 = vmatprep.subr.bf16.mxu0 0
        %1540 = vmatpush1.bf16.msra.mxu0 %v905
        %1541 = vmatprep.subr.bf16.mxu0 0
        %1542 = vmatpush1.bf16.msra.mxu0 %v906
        %1543 = vmatprep.subr.bf16.mxu0 0
        %1544 = vmatpush1.bf16.msra.mxu0 %v907
        %1545 = vmatprep.subr.bf16.mxu0 0
        %1546 = vmatpush1.bf16.msra.mxu0 %v908
        %1547 = vmatprep.mubr.bf16.mxu0 %v1500
        %1548 = vmatmul.mubr.bf16.gmra.mrb[0].mxu0 %v1499
        %v1549 = vpop.f32.mrb[0].mxu0
        %v1550 = vadd.f32 0.0, %v1549
        %v1551 = vpop.f32.mrb[0].mxu0
        %v1552 = vpop.f32.mrb[0].mxu0
        %v1553 = vadd.f32 0.0, %v1552
        %v1554 = vpop.f32.mrb[0].mxu0
        %1555 = vmatprep.mubr.bf16.mxu0 %v1502
        %1556 = vmatmul.mubr.bf16.gmra.mrb[0].mxu0 %v1501
        %v1557 = vpop.f32.mrb[0].mxu0
        %v1558 = vadd.f32 0.0, %v1557
        %v1559 = vpop.f32.mrb[0].mxu0
        %v1560 = vpop.f32.mrb[0].mxu0
        %v1561 = vadd.f32 0.0, %v1560
        %v1562 = vpop.f32.mrb[0].mxu0
        %1563 = vmatprep.mubr.bf16.mxu0 %v1504
        %1564 = vmatmul.mubr.bf16.gmra.mrb[0].mxu0 %v1503
        %v1565 = vpop.f32.mrb[0].mxu0
        %v1566 = vadd.f32 0.0, %v1565
        %v1567 = vpop.f32.mrb[0].mxu0
        %v1568 = vpop.f32.mrb[0].mxu0
        %v1569 = vadd.f32 0.0, %v1568
        %v1570 = vpop.f32.mrb[0].mxu0
        %1571 = vmatprep.mubr.bf16.mxu0 %v1506
        %1572 = vmatmul.mubr.bf16.gmra.mrb[0].mxu0 %v1505
        %v1573 = vpop.f32.mrb[0].mxu0
        %v1574 = vadd.f32 0.0, %v1573
        %v1575 = vpop.f32.mrb[0].mxu0
        %v1576 = vpop.f32.mrb[0].mxu0
        %v1577 = vadd.f32 0.0, %v1576
        %v1578 = vpop.f32.mrb[0].mxu0
        %1579 = vdwg.mxu0
        %v1580 = vpack.c.bf16 %v1553, %v1550
        %v1581 = vpack.c.bf16 %v1561, %v1558
        %v1582 = vpack.c.bf16 %v1569, %v1566
        %v1583 = vpack.c.bf16 %v1577, %v1574
        %s1584 = scalar_lea.vmem %s1, 384
        %v1585 = vld [vmem:[%s1584] sm:$0xff]
        %v1586 = vld [vmem:[%s1584 + $0x8] sm:$0xff]
        %v1587 = vld [vmem:[%s1584 + $0x10] sm:$0xff]
        %v1588 = vld [vmem:[%s1584 + $0x18] sm:$0xff]
        %v1589 = vld [vmem:[%s1584 + $0x20] sm:$0xff]
        %v1590 = vld [vmem:[%s1584 + $0x28] sm:$0xff]
        %v1591 = vld [vmem:[%s1584 + $0x30] sm:$0xff]
        %v1592 = vld [vmem:[%s1584 + $0x38] sm:$0xff]
        %v1601 = vunpack.c.l.b16 %v1585
        %v1602 = vunpack.c.h.b16 %v1585
        %v1603 = vunpack.c.l.b16 %v1586
        %v1604 = vunpack.c.h.b16 %v1586
        %v1605 = vunpack.c.l.b16 %v1587
        %v1606 = vunpack.c.h.b16 %v1587
        %v1607 = vunpack.c.l.b16 %v1588
        %v1608 = vunpack.c.h.b16 %v1588
        %v1609 = vunpack.c.l.b16 %v1589
        %v1610 = vunpack.c.h.b16 %v1589
        %v1611 = vunpack.c.l.b16 %v1590
        %v1612 = vunpack.c.h.b16 %v1590
        %v1613 = vunpack.c.l.b16 %v1591
        %v1614 = vunpack.c.h.b16 %v1591
        %v1615 = vunpack.c.l.b16 %v1592
        %v1616 = vunpack.c.h.b16 %v1592
        %v1617 = vpack.c.b16 %v1603, %v1601
        %v1618 = vpack.c.b16 %v1604, %v1602
        %v1619 = vpack.c.b16 %v1607, %v1605
        %v1620 = vpack.c.b16 %v1608, %v1606
        %v1621 = vpack.c.b16 %v1611, %v1609
        %v1622 = vpack.c.b16 %v1612, %v1610
        %v1623 = vpack.c.b16 %v1615, %v1613
        %v1624 = vpack.c.b16 %v1616, %v1614
        %1633 = vmatprep.subr.bf16.mxu0 0
        %1634 = vmatpush1.bf16.msra.mxu0 %v893
        %1635 = vmatprep.subr.bf16.mxu0 0
        %1636 = vmatpush1.bf16.msra.mxu0 %v894
        %1637 = vmatprep.subr.bf16.mxu0 0
        %1638 = vmatpush1.bf16.msra.mxu0 %v895
        %1639 = vmatprep.subr.bf16.mxu0 0
        %1640 = vmatpush1.bf16.msra.mxu0 %v896
        %1641 = vmatprep.subr.bf16.mxu0 0
        %1642 = vmatpush1.bf16.msra.mxu0 %v897
        %1643 = vmatprep.subr.bf16.mxu0 0
        %1644 = vmatpush1.bf16.msra.mxu0 %v898
        %1645 = vmatprep.subr.bf16.mxu0 0
        %1646 = vmatpush1.bf16.msra.mxu0 %v899
        %1647 = vmatprep.subr.bf16.mxu0 0
        %1648 = vmatpush1.bf16.msra.mxu0 %v900
        %1649 = vmatprep.subr.bf16.mxu0 0
        %1650 = vmatpush1.bf16.msra.mxu0 %v901
        %1651 = vmatprep.subr.bf16.mxu0 0
        %1652 = vmatpush1.bf16.msra.mxu0 %v902
        %1653 = vmatprep.subr.bf16.mxu0 0
        %1654 = vmatpush1.bf16.msra.mxu0 %v903
        %1655 = vmatprep.subr.bf16.mxu0 0
        %1656 = vmatpush1.bf16.msra.mxu0 %v904
        %1657 = vmatprep.subr.bf16.mxu0 0
        %1658 = vmatpush1.bf16.msra.mxu0 %v905
        %1659 = vmatprep.subr.bf16.mxu0 0
        %1660 = vmatpush1.bf16.msra.mxu0 %v906
        %1661 = vmatprep.subr.bf16.mxu0 0
        %1662 = vmatpush1.bf16.msra.mxu0 %v907
        %1663 = vmatprep.subr.bf16.mxu0 0
        %1664 = vmatpush1.bf16.msra.mxu0 %v908
        %1665 = vmatprep.mubr.bf16.mxu0 %v1618
        %1666 = vmatmul.mubr.bf16.gmra.mrb[0].mxu0 %v1617
        %v1667 = vpop.f32.mrb[0].mxu0
        %v1668 = vadd.f32 0.0, %v1667
        %v1669 = vpop.f32.mrb[0].mxu0
        %v1670 = vpop.f32.mrb[0].mxu0
        %v1671 = vadd.f32 0.0, %v1670
        %v1672 = vpop.f32.mrb[0].mxu0
        %1673 = vmatprep.mubr.bf16.mxu0 %v1620
        %1674 = vmatmul.mubr.bf16.gmra.mrb[0].mxu0 %v1619
        %v1675 = vpop.f32.mrb[0].mxu0
        %v1676 = vadd.f32 0.0, %v1675
        %v1677 = vpop.f32.mrb[0].mxu0
        %v1678 = vpop.f32.mrb[0].mxu0
        %v1679 = vadd.f32 0.0, %v1678
        %v1680 = vpop.f32.mrb[0].mxu0
        %1681 = vmatprep.mubr.bf16.mxu0 %v1622
        %1682 = vmatmul.mubr.bf16.gmra.mrb[0].mxu0 %v1621
        %v1683 = vpop.f32.mrb[0].mxu0
        %v1684 = vadd.f32 0.0, %v1683
        %v1685 = vpop.f32.mrb[0].mxu0
        %v1686 = vpop.f32.mrb[0].mxu0
        %v1687 = vadd.f32 0.0, %v1686
        %v1688 = vpop.f32.mrb[0].mxu0
        %1689 = vmatprep.mubr.bf16.mxu0 %v1624
        %1690 = vmatmul.mubr.bf16.gmra.mrb[0].mxu0 %v1623
        %v1691 = vpop.f32.mrb[0].mxu0
        %v1692 = vadd.f32 0.0, %v1691
        %v1693 = vpop.f32.mrb[0].mxu0
        %v1694 = vpop.f32.mrb[0].mxu0
        %v1695 = vadd.f32 0.0, %v1694
        %v1696 = vpop.f32.mrb[0].mxu0
        %1697 = vdwg.mxu0
        %v1698 = vpack.c.bf16 %v1671, %v1668
        %v1699 = vpack.c.bf16 %v1679, %v1676
        %v1700 = vpack.c.bf16 %v1687, %v1684
        %v1701 = vpack.c.bf16 %v1695, %v1692
        %s1702 = scalar_lea.vmem %s1, 448
        %v1703 = vld [vmem:[%s1702] sm:$0xff]
        %v1704 = vld [vmem:[%s1702 + $0x8] sm:$0xff]
        %v1705 = vld [vmem:[%s1702 + $0x10] sm:$0xff]
        %v1706 = vld [vmem:[%s1702 + $0x18] sm:$0xff]
        %v1707 = vld [vmem:[%s1702 + $0x20] sm:$0xff]
        %v1708 = vld [vmem:[%s1702 + $0x28] sm:$0xff]
        %v1709 = vld [vmem:[%s1702 + $0x30] sm:$0xff]
        %v1710 = vld [vmem:[%s1702 + $0x38] sm:$0xff]
        %v1719 = vunpack.c.l.b16 %v1703
        %v1720 = vunpack.c.h.b16 %v1703
        %v1721 = vunpack.c.l.b16 %v1704
        %v1722 = vunpack.c.h.b16 %v1704
        %v1723 = vunpack.c.l.b16 %v1705
        %v1724 = vunpack.c.h.b16 %v1705
        %v1725 = vunpack.c.l.b16 %v1706
        %v1726 = vunpack.c.h.b16 %v1706
        %v1727 = vunpack.c.l.b16 %v1707
        %v1728 = vunpack.c.h.b16 %v1707
        %v1729 = vunpack.c.l.b16 %v1708
        %v1730 = vunpack.c.h.b16 %v1708
        %v1731 = vunpack.c.l.b16 %v1709
        %v1732 = vunpack.c.h.b16 %v1709
        %v1733 = vunpack.c.l.b16 %v1710
        %v1734 = vunpack.c.h.b16 %v1710
        %v1735 = vpack.c.b16 %v1721, %v1719
        %v1736 = vpack.c.b16 %v1722, %v1720
        %v1737 = vpack.c.b16 %v1725, %v1723
        %v1738 = vpack.c.b16 %v1726, %v1724
        %v1739 = vpack.c.b16 %v1729, %v1727
        %v1740 = vpack.c.b16 %v1730, %v1728
        %v1741 = vpack.c.b16 %v1733, %v1731
        %v1742 = vpack.c.b16 %v1734, %v1732
        %1751 = vmatprep.subr.bf16.mxu0 0
        %1752 = vmatpush1.bf16.msra.mxu0 %v893
        %1753 = vmatprep.subr.bf16.mxu0 0
        %1754 = vmatpush1.bf16.msra.mxu0 %v894
        %1755 = vmatprep.subr.bf16.mxu0 0
        %1756 = vmatpush1.bf16.msra.mxu0 %v895
        %1757 = vmatprep.subr.bf16.mxu0 0
        %1758 = vmatpush1.bf16.msra.mxu0 %v896
        %1759 = vmatprep.subr.bf16.mxu0 0
        %1760 = vmatpush1.bf16.msra.mxu0 %v897
        %1761 = vmatprep.subr.bf16.mxu0 0
        %1762 = vmatpush1.bf16.msra.mxu0 %v898
        %1763 = vmatprep.subr.bf16.mxu0 0
        %1764 = vmatpush1.bf16.msra.mxu0 %v899
        %1765 = vmatprep.subr.bf16.mxu0 0
        %1766 = vmatpush1.bf16.msra.mxu0 %v900
        %1767 = vmatprep.subr.bf16.mxu0 0
        %1768 = vmatpush1.bf16.msra.mxu0 %v901
        %1769 = vmatprep.subr.bf16.mxu0 0
        %1770 = vmatpush1.bf16.msra.mxu0 %v902
        %1771 = vmatprep.subr.bf16.mxu0 0
        %1772 = vmatpush1.bf16.msra.mxu0 %v903
        %1773 = vmatprep.subr.bf16.mxu0 0
        %1774 = vmatpush1.bf16.msra.mxu0 %v904
        %1775 = vmatprep.subr.bf16.mxu0 0
        %1776 = vmatpush1.bf16.msra.mxu0 %v905
        %1777 = vmatprep.subr.bf16.mxu0 0
        %1778 = vmatpush1.bf16.msra.mxu0 %v906
        %1779 = vmatprep.subr.bf16.mxu0 0
        %1780 = vmatpush1.bf16.msra.mxu0 %v907
        %1781 = vmatprep.subr.bf16.mxu0 0
        %1782 = vmatpush1.bf16.msra.mxu0 %v908
        %1783 = vmatprep.mubr.bf16.mxu0 %v1736
        %1784 = vmatmul.mubr.bf16.gmra.mrb[0].mxu0 %v1735
        %v1785 = vpop.f32.mrb[0].mxu0
        %v1786 = vadd.f32 0.0, %v1785
        %v1787 = vpop.f32.mrb[0].mxu0
        %v1788 = vpop.f32.mrb[0].mxu0
        %v1789 = vadd.f32 0.0, %v1788
        %v1790 = vpop.f32.mrb[0].mxu0
        %1791 = vmatprep.mubr.bf16.mxu0 %v1738
        %1792 = vmatmul.mubr.bf16.gmra.mrb[0].mxu0 %v1737
        %v1793 = vpop.f32.mrb[0].mxu0
        %v1794 = vadd.f32 0.0, %v1793
        %v1795 = vpop.f32.mrb[0].mxu0
        %v1796 = vpop.f32.mrb[0].mxu0
        %v1797 = vadd.f32 0.0, %v1796
        %v1798 = vpop.f32.mrb[0].mxu0
        %1799 = vmatprep.mubr.bf16.mxu0 %v1740
        %1800 = vmatmul.mubr.bf16.gmra.mrb[0].mxu0 %v1739
        %v1801 = vpop.f32.mrb[0].mxu0
        %v1802 = vadd.f32 0.0, %v1801
        %v1803 = vpop.f32.mrb[0].mxu0
        %v1804 = vpop.f32.mrb[0].mxu0
        %v1805 = vadd.f32 0.0, %v1804
        %v1806 = vpop.f32.mrb[0].mxu0
        %1807 = vmatprep.mubr.bf16.mxu0 %v1742
        %1808 = vmatmul.mubr.bf16.gmra.mrb[0].mxu0 %v1741
        %v1809 = vpop.f32.mrb[0].mxu0
        %v1810 = vadd.f32 0.0, %v1809
        %v1811 = vpop.f32.mrb[0].mxu0
        %v1812 = vpop.f32.mrb[0].mxu0
        %v1813 = vadd.f32 0.0, %v1812
        %v1814 = vpop.f32.mrb[0].mxu0
        %1815 = vdwg.mxu0
        %v1816 = vpack.c.bf16 %v1789, %v1786
        %v1817 = vpack.c.bf16 %v1797, %v1794
        %v1818 = vpack.c.bf16 %v1805, %v1802
        %v1819 = vpack.c.bf16 %v1813, %v1810
        %s1820 = scalar_lea.vmem %s1, 512
        %v1821 = vld [vmem:[%s1820] sm:$0xff]
        %v1822 = vld [vmem:[%s1820 + $0x8] sm:$0xff]
        %v1823 = vld [vmem:[%s1820 + $0x10] sm:$0xff]
        %v1824 = vld [vmem:[%s1820 + $0x18] sm:$0xff]
        %v1825 = vld [vmem:[%s1820 + $0x20] sm:$0xff]
        %v1826 = vld [vmem:[%s1820 + $0x28] sm:$0xff]
        %v1827 = vld [vmem:[%s1820 + $0x30] sm:$0xff]
        %v1828 = vld [vmem:[%s1820 + $0x38] sm:$0xff]
        %v1837 = vunpack.c.l.b16 %v1821
        %v1838 = vunpack.c.h.b16 %v1821
        %v1839 = vunpack.c.l.b16 %v1822
        %v1840 = vunpack.c.h.b16 %v1822
        %v1841 = vunpack.c.l.b16 %v1823
        %v1842 = vunpack.c.h.b16 %v1823
        %v1843 = vunpack.c.l.b16 %v1824
        %v1844 = vunpack.c.h.b16 %v1824
        %v1845 = vunpack.c.l.b16 %v1825
        %v1846 = vunpack.c.h.b16 %v1825
        %v1847 = vunpack.c.l.b16 %v1826
        %v1848 = vunpack.c.h.b16 %v1826
        %v1849 = vunpack.c.l.b16 %v1827
        %v1850 = vunpack.c.h.b16 %v1827
        %v1851 = vunpack.c.l.b16 %v1828
        %v1852 = vunpack.c.h.b16 %v1828
        %v1853 = vpack.c.b16 %v1839, %v1837
        %v1854 = vpack.c.b16 %v1840, %v1838
        %v1855 = vpack.c.b16 %v1843, %v1841
        %v1856 = vpack.c.b16 %v1844, %v1842
        %v1857 = vpack.c.b16 %v1847, %v1845
        %v1858 = vpack.c.b16 %v1848, %v1846
        %v1859 = vpack.c.b16 %v1851, %v1849
        %v1860 = vpack.c.b16 %v1852, %v1850
        %1869 = vmatprep.subr.bf16.mxu0 0
        %1870 = vmatpush1.bf16.msra.mxu0 %v893
        %1871 = vmatprep.subr.bf16.mxu0 0
        %1872 = vmatpush1.bf16.msra.mxu0 %v894
        %1873 = vmatprep.subr.bf16.mxu0 0
        %1874 = vmatpush1.bf16.msra.mxu0 %v895
        %1875 = vmatprep.subr.bf16.mxu0 0
        %1876 = vmatpush1.bf16.msra.mxu0 %v896
        %1877 = vmatprep.subr.bf16.mxu0 0
        %1878 = vmatpush1.bf16.msra.mxu0 %v897
        %1879 = vmatprep.subr.bf16.mxu0 0
        %1880 = vmatpush1.bf16.msra.mxu0 %v898
        %1881 = vmatprep.subr.bf16.mxu0 0
        %1882 = vmatpush1.bf16.msra.mxu0 %v899
        %1883 = vmatprep.subr.bf16.mxu0 0
        %1884 = vmatpush1.bf16.msra.mxu0 %v900
        %1885 = vmatprep.subr.bf16.mxu0 0
        %1886 = vmatpush1.bf16.msra.mxu0 %v901
        %1887 = vmatprep.subr.bf16.mxu0 0
        %1888 = vmatpush1.bf16.msra.mxu0 %v902
        %1889 = vmatprep.subr.bf16.mxu0 0
        %1890 = vmatpush1.bf16.msra.mxu0 %v903
        %1891 = vmatprep.subr.bf16.mxu0 0
        %1892 = vmatpush1.bf16.msra.mxu0 %v904
        %1893 = vmatprep.subr.bf16.mxu0 0
        %1894 = vmatpush1.bf16.msra.mxu0 %v905
        %1895 = vmatprep.subr.bf16.mxu0 0
        %1896 = vmatpush1.bf16.msra.mxu0 %v906
        %1897 = vmatprep.subr.bf16.mxu0 0
        %1898 = vmatpush1.bf16.msra.mxu0 %v907
        %1899 = vmatprep.subr.bf16.mxu0 0
        %1900 = vmatpush1.bf16.msra.mxu0 %v908
        %1901 = vmatprep.mubr.bf16.mxu0 %v1854
        %1902 = vmatmul.mubr.bf16.gmra.mrb[0].mxu0 %v1853
        %v1903 = vpop.f32.mrb[0].mxu0
        %v1904 = vadd.f32 0.0, %v1903
        %v1905 = vpop.f32.mrb[0].mxu0
        %v1906 = vpop.f32.mrb[0].mxu0
        %v1907 = vadd.f32 0.0, %v1906
        %v1908 = vpop.f32.mrb[0].mxu0
        %1909 = vmatprep.mubr.bf16.mxu0 %v1856
        %1910 = vmatmul.mubr.bf16.gmra.mrb[0].mxu0 %v1855
        %v1911 = vpop.f32.mrb[0].mxu0
        %v1912 = vadd.f32 0.0, %v1911
        %v1913 = vpop.f32.mrb[0].mxu0
        %v1914 = vpop.f32.mrb[0].mxu0
        %v1915 = vadd.f32 0.0, %v1914
        %v1916 = vpop.f32.mrb[0].mxu0
        %1917 = vmatprep.mubr.bf16.mxu0 %v1858
        %1918 = vmatmul.mubr.bf16.gmra.mrb[0].mxu0 %v1857
        %v1919 = vpop.f32.mrb[0].mxu0
        %v1920 = vadd.f32 0.0, %v1919
        %v1921 = vpop.f32.mrb[0].mxu0
        %v1922 = vpop.f32.mrb[0].mxu0
        %v1923 = vadd.f32 0.0, %v1922
        %v1924 = vpop.f32.mrb[0].mxu0
        %1925 = vmatprep.mubr.bf16.mxu0 %v1860
        %1926 = vmatmul.mubr.bf16.gmra.mrb[0].mxu0 %v1859
        %v1927 = vpop.f32.mrb[0].mxu0
        %v1928 = vadd.f32 0.0, %v1927
        %v1929 = vpop.f32.mrb[0].mxu0
        %v1930 = vpop.f32.mrb[0].mxu0
        %v1931 = vadd.f32 0.0, %v1930
        %v1932 = vpop.f32.mrb[0].mxu0
        %1933 = vdwg.mxu0
        %v1934 = vpack.c.bf16 %v1907, %v1904
        %v1935 = vpack.c.bf16 %v1915, %v1912
        %v1936 = vpack.c.bf16 %v1923, %v1920
        %v1937 = vpack.c.bf16 %v1931, %v1928
        %1942 = vrot.lane.b32.xlu0 %v1108, 4
        %v1943 = vpop.permute.xlu0 %1942
        %1944 = vrot.lane.b32.xlu0 %v1109, 4
        %v1945 = vpop.permute.xlu0 %1944
        %1946 = vrot.lane.b32.xlu0 %v1110, 4
        %v1947 = vpop.permute.xlu0 %1946
        %1948 = vrot.lane.b32.xlu0 %v1111, 4
        %v1949 = vpop.permute.xlu0 %1948
        %1954 = vrot.lane.b32.xlu0 %v1226, 8
        %v1955 = vpop.permute.xlu0 %1954
        %1956 = vrot.lane.b32.xlu0 %v1227, 8
        %v1957 = vpop.permute.xlu0 %1956
        %1958 = vrot.lane.b32.xlu0 %v1228, 8
        %v1959 = vpop.permute.xlu0 %1958
        %1960 = vrot.lane.b32.xlu0 %v1229, 8
        %v1961 = vpop.permute.xlu0 %1960
        %1966 = vrot.lane.b32.xlu0 %v1344, 12
        %v1967 = vpop.permute.xlu0 %1966
        %1968 = vrot.lane.b32.xlu0 %v1345, 12
        %v1969 = vpop.permute.xlu0 %1968
        %1970 = vrot.lane.b32.xlu0 %v1346, 12
        %v1971 = vpop.permute.xlu0 %1970
        %1972 = vrot.lane.b32.xlu0 %v1347, 12
        %v1973 = vpop.permute.xlu0 %1972
        %1978 = vrot.lane.b32.xlu0 %v1462, 16
        %v1979 = vpop.permute.xlu0 %1978
        %1980 = vrot.lane.b32.xlu0 %v1463, 16
        %v1981 = vpop.permute.xlu0 %1980
        %1982 = vrot.lane.b32.xlu0 %v1464, 16
        %v1983 = vpop.permute.xlu0 %1982
        %1984 = vrot.lane.b32.xlu0 %v1465, 16
        %v1985 = vpop.permute.xlu0 %1984
        %1990 = vrot.lane.b32.xlu0 %v1580, 20
        %v1991 = vpop.permute.xlu0 %1990
        %1992 = vrot.lane.b32.xlu0 %v1581, 20
        %v1993 = vpop.permute.xlu0 %1992
        %1994 = vrot.lane.b32.xlu0 %v1582, 20
        %v1995 = vpop.permute.xlu0 %1994
        %1996 = vrot.lane.b32.xlu0 %v1583, 20
        %v1997 = vpop.permute.xlu0 %1996
        %2002 = vrot.lane.b32.xlu0 %v1698, 24
        %v2003 = vpop.permute.xlu0 %2002
        %2004 = vrot.lane.b32.xlu0 %v1699, 24
        %v2005 = vpop.permute.xlu0 %2004
        %2006 = vrot.lane.b32.xlu0 %v1700, 24
        %v2007 = vpop.permute.xlu0 %2006
        %2008 = vrot.lane.b32.xlu0 %v1701, 24
        %v2009 = vpop.permute.xlu0 %2008
        %2014 = vrot.lane.b32.xlu0 %v1816, 28
        %v2015 = vpop.permute.xlu0 %2014
        %2016 = vrot.lane.b32.xlu0 %v1817, 28
        %v2017 = vpop.permute.xlu0 %2016
        %2018 = vrot.lane.b32.xlu0 %v1818, 28
        %v2019 = vpop.permute.xlu0 %2018
        %2020 = vrot.lane.b32.xlu0 %v1819, 28
        %v2021 = vpop.permute.xlu0 %2020
        %2026 = vrot.lane.b32.xlu0 %v1934, 32
        %v2027 = vpop.permute.xlu0 %2026
        %2028 = vrot.lane.b32.xlu0 %v1935, 32
        %v2029 = vpop.permute.xlu0 %2028
        %2030 = vrot.lane.b32.xlu0 %v1936, 32
        %v2031 = vpop.permute.xlu0 %2030
        %2032 = vrot.lane.b32.xlu0 %v1937, 32
        %v2033 = vpop.permute.xlu0 %2032
        %vm2034 = vcmask 31744
        %v2037 = vsel %vm2034, %v990, %v1943
        %v2040 = vsel %vm2034, %v991, %v1945
        %v2043 = vsel %vm2034, %v992, %v1947
        %v2046 = vsel %vm2034, %v993, %v1949
        %vm2047 = vcmask 64512
        %v2049 = vsel %vm2047, %v2037, %v1955
        %v2051 = vsel %vm2047, %v2040, %v1957
        %v2053 = vsel %vm2047, %v2043, %v1959
        %v2055 = vsel %vm2047, %v2046, %v1961
        %vm2056 = vcmask 97280
        %v2058 = vsel %vm2056, %v2049, %v1967
        %v2060 = vsel %vm2056, %v2051, %v1969
        %v2062 = vsel %vm2056, %v2053, %v1971
        %v2064 = vsel %vm2056, %v2055, %v1973
        %vm2065 = vcmask 130048
        %v2067 = vsel %vm2065, %v2058, %v1979
        %v2069 = vsel %vm2065, %v2060, %v1981
        %v2071 = vsel %vm2065, %v2062, %v1983
        %v2073 = vsel %vm2065, %v2064, %v1985
        %vm2074 = vcmask 162816
        %v2076 = vsel %vm2074, %v2067, %v1991
        %v2078 = vsel %vm2074, %v2069, %v1993
        %v2080 = vsel %vm2074, %v2071, %v1995
        %v2082 = vsel %vm2074, %v2073, %v1997
        %vm2083 = vcmask 195584
        %v2085 = vsel %vm2083, %v2076, %v2003
        %v2087 = vsel %vm2083, %v2078, %v2005
        %v2089 = vsel %vm2083, %v2080, %v2007
        %v2091 = vsel %vm2083, %v2082, %v2009
        %vm2092 = vcmask 228352
        %v2094 = vsel %vm2092, %v2085, %v2015
        %v2096 = vsel %vm2092, %v2087, %v2017
        %v2098 = vsel %vm2092, %v2089, %v2019
        %v2100 = vsel %vm2092, %v2091, %v2021
        %vm2101 = vcmask 261120
        %v2103 = vsel %vm2101, %v2094, %v2027
        %v2105 = vsel %vm2101, %v2096, %v2029
        %v2107 = vsel %vm2101, %v2098, %v2031
        %v2109 = vsel %vm2101, %v2100, %v2033
        %v2110 = vld [vmem:[%s2] sm:$0xf]
        %v2111 = vld [vmem:[%s2 + $0x4] sm:$0xf]
        %v2112 = vld [vmem:[%s2 + $0x8] sm:$0xf]
        %v2113 = vld [vmem:[%s2 + $0xc] sm:$0xf]
        %v2114 = vld [vmem:[%s2 + $0x10] sm:$0x3]
        %v2115 = vld [vmem:[#allocation2] sm:$0x1]
        %v2117 = vlaneseq
        %v2118 = vshrl.u32 %v2117, 7
        %v2119 = vsub.s32 0, %v2118
        %v2120 = vrot.slane %v2115, %v2119
        %v2127 = vunpack.c.l.b16 %v2110
        %v2128 = vunpack.c.l.b16 %v2111
        %v2129 = vunpack.c.l.b16 %v2112
        %v2130 = vunpack.c.l.b16 %v2113
        %v2131 = vunpack.c.l.b16 %v2114
        %v2132 = vpack.c.b16 %v2128, %v2127
        %v2133 = vpack.c.b16 %v2130, %v2129
        %v2134 = vpack.c.b16 %v2131, %v2131
        %vm2137 = vcmask 293888
        %v2138 = vsel %vm2137, %v2103, 0
        %v2140 = vsel %vm2137, %v2105, 0
        %v2142 = vsel %vm2137, %v2107, 0
        %v2144 = vsel %vm2137, %v2109, 0
        %vm2146 = vcmask 1041408
        %v2148 = vsel %vm2146, %v2134, 0
        %2150 = vmatprep.subr.bf16.mxu0 0
        %2151 = vmatpush1.bf16.msra.mxu0 %v2132
        %2152 = vmatprep.subr.bf16.mxu0 0
        %2153 = vmatpush1.bf16.msra.mxu0 %v2133
        %2154 = vmatprep.subr.bf16.mxu0 0
        %2155 = vmatpush1.bf16.msra.mxu0 %v2148
        %2156 = vmatprep.subr.bf16.mxu0 0
        %2157 = vmatpush1.bf16.msra.mxu0 0
        %2158 = vmatprep.subr.bf16.mxu0 0
        %2159 = vmatpush1.bf16.msra.mxu0 0
        %2160 = vmatprep.subr.bf16.mxu0 0
        %2161 = vmatpush1.bf16.msra.mxu0 0
        %2162 = vmatprep.subr.bf16.mxu0 0
        %2163 = vmatpush1.bf16.msra.mxu0 0
        %2164 = vmatprep.subr.bf16.mxu0 0
        %2165 = vmatpush1.bf16.msra.mxu0 0
        %2166 = vmatprep.subr.bf16.mxu0 0
        %2167 = vmatpush1.bf16.msra.mxu0 0
        %2168 = vmatprep.subr.bf16.mxu0 0
        %2169 = vmatpush1.bf16.msra.mxu0 0
        %2170 = vmatprep.subr.bf16.mxu0 0
        %2171 = vmatpush1.bf16.msra.mxu0 0
        %2172 = vmatprep.subr.bf16.mxu0 0
        %2173 = vmatpush1.bf16.msra.mxu0 0
        %2174 = vmatprep.subr.bf16.mxu0 0
        %2175 = vmatpush1.bf16.msra.mxu0 0
        %2176 = vmatprep.subr.bf16.mxu0 0
        %2177 = vmatpush1.bf16.msra.mxu0 0
        %2178 = vmatprep.subr.bf16.mxu0 0
        %2179 = vmatpush1.bf16.msra.mxu0 0
        %2180 = vmatprep.subr.bf16.mxu0 0
        %2181 = vmatpush1.bf16.msra.mxu0 0
        %2182 = vmatprep.mubr.bf16.mxu0 0
        %2183 = vmatmul.mubr.bf16.gmra.mrb[0].mxu0 %v2138
        %v2184 = vpop.f32.mrb[0].mxu0
        %v2185 = vadd.f32 %v2120, %v2184
        %v2186 = vpop.f32.mrb[0].mxu0
        %v2187 = vpop.f32.mrb[0].mxu0
        %v2188 = vadd.f32 %v2120, %v2187
        %v2189 = vpop.f32.mrb[0].mxu0
        %2190 = vmatprep.mubr.bf16.mxu0 0
        %2191 = vmatmul.mubr.bf16.gmra.mrb[0].mxu0 %v2140
        %v2192 = vpop.f32.mrb[0].mxu0
        %v2193 = vadd.f32 %v2120, %v2192
        %v2194 = vpop.f32.mrb[0].mxu0
        %v2195 = vpop.f32.mrb[0].mxu0
        %v2196 = vadd.f32 %v2120, %v2195
        %v2197 = vpop.f32.mrb[0].mxu0
        %2198 = vmatprep.mubr.bf16.mxu0 0
        %2199 = vmatmul.mubr.bf16.gmra.mrb[0].mxu0 %v2142
        %v2200 = vpop.f32.mrb[0].mxu0
        %v2201 = vadd.f32 %v2120, %v2200
        %v2202 = vpop.f32.mrb[0].mxu0
        %v2203 = vpop.f32.mrb[0].mxu0
        %v2204 = vadd.f32 %v2120, %v2203
        %v2205 = vpop.f32.mrb[0].mxu0
        %2206 = vmatprep.mubr.bf16.mxu0 0
        %2207 = vmatmul.mubr.bf16.gmra.mrb[0].mxu0 %v2144
        %v2208 = vpop.f32.mrb[0].mxu0
        %v2209 = vadd.f32 %v2120, %v2208
        %v2210 = vpop.f32.mrb[0].mxu0
        %v2211 = vpop.f32.mrb[0].mxu0
        %v2212 = vadd.f32 %v2120, %v2211
        %v2213 = vpop.f32.mrb[0].mxu0
        %2214 = vdwg.mxu0
        %v2215 = vmax.f32 %v2185, 0.0
        %v2216 = vmax.f32 %v2188, 0.0
        %v2217 = vmax.f32 %v2193, 0.0
        %v2218 = vmax.f32 %v2196, 0.0
        %v2219 = vmax.f32 %v2201, 0.0
        %v2220 = vmax.f32 %v2204, 0.0
        %v2221 = vmax.f32 %v2209, 0.0
        %v2222 = vmax.f32 %v2212, 0.0
        %v2223 = vpack.c.bf16 %v2216, %v2215
        %v2224 = vpack.c.bf16 %v2218, %v2217
        %v2225 = vpack.c.bf16 %v2220, %v2219
        %v2226 = vpack.c.bf16 %v2222, %v2221
        %v2227 = vld [vmem:[%s4] sm:$0xf]
        %v2228 = vld [vmem:[%s4 + $0x4] sm:$0xf]
        %v2231 = vunpack.c.l.b16 %v2227
        %v2232 = vunpack.c.l.b16 %v2228
        %v2233 = vpack.c.b16 %v2232, %v2231
        %vm2234 = vcmask 523264
        %v2236 = vsel %vm2234, %v2233, 0
        %2238 = vmatprep.subr.bf16.mxu0 0
        %2239 = vmatpush1.bf16.msra.mxu0 %v2223
        %2240 = vmatprep.subr.bf16.mxu0 0
        %2241 = vmatpush1.bf16.msra.mxu0 %v2224
        %2242 = vmatprep.subr.bf16.mxu0 0
        %2243 = vmatpush1.bf16.msra.mxu0 %v2225
        %2244 = vmatprep.subr.bf16.mxu0 0
        %2245 = vmatpush1.bf16.msra.mxu0 %v2226
        %2246 = vmatprep.subr.bf16.mxu0 0
        %2247 = vmatpush1.bf16.msra.mxu0 0
        %2248 = vmatprep.subr.bf16.mxu0 0
        %2249 = vmatpush1.bf16.msra.mxu0 0
        %2250 = vmatprep.subr.bf16.mxu0 0
        %2251 = vmatpush1.bf16.msra.mxu0 0
        %2252 = vmatprep.subr.bf16.mxu0 0
        %2253 = vmatpush1.bf16.msra.mxu0 0
        %2254 = vmatprep.subr.bf16.mxu0 0
        %2255 = vmatpush1.bf16.msra.mxu0 0
        %2256 = vmatprep.subr.bf16.mxu0 0
        %2257 = vmatpush1.bf16.msra.mxu0 0
        %2258 = vmatprep.subr.bf16.mxu0 0
        %2259 = vmatpush1.bf16.msra.mxu0 0
        %2260 = vmatprep.subr.bf16.mxu0 0
        %2261 = vmatpush1.bf16.msra.mxu0 0
        %2262 = vmatprep.subr.bf16.mxu0 0
        %2263 = vmatpush1.bf16.msra.mxu0 0
        %2264 = vmatprep.subr.bf16.mxu0 0
        %2265 = vmatpush1.bf16.msra.mxu0 0
        %2266 = vmatprep.subr.bf16.mxu0 0
        %2267 = vmatpush1.bf16.msra.mxu0 0
        %2268 = vmatprep.subr.bf16.mxu0 0
        %2269 = vmatpush1.bf16.msra.mxu0 0
        %2270 = vmatprep.mubr.bf16.mxu0 0
        %2271 = vmatmul.mubr.bf16.gmra.mrb[0].mxu0 %v2236
        %v2272 = vpop.f32.mrb[0].mxu0
        %v2273 = vadd.f32 0.0, %v2272
        %v2274 = vpop.f32.mrb[0].mxu0
        %v2275 = vpop.f32.mrb[0].mxu0
        %v2276 = vadd.f32 0.0, %v2275
        %v2277 = vpop.f32.mrb[0].mxu0
        %2278 = vdwg.mxu0
        %v2279 = vpack.c.bf16 %v2276, %v2273
        %s2280 = scalar_lea.vmem %s4, 8
        %v2281 = vld [vmem:[%s2280] sm:$0xf]
        %v2282 = vld [vmem:[%s2280 + $0x4] sm:$0xf]
        %v2285 = vunpack.c.l.b16 %v2281
        %v2286 = vunpack.c.l.b16 %v2282
        %v2287 = vpack.c.b16 %v2286, %v2285
        %v2289 = vsel %vm2234, %v2287, 0
        %2291 = vmatprep.subr.bf16.mxu0 0
        %2292 = vmatpush1.bf16.msra.mxu0 %v2223
        %2293 = vmatprep.subr.bf16.mxu0 0
        %2294 = vmatpush1.bf16.msra.mxu0 %v2224
        %2295 = vmatprep.subr.bf16.mxu0 0
        %2296 = vmatpush1.bf16.msra.mxu0 %v2225
        %2297 = vmatprep.subr.bf16.mxu0 0
        %2298 = vmatpush1.bf16.msra.mxu0 %v2226
        %2299 = vmatprep.subr.bf16.mxu0 0
        %2300 = vmatpush1.bf16.msra.mxu0 0
        %2301 = vmatprep.subr.bf16.mxu0 0
        %2302 = vmatpush1.bf16.msra.mxu0 0
        %2303 = vmatprep.subr.bf16.mxu0 0
        %2304 = vmatpush1.bf16.msra.mxu0 0
        %2305 = vmatprep.subr.bf16.mxu0 0
        %2306 = vmatpush1.bf16.msra.mxu0 0
        %2307 = vmatprep.subr.bf16.mxu0 0
        %2308 = vmatpush1.bf16.msra.mxu0 0
        %2309 = vmatprep.subr.bf16.mxu0 0
        %2310 = vmatpush1.bf16.msra.mxu0 0
        %2311 = vmatprep.subr.bf16.mxu0 0
        %2312 = vmatpush1.bf16.msra.mxu0 0
        %2313 = vmatprep.subr.bf16.mxu0 0
        %2314 = vmatpush1.bf16.msra.mxu0 0
        %2315 = vmatprep.subr.bf16.mxu0 0
        %2316 = vmatpush1.bf16.msra.mxu0 0
        %2317 = vmatprep.subr.bf16.mxu0 0
        %2318 = vmatpush1.bf16.msra.mxu0 0
        %2319 = vmatprep.subr.bf16.mxu0 0
        %2320 = vmatpush1.bf16.msra.mxu0 0
        %2321 = vmatprep.subr.bf16.mxu0 0
        %2322 = vmatpush1.bf16.msra.mxu0 0
        %2323 = vmatprep.mubr.bf16.mxu0 0
        %2324 = vmatmul.mubr.bf16.gmra.mrb[0].mxu0 %v2289
        %v2325 = vpop.f32.mrb[0].mxu0
        %v2326 = vadd.f32 0.0, %v2325
        %v2327 = vpop.f32.mrb[0].mxu0
        %v2328 = vpop.f32.mrb[0].mxu0
        %v2329 = vadd.f32 0.0, %v2328
        %v2330 = vpop.f32.mrb[0].mxu0
        %2331 = vdwg.mxu0
        %v2332 = vpack.c.bf16 %v2329, %v2326
        %s2333 = scalar_lea.vmem %s4, 16
        %v2334 = vld [vmem:[%s2333] sm:$0xf]
        %v2335 = vld [vmem:[%s2333 + $0x4] sm:$0xf]
        %v2338 = vunpack.c.l.b16 %v2334
        %v2339 = vunpack.c.l.b16 %v2335
        %v2340 = vpack.c.b16 %v2339, %v2338
        %v2342 = vsel %vm2234, %v2340, 0
        %2344 = vmatprep.subr.bf16.mxu0 0
        %2345 = vmatpush1.bf16.msra.mxu0 %v2223
        %2346 = vmatprep.subr.bf16.mxu0 0
        %2347 = vmatpush1.bf16.msra.mxu0 %v2224
        %2348 = vmatprep.subr.bf16.mxu0 0
        %2349 = vmatpush1.bf16.msra.mxu0 %v2225
        %2350 = vmatprep.subr.bf16.mxu0 0
        %2351 = vmatpush1.bf16.msra.mxu0 %v2226
        %2352 = vmatprep.subr.bf16.mxu0 0
        %2353 = vmatpush1.bf16.msra.mxu0 0
        %2354 = vmatprep.subr.bf16.mxu0 0
        %2355 = vmatpush1.bf16.msra.mxu0 0
        %2356 = vmatprep.subr.bf16.mxu0 0
        %2357 = vmatpush1.bf16.msra.mxu0 0
        %2358 = vmatprep.subr.bf16.mxu0 0
        %2359 = vmatpush1.bf16.msra.mxu0 0
        %2360 = vmatprep.subr.bf16.mxu0 0
        %2361 = vmatpush1.bf16.msra.mxu0 0
        %2362 = vmatprep.subr.bf16.mxu0 0
        %2363 = vmatpush1.bf16.msra.mxu0 0
        %2364 = vmatprep.subr.bf16.mxu0 0
        %2365 = vmatpush1.bf16.msra.mxu0 0
        %2366 = vmatprep.subr.bf16.mxu0 0
        %2367 = vmatpush1.bf16.msra.mxu0 0
        %2368 = vmatprep.subr.bf16.mxu0 0
        %2369 = vmatpush1.bf16.msra.mxu0 0
        %2370 = vmatprep.subr.bf16.mxu0 0
        %2371 = vmatpush1.bf16.msra.mxu0 0
        %2372 = vmatprep.subr.bf16.mxu0 0
        %2373 = vmatpush1.bf16.msra.mxu0 0
        %2374 = vmatprep.subr.bf16.mxu0 0
        %2375 = vmatpush1.bf16.msra.mxu0 0
        %2376 = vmatprep.mubr.bf16.mxu0 0
        %2377 = vmatmul.mubr.bf16.gmra.mrb[0].mxu0 %v2342
        %v2378 = vpop.f32.mrb[0].mxu0
        %v2379 = vadd.f32 0.0, %v2378
        %v2380 = vpop.f32.mrb[0].mxu0
        %v2381 = vpop.f32.mrb[0].mxu0
        %v2382 = vadd.f32 0.0, %v2381
        %v2383 = vpop.f32.mrb[0].mxu0
        %2384 = vdwg.mxu0
        %v2385 = vpack.c.bf16 %v2382, %v2379
        %s2386 = scalar_lea.vmem %s4, 24
        %v2387 = vld [vmem:[%s2386] sm:$0xf]
        %v2388 = vld [vmem:[%s2386 + $0x4] sm:$0xf]
        %v2391 = vunpack.c.l.b16 %v2387
        %v2392 = vunpack.c.l.b16 %v2388
        %v2393 = vpack.c.b16 %v2392, %v2391
        %v2395 = vsel %vm2234, %v2393, 0
        %2397 = vmatprep.subr.bf16.mxu0 0
        %2398 = vmatpush1.bf16.msra.mxu0 %v2223
        %2399 = vmatprep.subr.bf16.mxu0 0
        %2400 = vmatpush1.bf16.msra.mxu0 %v2224
        %2401 = vmatprep.subr.bf16.mxu0 0
        %2402 = vmatpush1.bf16.msra.mxu0 %v2225
        %2403 = vmatprep.subr.bf16.mxu0 0
        %2404 = vmatpush1.bf16.msra.mxu0 %v2226
        %2405 = vmatprep.subr.bf16.mxu0 0
        %2406 = vmatpush1.bf16.msra.mxu0 0
        %2407 = vmatprep.subr.bf16.mxu0 0
        %2408 = vmatpush1.bf16.msra.mxu0 0
        %2409 = vmatprep.subr.bf16.mxu0 0
        %2410 = vmatpush1.bf16.msra.mxu0 0
        %2411 = vmatprep.subr.bf16.mxu0 0
        %2412 = vmatpush1.bf16.msra.mxu0 0
        %2413 = vmatprep.subr.bf16.mxu0 0
        %2414 = vmatpush1.bf16.msra.mxu0 0
        %2415 = vmatprep.subr.bf16.mxu0 0
        %2416 = vmatpush1.bf16.msra.mxu0 0
        %2417 = vmatprep.subr.bf16.mxu0 0
        %2418 = vmatpush1.bf16.msra.mxu0 0
        %2419 = vmatprep.subr.bf16.mxu0 0
        %2420 = vmatpush1.bf16.msra.mxu0 0
        %2421 = vmatprep.subr.bf16.mxu0 0
        %2422 = vmatpush1.bf16.msra.mxu0 0
        %2423 = vmatprep.subr.bf16.mxu0 0
        %2424 = vmatpush1.bf16.msra.mxu0 0
        %2425 = vmatprep.subr.bf16.mxu0 0
        %2426 = vmatpush1.bf16.msra.mxu0 0
        %2427 = vmatprep.subr.bf16.mxu0 0
        %2428 = vmatpush1.bf16.msra.mxu0 0
        %2429 = vmatprep.mubr.bf16.mxu0 0
        %2430 = vmatmul.mubr.bf16.gmra.mrb[0].mxu0 %v2395
        %v2431 = vpop.f32.mrb[0].mxu0
        %v2432 = vadd.f32 0.0, %v2431
        %v2433 = vpop.f32.mrb[0].mxu0
        %v2434 = vpop.f32.mrb[0].mxu0
        %v2435 = vadd.f32 0.0, %v2434
        %v2436 = vpop.f32.mrb[0].mxu0
        %2437 = vdwg.mxu0
        %v2438 = vpack.c.bf16 %v2435, %v2432
        %s2439 = scalar_lea.vmem %s4, 32
        %v2440 = vld [vmem:[%s2439] sm:$0xf]
        %v2441 = vld [vmem:[%s2439 + $0x4] sm:$0xf]
        %v2444 = vunpack.c.l.b16 %v2440
        %v2445 = vunpack.c.l.b16 %v2441
        %v2446 = vpack.c.b16 %v2445, %v2444
        %v2448 = vsel %vm2234, %v2446, 0
        %2450 = vmatprep.subr.bf16.mxu0 0
        %2451 = vmatpush1.bf16.msra.mxu0 %v2223
        %2452 = vmatprep.subr.bf16.mxu0 0
        %2453 = vmatpush1.bf16.msra.mxu0 %v2224
        %2454 = vmatprep.subr.bf16.mxu0 0
        %2455 = vmatpush1.bf16.msra.mxu0 %v2225
        %2456 = vmatprep.subr.bf16.mxu0 0
        %2457 = vmatpush1.bf16.msra.mxu0 %v2226
        %2458 = vmatprep.subr.bf16.mxu0 0
        %2459 = vmatpush1.bf16.msra.mxu0 0
        %2460 = vmatprep.subr.bf16.mxu0 0
        %2461 = vmatpush1.bf16.msra.mxu0 0
        %2462 = vmatprep.subr.bf16.mxu0 0
        %2463 = vmatpush1.bf16.msra.mxu0 0
        %2464 = vmatprep.subr.bf16.mxu0 0
        %2465 = vmatpush1.bf16.msra.mxu0 0
        %2466 = vmatprep.subr.bf16.mxu0 0
        %2467 = vmatpush1.bf16.msra.mxu0 0
        %2468 = vmatprep.subr.bf16.mxu0 0
        %2469 = vmatpush1.bf16.msra.mxu0 0
        %2470 = vmatprep.subr.bf16.mxu0 0
        %2471 = vmatpush1.bf16.msra.mxu0 0
        %2472 = vmatprep.subr.bf16.mxu0 0
        %2473 = vmatpush1.bf16.msra.mxu0 0
        %2474 = vmatprep.subr.bf16.mxu0 0
        %2475 = vmatpush1.bf16.msra.mxu0 0
        %2476 = vmatprep.subr.bf16.mxu0 0
        %2477 = vmatpush1.bf16.msra.mxu0 0
        %2478 = vmatprep.subr.bf16.mxu0 0
        %2479 = vmatpush1.bf16.msra.mxu0 0
        %2480 = vmatprep.subr.bf16.mxu0 0
        %2481 = vmatpush1.bf16.msra.mxu0 0
        %2482 = vmatprep.mubr.bf16.mxu0 0
        %2483 = vmatmul.mubr.bf16.gmra.mrb[0].mxu0 %v2448
        %v2484 = vpop.f32.mrb[0].mxu0
        %v2485 = vadd.f32 0.0, %v2484
        %v2486 = vpop.f32.mrb[0].mxu0
        %v2487 = vpop.f32.mrb[0].mxu0
        %v2488 = vadd.f32 0.0, %v2487
        %v2489 = vpop.f32.mrb[0].mxu0
        %2490 = vdwg.mxu0
        %v2491 = vpack.c.bf16 %v2488, %v2485
        %s2492 = scalar_lea.vmem %s4, 40
        %v2493 = vld [vmem:[%s2492] sm:$0xf]
        %v2494 = vld [vmem:[%s2492 + $0x4] sm:$0xf]
        %v2497 = vunpack.c.l.b16 %v2493
        %v2498 = vunpack.c.l.b16 %v2494
        %v2499 = vpack.c.b16 %v2498, %v2497
        %v2501 = vsel %vm2234, %v2499, 0
        %2503 = vmatprep.subr.bf16.mxu0 0
        %2504 = vmatpush1.bf16.msra.mxu0 %v2223
        %2505 = vmatprep.subr.bf16.mxu0 0
        %2506 = vmatpush1.bf16.msra.mxu0 %v2224
        %2507 = vmatprep.subr.bf16.mxu0 0
        %2508 = vmatpush1.bf16.msra.mxu0 %v2225
        %2509 = vmatprep.subr.bf16.mxu0 0
        %2510 = vmatpush1.bf16.msra.mxu0 %v2226
        %2511 = vmatprep.subr.bf16.mxu0 0
        %2512 = vmatpush1.bf16.msra.mxu0 0
        %2513 = vmatprep.subr.bf16.mxu0 0
        %2514 = vmatpush1.bf16.msra.mxu0 0
        %2515 = vmatprep.subr.bf16.mxu0 0
        %2516 = vmatpush1.bf16.msra.mxu0 0
        %2517 = vmatprep.subr.bf16.mxu0 0
        %2518 = vmatpush1.bf16.msra.mxu0 0
        %2519 = vmatprep.subr.bf16.mxu0 0
        %2520 = vmatpush1.bf16.msra.mxu0 0
        %2521 = vmatprep.subr.bf16.mxu0 0
        %2522 = vmatpush1.bf16.msra.mxu0 0
        %2523 = vmatprep.subr.bf16.mxu0 0
        %2524 = vmatpush1.bf16.msra.mxu0 0
        %2525 = vmatprep.subr.bf16.mxu0 0
        %2526 = vmatpush1.bf16.msra.mxu0 0
        %2527 = vmatprep.subr.bf16.mxu0 0
        %2528 = vmatpush1.bf16.msra.mxu0 0
        %2529 = vmatprep.subr.bf16.mxu0 0
        %2530 = vmatpush1.bf16.msra.mxu0 0
        %2531 = vmatprep.subr.bf16.mxu0 0
        %2532 = vmatpush1.bf16.msra.mxu0 0
        %2533 = vmatprep.subr.bf16.mxu0 0
        %2534 = vmatpush1.bf16.msra.mxu0 0
        %2535 = vmatprep.mubr.bf16.mxu0 0
        %2536 = vmatmul.mubr.bf16.gmra.mrb[0].mxu0 %v2501
        %v2537 = vpop.f32.mrb[0].mxu0
        %v2538 = vadd.f32 0.0, %v2537
        %v2539 = vpop.f32.mrb[0].mxu0
        %v2540 = vpop.f32.mrb[0].mxu0
        %v2541 = vadd.f32 0.0, %v2540
        %v2542 = vpop.f32.mrb[0].mxu0
        %2543 = vdwg.mxu0
        %v2544 = vpack.c.bf16 %v2541, %v2538
        %s2545 = scalar_lea.vmem %s4, 48
        %v2546 = vld [vmem:[%s2545] sm:$0xf]
        %v2547 = vld [vmem:[%s2545 + $0x4] sm:$0xf]
        %v2550 = vunpack.c.l.b16 %v2546
        %v2551 = vunpack.c.l.b16 %v2547
        %v2552 = vpack.c.b16 %v2551, %v2550
        %v2554 = vsel %vm2234, %v2552, 0
        %2556 = vmatprep.subr.bf16.mxu0 0
        %2557 = vmatpush1.bf16.msra.mxu0 %v2223
        %2558 = vmatprep.subr.bf16.mxu0 0
        %2559 = vmatpush1.bf16.msra.mxu0 %v2224
        %2560 = vmatprep.subr.bf16.mxu0 0
        %2561 = vmatpush1.bf16.msra.mxu0 %v2225
        %2562 = vmatprep.subr.bf16.mxu0 0
        %2563 = vmatpush1.bf16.msra.mxu0 %v2226
        %2564 = vmatprep.subr.bf16.mxu0 0
        %2565 = vmatpush1.bf16.msra.mxu0 0
        %2566 = vmatprep.subr.bf16.mxu0 0
        %2567 = vmatpush1.bf16.msra.mxu0 0
        %2568 = vmatprep.subr.bf16.mxu0 0
        %2569 = vmatpush1.bf16.msra.mxu0 0
        %2570 = vmatprep.subr.bf16.mxu0 0
        %2571 = vmatpush1.bf16.msra.mxu0 0
        %2572 = vmatprep.subr.bf16.mxu0 0
        %2573 = vmatpush1.bf16.msra.mxu0 0
        %2574 = vmatprep.subr.bf16.mxu0 0
        %2575 = vmatpush1.bf16.msra.mxu0 0
        %2576 = vmatprep.subr.bf16.mxu0 0
        %2577 = vmatpush1.bf16.msra.mxu0 0
        %2578 = vmatprep.subr.bf16.mxu0 0
        %2579 = vmatpush1.bf16.msra.mxu0 0
        %2580 = vmatprep.subr.bf16.mxu0 0
        %2581 = vmatpush1.bf16.msra.mxu0 0
        %2582 = vmatprep.subr.bf16.mxu0 0
        %2583 = vmatpush1.bf16.msra.mxu0 0
        %2584 = vmatprep.subr.bf16.mxu0 0
        %2585 = vmatpush1.bf16.msra.mxu0 0
        %2586 = vmatprep.subr.bf16.mxu0 0
        %2587 = vmatpush1.bf16.msra.mxu0 0
        %2588 = vmatprep.mubr.bf16.mxu0 0
        %2589 = vmatmul.mubr.bf16.gmra.mrb[0].mxu0 %v2554
        %v2590 = vpop.f32.mrb[0].mxu0
        %v2591 = vadd.f32 0.0, %v2590
        %v2592 = vpop.f32.mrb[0].mxu0
        %v2593 = vpop.f32.mrb[0].mxu0
        %v2594 = vadd.f32 0.0, %v2593
        %v2595 = vpop.f32.mrb[0].mxu0
        %2596 = vdwg.mxu0
        %v2597 = vpack.c.bf16 %v2594, %v2591
        %s2598 = scalar_lea.vmem %s4, 56
        %v2599 = vld [vmem:[%s2598] sm:$0xf]
        %v2600 = vld [vmem:[%s2598 + $0x4] sm:$0xf]
        %v2603 = vunpack.c.l.b16 %v2599
        %v2604 = vunpack.c.l.b16 %v2600
        %v2605 = vpack.c.b16 %v2604, %v2603
        %v2607 = vsel %vm2234, %v2605, 0
        %2609 = vmatprep.subr.bf16.mxu0 0
        %2610 = vmatpush1.bf16.msra.mxu0 %v2223
        %2611 = vmatprep.subr.bf16.mxu0 0
        %2612 = vmatpush1.bf16.msra.mxu0 %v2224
        %2613 = vmatprep.subr.bf16.mxu0 0
        %2614 = vmatpush1.bf16.msra.mxu0 %v2225
        %2615 = vmatprep.subr.bf16.mxu0 0
        %2616 = vmatpush1.bf16.msra.mxu0 %v2226
        %2617 = vmatprep.subr.bf16.mxu0 0
        %2618 = vmatpush1.bf16.msra.mxu0 0
        %2619 = vmatprep.subr.bf16.mxu0 0
        %2620 = vmatpush1.bf16.msra.mxu0 0
        %2621 = vmatprep.subr.bf16.mxu0 0
        %2622 = vmatpush1.bf16.msra.mxu0 0
        %2623 = vmatprep.subr.bf16.mxu0 0
        %2624 = vmatpush1.bf16.msra.mxu0 0
        %2625 = vmatprep.subr.bf16.mxu0 0
        %2626 = vmatpush1.bf16.msra.mxu0 0
        %2627 = vmatprep.subr.bf16.mxu0 0
        %2628 = vmatpush1.bf16.msra.mxu0 0
        %2629 = vmatprep.subr.bf16.mxu0 0
        %2630 = vmatpush1.bf16.msra.mxu0 0
        %2631 = vmatprep.subr.bf16.mxu0 0
        %2632 = vmatpush1.bf16.msra.mxu0 0
        %2633 = vmatprep.subr.bf16.mxu0 0
        %2634 = vmatpush1.bf16.msra.mxu0 0
        %2635 = vmatprep.subr.bf16.mxu0 0
        %2636 = vmatpush1.bf16.msra.mxu0 0
        %2637 = vmatprep.subr.bf16.mxu0 0
        %2638 = vmatpush1.bf16.msra.mxu0 0
        %2639 = vmatprep.subr.bf16.mxu0 0
        %2640 = vmatpush1.bf16.msra.mxu0 0
        %2641 = vmatprep.mubr.bf16.mxu0 0
        %2642 = vmatmul.mubr.bf16.gmra.mrb[0].mxu0 %v2607
        %v2643 = vpop.f32.mrb[0].mxu0
        %v2644 = vadd.f32 0.0, %v2643
        %v2645 = vpop.f32.mrb[0].mxu0
        %v2646 = vpop.f32.mrb[0].mxu0
        %v2647 = vadd.f32 0.0, %v2646
        %v2648 = vpop.f32.mrb[0].mxu0
        %2649 = vdwg.mxu0
        %v2650 = vpack.c.bf16 %v2647, %v2644
        %s2651 = scalar_lea.vmem %s4, 64
        %v2652 = vld [vmem:[%s2651] sm:$0xf]
        %v2653 = vld [vmem:[%s2651 + $0x4] sm:$0xf]
        %v2656 = vunpack.c.l.b16 %v2652
        %v2657 = vunpack.c.l.b16 %v2653
        %v2658 = vpack.c.b16 %v2657, %v2656
        %v2660 = vsel %vm2234, %v2658, 0
        %2662 = vmatprep.subr.bf16.mxu0 0
        %2663 = vmatpush1.bf16.msra.mxu0 %v2223
        %2664 = vmatprep.subr.bf16.mxu0 0
        %2665 = vmatpush1.bf16.msra.mxu0 %v2224
        %2666 = vmatprep.subr.bf16.mxu0 0
        %2667 = vmatpush1.bf16.msra.mxu0 %v2225
        %2668 = vmatprep.subr.bf16.mxu0 0
        %2669 = vmatpush1.bf16.msra.mxu0 %v2226
        %2670 = vmatprep.subr.bf16.mxu0 0
        %2671 = vmatpush1.bf16.msra.mxu0 0
        %2672 = vmatprep.subr.bf16.mxu0 0
        %2673 = vmatpush1.bf16.msra.mxu0 0
        %2674 = vmatprep.subr.bf16.mxu0 0
        %2675 = vmatpush1.bf16.msra.mxu0 0
        %2676 = vmatprep.subr.bf16.mxu0 0
        %2677 = vmatpush1.bf16.msra.mxu0 0
        %2678 = vmatprep.subr.bf16.mxu0 0
        %2679 = vmatpush1.bf16.msra.mxu0 0
        %2680 = vmatprep.subr.bf16.mxu0 0
        %2681 = vmatpush1.bf16.msra.mxu0 0
        %2682 = vmatprep.subr.bf16.mxu0 0
        %2683 = vmatpush1.bf16.msra.mxu0 0
        %2684 = vmatprep.subr.bf16.mxu0 0
        %2685 = vmatpush1.bf16.msra.mxu0 0
        %2686 = vmatprep.subr.bf16.mxu0 0
        %2687 = vmatpush1.bf16.msra.mxu0 0
        %2688 = vmatprep.subr.bf16.mxu0 0
        %2689 = vmatpush1.bf16.msra.mxu0 0
        %2690 = vmatprep.subr.bf16.mxu0 0
        %2691 = vmatpush1.bf16.msra.mxu0 0
        %2692 = vmatprep.subr.bf16.mxu0 0
        %2693 = vmatpush1.bf16.msra.mxu0 0
        %2694 = vmatprep.mubr.bf16.mxu0 0
        %2695 = vmatmul.mubr.bf16.gmra.mrb[0].mxu0 %v2660
        %v2696 = vpop.f32.mrb[0].mxu0
        %v2697 = vadd.f32 0.0, %v2696
        %v2698 = vpop.f32.mrb[0].mxu0
        %v2699 = vpop.f32.mrb[0].mxu0
        %v2700 = vadd.f32 0.0, %v2699
        %v2701 = vpop.f32.mrb[0].mxu0
        %2702 = vdwg.mxu0
        %v2703 = vpack.c.bf16 %v2700, %v2697
        %2705 = vrot.lane.b32.xlu0 %v2332, 16
        %v2706 = vpop.permute.xlu0 %2705
        %2708 = vrot.lane.b32.xlu0 %v2385, 32
        %v2709 = vpop.permute.xlu0 %2708
        %2711 = vrot.lane.b32.xlu0 %v2438, 48
        %v2712 = vpop.permute.xlu0 %2711
        %2714 = vrot.lane.b32.xlu0 %v2491, 64
        %v2715 = vpop.permute.xlu0 %2714
        %2717 = vrot.lane.b32.xlu0 %v2544, 80
        %v2718 = vpop.permute.xlu0 %2717
        %2720 = vrot.lane.b32.xlu0 %v2597, 96
        %v2721 = vpop.permute.xlu0 %2720
        %2723 = vrot.lane.b32.xlu0 %v2650, 112
        %v2724 = vpop.permute.xlu0 %2723
        %v2727 = vsel %vm2065, %v2279, %v2706
        %v2729 = vsel %vm2101, %v2727, %v2709
        %vm2730 = vcmask 392192
        %v2732 = vsel %vm2730, %v2729, %v2712
        %v2734 = vsel %vm2234, %v2732, %v2715
        %vm2735 = vcmask 654336
        %v2737 = vsel %vm2735, %v2734, %v2718
        %vm2738 = vcmask 785408
        %v2740 = vsel %vm2738, %v2737, %v2721
        %vm2741 = vcmask 916480
        %v2743 = vsel %vm2741, %v2740, %v2724
        %v2745 = vld [vmem:[%s5] sm:$0xf]
        %v2746 = vld [vmem:[%s5 + $0x4] sm:$0xf]
        %v2747 = vld [vmem:[%s5 + $0x8] sm:$0xf]
        %v2748 = vld [vmem:[%s5 + $0xc] sm:$0xf]
        %v2749 = vld [vmem:[%s5 + $0x10] sm:$0xf]
        %v2750 = vld [vmem:[%s5 + $0x14] sm:$0xf]
        %v2751 = vld [vmem:[%s5 + $0x18] sm:$0xf]
        %v2752 = vld [vmem:[%s5 + $0x1c] sm:$0xf]
        %v2753 = vld [vmem:[%s5 + $0x20] sm:$0xf]
        %v2754 = vld [vmem:[%s5 + $0x24] sm:$0xf]
        %v2755 = vld [vmem:[%s5 + $0x28] sm:$0xf]
        %v2756 = vld [vmem:[%s5 + $0x2c] sm:$0xf]
        %v2757 = vld [vmem:[%s5 + $0x30] sm:$0xf]
        %v2758 = vld [vmem:[%s5 + $0x34] sm:$0xf]
        %v2759 = vld [vmem:[%s5 + $0x38] sm:$0xf]
        %v2760 = vld [vmem:[%s5 + $0x3c] sm:$0xf]
        %v2761 = vld [vmem:[%s5 + $0x40] sm:$0xf]
        %v2762 = vld [vmem:[%s5 + $0x44] sm:$0xf]
        %v2763 = vld [vmem:[#allocation4] sm:$0x1]
        %v2765 = vlaneseq
        %v2766 = vshrl.u32 %v2765, 7
        %v2767 = vsub.s32 0, %v2766
        %v2768 = vrot.slane %v2763, %v2767
        %v2788 = vunpack.c.l.b16 %v2745
        %v2789 = vunpack.c.l.b16 %v2746
        %v2790 = vunpack.c.l.b16 %v2747
        %v2791 = vunpack.c.l.b16 %v2748
        %v2792 = vunpack.c.l.b16 %v2749
        %v2793 = vunpack.c.l.b16 %v2750
        %v2794 = vunpack.c.l.b16 %v2751
        %v2795 = vunpack.c.l.b16 %v2752
        %v2796 = vunpack.c.l.b16 %v2753
        %v2797 = vunpack.c.l.b16 %v2754
        %v2798 = vunpack.c.l.b16 %v2755
        %v2799 = vunpack.c.l.b16 %v2756
        %v2800 = vunpack.c.l.b16 %v2757
        %v2801 = vunpack.c.l.b16 %v2758
        %v2802 = vunpack.c.l.b16 %v2759
        %v2803 = vunpack.c.l.b16 %v2760
        %v2804 = vunpack.c.l.b16 %v2761
        %v2805 = vunpack.c.l.b16 %v2762
        %v2806 = vpack.c.b16 %v2789, %v2788
        %v2807 = vpack.c.b16 %v2791, %v2790
        %v2808 = vpack.c.b16 %v2793, %v2792
        %v2809 = vpack.c.b16 %v2795, %v2794
        %v2810 = vpack.c.b16 %v2797, %v2796
        %v2811 = vpack.c.b16 %v2799, %v2798
        %v2812 = vpack.c.b16 %v2801, %v2800
        %v2813 = vpack.c.b16 %v2803, %v2802
        %v2814 = vpack.c.b16 %v2805, %v2804
        %v2825 = vsel %vm2065, %v2703, 0
        %2827 = vmatprep.subr.bf16.mxu0 0
        %2828 = vmatpush1.bf16.msra.mxu0 %v2806
        %2829 = vmatprep.subr.bf16.mxu0 0
        %2830 = vmatpush1.bf16.msra.mxu0 %v2807
        %2831 = vmatprep.subr.bf16.mxu0 0
        %2832 = vmatpush1.bf16.msra.mxu0 %v2808
        %2833 = vmatprep.subr.bf16.mxu0 0
        %2834 = vmatpush1.bf16.msra.mxu0 %v2809
        %2835 = vmatprep.subr.bf16.mxu0 0
        %2836 = vmatpush1.bf16.msra.mxu0 %v2810
        %2837 = vmatprep.subr.bf16.mxu0 0
        %2838 = vmatpush1.bf16.msra.mxu0 %v2811
        %2839 = vmatprep.subr.bf16.mxu0 0
        %2840 = vmatpush1.bf16.msra.mxu0 %v2812
        %2841 = vmatprep.subr.bf16.mxu0 0
        %2842 = vmatpush1.bf16.msra.mxu0 %v2813
        %2843 = vmatprep.subr.bf16.mxu0 0
        %2844 = vmatpush1.bf16.msra.mxu0 %v2814
        %2845 = vmatprep.subr.bf16.mxu0 0
        %2846 = vmatpush1.bf16.msra.mxu0 0
        %2847 = vmatprep.subr.bf16.mxu0 0
        %2848 = vmatpush1.bf16.msra.mxu0 0
        %2849 = vmatprep.subr.bf16.mxu0 0
        %2850 = vmatpush1.bf16.msra.mxu0 0
        %2851 = vmatprep.subr.bf16.mxu0 0
        %2852 = vmatpush1.bf16.msra.mxu0 0
        %2853 = vmatprep.subr.bf16.mxu0 0
        %2854 = vmatpush1.bf16.msra.mxu0 0
        %2855 = vmatprep.subr.bf16.mxu0 0
        %2856 = vmatpush1.bf16.msra.mxu0 0
        %2857 = vmatprep.subr.bf16.mxu0 0
        %2858 = vmatpush1.bf16.msra.mxu0 0
        %2859 = vmatprep.mubr.bf16.mxu0 %v2825
        %2860 = vmatmul.mubr.bf16.gmra.mrb[0].mxu0 %v2743
        %v2861 = vpop.f32.mrb[0].mxu0
        %v2862 = vadd.f32 %v2768, %v2861
        %v2863 = vpop.f32.mrb[0].mxu0
        %v2864 = vpop.f32.mrb[0].mxu0
        %v2865 = vadd.f32 %v2768, %v2864
        %v2866 = vpop.f32.mrb[0].mxu0
        %2867 = vdwg.mxu0
        %v2868 = vpack.c.bf16 %v2865, %v2862
        %v2869 = vld [vmem:[%s7] sm:$0xf]
        %v2870 = vld [vmem:[%s7 + $0x4] sm:$0xf]
        %v2871 = vld [vmem:[%s7 + $0x8] sm:$0xf]
        %v2872 = vld [vmem:[%s7 + $0xc] sm:$0xf]
        %v2873 = vld [vmem:[#allocation6] sm:$0x1]
        %v2875 = vlaneseq
        %v2876 = vshrl.u32 %v2875, 7
        %v2877 = vsub.s32 0, %v2876
        %v2878 = vrot.slane %v2873, %v2877
        %v2884 = vunpack.c.l.b16 %v2869
        %v2885 = vunpack.c.l.b16 %v2870
        %v2886 = vunpack.c.l.b16 %v2871
        %v2887 = vunpack.c.l.b16 %v2872
        %v2888 = vpack.c.b16 %v2885, %v2884
        %v2889 = vpack.c.b16 %v2887, %v2886
        %v2893 = vsel %vm2101, %v2868, 0
        %2895 = vmatprep.subr.bf16.mxu0 0
        %2896 = vmatpush1.bf16.msra.mxu0 %v2888
        %2897 = vmatprep.subr.bf16.mxu0 0
        %2898 = vmatpush1.bf16.msra.mxu0 %v2889
        %2899 = vmatprep.subr.bf16.mxu0 0
        %2900 = vmatpush1.bf16.msra.mxu0 0
        %2901 = vmatprep.subr.bf16.mxu0 0
        %2902 = vmatpush1.bf16.msra.mxu0 0
        %2903 = vmatprep.subr.bf16.mxu0 0
        %2904 = vmatpush1.bf16.msra.mxu0 0
        %2905 = vmatprep.subr.bf16.mxu0 0
        %2906 = vmatpush1.bf16.msra.mxu0 0
        %2907 = vmatprep.subr.bf16.mxu0 0
        %2908 = vmatpush1.bf16.msra.mxu0 0
        %2909 = vmatprep.subr.bf16.mxu0 0
        %2910 = vmatpush1.bf16.msra.mxu0 0
        %2911 = vmatprep.subr.bf16.mxu0 0
        %2912 = vmatpush1.bf16.msra.mxu0 0
        %2913 = vmatprep.subr.bf16.mxu0 0
        %2914 = vmatpush1.bf16.msra.mxu0 0
        %2915 = vmatprep.subr.bf16.mxu0 0
        %2916 = vmatpush1.bf16.msra.mxu0 0
        %2917 = vmatprep.subr.bf16.mxu0 0
        %2918 = vmatpush1.bf16.msra.mxu0 0
        %2919 = vmatprep.subr.bf16.mxu0 0
        %2920 = vmatpush1.bf16.msra.mxu0 0
        %2921 = vmatprep.subr.bf16.mxu0 0
        %2922 = vmatpush1.bf16.msra.mxu0 0
        %2923 = vmatprep.subr.bf16.mxu0 0
        %2924 = vmatpush1.bf16.msra.mxu0 0
        %2925 = vmatprep.subr.bf16.mxu0 0
        %2926 = vmatpush1.bf16.msra.mxu0 0
        %2927 = vmatprep.mubr.bf16.mxu0 0
        %2928 = vmatmul.mubr.bf16.gmra.mrb[0].mxu0 %v2893
        %v2929 = vpop.f32.mrb[0].mxu0
        %v2930 = vadd.f32 %v2878, %v2929
        %v2931 = vpop.f32.mrb[0].mxu0
        %v2932 = vpop.f32.mrb[0].mxu0
        %v2933 = vadd.f32 %v2878, %v2932
        %v2934 = vpop.f32.mrb[0].mxu0
        %2935 = vdwg.mxu0
        %v2936 = vld [vmem:[#allocation7] sm:$0xff]
        %v2937 = vld [vmem:[#allocation7 + $0x8] sm:$0xff]
        %v2938 = vld [vmem:[#allocation7 + $0x10] sm:$0xff]
        %v2939 = vld [vmem:[#allocation7 + $0x18] sm:$0xff]
        %v2940 = vld [vmem:[#allocation7 + $0x20] sm:$0xff]
        %v2941 = vld [vmem:[#allocation7 + $0x28] sm:$0xff]
        %v2942 = vld [vmem:[#allocation7 + $0x30] sm:$0xff]
        %v2943 = vld [vmem:[#allocation7 + $0x38] sm:$0xff]
        %v2945 = vsel %vm2101, %v2930, 0
        %v2948 = vsel %vm2101, %v2933, 0
        %v2951 = vsel %vm2101, %v2936, 0
        %v2954 = vsel %vm2101, %v2937, 0
        %v2957 = vsel %vm2101, %v2938, 0
        %v2960 = vsel %vm2101, %v2939, 0
        %v2963 = vsel %vm2101, %v2940, 0
        %v2966 = vsel %vm2101, %v2941, 0
        %v2969 = vsel %vm2101, %v2942, 0
        %v2972 = vsel %vm2101, %v2943, 0
        %2974 = vmatprep.subr.mxu0 0.0
        %2975 = vmatpush1.xpose.msra.mxu0 %v2951
        %2976 = vmatprep.subr.mxu0 0.0
        %2977 = vmatpush1.xpose.msra.mxu0 %v2954
        %2978 = vmatprep.subr.mxu0 0.0
        %2979 = vmatpush1.xpose.msra.mxu0 %v2957
        %2980 = vmatprep.subr.mxu0 0.0
        %2981 = vmatpush1.xpose.msra.mxu0 %v2960
        %2982 = vmatprep.subr.mxu0 0.0
        %2983 = vmatpush1.xpose.msra.mxu0 %v2963
        %2984 = vmatprep.subr.mxu0 0.0
        %2985 = vmatpush1.xpose.msra.mxu0 %v2966
        %2986 = vmatprep.subr.mxu0 0.0
        %2987 = vmatpush1.xpose.msra.mxu0 %v2969
        %2988 = vmatprep.subr.mxu0 0.0
        %2989 = vmatpush1.xpose.msra.mxu0 %v2972
        %2990 = vmatprep.subr.mxu0 0.0
        %2991 = vmatpush1.xpose.msra.mxu0 0.0
        %2992 = vmatprep.subr.mxu0 0.0
        %2993 = vmatpush1.xpose.msra.mxu0 0.0
        %2994 = vmatprep.subr.mxu0 0.0
        %2995 = vmatpush1.xpose.msra.mxu0 0.0
        %2996 = vmatprep.subr.mxu0 0.0
        %2997 = vmatpush1.xpose.msra.mxu0 0.0
        %2998 = vmatprep.subr.mxu0 0.0
        %2999 = vmatpush1.xpose.msra.mxu0 0.0
        %3000 = vmatprep.subr.mxu0 0.0
        %3001 = vmatpush1.xpose.msra.mxu0 0.0
        %3002 = vmatprep.subr.mxu0 0.0
        %3003 = vmatpush1.xpose.msra.mxu0 0.0
        %3004 = vmatprep.subr.mxu0 0.0
        %3005 = vmatpush1.xpose.msra.mxu0 0.0
        %3006 = vmatprep.subr.mxu0 0.0
        %3007 = vmatpush1.xpose.msra.mxu0 0.0
        %3008 = vmatprep.subr.mxu0 0.0
        %3009 = vmatpush1.xpose.msra.mxu0 0.0
        %3010 = vmatprep.subr.mxu0 0.0
        %3011 = vmatpush1.xpose.msra.mxu0 0.0
        %3012 = vmatprep.subr.mxu0 0.0
        %3013 = vmatpush1.xpose.msra.mxu0 0.0
        %3014 = vmatprep.subr.mxu0 0.0
        %3015 = vmatpush1.xpose.msra.mxu0 0.0
        %3016 = vmatprep.subr.mxu0 0.0
        %3017 = vmatpush1.xpose.msra.mxu0 0.0
        %3018 = vmatprep.subr.mxu0 0.0
        %3019 = vmatpush1.xpose.msra.mxu0 0.0
        %3020 = vmatprep.subr.mxu0 0.0
        %3021 = vmatpush1.xpose.msra.mxu0 0.0
        %3022 = vmatprep.subr.mxu0 0.0
        %3023 = vmatpush1.xpose.msra.mxu0 0.0
        %3024 = vmatprep.subr.mxu0 0.0
        %3025 = vmatpush1.xpose.msra.mxu0 0.0
        %3026 = vmatprep.subr.mxu0 0.0
        %3027 = vmatpush1.xpose.msra.mxu0 0.0
        %3028 = vmatprep.subr.mxu0 0.0
        %3029 = vmatpush1.xpose.msra.mxu0 0.0
        %3030 = vmatprep.subr.mxu0 0.0
        %3031 = vmatpush1.xpose.msra.mxu0 0.0
        %3032 = vmatprep.subr.mxu0 0.0
        %3033 = vmatpush1.xpose.msra.mxu0 0.0
        %3034 = vmatprep.subr.mxu0 0.0
        %3035 = vmatpush1.xpose.msra.mxu0 0.0
        %3036 = vmatprep.subr.mxu0 0.0
        %3037 = vmatpush1.xpose.msra.mxu0 0.0
        %3038 = vmatprep.mubr.f32.mxu0 0.0
        %3039 = vmatmul.mubr.f32.gmra.mrb[0].mxu0 %v2945
        %v3040 = vpop.f32.mrb[0].mxu0
        %v3041 = vadd.f32 0.0, %v3040
        %v3042 = vpop.f32.mrb[0].mxu0
        %3043 = vmatprep.mubr.f32.mxu0 0.0
        %3044 = vmatmul.mubr.f32.gmra.mrb[0].mxu0 %v2948
        %v3045 = vpop.f32.mrb[0].mxu0
        %v3046 = vadd.f32 0.0, %v3045
        %v3047 = vpop.f32.mrb[0].mxu0
        %3048 = vdwg.mxu0
        %v3049 = vld [vmem:[%s10] sm:$0x1]
        %v3050 = vmul.f32 %v3041, 2.0
        %v3051 = vmul.f32 %v3046, 2.0
        %v3053 = vlaneseq
        %v3054 = vshrl.u32 %v3053, 7
        %v3055 = vsub.s32 0, %v3054
        %v3056 = vrot.slane %v3049, %v3055
        %v3058 = vsub.f32 %v3056, %v3050
        %v3059 = vsub.f32 %v3056, %v3051
        %v3060 = vsel %vm2234, %v3058, inf
        %3061 = vmin.xlane.f32.xlu0 %v3060
        %v3062 = vpop.xlane.xlu0 %3061
        %v3063 = vsel %vm2234, %v3059, inf
        %3064 = vmin.xlane.f32.xlu0 %v3063
        %v3065 = vpop.xlane.xlu0 %3064
        %v3066 = vlaneseq
        %v3067 = vand.u32 %v3066, 127
        %v3068 = vcvt.s32.f32 %v3067
        %vm3069 = vcmp.le.f32.partialorder %v3058, %v3062
        %vm3070 = vcmp.le.f32.partialorder %v3059, %v3065
        %v3071 = vsel %vm3069, %v3068, 64.0
        %v3072 = vsel %vm3070, %v3068, 64.0
        %v3073 = vsel %vm2234, %v3071, inf
        %3074 = vmin.xlane.f32.xlu0 %v3073
        %v3075 = vpop.xlane.xlu0 %3074
        %v3076 = vsel %vm2234, %v3072, inf
        %3077 = vmin.xlane.f32.xlu0 %v3076
        %v3078 = vpop.xlane.xlu0 %3077
        %vm3079 = vcmp.eq.f32.partialorder %v3068, %v3075
        %vm3080 = vcmp.eq.f32.partialorder %v3068, %v3078
        %v3081 = vsel %vm3079, 1, 0
        %v3082 = vsel %vm3080, 1, 0
        %v3083 = vcvt.s32.f32 %v3081
        %v3084 = vcvt.s32.f32 %v3082
        %v3086 = vsel %vm2234, %v3083, 0
        %v3089 = vsel %vm2234, %v3084, 0
        %3091 = vmatprep.subr.mxu0 0.0
        %3092 = vmatpush1.msra.mxu0 %v2936
        %3093 = vmatprep.subr.mxu0 0.0
        %3094 = vmatpush1.msra.mxu0 %v2937
        %3095 = vmatprep.subr.mxu0 0.0
        %3096 = vmatpush1.msra.mxu0 %v2938
        %3097 = vmatprep.subr.mxu0 0.0
        %3098 = vmatpush1.msra.mxu0 %v2939
        %3099 = vmatprep.subr.mxu0 0.0
        %3100 = vmatpush1.msra.mxu0 %v2940
        %3101 = vmatprep.subr.mxu0 0.0
        %3102 = vmatpush1.msra.mxu0 %v2941
        %3103 = vmatprep.subr.mxu0 0.0
        %3104 = vmatpush1.msra.mxu0 %v2942
        %3105 = vmatprep.subr.mxu0 0.0
        %3106 = vmatpush1.msra.mxu0 %v2943
        %3107 = vmatprep.subr.mxu0 0.0
        %3108 = vmatpush1.msra.mxu0 0.0
        %3109 = vmatprep.subr.mxu0 0.0
        %3110 = vmatpush1.msra.mxu0 0.0
        %3111 = vmatprep.subr.mxu0 0.0
        %3112 = vmatpush1.msra.mxu0 0.0
        %3113 = vmatprep.subr.mxu0 0.0
        %3114 = vmatpush1.msra.mxu0 0.0
        %3115 = vmatprep.subr.mxu0 0.0
        %3116 = vmatpush1.msra.mxu0 0.0
        %3117 = vmatprep.subr.mxu0 0.0
        %3118 = vmatpush1.msra.mxu0 0.0
        %3119 = vmatprep.subr.mxu0 0.0
        %3120 = vmatpush1.msra.mxu0 0.0
        %3121 = vmatprep.subr.mxu0 0.0
        %3122 = vmatpush1.msra.mxu0 0.0
        %3123 = vmatprep.subr.mxu0 0.0
        %3124 = vmatpush1.msra.mxu0 0.0
        %3125 = vmatprep.subr.mxu0 0.0
        %3126 = vmatpush1.msra.mxu0 0.0
        %3127 = vmatprep.subr.mxu0 0.0
        %3128 = vmatpush1.msra.mxu0 0.0
        %3129 = vmatprep.subr.mxu0 0.0
        %3130 = vmatpush1.msra.mxu0 0.0
        %3131 = vmatprep.subr.mxu0 0.0
        %3132 = vmatpush1.msra.mxu0 0.0
        %3133 = vmatprep.subr.mxu0 0.0
        %3134 = vmatpush1.msra.mxu0 0.0
        %3135 = vmatprep.subr.mxu0 0.0
        %3136 = vmatpush1.msra.mxu0 0.0
        %3137 = vmatprep.subr.mxu0 0.0
        %3138 = vmatpush1.msra.mxu0 0.0
        %3139 = vmatprep.subr.mxu0 0.0
        %3140 = vmatpush1.msra.mxu0 0.0
        %3141 = vmatprep.subr.mxu0 0.0
        %3142 = vmatpush1.msra.mxu0 0.0
        %3143 = vmatprep.subr.mxu0 0.0
        %3144 = vmatpush1.msra.mxu0 0.0
        %3145 = vmatprep.subr.mxu0 0.0
        %3146 = vmatpush1.msra.mxu0 0.0
        %3147 = vmatprep.subr.mxu0 0.0
        %3148 = vmatpush1.msra.mxu0 0.0
        %3149 = vmatprep.subr.mxu0 0.0
        %3150 = vmatpush1.msra.mxu0 0.0
        %3151 = vmatprep.subr.mxu0 0.0
        %3152 = vmatpush1.msra.mxu0 0.0
        %3153 = vmatprep.subr.mxu0 0.0
        %3154 = vmatpush1.msra.mxu0 0.0
        %3155 = vmatprep.mubr.f32.mxu0 0.0
        %3156 = vmatmul.mubr.f32.gmra.mrb[0].mxu0 %v3086
        %v3157 = vpop.f32.mrb[0].mxu0
        %v3158 = vadd.f32 0.0, %v3157
        %v3159 = vpop.f32.mrb[0].mxu0
        %3160 = vmatprep.mubr.f32.mxu0 0.0
        %3161 = vmatmul.mubr.f32.gmra.mrb[0].mxu0 %v3089
        %v3162 = vpop.f32.mrb[0].mxu0
        %v3163 = vadd.f32 0.0, %v3162
        %v3164 = vpop.f32.mrb[0].mxu0
        %3165 = vdwg.mxu0
        %v3166 = vsub.f32 %v3158, %v2930
        %v3167 = vsub.f32 %v3163, %v2933
        %v3168 = vmul.f32 %v3166, %v3166
        %v3169 = vmul.f32 %v3167, %v3167
        %v3170 = vsel %vm2101, %v3168, 0.0
        %3171 = vadd.xlane.f32.xlu0 %v3170
        %v3172 = vpop.xlane.xlu0 %3171
        %v3173 = vsel %vm2101, %v3169, 0.0
        %3174 = vadd.xlane.f32.xlu0 %v3173
        %v3175 = vpop.xlane.xlu0 %3174
        %v3176 = vpack.c.bf16 %v3163, %v3158
        %v3177 = vld [vmem:[#allocation9] sm:$0xf]
        %v3178 = vld [vmem:[#allocation9 + $0x4] sm:$0xf]
        %v3179 = vld [vmem:[#allocation9 + $0x8] sm:$0xf]
        %v3180 = vld [vmem:[#allocation9 + $0xc] sm:$0xf]
        %v3181 = vld [vmem:[#allocation10] sm:$0x1]
        %v3183 = vlaneseq
        %v3184 = vshrl.u32 %v3183, 7
        %v3185 = vsub.s32 0, %v3184
        %v3186 = vrot.slane %v3181, %v3185
        %v3192 = vunpack.c.l.b16 %v3177
        %v3193 = vunpack.c.l.b16 %v3178
        %v3194 = vunpack.c.l.b16 %v3179
        %v3195 = vunpack.c.l.b16 %v3180
        %v3196 = vpack.c.b16 %v3193, %v3192
        %v3197 = vpack.c.b16 %v3195, %v3194
        %v3201 = vsel %vm2101, %v3176, 0
        %3203 = vmatprep.subr.bf16.mxu0 0
        %3204 = vmatpush1.bf16.msra.mxu0 %v3196
        %3205 = vmatprep.subr.bf16.mxu0 0
        %3206 = vmatpush1.bf16.msra.mxu0 %v3197
        %3207 = vmatprep.subr.bf16.mxu0 0
        %3208 = vmatpush1.bf16.msra.mxu0 0
        %3209 = vmatprep.subr.bf16.mxu0 0
        %3210 = vmatpush1.bf16.msra.mxu0 0
        %3211 = vmatprep.subr.bf16.mxu0 0
        %3212 = vmatpush1.bf16.msra.mxu0 0
        %3213 = vmatprep.subr.bf16.mxu0 0
        %3214 = vmatpush1.bf16.msra.mxu0 0
        %3215 = vmatprep.subr.bf16.mxu0 0
        %3216 = vmatpush1.bf16.msra.mxu0 0
        %3217 = vmatprep.subr.bf16.mxu0 0
        %3218 = vmatpush1.bf16.msra.mxu0 0
        %3219 = vmatprep.subr.bf16.mxu0 0
        %3220 = vmatpush1.bf16.msra.mxu0 0
        %3221 = vmatprep.subr.bf16.mxu0 0
        %3222 = vmatpush1.bf16.msra.mxu0 0
        %3223 = vmatprep.subr.bf16.mxu0 0
        %3224 = vmatpush1.bf16.msra.mxu0 0
        %3225 = vmatprep.subr.bf16.mxu0 0
        %3226 = vmatpush1.bf16.msra.mxu0 0
        %3227 = vmatprep.subr.bf16.mxu0 0
        %3228 = vmatpush1.bf16.msra.mxu0 0
        %3229 = vmatprep.subr.bf16.mxu0 0
        %3230 = vmatpush1.bf16.msra.mxu0 0
        %3231 = vmatprep.subr.bf16.mxu0 0
        %3232 = vmatpush1.bf16.msra.mxu0 0
        %3233 = vmatprep.subr.bf16.mxu0 0
        %3234 = vmatpush1.bf16.msra.mxu0 0
        %3235 = vmatprep.mubr.bf16.mxu0 0
        %3236 = vmatmul.mubr.bf16.gmra.mrb[0].mxu0 %v3201
        %v3237 = vpop.f32.mrb[0].mxu0
        %v3238 = vadd.f32 %v3186, %v3237
        %v3239 = vpop.f32.mrb[0].mxu0
        %v3240 = vpop.f32.mrb[0].mxu0
        %v3241 = vadd.f32 %v3186, %v3240
        %v3242 = vpop.f32.mrb[0].mxu0
        %3243 = vdwg.mxu0
        %v3244 = vpack.c.bf16 %v3241, %v3238
        %v3245 = vld [vmem:[%s13] sm:$0xf]
        %v3246 = vld [vmem:[%s13 + $0x4] sm:$0xf]
        %v3247 = vld [vmem:[%s13 + $0x8] sm:$0xf]
        %v3248 = vld [vmem:[%s13 + $0xc] sm:$0xf]
        %v3249 = vld [vmem:[%s13 + $0x10] sm:$0xf]
        %v3250 = vld [vmem:[%s13 + $0x14] sm:$0xf]
        %v3251 = vld [vmem:[%s13 + $0x18] sm:$0xf]
        %v3252 = vld [vmem:[%s13 + $0x1c] sm:$0xf]
        %v3261 = vunpack.c.l.b16 %v3245
        %v3262 = vunpack.c.l.b16 %v3246
        %v3263 = vunpack.c.l.b16 %v3247
        %v3264 = vunpack.c.l.b16 %v3248
        %v3265 = vunpack.c.l.b16 %v3249
        %v3266 = vunpack.c.l.b16 %v3250
        %v3267 = vunpack.c.l.b16 %v3251
        %v3268 = vunpack.c.l.b16 %v3252
        %v3269 = vpack.c.b16 %v3262, %v3261
        %v3270 = vpack.c.b16 %v3264, %v3263
        %v3271 = vpack.c.b16 %v3266, %v3265
        %v3272 = vpack.c.b16 %v3268, %v3267
        %v3274 = vsel %vm2065, %v3269, 0
        %v3277 = vsel %vm2065, %v3270, 0
        %v3280 = vsel %vm2065, %v3271, 0
        %v3283 = vsel %vm2065, %v3272, 0
        %3285 = vmatprep.subr.bf16.mxu0 0
        %3286 = vmatpush1.bf16.msra.mxu0 %v3244
        %3287 = vmatprep.subr.bf16.mxu0 0
        %3288 = vmatpush1.bf16.msra.mxu0 0
        %3289 = vmatprep.subr.bf16.mxu0 0
        %3290 = vmatpush1.bf16.msra.mxu0 0
        %3291 = vmatprep.subr.bf16.mxu0 0
        %3292 = vmatpush1.bf16.msra.mxu0 0
        %3293 = vmatprep.subr.bf16.mxu0 0
        %3294 = vmatpush1.bf16.msra.mxu0 0
        %3295 = vmatprep.subr.bf16.mxu0 0
        %3296 = vmatpush1.bf16.msra.mxu0 0
        %3297 = vmatprep.subr.bf16.mxu0 0
        %3298 = vmatpush1.bf16.msra.mxu0 0
        %3299 = vmatprep.subr.bf16.mxu0 0
        %3300 = vmatpush1.bf16.msra.mxu0 0
        %3301 = vmatprep.subr.bf16.mxu0 0
        %3302 = vmatpush1.bf16.msra.mxu0 0
        %3303 = vmatprep.subr.bf16.mxu0 0
        %3304 = vmatpush1.bf16.msra.mxu0 0
        %3305 = vmatprep.subr.bf16.mxu0 0
        %3306 = vmatpush1.bf16.msra.mxu0 0
        %3307 = vmatprep.subr.bf16.mxu0 0
        %3308 = vmatpush1.bf16.msra.mxu0 0
        %3309 = vmatprep.subr.bf16.mxu0 0
        %3310 = vmatpush1.bf16.msra.mxu0 0
        %3311 = vmatprep.subr.bf16.mxu0 0
        %3312 = vmatpush1.bf16.msra.mxu0 0
        %3313 = vmatprep.subr.bf16.mxu0 0
        %3314 = vmatpush1.bf16.msra.mxu0 0
        %3315 = vmatprep.subr.bf16.mxu0 0
        %3316 = vmatpush1.bf16.msra.mxu0 0
        %3317 = vmatprep.mubr.bf16.mxu0 0
        %3318 = vmatmul.mubr.bf16.gmra.mrb[0].mxu0 %v3274
        %v3319 = vpop.f32.mrb[0].mxu0
        %v3320 = vadd.f32 0.0, %v3319
        %v3321 = vpop.f32.mrb[0].mxu0
        %v3322 = vpop.f32.mrb[0].mxu0
        %v3323 = vadd.f32 0.0, %v3322
        %v3324 = vpop.f32.mrb[0].mxu0
        %3325 = vmatprep.mubr.bf16.mxu0 0
        %3326 = vmatmul.mubr.bf16.gmra.mrb[0].mxu0 %v3277
        %v3327 = vpop.f32.mrb[0].mxu0
        %v3328 = vadd.f32 0.0, %v3327
        %v3329 = vpop.f32.mrb[0].mxu0
        %v3330 = vpop.f32.mrb[0].mxu0
        %v3331 = vadd.f32 0.0, %v3330
        %v3332 = vpop.f32.mrb[0].mxu0
        %3333 = vmatprep.mubr.bf16.mxu0 0
        %3334 = vmatmul.mubr.bf16.gmra.mrb[0].mxu0 %v3280
        %v3335 = vpop.f32.mrb[0].mxu0
        %v3336 = vadd.f32 0.0, %v3335
        %v3337 = vpop.f32.mrb[0].mxu0
        %v3338 = vpop.f32.mrb[0].mxu0
        %v3339 = vadd.f32 0.0, %v3338
        %v3340 = vpop.f32.mrb[0].mxu0
        %3341 = vmatprep.mubr.bf16.mxu0 0
        %3342 = vmatmul.mubr.bf16.gmra.mrb[0].mxu0 %v3283
        %v3343 = vpop.f32.mrb[0].mxu0
        %v3344 = vadd.f32 0.0, %v3343
        %v3345 = vpop.f32.mrb[0].mxu0
        %v3346 = vpop.f32.mrb[0].mxu0
        %v3347 = vadd.f32 0.0, %v3346
        %v3348 = vpop.f32.mrb[0].mxu0
        %3349 = vdwg.mxu0
        %v3350 = vpack.c.bf16 %v3323, %v3320
        %v3351 = vpack.c.bf16 %v3331, %v3328
        %v3352 = vpack.c.bf16 %v3339, %v3336
        %v3353 = vpack.c.bf16 %v3347, %v3344
        %s3354 = scalar_lea.vmem %s13, 32
        %v3355 = vld [vmem:[%s3354] sm:$0xf]
        %v3356 = vld [vmem:[%s3354 + $0x4] sm:$0xf]
        %v3357 = vld [vmem:[%s3354 + $0x8] sm:$0xf]
        %v3358 = vld [vmem:[%s3354 + $0xc] sm:$0xf]
        %v3359 = vld [vmem:[%s3354 + $0x10] sm:$0xf]
        %v3360 = vld [vmem:[%s3354 + $0x14] sm:$0xf]
        %v3361 = vld [vmem:[%s3354 + $0x18] sm:$0xf]
        %v3362 = vld [vmem:[%s3354 + $0x1c] sm:$0xf]
        %v3371 = vunpack.c.l.b16 %v3355
        %v3372 = vunpack.c.l.b16 %v3356
        %v3373 = vunpack.c.l.b16 %v3357
        %v3374 = vunpack.c.l.b16 %v3358
        %v3375 = vunpack.c.l.b16 %v3359
        %v3376 = vunpack.c.l.b16 %v3360
        %v3377 = vunpack.c.l.b16 %v3361
        %v3378 = vunpack.c.l.b16 %v3362
        %v3379 = vpack.c.b16 %v3372, %v3371
        %v3380 = vpack.c.b16 %v3374, %v3373
        %v3381 = vpack.c.b16 %v3376, %v3375
        %v3382 = vpack.c.b16 %v3378, %v3377
        %v3384 = vsel %vm2065, %v3379, 0
        %v3387 = vsel %vm2065, %v3380, 0
        %v3390 = vsel %vm2065, %v3381, 0
        %v3393 = vsel %vm2065, %v3382, 0
        %3395 = vmatprep.subr.bf16.mxu0 0
        %3396 = vmatpush1.bf16.msra.mxu0 %v3244
        %3397 = vmatprep.subr.bf16.mxu0 0
        %3398 = vmatpush1.bf16.msra.mxu0 0
        %3399 = vmatprep.subr.bf16.mxu0 0
        %3400 = vmatpush1.bf16.msra.mxu0 0
        %3401 = vmatprep.subr.bf16.mxu0 0
        %3402 = vmatpush1.bf16.msra.mxu0 0
        %3403 = vmatprep.subr.bf16.mxu0 0
        %3404 = vmatpush1.bf16.msra.mxu0 0
        %3405 = vmatprep.subr.bf16.mxu0 0
        %3406 = vmatpush1.bf16.msra.mxu0 0
        %3407 = vmatprep.subr.bf16.mxu0 0
        %3408 = vmatpush1.bf16.msra.mxu0 0
        %3409 = vmatprep.subr.bf16.mxu0 0
        %3410 = vmatpush1.bf16.msra.mxu0 0
        %3411 = vmatprep.subr.bf16.mxu0 0
        %3412 = vmatpush1.bf16.msra.mxu0 0
        %3413 = vmatprep.subr.bf16.mxu0 0
        %3414 = vmatpush1.bf16.msra.mxu0 0
        %3415 = vmatprep.subr.bf16.mxu0 0
        %3416 = vmatpush1.bf16.msra.mxu0 0
        %3417 = vmatprep.subr.bf16.mxu0 0
        %3418 = vmatpush1.bf16.msra.mxu0 0
        %3419 = vmatprep.subr.bf16.mxu0 0
        %3420 = vmatpush1.bf16.msra.mxu0 0
        %3421 = vmatprep.subr.bf16.mxu0 0
        %3422 = vmatpush1.bf16.msra.mxu0 0
        %3423 = vmatprep.subr.bf16.mxu0 0
        %3424 = vmatpush1.bf16.msra.mxu0 0
        %3425 = vmatprep.subr.bf16.mxu0 0
        %3426 = vmatpush1.bf16.msra.mxu0 0
        %3427 = vmatprep.mubr.bf16.mxu0 0
        %3428 = vmatmul.mubr.bf16.gmra.mrb[0].mxu0 %v3384
        %v3429 = vpop.f32.mrb[0].mxu0
        %v3430 = vadd.f32 0.0, %v3429
        %v3431 = vpop.f32.mrb[0].mxu0
        %v3432 = vpop.f32.mrb[0].mxu0
        %v3433 = vadd.f32 0.0, %v3432
        %v3434 = vpop.f32.mrb[0].mxu0
        %3435 = vmatprep.mubr.bf16.mxu0 0
        %3436 = vmatmul.mubr.bf16.gmra.mrb[0].mxu0 %v3387
        %v3437 = vpop.f32.mrb[0].mxu0
        %v3438 = vadd.f32 0.0, %v3437
        %v3439 = vpop.f32.mrb[0].mxu0
        %v3440 = vpop.f32.mrb[0].mxu0
        %v3441 = vadd.f32 0.0, %v3440
        %v3442 = vpop.f32.mrb[0].mxu0
        %3443 = vmatprep.mubr.bf16.mxu0 0
        %3444 = vmatmul.mubr.bf16.gmra.mrb[0].mxu0 %v3390
        %v3445 = vpop.f32.mrb[0].mxu0
        %v3446 = vadd.f32 0.0, %v3445
        %v3447 = vpop.f32.mrb[0].mxu0
        %v3448 = vpop.f32.mrb[0].mxu0
        %v3449 = vadd.f32 0.0, %v3448
        %v3450 = vpop.f32.mrb[0].mxu0
        %3451 = vmatprep.mubr.bf16.mxu0 0
        %3452 = vmatmul.mubr.bf16.gmra.mrb[0].mxu0 %v3393
        %v3453 = vpop.f32.mrb[0].mxu0
        %v3454 = vadd.f32 0.0, %v3453
        %v3455 = vpop.f32.mrb[0].mxu0
        %v3456 = vpop.f32.mrb[0].mxu0
        %v3457 = vadd.f32 0.0, %v3456
        %v3458 = vpop.f32.mrb[0].mxu0
        %3459 = vdwg.mxu0
        %v3460 = vpack.c.bf16 %v3433, %v3430
        %v3461 = vpack.c.bf16 %v3441, %v3438
        %v3462 = vpack.c.bf16 %v3449, %v3446
        %v3463 = vpack.c.bf16 %v3457, %v3454
        %s3464 = scalar_lea.vmem %s13, 64
        %v3465 = vld [vmem:[%s3464] sm:$0xf]
        %v3466 = vld [vmem:[%s3464 + $0x4] sm:$0xf]
        %v3467 = vld [vmem:[%s3464 + $0x8] sm:$0xf]
        %v3468 = vld [vmem:[%s3464 + $0xc] sm:$0xf]
        %v3469 = vld [vmem:[%s3464 + $0x10] sm:$0xf]
        %v3470 = vld [vmem:[%s3464 + $0x14] sm:$0xf]
        %v3471 = vld [vmem:[%s3464 + $0x18] sm:$0xf]
        %v3472 = vld [vmem:[%s3464 + $0x1c] sm:$0xf]
        %v3481 = vunpack.c.l.b16 %v3465
        %v3482 = vunpack.c.l.b16 %v3466
        %v3483 = vunpack.c.l.b16 %v3467
        %v3484 = vunpack.c.l.b16 %v3468
        %v3485 = vunpack.c.l.b16 %v3469
        %v3486 = vunpack.c.l.b16 %v3470
        %v3487 = vunpack.c.l.b16 %v3471
        %v3488 = vunpack.c.l.b16 %v3472
        %v3489 = vpack.c.b16 %v3482, %v3481
        %v3490 = vpack.c.b16 %v3484, %v3483
        %v3491 = vpack.c.b16 %v3486, %v3485
        %v3492 = vpack.c.b16 %v3488, %v3487
        %v3494 = vsel %vm2065, %v3489, 0
        %v3497 = vsel %vm2065, %v3490, 0
        %v3500 = vsel %vm2065, %v3491, 0
        %v3503 = vsel %vm2065, %v3492, 0
        %3505 = vmatprep.subr.bf16.mxu0 0
        %3506 = vmatpush1.bf16.msra.mxu0 %v3244
        %3507 = vmatprep.subr.bf16.mxu0 0
        %3508 = vmatpush1.bf16.msra.mxu0 0
        %3509 = vmatprep.subr.bf16.mxu0 0
        %3510 = vmatpush1.bf16.msra.mxu0 0
        %3511 = vmatprep.subr.bf16.mxu0 0
        %3512 = vmatpush1.bf16.msra.mxu0 0
        %3513 = vmatprep.subr.bf16.mxu0 0
        %3514 = vmatpush1.bf16.msra.mxu0 0
        %3515 = vmatprep.subr.bf16.mxu0 0
        %3516 = vmatpush1.bf16.msra.mxu0 0
        %3517 = vmatprep.subr.bf16.mxu0 0
        %3518 = vmatpush1.bf16.msra.mxu0 0
        %3519 = vmatprep.subr.bf16.mxu0 0
        %3520 = vmatpush1.bf16.msra.mxu0 0
        %3521 = vmatprep.subr.bf16.mxu0 0
        %3522 = vmatpush1.bf16.msra.mxu0 0
        %3523 = vmatprep.subr.bf16.mxu0 0
        %3524 = vmatpush1.bf16.msra.mxu0 0
        %3525 = vmatprep.subr.bf16.mxu0 0
        %3526 = vmatpush1.bf16.msra.mxu0 0
        %3527 = vmatprep.subr.bf16.mxu0 0
        %3528 = vmatpush1.bf16.msra.mxu0 0
        %3529 = vmatprep.subr.bf16.mxu0 0
        %3530 = vmatpush1.bf16.msra.mxu0 0
        %3531 = vmatprep.subr.bf16.mxu0 0
        %3532 = vmatpush1.bf16.msra.mxu0 0
        %3533 = vmatprep.subr.bf16.mxu0 0
        %3534 = vmatpush1.bf16.msra.mxu0 0
        %3535 = vmatprep.subr.bf16.mxu0 0
        %3536 = vmatpush1.bf16.msra.mxu0 0
        %3537 = vmatprep.mubr.bf16.mxu0 0
        %3538 = vmatmul.mubr.bf16.gmra.mrb[0].mxu0 %v3494
        %v3539 = vpop.f32.mrb[0].mxu0
        %v3540 = vadd.f32 0.0, %v3539
        %v3541 = vpop.f32.mrb[0].mxu0
        %v3542 = vpop.f32.mrb[0].mxu0
        %v3543 = vadd.f32 0.0, %v3542
        %v3544 = vpop.f32.mrb[0].mxu0
        %3545 = vmatprep.mubr.bf16.mxu0 0
        %3546 = vmatmul.mubr.bf16.gmra.mrb[0].mxu0 %v3497
        %v3547 = vpop.f32.mrb[0].mxu0
        %v3548 = vadd.f32 0.0, %v3547
        %v3549 = vpop.f32.mrb[0].mxu0
        %v3550 = vpop.f32.mrb[0].mxu0
        %v3551 = vadd.f32 0.0, %v3550
        %v3552 = vpop.f32.mrb[0].mxu0
        %3553 = vmatprep.mubr.bf16.mxu0 0
        %3554 = vmatmul.mubr.bf16.gmra.mrb[0].mxu0 %v3500
        %v3555 = vpop.f32.mrb[0].mxu0
        %v3556 = vadd.f32 0.0, %v3555
        %v3557 = vpop.f32.mrb[0].mxu0
        %v3558 = vpop.f32.mrb[0].mxu0
        %v3559 = vadd.f32 0.0, %v3558
        %v3560 = vpop.f32.mrb[0].mxu0
        %3561 = vmatprep.mubr.bf16.mxu0 0
        %3562 = vmatmul.mubr.bf16.gmra.mrb[0].mxu0 %v3503
        %v3563 = vpop.f32.mrb[0].mxu0
        %v3564 = vadd.f32 0.0, %v3563
        %v3565 = vpop.f32.mrb[0].mxu0
        %v3566 = vpop.f32.mrb[0].mxu0
        %v3567 = vadd.f32 0.0, %v3566
        %v3568 = vpop.f32.mrb[0].mxu0
        %3569 = vdwg.mxu0
        %v3570 = vpack.c.bf16 %v3543, %v3540
        %v3571 = vpack.c.bf16 %v3551, %v3548
        %v3572 = vpack.c.bf16 %v3559, %v3556
        %v3573 = vpack.c.bf16 %v3567, %v3564
        %s3574 = scalar_lea.vmem %s13, 96
        %v3575 = vld [vmem:[%s3574] sm:$0xf]
        %v3576 = vld [vmem:[%s3574 + $0x4] sm:$0xf]
        %v3577 = vld [vmem:[%s3574 + $0x8] sm:$0xf]
        %v3578 = vld [vmem:[%s3574 + $0xc] sm:$0xf]
        %v3579 = vld [vmem:[%s3574 + $0x10] sm:$0xf]
        %v3580 = vld [vmem:[%s3574 + $0x14] sm:$0xf]
        %v3581 = vld [vmem:[%s3574 + $0x18] sm:$0xf]
        %v3582 = vld [vmem:[%s3574 + $0x1c] sm:$0xf]
        %v3591 = vunpack.c.l.b16 %v3575
        %v3592 = vunpack.c.l.b16 %v3576
        %v3593 = vunpack.c.l.b16 %v3577
        %v3594 = vunpack.c.l.b16 %v3578
        %v3595 = vunpack.c.l.b16 %v3579
        %v3596 = vunpack.c.l.b16 %v3580
        %v3597 = vunpack.c.l.b16 %v3581
        %v3598 = vunpack.c.l.b16 %v3582
        %v3599 = vpack.c.b16 %v3592, %v3591
        %v3600 = vpack.c.b16 %v3594, %v3593
        %v3601 = vpack.c.b16 %v3596, %v3595
        %v3602 = vpack.c.b16 %v3598, %v3597
        %v3604 = vsel %vm2065, %v3599, 0
        %v3607 = vsel %vm2065, %v3600, 0
        %v3610 = vsel %vm2065, %v3601, 0
        %v3613 = vsel %vm2065, %v3602, 0
        %3615 = vmatprep.subr.bf16.mxu0 0
        %3616 = vmatpush1.bf16.msra.mxu0 %v3244
        %3617 = vmatprep.subr.bf16.mxu0 0
        %3618 = vmatpush1.bf16.msra.mxu0 0
        %3619 = vmatprep.subr.bf16.mxu0 0
        %3620 = vmatpush1.bf16.msra.mxu0 0
        %3621 = vmatprep.subr.bf16.mxu0 0
        %3622 = vmatpush1.bf16.msra.mxu0 0
        %3623 = vmatprep.subr.bf16.mxu0 0
        %3624 = vmatpush1.bf16.msra.mxu0 0
        %3625 = vmatprep.subr.bf16.mxu0 0
        %3626 = vmatpush1.bf16.msra.mxu0 0
        %3627 = vmatprep.subr.bf16.mxu0 0
        %3628 = vmatpush1.bf16.msra.mxu0 0
        %3629 = vmatprep.subr.bf16.mxu0 0
        %3630 = vmatpush1.bf16.msra.mxu0 0
        %3631 = vmatprep.subr.bf16.mxu0 0
        %3632 = vmatpush1.bf16.msra.mxu0 0
        %3633 = vmatprep.subr.bf16.mxu0 0
        %3634 = vmatpush1.bf16.msra.mxu0 0
        %3635 = vmatprep.subr.bf16.mxu0 0
        %3636 = vmatpush1.bf16.msra.mxu0 0
        %3637 = vmatprep.subr.bf16.mxu0 0
        %3638 = vmatpush1.bf16.msra.mxu0 0
        %3639 = vmatprep.subr.bf16.mxu0 0
        %3640 = vmatpush1.bf16.msra.mxu0 0
        %3641 = vmatprep.subr.bf16.mxu0 0
        %3642 = vmatpush1.bf16.msra.mxu0 0
        %3643 = vmatprep.subr.bf16.mxu0 0
        %3644 = vmatpush1.bf16.msra.mxu0 0
        %3645 = vmatprep.subr.bf16.mxu0 0
        %3646 = vmatpush1.bf16.msra.mxu0 0
        %3647 = vmatprep.mubr.bf16.mxu0 0
        %3648 = vmatmul.mubr.bf16.gmra.mrb[0].mxu0 %v3604
        %v3649 = vpop.f32.mrb[0].mxu0
        %v3650 = vadd.f32 0.0, %v3649
        %v3651 = vpop.f32.mrb[0].mxu0
        %v3652 = vpop.f32.mrb[0].mxu0
        %v3653 = vadd.f32 0.0, %v3652
        %v3654 = vpop.f32.mrb[0].mxu0
        %3655 = vmatprep.mubr.bf16.mxu0 0
        %3656 = vmatmul.mubr.bf16.gmra.mrb[0].mxu0 %v3607
        %v3657 = vpop.f32.mrb[0].mxu0
        %v3658 = vadd.f32 0.0, %v3657
        %v3659 = vpop.f32.mrb[0].mxu0
        %v3660 = vpop.f32.mrb[0].mxu0
        %v3661 = vadd.f32 0.0, %v3660
        %v3662 = vpop.f32.mrb[0].mxu0
        %3663 = vmatprep.mubr.bf16.mxu0 0
        %3664 = vmatmul.mubr.bf16.gmra.mrb[0].mxu0 %v3610
        %v3665 = vpop.f32.mrb[0].mxu0
        %v3666 = vadd.f32 0.0, %v3665
        %v3667 = vpop.f32.mrb[0].mxu0
        %v3668 = vpop.f32.mrb[0].mxu0
        %v3669 = vadd.f32 0.0, %v3668
        %v3670 = vpop.f32.mrb[0].mxu0
        %3671 = vmatprep.mubr.bf16.mxu0 0
        %3672 = vmatmul.mubr.bf16.gmra.mrb[0].mxu0 %v3613
        %v3673 = vpop.f32.mrb[0].mxu0
        %v3674 = vadd.f32 0.0, %v3673
        %v3675 = vpop.f32.mrb[0].mxu0
        %v3676 = vpop.f32.mrb[0].mxu0
        %v3677 = vadd.f32 0.0, %v3676
        %v3678 = vpop.f32.mrb[0].mxu0
        %3679 = vdwg.mxu0
        %v3680 = vpack.c.bf16 %v3653, %v3650
        %v3681 = vpack.c.bf16 %v3661, %v3658
        %v3682 = vpack.c.bf16 %v3669, %v3666
        %v3683 = vpack.c.bf16 %v3677, %v3674
        %s3684 = scalar_lea.vmem %s13, 128
        %v3685 = vld [vmem:[%s3684] sm:$0xf]
        %v3686 = vld [vmem:[%s3684 + $0x4] sm:$0xf]
        %v3687 = vld [vmem:[%s3684 + $0x8] sm:$0xf]
        %v3688 = vld [vmem:[%s3684 + $0xc] sm:$0xf]
        %v3689 = vld [vmem:[%s3684 + $0x10] sm:$0xf]
        %v3690 = vld [vmem:[%s3684 + $0x14] sm:$0xf]
        %v3691 = vld [vmem:[%s3684 + $0x18] sm:$0xf]
        %v3692 = vld [vmem:[%s3684 + $0x1c] sm:$0xf]
        %v3701 = vunpack.c.l.b16 %v3685
        %v3702 = vunpack.c.l.b16 %v3686
        %v3703 = vunpack.c.l.b16 %v3687
        %v3704 = vunpack.c.l.b16 %v3688
        %v3705 = vunpack.c.l.b16 %v3689
        %v3706 = vunpack.c.l.b16 %v3690
        %v3707 = vunpack.c.l.b16 %v3691
        %v3708 = vunpack.c.l.b16 %v3692
        %v3709 = vpack.c.b16 %v3702, %v3701
        %v3710 = vpack.c.b16 %v3704, %v3703
        %v3711 = vpack.c.b16 %v3706, %v3705
        %v3712 = vpack.c.b16 %v3708, %v3707
        %v3714 = vsel %vm2065, %v3709, 0
        %v3717 = vsel %vm2065, %v3710, 0
        %v3720 = vsel %vm2065, %v3711, 0
        %v3723 = vsel %vm2065, %v3712, 0
        %3725 = vmatprep.subr.bf16.mxu0 0
        %3726 = vmatpush1.bf16.msra.mxu0 %v3244
        %3727 = vmatprep.subr.bf16.mxu0 0
        %3728 = vmatpush1.bf16.msra.mxu0 0
        %3729 = vmatprep.subr.bf16.mxu0 0
        %3730 = vmatpush1.bf16.msra.mxu0 0
        %3731 = vmatprep.subr.bf16.mxu0 0
        %3732 = vmatpush1.bf16.msra.mxu0 0
        %3733 = vmatprep.subr.bf16.mxu0 0
        %3734 = vmatpush1.bf16.msra.mxu0 0
        %3735 = vmatprep.subr.bf16.mxu0 0
        %3736 = vmatpush1.bf16.msra.mxu0 0
        %3737 = vmatprep.subr.bf16.mxu0 0
        %3738 = vmatpush1.bf16.msra.mxu0 0
        %3739 = vmatprep.subr.bf16.mxu0 0
        %3740 = vmatpush1.bf16.msra.mxu0 0
        %3741 = vmatprep.subr.bf16.mxu0 0
        %3742 = vmatpush1.bf16.msra.mxu0 0
        %3743 = vmatprep.subr.bf16.mxu0 0
        %3744 = vmatpush1.bf16.msra.mxu0 0
        %3745 = vmatprep.subr.bf16.mxu0 0
        %3746 = vmatpush1.bf16.msra.mxu0 0
        %3747 = vmatprep.subr.bf16.mxu0 0
        %3748 = vmatpush1.bf16.msra.mxu0 0
        %3749 = vmatprep.subr.bf16.mxu0 0
        %3750 = vmatpush1.bf16.msra.mxu0 0
        %3751 = vmatprep.subr.bf16.mxu0 0
        %3752 = vmatpush1.bf16.msra.mxu0 0
        %3753 = vmatprep.subr.bf16.mxu0 0
        %3754 = vmatpush1.bf16.msra.mxu0 0
        %3755 = vmatprep.subr.bf16.mxu0 0
        %3756 = vmatpush1.bf16.msra.mxu0 0
        %3757 = vmatprep.mubr.bf16.mxu0 0
        %3758 = vmatmul.mubr.bf16.gmra.mrb[0].mxu0 %v3714
        %v3759 = vpop.f32.mrb[0].mxu0
        %v3760 = vadd.f32 0.0, %v3759
        %v3761 = vpop.f32.mrb[0].mxu0
        %v3762 = vpop.f32.mrb[0].mxu0
        %v3763 = vadd.f32 0.0, %v3762
        %v3764 = vpop.f32.mrb[0].mxu0
        %3765 = vmatprep.mubr.bf16.mxu0 0
        %3766 = vmatmul.mubr.bf16.gmra.mrb[0].mxu0 %v3717
        %v3767 = vpop.f32.mrb[0].mxu0
        %v3768 = vadd.f32 0.0, %v3767
        %v3769 = vpop.f32.mrb[0].mxu0
        %v3770 = vpop.f32.mrb[0].mxu0
        %v3771 = vadd.f32 0.0, %v3770
        %v3772 = vpop.f32.mrb[0].mxu0
        %3773 = vmatprep.mubr.bf16.mxu0 0
        %3774 = vmatmul.mubr.bf16.gmra.mrb[0].mxu0 %v3720
        %v3775 = vpop.f32.mrb[0].mxu0
        %v3776 = vadd.f32 0.0, %v3775
        %v3777 = vpop.f32.mrb[0].mxu0
        %v3778 = vpop.f32.mrb[0].mxu0
        %v3779 = vadd.f32 0.0, %v3778
        %v3780 = vpop.f32.mrb[0].mxu0
        %3781 = vmatprep.mubr.bf16.mxu0 0
        %3782 = vmatmul.mubr.bf16.gmra.mrb[0].mxu0 %v3723
        %v3783 = vpop.f32.mrb[0].mxu0
        %v3784 = vadd.f32 0.0, %v3783
        %v3785 = vpop.f32.mrb[0].mxu0
        %v3786 = vpop.f32.mrb[0].mxu0
        %v3787 = vadd.f32 0.0, %v3786
        %v3788 = vpop.f32.mrb[0].mxu0
        %3789 = vdwg.mxu0
        %v3790 = vpack.c.bf16 %v3763, %v3760
        %v3791 = vpack.c.bf16 %v3771, %v3768
        %v3792 = vpack.c.bf16 %v3779, %v3776
        %v3793 = vpack.c.bf16 %v3787, %v3784
        %s3794 = scalar_lea.vmem %s13, 160
        %v3795 = vld [vmem:[%s3794] sm:$0xf]
        %v3796 = vld [vmem:[%s3794 + $0x4] sm:$0xf]
        %v3797 = vld [vmem:[%s3794 + $0x8] sm:$0xf]
        %v3798 = vld [vmem:[%s3794 + $0xc] sm:$0xf]
        %v3799 = vld [vmem:[%s3794 + $0x10] sm:$0xf]
        %v3800 = vld [vmem:[%s3794 + $0x14] sm:$0xf]
        %v3801 = vld [vmem:[%s3794 + $0x18] sm:$0xf]
        %v3802 = vld [vmem:[%s3794 + $0x1c] sm:$0xf]
        %v3811 = vunpack.c.l.b16 %v3795
        %v3812 = vunpack.c.l.b16 %v3796
        %v3813 = vunpack.c.l.b16 %v3797
        %v3814 = vunpack.c.l.b16 %v3798
        %v3815 = vunpack.c.l.b16 %v3799
        %v3816 = vunpack.c.l.b16 %v3800
        %v3817 = vunpack.c.l.b16 %v3801
        %v3818 = vunpack.c.l.b16 %v3802
        %v3819 = vpack.c.b16 %v3812, %v3811
        %v3820 = vpack.c.b16 %v3814, %v3813
        %v3821 = vpack.c.b16 %v3816, %v3815
        %v3822 = vpack.c.b16 %v3818, %v3817
        %v3824 = vsel %vm2065, %v3819, 0
        %v3827 = vsel %vm2065, %v3820, 0
        %v3830 = vsel %vm2065, %v3821, 0
        %v3833 = vsel %vm2065, %v3822, 0
        %3835 = vmatprep.subr.bf16.mxu0 0
        %3836 = vmatpush1.bf16.msra.mxu0 %v3244
        %3837 = vmatprep.subr.bf16.mxu0 0
        %3838 = vmatpush1.bf16.msra.mxu0 0
        %3839 = vmatprep.subr.bf16.mxu0 0
        %3840 = vmatpush1.bf16.msra.mxu0 0
        %3841 = vmatprep.subr.bf16.mxu0 0
        %3842 = vmatpush1.bf16.msra.mxu0 0
        %3843 = vmatprep.subr.bf16.mxu0 0
        %3844 = vmatpush1.bf16.msra.mxu0 0
        %3845 = vmatprep.subr.bf16.mxu0 0
        %3846 = vmatpush1.bf16.msra.mxu0 0
        %3847 = vmatprep.subr.bf16.mxu0 0
        %3848 = vmatpush1.bf16.msra.mxu0 0
        %3849 = vmatprep.subr.bf16.mxu0 0
        %3850 = vmatpush1.bf16.msra.mxu0 0
        %3851 = vmatprep.subr.bf16.mxu0 0
        %3852 = vmatpush1.bf16.msra.mxu0 0
        %3853 = vmatprep.subr.bf16.mxu0 0
        %3854 = vmatpush1.bf16.msra.mxu0 0
        %3855 = vmatprep.subr.bf16.mxu0 0
        %3856 = vmatpush1.bf16.msra.mxu0 0
        %3857 = vmatprep.subr.bf16.mxu0 0
        %3858 = vmatpush1.bf16.msra.mxu0 0
        %3859 = vmatprep.subr.bf16.mxu0 0
        %3860 = vmatpush1.bf16.msra.mxu0 0
        %3861 = vmatprep.subr.bf16.mxu0 0
        %3862 = vmatpush1.bf16.msra.mxu0 0
        %3863 = vmatprep.subr.bf16.mxu0 0
        %3864 = vmatpush1.bf16.msra.mxu0 0
        %3865 = vmatprep.subr.bf16.mxu0 0
        %3866 = vmatpush1.bf16.msra.mxu0 0
        %3867 = vmatprep.mubr.bf16.mxu0 0
        %3868 = vmatmul.mubr.bf16.gmra.mrb[0].mxu0 %v3824
        %v3869 = vpop.f32.mrb[0].mxu0
        %v3870 = vadd.f32 0.0, %v3869
        %v3871 = vpop.f32.mrb[0].mxu0
        %v3872 = vpop.f32.mrb[0].mxu0
        %v3873 = vadd.f32 0.0, %v3872
        %v3874 = vpop.f32.mrb[0].mxu0
        %3875 = vmatprep.mubr.bf16.mxu0 0
        %3876 = vmatmul.mubr.bf16.gmra.mrb[0].mxu0 %v3827
        %v3877 = vpop.f32.mrb[0].mxu0
        %v3878 = vadd.f32 0.0, %v3877
        %v3879 = vpop.f32.mrb[0].mxu0
        %v3880 = vpop.f32.mrb[0].mxu0
        %v3881 = vadd.f32 0.0, %v3880
        %v3882 = vpop.f32.mrb[0].mxu0
        %3883 = vmatprep.mubr.bf16.mxu0 0
        %3884 = vmatmul.mubr.bf16.gmra.mrb[0].mxu0 %v3830
        %v3885 = vpop.f32.mrb[0].mxu0
        %v3886 = vadd.f32 0.0, %v3885
        %v3887 = vpop.f32.mrb[0].mxu0
        %v3888 = vpop.f32.mrb[0].mxu0
        %v3889 = vadd.f32 0.0, %v3888
        %v3890 = vpop.f32.mrb[0].mxu0
        %3891 = vmatprep.mubr.bf16.mxu0 0
        %3892 = vmatmul.mubr.bf16.gmra.mrb[0].mxu0 %v3833
        %v3893 = vpop.f32.mrb[0].mxu0
        %v3894 = vadd.f32 0.0, %v3893
        %v3895 = vpop.f32.mrb[0].mxu0
        %v3896 = vpop.f32.mrb[0].mxu0
        %v3897 = vadd.f32 0.0, %v3896
        %v3898 = vpop.f32.mrb[0].mxu0
        %3899 = vdwg.mxu0
        %v3900 = vpack.c.bf16 %v3873, %v3870
        %v3901 = vpack.c.bf16 %v3881, %v3878
        %v3902 = vpack.c.bf16 %v3889, %v3886
        %v3903 = vpack.c.bf16 %v3897, %v3894
        %s3904 = scalar_lea.vmem %s13, 192
        %v3905 = vld [vmem:[%s3904] sm:$0xf]
        %v3906 = vld [vmem:[%s3904 + $0x4] sm:$0xf]
        %v3907 = vld [vmem:[%s3904 + $0x8] sm:$0xf]
        %v3908 = vld [vmem:[%s3904 + $0xc] sm:$0xf]
        %v3909 = vld [vmem:[%s3904 + $0x10] sm:$0xf]
        %v3910 = vld [vmem:[%s3904 + $0x14] sm:$0xf]
        %v3911 = vld [vmem:[%s3904 + $0x18] sm:$0xf]
        %v3912 = vld [vmem:[%s3904 + $0x1c] sm:$0xf]
        %v3921 = vunpack.c.l.b16 %v3905
        %v3922 = vunpack.c.l.b16 %v3906
        %v3923 = vunpack.c.l.b16 %v3907
        %v3924 = vunpack.c.l.b16 %v3908
        %v3925 = vunpack.c.l.b16 %v3909
        %v3926 = vunpack.c.l.b16 %v3910
        %v3927 = vunpack.c.l.b16 %v3911
        %v3928 = vunpack.c.l.b16 %v3912
        %v3929 = vpack.c.b16 %v3922, %v3921
        %v3930 = vpack.c.b16 %v3924, %v3923
        %v3931 = vpack.c.b16 %v3926, %v3925
        %v3932 = vpack.c.b16 %v3928, %v3927
        %v3934 = vsel %vm2065, %v3929, 0
        %v3937 = vsel %vm2065, %v3930, 0
        %v3940 = vsel %vm2065, %v3931, 0
        %v3943 = vsel %vm2065, %v3932, 0
        %3945 = vmatprep.subr.bf16.mxu0 0
        %3946 = vmatpush1.bf16.msra.mxu0 %v3244
        %3947 = vmatprep.subr.bf16.mxu0 0
        %3948 = vmatpush1.bf16.msra.mxu0 0
        %3949 = vmatprep.subr.bf16.mxu0 0
        %3950 = vmatpush1.bf16.msra.mxu0 0
        %3951 = vmatprep.subr.bf16.mxu0 0
        %3952 = vmatpush1.bf16.msra.mxu0 0
        %3953 = vmatprep.subr.bf16.mxu0 0
        %3954 = vmatpush1.bf16.msra.mxu0 0
        %3955 = vmatprep.subr.bf16.mxu0 0
        %3956 = vmatpush1.bf16.msra.mxu0 0
        %3957 = vmatprep.subr.bf16.mxu0 0
        %3958 = vmatpush1.bf16.msra.mxu0 0
        %3959 = vmatprep.subr.bf16.mxu0 0
        %3960 = vmatpush1.bf16.msra.mxu0 0
        %3961 = vmatprep.subr.bf16.mxu0 0
        %3962 = vmatpush1.bf16.msra.mxu0 0
        %3963 = vmatprep.subr.bf16.mxu0 0
        %3964 = vmatpush1.bf16.msra.mxu0 0
        %3965 = vmatprep.subr.bf16.mxu0 0
        %3966 = vmatpush1.bf16.msra.mxu0 0
        %3967 = vmatprep.subr.bf16.mxu0 0
        %3968 = vmatpush1.bf16.msra.mxu0 0
        %3969 = vmatprep.subr.bf16.mxu0 0
        %3970 = vmatpush1.bf16.msra.mxu0 0
        %3971 = vmatprep.subr.bf16.mxu0 0
        %3972 = vmatpush1.bf16.msra.mxu0 0
        %3973 = vmatprep.subr.bf16.mxu0 0
        %3974 = vmatpush1.bf16.msra.mxu0 0
        %3975 = vmatprep.subr.bf16.mxu0 0
        %3976 = vmatpush1.bf16.msra.mxu0 0
        %3977 = vmatprep.mubr.bf16.mxu0 0
        %3978 = vmatmul.mubr.bf16.gmra.mrb[0].mxu0 %v3934
        %v3979 = vpop.f32.mrb[0].mxu0
        %v3980 = vadd.f32 0.0, %v3979
        %v3981 = vpop.f32.mrb[0].mxu0
        %v3982 = vpop.f32.mrb[0].mxu0
        %v3983 = vadd.f32 0.0, %v3982
        %v3984 = vpop.f32.mrb[0].mxu0
        %3985 = vmatprep.mubr.bf16.mxu0 0
        %3986 = vmatmul.mubr.bf16.gmra.mrb[0].mxu0 %v3937
        %v3987 = vpop.f32.mrb[0].mxu0
        %v3988 = vadd.f32 0.0, %v3987
        %v3989 = vpop.f32.mrb[0].mxu0
        %v3990 = vpop.f32.mrb[0].mxu0
        %v3991 = vadd.f32 0.0, %v3990
        %v3992 = vpop.f32.mrb[0].mxu0
        %3993 = vmatprep.mubr.bf16.mxu0 0
        %3994 = vmatmul.mubr.bf16.gmra.mrb[0].mxu0 %v3940
        %v3995 = vpop.f32.mrb[0].mxu0
        %v3996 = vadd.f32 0.0, %v3995
        %v3997 = vpop.f32.mrb[0].mxu0
        %v3998 = vpop.f32.mrb[0].mxu0
        %v3999 = vadd.f32 0.0, %v3998
        %v4000 = vpop.f32.mrb[0].mxu0
        %4001 = vmatprep.mubr.bf16.mxu0 0
        %4002 = vmatmul.mubr.bf16.gmra.mrb[0].mxu0 %v3943
        %v4003 = vpop.f32.mrb[0].mxu0
        %v4004 = vadd.f32 0.0, %v4003
        %v4005 = vpop.f32.mrb[0].mxu0
        %v4006 = vpop.f32.mrb[0].mxu0
        %v4007 = vadd.f32 0.0, %v4006
        %v4008 = vpop.f32.mrb[0].mxu0
        %4009 = vdwg.mxu0
        %v4010 = vpack.c.bf16 %v3983, %v3980
        %v4011 = vpack.c.bf16 %v3991, %v3988
        %v4012 = vpack.c.bf16 %v3999, %v3996
        %v4013 = vpack.c.bf16 %v4007, %v4004
        %s4014 = scalar_lea.vmem %s13, 224
        %v4015 = vld [vmem:[%s4014] sm:$0xf]
        %v4016 = vld [vmem:[%s4014 + $0x4] sm:$0xf]
        %v4017 = vld [vmem:[%s4014 + $0x8] sm:$0xf]
        %v4018 = vld [vmem:[%s4014 + $0xc] sm:$0xf]
        %v4019 = vld [vmem:[%s4014 + $0x10] sm:$0xf]
        %v4020 = vld [vmem:[%s4014 + $0x14] sm:$0xf]
        %v4021 = vld [vmem:[%s4014 + $0x18] sm:$0xf]
        %v4022 = vld [vmem:[%s4014 + $0x1c] sm:$0xf]
        %v4031 = vunpack.c.l.b16 %v4015
        %v4032 = vunpack.c.l.b16 %v4016
        %v4033 = vunpack.c.l.b16 %v4017
        %v4034 = vunpack.c.l.b16 %v4018
        %v4035 = vunpack.c.l.b16 %v4019
        %v4036 = vunpack.c.l.b16 %v4020
        %v4037 = vunpack.c.l.b16 %v4021
        %v4038 = vunpack.c.l.b16 %v4022
        %v4039 = vpack.c.b16 %v4032, %v4031
        %v4040 = vpack.c.b16 %v4034, %v4033
        %v4041 = vpack.c.b16 %v4036, %v4035
        %v4042 = vpack.c.b16 %v4038, %v4037
        %v4044 = vsel %vm2065, %v4039, 0
        %v4047 = vsel %vm2065, %v4040, 0
        %v4050 = vsel %vm2065, %v4041, 0
        %v4053 = vsel %vm2065, %v4042, 0
        %4055 = vmatprep.subr.bf16.mxu0 0
        %4056 = vmatpush1.bf16.msra.mxu0 %v3244
        %4057 = vmatprep.subr.bf16.mxu0 0
        %4058 = vmatpush1.bf16.msra.mxu0 0
        %4059 = vmatprep.subr.bf16.mxu0 0
        %4060 = vmatpush1.bf16.msra.mxu0 0
        %4061 = vmatprep.subr.bf16.mxu0 0
        %4062 = vmatpush1.bf16.msra.mxu0 0
        %4063 = vmatprep.subr.bf16.mxu0 0
        %4064 = vmatpush1.bf16.msra.mxu0 0
        %4065 = vmatprep.subr.bf16.mxu0 0
        %4066 = vmatpush1.bf16.msra.mxu0 0
        %4067 = vmatprep.subr.bf16.mxu0 0
        %4068 = vmatpush1.bf16.msra.mxu0 0
        %4069 = vmatprep.subr.bf16.mxu0 0
        %4070 = vmatpush1.bf16.msra.mxu0 0
        %4071 = vmatprep.subr.bf16.mxu0 0
        %4072 = vmatpush1.bf16.msra.mxu0 0
        %4073 = vmatprep.subr.bf16.mxu0 0
        %4074 = vmatpush1.bf16.msra.mxu0 0
        %4075 = vmatprep.subr.bf16.mxu0 0
        %4076 = vmatpush1.bf16.msra.mxu0 0
        %4077 = vmatprep.subr.bf16.mxu0 0
        %4078 = vmatpush1.bf16.msra.mxu0 0
        %4079 = vmatprep.subr.bf16.mxu0 0
        %4080 = vmatpush1.bf16.msra.mxu0 0
        %4081 = vmatprep.subr.bf16.mxu0 0
        %4082 = vmatpush1.bf16.msra.mxu0 0
        %4083 = vmatprep.subr.bf16.mxu0 0
        %4084 = vmatpush1.bf16.msra.mxu0 0
        %4085 = vmatprep.subr.bf16.mxu0 0
        %4086 = vmatpush1.bf16.msra.mxu0 0
        %4087 = vmatprep.mubr.bf16.mxu0 0
        %4088 = vmatmul.mubr.bf16.gmra.mrb[0].mxu0 %v4044
        %v4089 = vpop.f32.mrb[0].mxu0
        %v4090 = vadd.f32 0.0, %v4089
        %v4091 = vpop.f32.mrb[0].mxu0
        %v4092 = vpop.f32.mrb[0].mxu0
        %v4093 = vadd.f32 0.0, %v4092
        %v4094 = vpop.f32.mrb[0].mxu0
        %4095 = vmatprep.mubr.bf16.mxu0 0
        %4096 = vmatmul.mubr.bf16.gmra.mrb[0].mxu0 %v4047
        %v4097 = vpop.f32.mrb[0].mxu0
        %v4098 = vadd.f32 0.0, %v4097
        %v4099 = vpop.f32.mrb[0].mxu0
        %v4100 = vpop.f32.mrb[0].mxu0
        %v4101 = vadd.f32 0.0, %v4100
        %v4102 = vpop.f32.mrb[0].mxu0
        %4103 = vmatprep.mubr.bf16.mxu0 0
        %4104 = vmatmul.mubr.bf16.gmra.mrb[0].mxu0 %v4050
        %v4105 = vpop.f32.mrb[0].mxu0
        %v4106 = vadd.f32 0.0, %v4105
        %v4107 = vpop.f32.mrb[0].mxu0
        %v4108 = vpop.f32.mrb[0].mxu0
        %v4109 = vadd.f32 0.0, %v4108
        %v4110 = vpop.f32.mrb[0].mxu0
        %4111 = vmatprep.mubr.bf16.mxu0 0
        %4112 = vmatmul.mubr.bf16.gmra.mrb[0].mxu0 %v4053
        %v4113 = vpop.f32.mrb[0].mxu0
        %v4114 = vadd.f32 0.0, %v4113
        %v4115 = vpop.f32.mrb[0].mxu0
        %v4116 = vpop.f32.mrb[0].mxu0
        %v4117 = vadd.f32 0.0, %v4116
        %v4118 = vpop.f32.mrb[0].mxu0
        %4119 = vdwg.mxu0
        %v4120 = vpack.c.bf16 %v4093, %v4090
        %v4121 = vpack.c.bf16 %v4101, %v4098
        %v4122 = vpack.c.bf16 %v4109, %v4106
        %v4123 = vpack.c.bf16 %v4117, %v4114
        %s4124 = scalar_lea.vmem %s13, 256
        %v4125 = vld [vmem:[%s4124] sm:$0xf]
        %v4126 = vld [vmem:[%s4124 + $0x4] sm:$0xf]
        %v4127 = vld [vmem:[%s4124 + $0x8] sm:$0xf]
        %v4128 = vld [vmem:[%s4124 + $0xc] sm:$0xf]
        %v4129 = vld [vmem:[%s4124 + $0x10] sm:$0xf]
        %v4130 = vld [vmem:[%s4124 + $0x14] sm:$0xf]
        %v4131 = vld [vmem:[%s4124 + $0x18] sm:$0xf]
        %v4132 = vld [vmem:[%s4124 + $0x1c] sm:$0xf]
        %v4141 = vunpack.c.l.b16 %v4125
        %v4142 = vunpack.c.l.b16 %v4126
        %v4143 = vunpack.c.l.b16 %v4127
        %v4144 = vunpack.c.l.b16 %v4128
        %v4145 = vunpack.c.l.b16 %v4129
        %v4146 = vunpack.c.l.b16 %v4130
        %v4147 = vunpack.c.l.b16 %v4131
        %v4148 = vunpack.c.l.b16 %v4132
        %v4149 = vpack.c.b16 %v4142, %v4141
        %v4150 = vpack.c.b16 %v4144, %v4143
        %v4151 = vpack.c.b16 %v4146, %v4145
        %v4152 = vpack.c.b16 %v4148, %v4147
        %v4154 = vsel %vm2065, %v4149, 0
        %v4157 = vsel %vm2065, %v4150, 0
        %v4160 = vsel %vm2065, %v4151, 0
        %v4163 = vsel %vm2065, %v4152, 0
        %4165 = vmatprep.subr.bf16.mxu0 0
        %4166 = vmatpush1.bf16.msra.mxu0 %v3244
        %4167 = vmatprep.subr.bf16.mxu0 0
        %4168 = vmatpush1.bf16.msra.mxu0 0
        %4169 = vmatprep.subr.bf16.mxu0 0
        %4170 = vmatpush1.bf16.msra.mxu0 0
        %4171 = vmatprep.subr.bf16.mxu0 0
        %4172 = vmatpush1.bf16.msra.mxu0 0
        %4173 = vmatprep.subr.bf16.mxu0 0
        %4174 = vmatpush1.bf16.msra.mxu0 0
        %4175 = vmatprep.subr.bf16.mxu0 0
        %4176 = vmatpush1.bf16.msra.mxu0 0
        %4177 = vmatprep.subr.bf16.mxu0 0
        %4178 = vmatpush1.bf16.msra.mxu0 0
        %4179 = vmatprep.subr.bf16.mxu0 0
        %4180 = vmatpush1.bf16.msra.mxu0 0
        %4181 = vmatprep.subr.bf16.mxu0 0
        %4182 = vmatpush1.bf16.msra.mxu0 0
        %4183 = vmatprep.subr.bf16.mxu0 0
        %4184 = vmatpush1.bf16.msra.mxu0 0
        %4185 = vmatprep.subr.bf16.mxu0 0
        %4186 = vmatpush1.bf16.msra.mxu0 0
        %4187 = vmatprep.subr.bf16.mxu0 0
        %4188 = vmatpush1.bf16.msra.mxu0 0
        %4189 = vmatprep.subr.bf16.mxu0 0
        %4190 = vmatpush1.bf16.msra.mxu0 0
        %4191 = vmatprep.subr.bf16.mxu0 0
        %4192 = vmatpush1.bf16.msra.mxu0 0
        %4193 = vmatprep.subr.bf16.mxu0 0
        %4194 = vmatpush1.bf16.msra.mxu0 0
        %4195 = vmatprep.subr.bf16.mxu0 0
        %4196 = vmatpush1.bf16.msra.mxu0 0
        %4197 = vmatprep.mubr.bf16.mxu0 0
        %4198 = vmatmul.mubr.bf16.gmra.mrb[0].mxu0 %v4154
        %v4199 = vpop.f32.mrb[0].mxu0
        %v4200 = vadd.f32 0.0, %v4199
        %v4201 = vpop.f32.mrb[0].mxu0
        %v4202 = vpop.f32.mrb[0].mxu0
        %v4203 = vadd.f32 0.0, %v4202
        %v4204 = vpop.f32.mrb[0].mxu0
        %4205 = vmatprep.mubr.bf16.mxu0 0
        %4206 = vmatmul.mubr.bf16.gmra.mrb[0].mxu0 %v4157
        %v4207 = vpop.f32.mrb[0].mxu0
        %v4208 = vadd.f32 0.0, %v4207
        %v4209 = vpop.f32.mrb[0].mxu0
        %v4210 = vpop.f32.mrb[0].mxu0
        %v4211 = vadd.f32 0.0, %v4210
        %v4212 = vpop.f32.mrb[0].mxu0
        %4213 = vmatprep.mubr.bf16.mxu0 0
        %4214 = vmatmul.mubr.bf16.gmra.mrb[0].mxu0 %v4160
        %v4215 = vpop.f32.mrb[0].mxu0
        %v4216 = vadd.f32 0.0, %v4215
        %v4217 = vpop.f32.mrb[0].mxu0
        %v4218 = vpop.f32.mrb[0].mxu0
        %v4219 = vadd.f32 0.0, %v4218
        %v4220 = vpop.f32.mrb[0].mxu0
        %4221 = vmatprep.mubr.bf16.mxu0 0
        %4222 = vmatmul.mubr.bf16.gmra.mrb[0].mxu0 %v4163
        %v4223 = vpop.f32.mrb[0].mxu0
        %v4224 = vadd.f32 0.0, %v4223
        %v4225 = vpop.f32.mrb[0].mxu0
        %v4226 = vpop.f32.mrb[0].mxu0
        %v4227 = vadd.f32 0.0, %v4226
        %v4228 = vpop.f32.mrb[0].mxu0
        %4229 = vdwg.mxu0
        %v4230 = vpack.c.bf16 %v4203, %v4200
        %v4231 = vpack.c.bf16 %v4211, %v4208
        %v4232 = vpack.c.bf16 %v4219, %v4216
        %v4233 = vpack.c.bf16 %v4227, %v4224
        %4238 = vrot.lane.b32.xlu0 %v3460, 32
        %v4239 = vpop.permute.xlu0 %4238
        %4240 = vrot.lane.b32.xlu0 %v3461, 32
        %v4241 = vpop.permute.xlu0 %4240
        %4242 = vrot.lane.b32.xlu0 %v3462, 32
        %v4243 = vpop.permute.xlu0 %4242
        %4244 = vrot.lane.b32.xlu0 %v3463, 32
        %v4245 = vpop.permute.xlu0 %4244
        %4250 = vrot.lane.b32.xlu0 %v3570, 64
        %v4251 = vpop.permute.xlu0 %4250
        %4252 = vrot.lane.b32.xlu0 %v3571, 64
        %v4253 = vpop.permute.xlu0 %4252
        %4254 = vrot.lane.b32.xlu0 %v3572, 64
        %v4255 = vpop.permute.xlu0 %4254
        %4256 = vrot.lane.b32.xlu0 %v3573, 64
        %v4257 = vpop.permute.xlu0 %4256
        %4262 = vrot.lane.b32.xlu0 %v3680, 96
        %v4263 = vpop.permute.xlu0 %4262
        %4264 = vrot.lane.b32.xlu0 %v3681, 96
        %v4265 = vpop.permute.xlu0 %4264
        %4266 = vrot.lane.b32.xlu0 %v3682, 96
        %v4267 = vpop.permute.xlu0 %4266
        %4268 = vrot.lane.b32.xlu0 %v3683, 96
        %v4269 = vpop.permute.xlu0 %4268
        %4274 = vrot.lane.b32.xlu0 %v3900, 32
        %v4275 = vpop.permute.xlu0 %4274
        %4276 = vrot.lane.b32.xlu0 %v3901, 32
        %v4277 = vpop.permute.xlu0 %4276
        %4278 = vrot.lane.b32.xlu0 %v3902, 32
        %v4279 = vpop.permute.xlu0 %4278
        %4280 = vrot.lane.b32.xlu0 %v3903, 32
        %v4281 = vpop.permute.xlu0 %4280
        %4286 = vrot.lane.b32.xlu0 %v4010, 64
        %v4287 = vpop.permute.xlu0 %4286
        %4288 = vrot.lane.b32.xlu0 %v4011, 64
        %v4289 = vpop.permute.xlu0 %4288
        %4290 = vrot.lane.b32.xlu0 %v4012, 64
        %v4291 = vpop.permute.xlu0 %4290
        %4292 = vrot.lane.b32.xlu0 %v4013, 64
        %v4293 = vpop.permute.xlu0 %4292
        %4298 = vrot.lane.b32.xlu0 %v4120, 96
        %v4299 = vpop.permute.xlu0 %4298
        %4300 = vrot.lane.b32.xlu0 %v4121, 96
        %v4301 = vpop.permute.xlu0 %4300
        %4302 = vrot.lane.b32.xlu0 %v4122, 96
        %v4303 = vpop.permute.xlu0 %4302
        %4304 = vrot.lane.b32.xlu0 %v4123, 96
        %v4305 = vpop.permute.xlu0 %4304
        %v4308 = vsel %vm2101, %v3350, %v4239
        %v4311 = vsel %vm2101, %v3351, %v4241
        %v4314 = vsel %vm2101, %v3352, %v4243
        %v4317 = vsel %vm2101, %v3353, %v4245
        %v4319 = vsel %vm2234, %v4308, %v4251
        %v4321 = vsel %vm2234, %v4311, %v4253
        %v4323 = vsel %vm2234, %v4314, %v4255
        %v4325 = vsel %vm2234, %v4317, %v4257
        %v4327 = vsel %vm2738, %v4319, %v4263
        %v4330 = vsel %vm2738, %v4321, %v4265
        %v4333 = vsel %vm2738, %v4323, %v4267
        %v4336 = vsel %vm2738, %v4325, %v4269
        %v4340 = vsel %vm2101, %v3790, %v4275
        %v4343 = vsel %vm2101, %v3791, %v4277
        %v4346 = vsel %vm2101, %v3792, %v4279
        %v4349 = vsel %vm2101, %v3793, %v4281
        %v4351 = vsel %vm2234, %v4340, %v4287
        %v4353 = vsel %vm2234, %v4343, %v4289
        %v4355 = vsel %vm2234, %v4346, %v4291
        %v4357 = vsel %vm2234, %v4349, %v4293
        %v4359 = vsel %vm2738, %v4351, %v4299
        %v4362 = vsel %vm2738, %v4353, %v4301
        %v4365 = vsel %vm2738, %v4355, %v4303
        %v4368 = vsel %vm2738, %v4357, %v4305
        %v4370 = vld [vmem:[%s14] sm:$0xf]
        %v4371 = vld [vmem:[%s14 + $0x4] sm:$0xf]
        %v4372 = vld [vmem:[%s14 + $0x8] sm:$0xf]
        %v4373 = vld [vmem:[%s14 + $0xc] sm:$0xf]
        %v4374 = vld [vmem:[%s14 + $0x10] sm:$0xf]
        %v4375 = vld [vmem:[%s14 + $0x14] sm:$0xf]
        %v4376 = vld [vmem:[%s14 + $0x18] sm:$0xf]
        %v4377 = vld [vmem:[%s14 + $0x1c] sm:$0xf]
        %v4378 = vld [vmem:[%s14 + $0x20] sm:$0xf]
        %v4379 = vld [vmem:[%s14 + $0x24] sm:$0xf]
        %v4380 = vld [vmem:[%s14 + $0x28] sm:$0xf]
        %v4381 = vld [vmem:[%s14 + $0x2c] sm:$0xf]
        %v4382 = vld [vmem:[%s14 + $0x30] sm:$0xf]
        %v4383 = vld [vmem:[%s14 + $0x34] sm:$0xf]
        %v4384 = vld [vmem:[%s14 + $0x38] sm:$0xf]
        %v4385 = vld [vmem:[%s14 + $0x3c] sm:$0xf]
        %v4386 = vld [vmem:[%s14 + $0x40] sm:$0xf]
        %v4387 = vld [vmem:[%s14 + $0x44] sm:$0xf]
        %v4388 = vld [vmem:[%s14 + $0x48] sm:$0xf]
        %v4389 = vld [vmem:[%s14 + $0x4c] sm:$0xf]
        %v4390 = vld [vmem:[%s14 + $0x50] sm:$0xf]
        %v4391 = vld [vmem:[%s14 + $0x54] sm:$0xf]
        %v4392 = vld [vmem:[%s14 + $0x58] sm:$0xf]
        %v4393 = vld [vmem:[%s14 + $0x5c] sm:$0xf]
        %v4394 = vld [vmem:[%s14 + $0x60] sm:$0xf]
        %v4395 = vld [vmem:[%s14 + $0x64] sm:$0xf]
        %v4396 = vld [vmem:[%s14 + $0x68] sm:$0xf]
        %v4397 = vld [vmem:[%s14 + $0x6c] sm:$0xf]
        %v4398 = vld [vmem:[%s14 + $0x70] sm:$0xf]
        %v4399 = vld [vmem:[%s14 + $0x74] sm:$0xf]
        %v4400 = vld [vmem:[%s14 + $0x78] sm:$0xf]
        %v4401 = vld [vmem:[%s14 + $0x7c] sm:$0xf]
        %v4402 = vld [vmem:[%s14 + $0x80] sm:$0xf]
        %v4403 = vld [vmem:[%s14 + $0x84] sm:$0xf]
        %v4404 = vld [vmem:[%s14 + $0x88] sm:$0xf]
        %v4405 = vld [vmem:[%s14 + $0x8c] sm:$0xf]
        %v4406 = vld [vmem:[#allocation12] sm:$0x1]
        %v4408 = vlaneseq
        %v4409 = vshrl.u32 %v4408, 7
        %v4410 = vsub.s32 0, %v4409
        %v4411 = vrot.slane %v4406, %v4410
        %v4449 = vunpack.c.l.b16 %v4370
        %v4450 = vunpack.c.l.b16 %v4371
        %v4451 = vunpack.c.l.b16 %v4372
        %v4452 = vunpack.c.l.b16 %v4373
        %v4453 = vunpack.c.l.b16 %v4374
        %v4454 = vunpack.c.l.b16 %v4375
        %v4455 = vunpack.c.l.b16 %v4376
        %v4456 = vunpack.c.l.b16 %v4377
        %v4457 = vunpack.c.l.b16 %v4378
        %v4458 = vunpack.c.l.b16 %v4379
        %v4459 = vunpack.c.l.b16 %v4380
        %v4460 = vunpack.c.l.b16 %v4381
        %v4461 = vunpack.c.l.b16 %v4382
        %v4462 = vunpack.c.l.b16 %v4383
        %v4463 = vunpack.c.l.b16 %v4384
        %v4464 = vunpack.c.l.b16 %v4385
        %v4465 = vunpack.c.l.b16 %v4386
        %v4466 = vunpack.c.l.b16 %v4387
        %v4467 = vunpack.c.l.b16 %v4388
        %v4468 = vunpack.c.l.b16 %v4389
        %v4469 = vunpack.c.l.b16 %v4390
        %v4470 = vunpack.c.l.b16 %v4391
        %v4471 = vunpack.c.l.b16 %v4392
        %v4472 = vunpack.c.l.b16 %v4393
        %v4473 = vunpack.c.l.b16 %v4394
        %v4474 = vunpack.c.l.b16 %v4395
        %v4475 = vunpack.c.l.b16 %v4396
        %v4476 = vunpack.c.l.b16 %v4397
        %v4477 = vunpack.c.l.b16 %v4398
        %v4478 = vunpack.c.l.b16 %v4399
        %v4479 = vunpack.c.l.b16 %v4400
        %v4480 = vunpack.c.l.b16 %v4401
        %v4481 = vunpack.c.l.b16 %v4402
        %v4482 = vunpack.c.l.b16 %v4403
        %v4483 = vunpack.c.l.b16 %v4404
        %v4484 = vunpack.c.l.b16 %v4405
        %v4485 = vpack.c.b16 %v4450, %v4449
        %v4486 = vpack.c.b16 %v4452, %v4451
        %v4487 = vpack.c.b16 %v4454, %v4453
        %v4488 = vpack.c.b16 %v4456, %v4455
        %v4489 = vpack.c.b16 %v4458, %v4457
        %v4490 = vpack.c.b16 %v4460, %v4459
        %v4491 = vpack.c.b16 %v4462, %v4461
        %v4492 = vpack.c.b16 %v4464, %v4463
        %v4493 = vpack.c.b16 %v4466, %v4465
        %v4494 = vpack.c.b16 %v4468, %v4467
        %v4495 = vpack.c.b16 %v4470, %v4469
        %v4496 = vpack.c.b16 %v4472, %v4471
        %v4497 = vpack.c.b16 %v4474, %v4473
        %v4498 = vpack.c.b16 %v4476, %v4475
        %v4499 = vpack.c.b16 %v4478, %v4477
        %v4500 = vpack.c.b16 %v4480, %v4479
        %v4501 = vpack.c.b16 %v4482, %v4481
        %v4502 = vpack.c.b16 %v4484, %v4483
        %v4522 = vsel %vm2101, %v4230, 0
        %v4525 = vsel %vm2101, %v4231, 0
        %v4528 = vsel %vm2101, %v4232, 0
        %v4531 = vsel %vm2101, %v4233, 0
        %4533 = vmatprep.subr.bf16.mxu0 0
        %4534 = vmatpush1.bf16.msra.mxu0 %v4485
        %4535 = vmatprep.subr.bf16.mxu0 0
        %4536 = vmatpush1.bf16.msra.mxu0 %v4486
        %4537 = vmatprep.subr.bf16.mxu0 0
        %4538 = vmatpush1.bf16.msra.mxu0 %v4487
        %4539 = vmatprep.subr.bf16.mxu0 0
        %4540 = vmatpush1.bf16.msra.mxu0 %v4488
        %4541 = vmatprep.subr.bf16.mxu0 0
        %4542 = vmatpush1.bf16.msra.mxu0 %v4489
        %4543 = vmatprep.subr.bf16.mxu0 0
        %4544 = vmatpush1.bf16.msra.mxu0 %v4490
        %4545 = vmatprep.subr.bf16.mxu0 0
        %4546 = vmatpush1.bf16.msra.mxu0 %v4491
        %4547 = vmatprep.subr.bf16.mxu0 0
        %4548 = vmatpush1.bf16.msra.mxu0 %v4492
        %4549 = vmatprep.subr.bf16.mxu0 0
        %4550 = vmatpush1.bf16.msra.mxu0 %v4493
        %4551 = vmatprep.subr.bf16.mxu0 0
        %4552 = vmatpush1.bf16.msra.mxu0 %v4494
        %4553 = vmatprep.subr.bf16.mxu0 0
        %4554 = vmatpush1.bf16.msra.mxu0 %v4495
        %4555 = vmatprep.subr.bf16.mxu0 0
        %4556 = vmatpush1.bf16.msra.mxu0 %v4496
        %4557 = vmatprep.subr.bf16.mxu0 0
        %4558 = vmatpush1.bf16.msra.mxu0 %v4497
        %4559 = vmatprep.subr.bf16.mxu0 0
        %4560 = vmatpush1.bf16.msra.mxu0 %v4498
        %4561 = vmatprep.subr.bf16.mxu0 0
        %4562 = vmatpush1.bf16.msra.mxu0 %v4499
        %4563 = vmatprep.subr.bf16.mxu0 0
        %4564 = vmatpush1.bf16.msra.mxu0 %v4500
        %4565 = vmatprep.mubr.bf16.mxu0 %v4359
        %4566 = vmatmul.mubr.bf16.gmra.mrb[0].mxu0 %v4327
        %v4567 = vpop.f32.mrb[0].mxu0
        %v4568 = vadd.f32 %v4411, %v4567
        %v4569 = vpop.f32.mrb[0].mxu0
        %v4570 = vpop.f32.mrb[0].mxu0
        %v4571 = vadd.f32 %v4411, %v4570
        %v4572 = vpop.f32.mrb[0].mxu0
        %4573 = vmatprep.mubr.bf16.mxu0 %v4362
        %4574 = vmatmul.mubr.bf16.gmra.mrb[0].mxu0 %v4330
        %v4575 = vpop.f32.mrb[0].mxu0
        %v4576 = vadd.f32 %v4411, %v4575
        %v4577 = vpop.f32.mrb[0].mxu0
        %v4578 = vpop.f32.mrb[0].mxu0
        %v4579 = vadd.f32 %v4411, %v4578
        %v4580 = vpop.f32.mrb[0].mxu0
        %4581 = vmatprep.mubr.bf16.mxu0 %v4365
        %4582 = vmatmul.mubr.bf16.gmra.mrb[0].mxu0 %v4333
        %v4583 = vpop.f32.mrb[0].mxu0
        %v4584 = vadd.f32 %v4411, %v4583
        %v4585 = vpop.f32.mrb[0].mxu0
        %v4586 = vpop.f32.mrb[0].mxu0
        %v4587 = vadd.f32 %v4411, %v4586
        %v4588 = vpop.f32.mrb[0].mxu0
        %4589 = vmatprep.mubr.bf16.mxu0 %v4368
        %4590 = vmatmul.mubr.bf16.gmra.mrb[0].mxu0 %v4336
        %v4591 = vpop.f32.mrb[0].mxu0
        %v4592 = vadd.f32 %v4411, %v4591
        %v4593 = vpop.f32.mrb[0].mxu0
        %v4594 = vpop.f32.mrb[0].mxu0
        %v4595 = vadd.f32 %v4411, %v4594
        %v4596 = vpop.f32.mrb[0].mxu0
        %4597 = vdwg.mxu0
        %4598 = vmatprep.subr.bf16.mxu0 0
        %4599 = vmatpush1.bf16.msra.mxu0 %v4501
        %4600 = vmatprep.subr.bf16.mxu0 0
        %4601 = vmatpush1.bf16.msra.mxu0 %v4502
        %4602 = vmatprep.subr.bf16.mxu0 0
        %4603 = vmatpush1.bf16.msra.mxu0 0
        %4604 = vmatprep.subr.bf16.mxu0 0
        %4605 = vmatpush1.bf16.msra.mxu0 0
        %4606 = vmatprep.subr.bf16.mxu0 0
        %4607 = vmatpush1.bf16.msra.mxu0 0
        %4608 = vmatprep.subr.bf16.mxu0 0
        %4609 = vmatpush1.bf16.msra.mxu0 0
        %4610 = vmatprep.subr.bf16.mxu0 0
        %4611 = vmatpush1.bf16.msra.mxu0 0
        %4612 = vmatprep.subr.bf16.mxu0 0
        %4613 = vmatpush1.bf16.msra.mxu0 0
        %4614 = vmatprep.subr.bf16.mxu0 0
        %4615 = vmatpush1.bf16.msra.mxu0 0
        %4616 = vmatprep.subr.bf16.mxu0 0
        %4617 = vmatpush1.bf16.msra.mxu0 0
        %4618 = vmatprep.subr.bf16.mxu0 0
        %4619 = vmatpush1.bf16.msra.mxu0 0
        %4620 = vmatprep.subr.bf16.mxu0 0
        %4621 = vmatpush1.bf16.msra.mxu0 0
        %4622 = vmatprep.subr.bf16.mxu0 0
        %4623 = vmatpush1.bf16.msra.mxu0 0
        %4624 = vmatprep.subr.bf16.mxu0 0
        %4625 = vmatpush1.bf16.msra.mxu0 0
        %4626 = vmatprep.subr.bf16.mxu0 0
        %4627 = vmatpush1.bf16.msra.mxu0 0
        %4628 = vmatprep.subr.bf16.mxu0 0
        %4629 = vmatpush1.bf16.msra.mxu0 0
        %4630 = vmatprep.mubr.bf16.mxu0 0
        %4631 = vmatmul.mubr.bf16.gmra.mrb[0].mxu0 %v4522
        %v4632 = vpop.f32.mrb[0].mxu0
        %v4633 = vadd.f32 %v4568, %v4632
        %v4634 = vpop.f32.mrb[0].mxu0
        %v4635 = vpop.f32.mrb[0].mxu0
        %v4636 = vadd.f32 %v4571, %v4635
        %v4637 = vpop.f32.mrb[0].mxu0
        %4638 = vmatprep.mubr.bf16.mxu0 0
        %4639 = vmatmul.mubr.bf16.gmra.mrb[0].mxu0 %v4525
        %v4640 = vpop.f32.mrb[0].mxu0
        %v4641 = vadd.f32 %v4576, %v4640
        %v4642 = vpop.f32.mrb[0].mxu0
        %v4643 = vpop.f32.mrb[0].mxu0
        %v4644 = vadd.f32 %v4579, %v4643
        %v4645 = vpop.f32.mrb[0].mxu0
        %4646 = vmatprep.mubr.bf16.mxu0 0
        %4647 = vmatmul.mubr.bf16.gmra.mrb[0].mxu0 %v4528
        %v4648 = vpop.f32.mrb[0].mxu0
        %v4649 = vadd.f32 %v4584, %v4648
        %v4650 = vpop.f32.mrb[0].mxu0
        %v4651 = vpop.f32.mrb[0].mxu0
        %v4652 = vadd.f32 %v4587, %v4651
        %v4653 = vpop.f32.mrb[0].mxu0
        %4654 = vmatprep.mubr.bf16.mxu0 0
        %4655 = vmatmul.mubr.bf16.gmra.mrb[0].mxu0 %v4531
        %v4656 = vpop.f32.mrb[0].mxu0
        %v4657 = vadd.f32 %v4592, %v4656
        %v4658 = vpop.f32.mrb[0].mxu0
        %v4659 = vpop.f32.mrb[0].mxu0
        %v4660 = vadd.f32 %v4595, %v4659
        %v4661 = vpop.f32.mrb[0].mxu0
        %4662 = vdwg.mxu0
        %v4663 = vmax.f32 %v4633, 0.0
        %v4664 = vmax.f32 %v4636, 0.0
        %v4665 = vmax.f32 %v4641, 0.0
        %v4666 = vmax.f32 %v4644, 0.0
        %v4667 = vmax.f32 %v4649, 0.0
        %v4668 = vmax.f32 %v4652, 0.0
        %v4669 = vmax.f32 %v4657, 0.0
        %v4670 = vmax.f32 %v4660, 0.0
        %v4671 = vpack.c.bf16 %v4664, %v4663
        %v4672 = vpack.c.bf16 %v4666, %v4665
        %v4673 = vpack.c.bf16 %v4668, %v4667
        %v4674 = vpack.c.bf16 %v4670, %v4669
        %v4675 = vld [vmem:[%s16] sm:$0xf]
        %v4676 = vld [vmem:[%s16 + $0x4] sm:$0xf]
        %v4677 = vld [vmem:[%s16 + $0x8] sm:$0xf]
        %v4678 = vld [vmem:[%s16 + $0xc] sm:$0xf]
        %v4679 = vld [vmem:[%s16 + $0x10] sm:$0xf]
        %v4680 = vld [vmem:[%s16 + $0x14] sm:$0xf]
        %v4681 = vld [vmem:[%s16 + $0x18] sm:$0xf]
        %v4682 = vld [vmem:[%s16 + $0x1c] sm:$0xf]
        %v4683 = vld [vmem:[%s16 + $0x20] sm:$0xf]
        %v4684 = vld [vmem:[%s16 + $0x24] sm:$0xf]
        %v4685 = vld [vmem:[%s16 + $0x28] sm:$0xf]
        %v4686 = vld [vmem:[%s16 + $0x2c] sm:$0xf]
        %v4687 = vld [vmem:[%s16 + $0x30] sm:$0xf]
        %v4688 = vld [vmem:[%s16 + $0x34] sm:$0xf]
        %v4689 = vld [vmem:[%s16 + $0x38] sm:$0xf]
        %v4690 = vld [vmem:[%s16 + $0x3c] sm:$0xf]
        %v4691 = vld [vmem:[%s16 + $0x40] sm:$0xf]
        %v4692 = vld [vmem:[%s16 + $0x44] sm:$0xf]
        %v4693 = vld [vmem:[%s16 + $0x48] sm:$0xf]
        %v4694 = vld [vmem:[%s16 + $0x4c] sm:$0xf]
        %v4695 = vld [vmem:[%s16 + $0x50] sm:$0xf]
        %v4696 = vld [vmem:[%s16 + $0x54] sm:$0xf]
        %v4697 = vld [vmem:[%s16 + $0x58] sm:$0xf]
        %v4698 = vld [vmem:[%s16 + $0x5c] sm:$0xf]
        %v4699 = vld [vmem:[%s16 + $0x60] sm:$0xf]
        %v4700 = vld [vmem:[%s16 + $0x64] sm:$0xf]
        %v4701 = vld [vmem:[%s16 + $0x68] sm:$0xf]
        %v4702 = vld [vmem:[%s16 + $0x6c] sm:$0xf]
        %v4703 = vld [vmem:[%s16 + $0x70] sm:$0xf]
        %v4704 = vld [vmem:[%s16 + $0x74] sm:$0xf]
        %v4705 = vld [vmem:[%s16 + $0x78] sm:$0xf]
        %v4706 = vld [vmem:[%s16 + $0x7c] sm:$0xf]
        %v4739 = vunpack.c.l.b16 %v4675
        %v4740 = vunpack.c.l.b16 %v4676
        %v4741 = vunpack.c.l.b16 %v4677
        %v4742 = vunpack.c.l.b16 %v4678
        %v4743 = vunpack.c.l.b16 %v4679
        %v4744 = vunpack.c.l.b16 %v4680
        %v4745 = vunpack.c.l.b16 %v4681
        %v4746 = vunpack.c.l.b16 %v4682
        %v4747 = vunpack.c.l.b16 %v4683
        %v4748 = vunpack.c.l.b16 %v4684
        %v4749 = vunpack.c.l.b16 %v4685
        %v4750 = vunpack.c.l.b16 %v4686
        %v4751 = vunpack.c.l.b16 %v4687
        %v4752 = vunpack.c.l.b16 %v4688
        %v4753 = vunpack.c.l.b16 %v4689
        %v4754 = vunpack.c.l.b16 %v4690
        %v4755 = vunpack.c.l.b16 %v4691
        %v4756 = vunpack.c.l.b16 %v4692
        %v4757 = vunpack.c.l.b16 %v4693
        %v4758 = vunpack.c.l.b16 %v4694
        %v4759 = vunpack.c.l.b16 %v4695
        %v4760 = vunpack.c.l.b16 %v4696
        %v4761 = vunpack.c.l.b16 %v4697
        %v4762 = vunpack.c.l.b16 %v4698
        %v4763 = vunpack.c.l.b16 %v4699
        %v4764 = vunpack.c.l.b16 %v4700
        %v4765 = vunpack.c.l.b16 %v4701
        %v4766 = vunpack.c.l.b16 %v4702
        %v4767 = vunpack.c.l.b16 %v4703
        %v4768 = vunpack.c.l.b16 %v4704
        %v4769 = vunpack.c.l.b16 %v4705
        %v4770 = vunpack.c.l.b16 %v4706
        %v4771 = vpack.c.b16 %v4740, %v4739
        %v4772 = vpack.c.b16 %v4742, %v4741
        %v4773 = vpack.c.b16 %v4744, %v4743
        %v4774 = vpack.c.b16 %v4746, %v4745
        %v4775 = vpack.c.b16 %v4748, %v4747
        %v4776 = vpack.c.b16 %v4750, %v4749
        %v4777 = vpack.c.b16 %v4752, %v4751
        %v4778 = vpack.c.b16 %v4754, %v4753
        %v4779 = vpack.c.b16 %v4756, %v4755
        %v4780 = vpack.c.b16 %v4758, %v4757
        %v4781 = vpack.c.b16 %v4760, %v4759
        %v4782 = vpack.c.b16 %v4762, %v4761
        %v4783 = vpack.c.b16 %v4764, %v4763
        %v4784 = vpack.c.b16 %v4766, %v4765
        %v4785 = vpack.c.b16 %v4768, %v4767
        %v4786 = vpack.c.b16 %v4770, %v4769
        %v4788 = vsel %vm2234, %v4771, 0
        %v4791 = vsel %vm2234, %v4772, 0
        %v4794 = vsel %vm2234, %v4773, 0
        %v4797 = vsel %vm2234, %v4774, 0
        %v4800 = vsel %vm2234, %v4775, 0
        %v4803 = vsel %vm2234, %v4776, 0
        %v4806 = vsel %vm2234, %v4777, 0
        %v4809 = vsel %vm2234, %v4778, 0
        %v4812 = vsel %vm2234, %v4779, 0
        %v4815 = vsel %vm2234, %v4780, 0
        %v4818 = vsel %vm2234, %v4781, 0
        %v4821 = vsel %vm2234, %v4782, 0
        %v4824 = vsel %vm2234, %v4783, 0
        %v4827 = vsel %vm2234, %v4784, 0
        %v4830 = vsel %vm2234, %v4785, 0
        %v4833 = vsel %vm2234, %v4786, 0
        %4835 = vmatprep.subr.bf16.mxu0 0
        %4836 = vmatpush1.bf16.msra.mxu0 %v4671
        %4837 = vmatprep.subr.bf16.mxu0 0
        %4838 = vmatpush1.bf16.msra.mxu0 %v4672
        %4839 = vmatprep.subr.bf16.mxu0 0
        %4840 = vmatpush1.bf16.msra.mxu0 %v4673
        %4841 = vmatprep.subr.bf16.mxu0 0
        %4842 = vmatpush1.bf16.msra.mxu0 %v4674
        %4843 = vmatprep.subr.bf16.mxu0 0
        %4844 = vmatpush1.bf16.msra.mxu0 0
        %4845 = vmatprep.subr.bf16.mxu0 0
        %4846 = vmatpush1.bf16.msra.mxu0 0
        %4847 = vmatprep.subr.bf16.mxu0 0
        %4848 = vmatpush1.bf16.msra.mxu0 0
        %4849 = vmatprep.subr.bf16.mxu0 0
        %4850 = vmatpush1.bf16.msra.mxu0 0
        %4851 = vmatprep.subr.bf16.mxu0 0
        %4852 = vmatpush1.bf16.msra.mxu0 0
        %4853 = vmatprep.subr.bf16.mxu0 0
        %4854 = vmatpush1.bf16.msra.mxu0 0
        %4855 = vmatprep.subr.bf16.mxu0 0
        %4856 = vmatpush1.bf16.msra.mxu0 0
        %4857 = vmatprep.subr.bf16.mxu0 0
        %4858 = vmatpush1.bf16.msra.mxu0 0
        %4859 = vmatprep.subr.bf16.mxu0 0
        %4860 = vmatpush1.bf16.msra.mxu0 0
        %4861 = vmatprep.subr.bf16.mxu0 0
        %4862 = vmatpush1.bf16.msra.mxu0 0
        %4863 = vmatprep.subr.bf16.mxu0 0
        %4864 = vmatpush1.bf16.msra.mxu0 0
        %4865 = vmatprep.subr.bf16.mxu0 0
        %4866 = vmatpush1.bf16.msra.mxu0 0
        %4867 = vmatprep.mubr.bf16.mxu0 0
        %4868 = vmatmul.mubr.bf16.gmra.mrb[0].mxu0 %v4788
        %v4869 = vpop.f32.mrb[0].mxu0
        %v4870 = vadd.f32 0.0, %v4869
        %v4871 = vpop.f32.mrb[0].mxu0
        %v4872 = vpop.f32.mrb[0].mxu0
        %v4873 = vadd.f32 0.0, %v4872
        %v4874 = vpop.f32.mrb[0].mxu0
        %4875 = vmatprep.mubr.bf16.mxu0 0
        %4876 = vmatmul.mubr.bf16.gmra.mrb[0].mxu0 %v4791
        %v4877 = vpop.f32.mrb[0].mxu0
        %v4878 = vadd.f32 0.0, %v4877
        %v4879 = vpop.f32.mrb[0].mxu0
        %v4880 = vpop.f32.mrb[0].mxu0
        %v4881 = vadd.f32 0.0, %v4880
        %v4882 = vpop.f32.mrb[0].mxu0
        %4883 = vmatprep.mubr.bf16.mxu0 0
        %4884 = vmatmul.mubr.bf16.gmra.mrb[0].mxu0 %v4794
        %v4885 = vpop.f32.mrb[0].mxu0
        %v4886 = vadd.f32 0.0, %v4885
        %v4887 = vpop.f32.mrb[0].mxu0
        %v4888 = vpop.f32.mrb[0].mxu0
        %v4889 = vadd.f32 0.0, %v4888
        %v4890 = vpop.f32.mrb[0].mxu0
        %4891 = vmatprep.mubr.bf16.mxu0 0
        %4892 = vmatmul.mubr.bf16.gmra.mrb[0].mxu0 %v4797
        %v4893 = vpop.f32.mrb[0].mxu0
        %v4894 = vadd.f32 0.0, %v4893
        %v4895 = vpop.f32.mrb[0].mxu0
        %v4896 = vpop.f32.mrb[0].mxu0
        %v4897 = vadd.f32 0.0, %v4896
        %v4898 = vpop.f32.mrb[0].mxu0
        %4899 = vmatprep.mubr.bf16.mxu0 0
        %4900 = vmatmul.mubr.bf16.gmra.mrb[0].mxu0 %v4800
        %v4901 = vpop.f32.mrb[0].mxu0
        %v4902 = vadd.f32 0.0, %v4901
        %v4903 = vpop.f32.mrb[0].mxu0
        %v4904 = vpop.f32.mrb[0].mxu0
        %v4905 = vadd.f32 0.0, %v4904
        %v4906 = vpop.f32.mrb[0].mxu0
        %4907 = vmatprep.mubr.bf16.mxu0 0
        %4908 = vmatmul.mubr.bf16.gmra.mrb[0].mxu0 %v4803
        %v4909 = vpop.f32.mrb[0].mxu0
        %v4910 = vadd.f32 0.0, %v4909
        %v4911 = vpop.f32.mrb[0].mxu0
        %v4912 = vpop.f32.mrb[0].mxu0
        %v4913 = vadd.f32 0.0, %v4912
        %v4914 = vpop.f32.mrb[0].mxu0
        %4915 = vmatprep.mubr.bf16.mxu0 0
        %4916 = vmatmul.mubr.bf16.gmra.mrb[0].mxu0 %v4806
        %v4917 = vpop.f32.mrb[0].mxu0
        %v4918 = vadd.f32 0.0, %v4917
        %v4919 = vpop.f32.mrb[0].mxu0
        %v4920 = vpop.f32.mrb[0].mxu0
        %v4921 = vadd.f32 0.0, %v4920
        %v4922 = vpop.f32.mrb[0].mxu0
        %4923 = vmatprep.mubr.bf16.mxu0 0
        %4924 = vmatmul.mubr.bf16.gmra.mrb[0].mxu0 %v4809
        %v4925 = vpop.f32.mrb[0].mxu0
        %v4926 = vadd.f32 0.0, %v4925
        %v4927 = vpop.f32.mrb[0].mxu0
        %v4928 = vpop.f32.mrb[0].mxu0
        %v4929 = vadd.f32 0.0, %v4928
        %v4930 = vpop.f32.mrb[0].mxu0
        %4931 = vmatprep.mubr.bf16.mxu0 0
        %4932 = vmatmul.mubr.bf16.gmra.mrb[0].mxu0 %v4812
        %v4933 = vpop.f32.mrb[0].mxu0
        %v4934 = vadd.f32 0.0, %v4933
        %v4935 = vpop.f32.mrb[0].mxu0
        %v4936 = vpop.f32.mrb[0].mxu0
        %v4937 = vadd.f32 0.0, %v4936
        %v4938 = vpop.f32.mrb[0].mxu0
        %4939 = vmatprep.mubr.bf16.mxu0 0
        %4940 = vmatmul.mubr.bf16.gmra.mrb[0].mxu0 %v4815
        %v4941 = vpop.f32.mrb[0].mxu0
        %v4942 = vadd.f32 0.0, %v4941
        %v4943 = vpop.f32.mrb[0].mxu0
        %v4944 = vpop.f32.mrb[0].mxu0
        %v4945 = vadd.f32 0.0, %v4944
        %v4946 = vpop.f32.mrb[0].mxu0
        %4947 = vmatprep.mubr.bf16.mxu0 0
        %4948 = vmatmul.mubr.bf16.gmra.mrb[0].mxu0 %v4818
        %v4949 = vpop.f32.mrb[0].mxu0
        %v4950 = vadd.f32 0.0, %v4949
        %v4951 = vpop.f32.mrb[0].mxu0
        %v4952 = vpop.f32.mrb[0].mxu0
        %v4953 = vadd.f32 0.0, %v4952
        %v4954 = vpop.f32.mrb[0].mxu0
        %4955 = vmatprep.mubr.bf16.mxu0 0
        %4956 = vmatmul.mubr.bf16.gmra.mrb[0].mxu0 %v4821
        %v4957 = vpop.f32.mrb[0].mxu0
        %v4958 = vadd.f32 0.0, %v4957
        %v4959 = vpop.f32.mrb[0].mxu0
        %v4960 = vpop.f32.mrb[0].mxu0
        %v4961 = vadd.f32 0.0, %v4960
        %v4962 = vpop.f32.mrb[0].mxu0
        %4963 = vmatprep.mubr.bf16.mxu0 0
        %4964 = vmatmul.mubr.bf16.gmra.mrb[0].mxu0 %v4824
        %v4965 = vpop.f32.mrb[0].mxu0
        %v4966 = vadd.f32 0.0, %v4965
        %v4967 = vpop.f32.mrb[0].mxu0
        %v4968 = vpop.f32.mrb[0].mxu0
        %v4969 = vadd.f32 0.0, %v4968
        %v4970 = vpop.f32.mrb[0].mxu0
        %4971 = vmatprep.mubr.bf16.mxu0 0
        %4972 = vmatmul.mubr.bf16.gmra.mrb[0].mxu0 %v4827
        %v4973 = vpop.f32.mrb[0].mxu0
        %v4974 = vadd.f32 0.0, %v4973
        %v4975 = vpop.f32.mrb[0].mxu0
        %v4976 = vpop.f32.mrb[0].mxu0
        %v4977 = vadd.f32 0.0, %v4976
        %v4978 = vpop.f32.mrb[0].mxu0
        %4979 = vmatprep.mubr.bf16.mxu0 0
        %4980 = vmatmul.mubr.bf16.gmra.mrb[0].mxu0 %v4830
        %v4981 = vpop.f32.mrb[0].mxu0
        %v4982 = vadd.f32 0.0, %v4981
        %v4983 = vpop.f32.mrb[0].mxu0
        %v4984 = vpop.f32.mrb[0].mxu0
        %v4985 = vadd.f32 0.0, %v4984
        %v4986 = vpop.f32.mrb[0].mxu0
        %4987 = vmatprep.mubr.bf16.mxu0 0
        %4988 = vmatmul.mubr.bf16.gmra.mrb[0].mxu0 %v4833
        %v4989 = vpop.f32.mrb[0].mxu0
        %v4990 = vadd.f32 0.0, %v4989
        %v4991 = vpop.f32.mrb[0].mxu0
        %v4992 = vpop.f32.mrb[0].mxu0
        %v4993 = vadd.f32 0.0, %v4992
        %v4994 = vpop.f32.mrb[0].mxu0
        %4995 = vdwg.mxu0
        %v4996 = vpack.c.bf16 %v4873, %v4870
        %v4997 = vpack.c.bf16 %v4881, %v4878
        %v4998 = vpack.c.bf16 %v4889, %v4886
        %v4999 = vpack.c.bf16 %v4897, %v4894
        %v5000 = vpack.c.bf16 %v4905, %v4902
        %v5001 = vpack.c.bf16 %v4913, %v4910
        %v5002 = vpack.c.bf16 %v4921, %v4918
        %v5003 = vpack.c.bf16 %v4929, %v4926
        %v5004 = vpack.c.bf16 %v4937, %v4934
        %v5005 = vpack.c.bf16 %v4945, %v4942
        %v5006 = vpack.c.bf16 %v4953, %v4950
        %v5007 = vpack.c.bf16 %v4961, %v4958
        %v5008 = vpack.c.bf16 %v4969, %v4966
        %v5009 = vpack.c.bf16 %v4977, %v4974
        %v5010 = vpack.c.bf16 %v4985, %v4982
        %v5011 = vpack.c.bf16 %v4993, %v4990
        %s5012 = scalar_lea.vmem %s16, 128
        %v5013 = vld [vmem:[%s5012] sm:$0xf]
        %v5014 = vld [vmem:[%s5012 + $0x4] sm:$0xf]
        %v5015 = vld [vmem:[%s5012 + $0x8] sm:$0xf]
        %v5016 = vld [vmem:[%s5012 + $0xc] sm:$0xf]
        %v5017 = vld [vmem:[%s5012 + $0x10] sm:$0xf]
        %v5018 = vld [vmem:[%s5012 + $0x14] sm:$0xf]
        %v5019 = vld [vmem:[%s5012 + $0x18] sm:$0xf]
        %v5020 = vld [vmem:[%s5012 + $0x1c] sm:$0xf]
        %v5021 = vld [vmem:[%s5012 + $0x20] sm:$0xf]
        %v5022 = vld [vmem:[%s5012 + $0x24] sm:$0xf]
        %v5023 = vld [vmem:[%s5012 + $0x28] sm:$0xf]
        %v5024 = vld [vmem:[%s5012 + $0x2c] sm:$0xf]
        %v5025 = vld [vmem:[%s5012 + $0x30] sm:$0xf]
        %v5026 = vld [vmem:[%s5012 + $0x34] sm:$0xf]
        %v5027 = vld [vmem:[%s5012 + $0x38] sm:$0xf]
        %v5028 = vld [vmem:[%s5012 + $0x3c] sm:$0xf]
        %v5029 = vld [vmem:[%s5012 + $0x40] sm:$0xf]
        %v5030 = vld [vmem:[%s5012 + $0x44] sm:$0xf]
        %v5031 = vld [vmem:[%s5012 + $0x48] sm:$0xf]
        %v5032 = vld [vmem:[%s5012 + $0x4c] sm:$0xf]
        %v5033 = vld [vmem:[%s5012 + $0x50] sm:$0xf]
        %v5034 = vld [vmem:[%s5012 + $0x54] sm:$0xf]
        %v5035 = vld [vmem:[%s5012 + $0x58] sm:$0xf]
        %v5036 = vld [vmem:[%s5012 + $0x5c] sm:$0xf]
        %v5037 = vld [vmem:[%s5012 + $0x60] sm:$0xf]
        %v5038 = vld [vmem:[%s5012 + $0x64] sm:$0xf]
        %v5039 = vld [vmem:[%s5012 + $0x68] sm:$0xf]
        %v5040 = vld [vmem:[%s5012 + $0x6c] sm:$0xf]
        %v5041 = vld [vmem:[%s5012 + $0x70] sm:$0xf]
        %v5042 = vld [vmem:[%s5012 + $0x74] sm:$0xf]
        %v5043 = vld [vmem:[%s5012 + $0x78] sm:$0xf]
        %v5044 = vld [vmem:[%s5012 + $0x7c] sm:$0xf]
        %v5077 = vunpack.c.l.b16 %v5013
        %v5078 = vunpack.c.l.b16 %v5014
        %v5079 = vunpack.c.l.b16 %v5015
        %v5080 = vunpack.c.l.b16 %v5016
        %v5081 = vunpack.c.l.b16 %v5017
        %v5082 = vunpack.c.l.b16 %v5018
        %v5083 = vunpack.c.l.b16 %v5019
        %v5084 = vunpack.c.l.b16 %v5020
        %v5085 = vunpack.c.l.b16 %v5021
        %v5086 = vunpack.c.l.b16 %v5022
        %v5087 = vunpack.c.l.b16 %v5023
        %v5088 = vunpack.c.l.b16 %v5024
        %v5089 = vunpack.c.l.b16 %v5025
        %v5090 = vunpack.c.l.b16 %v5026
        %v5091 = vunpack.c.l.b16 %v5027
        %v5092 = vunpack.c.l.b16 %v5028
        %v5093 = vunpack.c.l.b16 %v5029
        %v5094 = vunpack.c.l.b16 %v5030
        %v5095 = vunpack.c.l.b16 %v5031
        %v5096 = vunpack.c.l.b16 %v5032
        %v5097 = vunpack.c.l.b16 %v5033
        %v5098 = vunpack.c.l.b16 %v5034
        %v5099 = vunpack.c.l.b16 %v5035
        %v5100 = vunpack.c.l.b16 %v5036
        %v5101 = vunpack.c.l.b16 %v5037
        %v5102 = vunpack.c.l.b16 %v5038
        %v5103 = vunpack.c.l.b16 %v5039
        %v5104 = vunpack.c.l.b16 %v5040
        %v5105 = vunpack.c.l.b16 %v5041
        %v5106 = vunpack.c.l.b16 %v5042
        %v5107 = vunpack.c.l.b16 %v5043
        %v5108 = vunpack.c.l.b16 %v5044
        %v5109 = vpack.c.b16 %v5078, %v5077
        %v5110 = vpack.c.b16 %v5080, %v5079
        %v5111 = vpack.c.b16 %v5082, %v5081
        %v5112 = vpack.c.b16 %v5084, %v5083
        %v5113 = vpack.c.b16 %v5086, %v5085
        %v5114 = vpack.c.b16 %v5088, %v5087
        %v5115 = vpack.c.b16 %v5090, %v5089
        %v5116 = vpack.c.b16 %v5092, %v5091
        %v5117 = vpack.c.b16 %v5094, %v5093
        %v5118 = vpack.c.b16 %v5096, %v5095
        %v5119 = vpack.c.b16 %v5098, %v5097
        %v5120 = vpack.c.b16 %v5100, %v5099
        %v5121 = vpack.c.b16 %v5102, %v5101
        %v5122 = vpack.c.b16 %v5104, %v5103
        %v5123 = vpack.c.b16 %v5106, %v5105
        %v5124 = vpack.c.b16 %v5108, %v5107
        %v5126 = vsel %vm2234, %v5109, 0
        %v5129 = vsel %vm2234, %v5110, 0
        %v5132 = vsel %vm2234, %v5111, 0
        %v5135 = vsel %vm2234, %v5112, 0
        %v5138 = vsel %vm2234, %v5113, 0
        %v5141 = vsel %vm2234, %v5114, 0
        %v5144 = vsel %vm2234, %v5115, 0
        %v5147 = vsel %vm2234, %v5116, 0
        %v5150 = vsel %vm2234, %v5117, 0
        %v5153 = vsel %vm2234, %v5118, 0
        %v5156 = vsel %vm2234, %v5119, 0
        %v5159 = vsel %vm2234, %v5120, 0
        %v5162 = vsel %vm2234, %v5121, 0
        %v5165 = vsel %vm2234, %v5122, 0
        %v5168 = vsel %vm2234, %v5123, 0
        %v5171 = vsel %vm2234, %v5124, 0
        %5173 = vmatprep.subr.bf16.mxu0 0
        %5174 = vmatpush1.bf16.msra.mxu0 %v4671
        %5175 = vmatprep.subr.bf16.mxu0 0
        %5176 = vmatpush1.bf16.msra.mxu0 %v4672
        %5177 = vmatprep.subr.bf16.mxu0 0
        %5178 = vmatpush1.bf16.msra.mxu0 %v4673
        %5179 = vmatprep.subr.bf16.mxu0 0
        %5180 = vmatpush1.bf16.msra.mxu0 %v4674
        %5181 = vmatprep.subr.bf16.mxu0 0
        %5182 = vmatpush1.bf16.msra.mxu0 0
        %5183 = vmatprep.subr.bf16.mxu0 0
        %5184 = vmatpush1.bf16.msra.mxu0 0
        %5185 = vmatprep.subr.bf16.mxu0 0
        %5186 = vmatpush1.bf16.msra.mxu0 0
        %5187 = vmatprep.subr.bf16.mxu0 0
        %5188 = vmatpush1.bf16.msra.mxu0 0
        %5189 = vmatprep.subr.bf16.mxu0 0
        %5190 = vmatpush1.bf16.msra.mxu0 0
        %5191 = vmatprep.subr.bf16.mxu0 0
        %5192 = vmatpush1.bf16.msra.mxu0 0
        %5193 = vmatprep.subr.bf16.mxu0 0
        %5194 = vmatpush1.bf16.msra.mxu0 0
        %5195 = vmatprep.subr.bf16.mxu0 0
        %5196 = vmatpush1.bf16.msra.mxu0 0
        %5197 = vmatprep.subr.bf16.mxu0 0
        %5198 = vmatpush1.bf16.msra.mxu0 0
        %5199 = vmatprep.subr.bf16.mxu0 0
        %5200 = vmatpush1.bf16.msra.mxu0 0
        %5201 = vmatprep.subr.bf16.mxu0 0
        %5202 = vmatpush1.bf16.msra.mxu0 0
        %5203 = vmatprep.subr.bf16.mxu0 0
        %5204 = vmatpush1.bf16.msra.mxu0 0
        %5205 = vmatprep.mubr.bf16.mxu0 0
        %5206 = vmatmul.mubr.bf16.gmra.mrb[0].mxu0 %v5126
        %v5207 = vpop.f32.mrb[0].mxu0
        %v5208 = vadd.f32 0.0, %v5207
        %v5209 = vpop.f32.mrb[0].mxu0
        %v5210 = vpop.f32.mrb[0].mxu0
        %v5211 = vadd.f32 0.0, %v5210
        %v5212 = vpop.f32.mrb[0].mxu0
        %5213 = vmatprep.mubr.bf16.mxu0 0
        %5214 = vmatmul.mubr.bf16.gmra.mrb[0].mxu0 %v5129
        %v5215 = vpop.f32.mrb[0].mxu0
        %v5216 = vadd.f32 0.0, %v5215
        %v5217 = vpop.f32.mrb[0].mxu0
        %v5218 = vpop.f32.mrb[0].mxu0
        %v5219 = vadd.f32 0.0, %v5218
        %v5220 = vpop.f32.mrb[0].mxu0
        %5221 = vmatprep.mubr.bf16.mxu0 0
        %5222 = vmatmul.mubr.bf16.gmra.mrb[0].mxu0 %v5132
        %v5223 = vpop.f32.mrb[0].mxu0
        %v5224 = vadd.f32 0.0, %v5223
        %v5225 = vpop.f32.mrb[0].mxu0
        %v5226 = vpop.f32.mrb[0].mxu0
        %v5227 = vadd.f32 0.0, %v5226
        %v5228 = vpop.f32.mrb[0].mxu0
        %5229 = vmatprep.mubr.bf16.mxu0 0
        %5230 = vmatmul.mubr.bf16.gmra.mrb[0].mxu0 %v5135
        %v5231 = vpop.f32.mrb[0].mxu0
        %v5232 = vadd.f32 0.0, %v5231
        %v5233 = vpop.f32.mrb[0].mxu0
        %v5234 = vpop.f32.mrb[0].mxu0
        %v5235 = vadd.f32 0.0, %v5234
        %v5236 = vpop.f32.mrb[0].mxu0
        %5237 = vmatprep.mubr.bf16.mxu0 0
        %5238 = vmatmul.mubr.bf16.gmra.mrb[0].mxu0 %v5138
        %v5239 = vpop.f32.mrb[0].mxu0
        %v5240 = vadd.f32 0.0, %v5239
        %v5241 = vpop.f32.mrb[0].mxu0
        %v5242 = vpop.f32.mrb[0].mxu0
        %v5243 = vadd.f32 0.0, %v5242
        %v5244 = vpop.f32.mrb[0].mxu0
        %5245 = vmatprep.mubr.bf16.mxu0 0
        %5246 = vmatmul.mubr.bf16.gmra.mrb[0].mxu0 %v5141
        %v5247 = vpop.f32.mrb[0].mxu0
        %v5248 = vadd.f32 0.0, %v5247
        %v5249 = vpop.f32.mrb[0].mxu0
        %v5250 = vpop.f32.mrb[0].mxu0
        %v5251 = vadd.f32 0.0, %v5250
        %v5252 = vpop.f32.mrb[0].mxu0
        %5253 = vmatprep.mubr.bf16.mxu0 0
        %5254 = vmatmul.mubr.bf16.gmra.mrb[0].mxu0 %v5144
        %v5255 = vpop.f32.mrb[0].mxu0
        %v5256 = vadd.f32 0.0, %v5255
        %v5257 = vpop.f32.mrb[0].mxu0
        %v5258 = vpop.f32.mrb[0].mxu0
        %v5259 = vadd.f32 0.0, %v5258
        %v5260 = vpop.f32.mrb[0].mxu0
        %5261 = vmatprep.mubr.bf16.mxu0 0
        %5262 = vmatmul.mubr.bf16.gmra.mrb[0].mxu0 %v5147
        %v5263 = vpop.f32.mrb[0].mxu0
        %v5264 = vadd.f32 0.0, %v5263
        %v5265 = vpop.f32.mrb[0].mxu0
        %v5266 = vpop.f32.mrb[0].mxu0
        %v5267 = vadd.f32 0.0, %v5266
        %v5268 = vpop.f32.mrb[0].mxu0
        %5269 = vmatprep.mubr.bf16.mxu0 0
        %5270 = vmatmul.mubr.bf16.gmra.mrb[0].mxu0 %v5150
        %v5271 = vpop.f32.mrb[0].mxu0
        %v5272 = vadd.f32 0.0, %v5271
        %v5273 = vpop.f32.mrb[0].mxu0
        %v5274 = vpop.f32.mrb[0].mxu0
        %v5275 = vadd.f32 0.0, %v5274
        %v5276 = vpop.f32.mrb[0].mxu0
        %5277 = vmatprep.mubr.bf16.mxu0 0
        %5278 = vmatmul.mubr.bf16.gmra.mrb[0].mxu0 %v5153
        %v5279 = vpop.f32.mrb[0].mxu0
        %v5280 = vadd.f32 0.0, %v5279
        %v5281 = vpop.f32.mrb[0].mxu0
        %v5282 = vpop.f32.mrb[0].mxu0
        %v5283 = vadd.f32 0.0, %v5282
        %v5284 = vpop.f32.mrb[0].mxu0
        %5285 = vmatprep.mubr.bf16.mxu0 0
        %5286 = vmatmul.mubr.bf16.gmra.mrb[0].mxu0 %v5156
        %v5287 = vpop.f32.mrb[0].mxu0
        %v5288 = vadd.f32 0.0, %v5287
        %v5289 = vpop.f32.mrb[0].mxu0
        %v5290 = vpop.f32.mrb[0].mxu0
        %v5291 = vadd.f32 0.0, %v5290
        %v5292 = vpop.f32.mrb[0].mxu0
        %5293 = vmatprep.mubr.bf16.mxu0 0
        %5294 = vmatmul.mubr.bf16.gmra.mrb[0].mxu0 %v5159
        %v5295 = vpop.f32.mrb[0].mxu0
        %v5296 = vadd.f32 0.0, %v5295
        %v5297 = vpop.f32.mrb[0].mxu0
        %v5298 = vpop.f32.mrb[0].mxu0
        %v5299 = vadd.f32 0.0, %v5298
        %v5300 = vpop.f32.mrb[0].mxu0
        %5301 = vmatprep.mubr.bf16.mxu0 0
        %5302 = vmatmul.mubr.bf16.gmra.mrb[0].mxu0 %v5162
        %v5303 = vpop.f32.mrb[0].mxu0
        %v5304 = vadd.f32 0.0, %v5303
        %v5305 = vpop.f32.mrb[0].mxu0
        %v5306 = vpop.f32.mrb[0].mxu0
        %v5307 = vadd.f32 0.0, %v5306
        %v5308 = vpop.f32.mrb[0].mxu0
        %5309 = vmatprep.mubr.bf16.mxu0 0
        %5310 = vmatmul.mubr.bf16.gmra.mrb[0].mxu0 %v5165
        %v5311 = vpop.f32.mrb[0].mxu0
        %v5312 = vadd.f32 0.0, %v5311
        %v5313 = vpop.f32.mrb[0].mxu0
        %v5314 = vpop.f32.mrb[0].mxu0
        %v5315 = vadd.f32 0.0, %v5314
        %v5316 = vpop.f32.mrb[0].mxu0
        %5317 = vmatprep.mubr.bf16.mxu0 0
        %5318 = vmatmul.mubr.bf16.gmra.mrb[0].mxu0 %v5168
        %v5319 = vpop.f32.mrb[0].mxu0
        %v5320 = vadd.f32 0.0, %v5319
        %v5321 = vpop.f32.mrb[0].mxu0
        %v5322 = vpop.f32.mrb[0].mxu0
        %v5323 = vadd.f32 0.0, %v5322
        %v5324 = vpop.f32.mrb[0].mxu0
        %5325 = vmatprep.mubr.bf16.mxu0 0
        %5326 = vmatmul.mubr.bf16.gmra.mrb[0].mxu0 %v5171
        %v5327 = vpop.f32.mrb[0].mxu0
        %v5328 = vadd.f32 0.0, %v5327
        %v5329 = vpop.f32.mrb[0].mxu0
        %v5330 = vpop.f32.mrb[0].mxu0
        %v5331 = vadd.f32 0.0, %v5330
        %v5332 = vpop.f32.mrb[0].mxu0
        %5333 = vdwg.mxu0
        %v5334 = vpack.c.bf16 %v5211, %v5208
        %v5335 = vpack.c.bf16 %v5219, %v5216
        %v5336 = vpack.c.bf16 %v5227, %v5224
        %v5337 = vpack.c.bf16 %v5235, %v5232
        %v5338 = vpack.c.bf16 %v5243, %v5240
        %v5339 = vpack.c.bf16 %v5251, %v5248
        %v5340 = vpack.c.bf16 %v5259, %v5256
        %v5341 = vpack.c.bf16 %v5267, %v5264
        %v5342 = vpack.c.bf16 %v5275, %v5272
        %v5343 = vpack.c.bf16 %v5283, %v5280
        %v5344 = vpack.c.bf16 %v5291, %v5288
        %v5345 = vpack.c.bf16 %v5299, %v5296
        %v5346 = vpack.c.bf16 %v5307, %v5304
        %v5347 = vpack.c.bf16 %v5315, %v5312
        %v5348 = vpack.c.bf16 %v5323, %v5320
        %v5349 = vpack.c.bf16 %v5331, %v5328
        %s5350 = scalar_lea.vmem %s16, 256
        %v5351 = vld [vmem:[%s5350] sm:$0xf]
        %v5352 = vld [vmem:[%s5350 + $0x4] sm:$0xf]
        %v5353 = vld [vmem:[%s5350 + $0x8] sm:$0xf]
        %v5354 = vld [vmem:[%s5350 + $0xc] sm:$0xf]
        %v5355 = vld [vmem:[%s5350 + $0x10] sm:$0xf]
        %v5356 = vld [vmem:[%s5350 + $0x14] sm:$0xf]
        %v5357 = vld [vmem:[%s5350 + $0x18] sm:$0xf]
        %v5358 = vld [vmem:[%s5350 + $0x1c] sm:$0xf]
        %v5359 = vld [vmem:[%s5350 + $0x20] sm:$0xf]
        %v5360 = vld [vmem:[%s5350 + $0x24] sm:$0xf]
        %v5361 = vld [vmem:[%s5350 + $0x28] sm:$0xf]
        %v5362 = vld [vmem:[%s5350 + $0x2c] sm:$0xf]
        %v5363 = vld [vmem:[%s5350 + $0x30] sm:$0xf]
        %v5364 = vld [vmem:[%s5350 + $0x34] sm:$0xf]
        %v5365 = vld [vmem:[%s5350 + $0x38] sm:$0xf]
        %v5366 = vld [vmem:[%s5350 + $0x3c] sm:$0xf]
        %v5367 = vld [vmem:[%s5350 + $0x40] sm:$0xf]
        %v5368 = vld [vmem:[%s5350 + $0x44] sm:$0xf]
        %v5369 = vld [vmem:[%s5350 + $0x48] sm:$0xf]
        %v5370 = vld [vmem:[%s5350 + $0x4c] sm:$0xf]
        %v5371 = vld [vmem:[%s5350 + $0x50] sm:$0xf]
        %v5372 = vld [vmem:[%s5350 + $0x54] sm:$0xf]
        %v5373 = vld [vmem:[%s5350 + $0x58] sm:$0xf]
        %v5374 = vld [vmem:[%s5350 + $0x5c] sm:$0xf]
        %v5375 = vld [vmem:[%s5350 + $0x60] sm:$0xf]
        %v5376 = vld [vmem:[%s5350 + $0x64] sm:$0xf]
        %v5377 = vld [vmem:[%s5350 + $0x68] sm:$0xf]
        %v5378 = vld [vmem:[%s5350 + $0x6c] sm:$0xf]
        %v5379 = vld [vmem:[%s5350 + $0x70] sm:$0xf]
        %v5380 = vld [vmem:[%s5350 + $0x74] sm:$0xf]
        %v5381 = vld [vmem:[%s5350 + $0x78] sm:$0xf]
        %v5382 = vld [vmem:[%s5350 + $0x7c] sm:$0xf]
        %v5415 = vunpack.c.l.b16 %v5351
        %v5416 = vunpack.c.l.b16 %v5352
        %v5417 = vunpack.c.l.b16 %v5353
        %v5418 = vunpack.c.l.b16 %v5354
        %v5419 = vunpack.c.l.b16 %v5355
        %v5420 = vunpack.c.l.b16 %v5356
        %v5421 = vunpack.c.l.b16 %v5357
        %v5422 = vunpack.c.l.b16 %v5358
        %v5423 = vunpack.c.l.b16 %v5359
        %v5424 = vunpack.c.l.b16 %v5360
        %v5425 = vunpack.c.l.b16 %v5361
        %v5426 = vunpack.c.l.b16 %v5362
        %v5427 = vunpack.c.l.b16 %v5363
        %v5428 = vunpack.c.l.b16 %v5364
        %v5429 = vunpack.c.l.b16 %v5365
        %v5430 = vunpack.c.l.b16 %v5366
        %v5431 = vunpack.c.l.b16 %v5367
        %v5432 = vunpack.c.l.b16 %v5368
        %v5433 = vunpack.c.l.b16 %v5369
        %v5434 = vunpack.c.l.b16 %v5370
        %v5435 = vunpack.c.l.b16 %v5371
        %v5436 = vunpack.c.l.b16 %v5372
        %v5437 = vunpack.c.l.b16 %v5373
        %v5438 = vunpack.c.l.b16 %v5374
        %v5439 = vunpack.c.l.b16 %v5375
        %v5440 = vunpack.c.l.b16 %v5376
        %v5441 = vunpack.c.l.b16 %v5377
        %v5442 = vunpack.c.l.b16 %v5378
        %v5443 = vunpack.c.l.b16 %v5379
        %v5444 = vunpack.c.l.b16 %v5380
        %v5445 = vunpack.c.l.b16 %v5381
        %v5446 = vunpack.c.l.b16 %v5382
        %v5447 = vpack.c.b16 %v5416, %v5415
        %v5448 = vpack.c.b16 %v5418, %v5417
        %v5449 = vpack.c.b16 %v5420, %v5419
        %v5450 = vpack.c.b16 %v5422, %v5421
        %v5451 = vpack.c.b16 %v5424, %v5423
        %v5452 = vpack.c.b16 %v5426, %v5425
        %v5453 = vpack.c.b16 %v5428, %v5427
        %v5454 = vpack.c.b16 %v5430, %v5429
        %v5455 = vpack.c.b16 %v5432, %v5431
        %v5456 = vpack.c.b16 %v5434, %v5433
        %v5457 = vpack.c.b16 %v5436, %v5435
        %v5458 = vpack.c.b16 %v5438, %v5437
        %v5459 = vpack.c.b16 %v5440, %v5439
        %v5460 = vpack.c.b16 %v5442, %v5441
        %v5461 = vpack.c.b16 %v5444, %v5443
        %v5462 = vpack.c.b16 %v5446, %v5445
        %v5464 = vsel %vm2234, %v5447, 0
        %v5467 = vsel %vm2234, %v5448, 0
        %v5470 = vsel %vm2234, %v5449, 0
        %v5473 = vsel %vm2234, %v5450, 0
        %v5476 = vsel %vm2234, %v5451, 0
        %v5479 = vsel %vm2234, %v5452, 0
        %v5482 = vsel %vm2234, %v5453, 0
        %v5485 = vsel %vm2234, %v5454, 0
        %v5488 = vsel %vm2234, %v5455, 0
        %v5491 = vsel %vm2234, %v5456, 0
        %v5494 = vsel %vm2234, %v5457, 0
        %v5497 = vsel %vm2234, %v5458, 0
        %v5500 = vsel %vm2234, %v5459, 0
        %v5503 = vsel %vm2234, %v5460, 0
        %v5506 = vsel %vm2234, %v5461, 0
        %v5509 = vsel %vm2234, %v5462, 0
        %5511 = vmatprep.subr.bf16.mxu0 0
        %5512 = vmatpush1.bf16.msra.mxu0 %v4671
        %5513 = vmatprep.subr.bf16.mxu0 0
        %5514 = vmatpush1.bf16.msra.mxu0 %v4672
        %5515 = vmatprep.subr.bf16.mxu0 0
        %5516 = vmatpush1.bf16.msra.mxu0 %v4673
        %5517 = vmatprep.subr.bf16.mxu0 0
        %5518 = vmatpush1.bf16.msra.mxu0 %v4674
        %5519 = vmatprep.subr.bf16.mxu0 0
        %5520 = vmatpush1.bf16.msra.mxu0 0
        %5521 = vmatprep.subr.bf16.mxu0 0
        %5522 = vmatpush1.bf16.msra.mxu0 0
        %5523 = vmatprep.subr.bf16.mxu0 0
        %5524 = vmatpush1.bf16.msra.mxu0 0
        %5525 = vmatprep.subr.bf16.mxu0 0
        %5526 = vmatpush1.bf16.msra.mxu0 0
        %5527 = vmatprep.subr.bf16.mxu0 0
        %5528 = vmatpush1.bf16.msra.mxu0 0
        %5529 = vmatprep.subr.bf16.mxu0 0
        %5530 = vmatpush1.bf16.msra.mxu0 0
        %5531 = vmatprep.subr.bf16.mxu0 0
        %5532 = vmatpush1.bf16.msra.mxu0 0
        %5533 = vmatprep.subr.bf16.mxu0 0
        %5534 = vmatpush1.bf16.msra.mxu0 0
        %5535 = vmatprep.subr.bf16.mxu0 0
        %5536 = vmatpush1.bf16.msra.mxu0 0
        %5537 = vmatprep.subr.bf16.mxu0 0
        %5538 = vmatpush1.bf16.msra.mxu0 0
        %5539 = vmatprep.subr.bf16.mxu0 0
        %5540 = vmatpush1.bf16.msra.mxu0 0
        %5541 = vmatprep.subr.bf16.mxu0 0
        %5542 = vmatpush1.bf16.msra.mxu0 0
        %5543 = vmatprep.mubr.bf16.mxu0 0
        %5544 = vmatmul.mubr.bf16.gmra.mrb[0].mxu0 %v5464
        %v5545 = vpop.f32.mrb[0].mxu0
        %v5546 = vadd.f32 0.0, %v5545
        %v5547 = vpop.f32.mrb[0].mxu0
        %v5548 = vpop.f32.mrb[0].mxu0
        %v5549 = vadd.f32 0.0, %v5548
        %v5550 = vpop.f32.mrb[0].mxu0
        %5551 = vmatprep.mubr.bf16.mxu0 0
        %5552 = vmatmul.mubr.bf16.gmra.mrb[0].mxu0 %v5467
        %v5553 = vpop.f32.mrb[0].mxu0
        %v5554 = vadd.f32 0.0, %v5553
        %v5555 = vpop.f32.mrb[0].mxu0
        %v5556 = vpop.f32.mrb[0].mxu0
        %v5557 = vadd.f32 0.0, %v5556
        %v5558 = vpop.f32.mrb[0].mxu0
        %5559 = vmatprep.mubr.bf16.mxu0 0
        %5560 = vmatmul.mubr.bf16.gmra.mrb[0].mxu0 %v5470
        %v5561 = vpop.f32.mrb[0].mxu0
        %v5562 = vadd.f32 0.0, %v5561
        %v5563 = vpop.f32.mrb[0].mxu0
        %v5564 = vpop.f32.mrb[0].mxu0
        %v5565 = vadd.f32 0.0, %v5564
        %v5566 = vpop.f32.mrb[0].mxu0
        %5567 = vmatprep.mubr.bf16.mxu0 0
        %5568 = vmatmul.mubr.bf16.gmra.mrb[0].mxu0 %v5473
        %v5569 = vpop.f32.mrb[0].mxu0
        %v5570 = vadd.f32 0.0, %v5569
        %v5571 = vpop.f32.mrb[0].mxu0
        %v5572 = vpop.f32.mrb[0].mxu0
        %v5573 = vadd.f32 0.0, %v5572
        %v5574 = vpop.f32.mrb[0].mxu0
        %5575 = vmatprep.mubr.bf16.mxu0 0
        %5576 = vmatmul.mubr.bf16.gmra.mrb[0].mxu0 %v5476
        %v5577 = vpop.f32.mrb[0].mxu0
        %v5578 = vadd.f32 0.0, %v5577
        %v5579 = vpop.f32.mrb[0].mxu0
        %v5580 = vpop.f32.mrb[0].mxu0
        %v5581 = vadd.f32 0.0, %v5580
        %v5582 = vpop.f32.mrb[0].mxu0
        %5583 = vmatprep.mubr.bf16.mxu0 0
        %5584 = vmatmul.mubr.bf16.gmra.mrb[0].mxu0 %v5479
        %v5585 = vpop.f32.mrb[0].mxu0
        %v5586 = vadd.f32 0.0, %v5585
        %v5587 = vpop.f32.mrb[0].mxu0
        %v5588 = vpop.f32.mrb[0].mxu0
        %v5589 = vadd.f32 0.0, %v5588
        %v5590 = vpop.f32.mrb[0].mxu0
        %5591 = vmatprep.mubr.bf16.mxu0 0
        %5592 = vmatmul.mubr.bf16.gmra.mrb[0].mxu0 %v5482
        %v5593 = vpop.f32.mrb[0].mxu0
        %v5594 = vadd.f32 0.0, %v5593
        %v5595 = vpop.f32.mrb[0].mxu0
        %v5596 = vpop.f32.mrb[0].mxu0
        %v5597 = vadd.f32 0.0, %v5596
        %v5598 = vpop.f32.mrb[0].mxu0
        %5599 = vmatprep.mubr.bf16.mxu0 0
        %5600 = vmatmul.mubr.bf16.gmra.mrb[0].mxu0 %v5485
        %v5601 = vpop.f32.mrb[0].mxu0
        %v5602 = vadd.f32 0.0, %v5601
        %v5603 = vpop.f32.mrb[0].mxu0
        %v5604 = vpop.f32.mrb[0].mxu0
        %v5605 = vadd.f32 0.0, %v5604
        %v5606 = vpop.f32.mrb[0].mxu0
        %5607 = vmatprep.mubr.bf16.mxu0 0
        %5608 = vmatmul.mubr.bf16.gmra.mrb[0].mxu0 %v5488
        %v5609 = vpop.f32.mrb[0].mxu0
        %v5610 = vadd.f32 0.0, %v5609
        %v5611 = vpop.f32.mrb[0].mxu0
        %v5612 = vpop.f32.mrb[0].mxu0
        %v5613 = vadd.f32 0.0, %v5612
        %v5614 = vpop.f32.mrb[0].mxu0
        %5615 = vmatprep.mubr.bf16.mxu0 0
        %5616 = vmatmul.mubr.bf16.gmra.mrb[0].mxu0 %v5491
        %v5617 = vpop.f32.mrb[0].mxu0
        %v5618 = vadd.f32 0.0, %v5617
        %v5619 = vpop.f32.mrb[0].mxu0
        %v5620 = vpop.f32.mrb[0].mxu0
        %v5621 = vadd.f32 0.0, %v5620
        %v5622 = vpop.f32.mrb[0].mxu0
        %5623 = vmatprep.mubr.bf16.mxu0 0
        %5624 = vmatmul.mubr.bf16.gmra.mrb[0].mxu0 %v5494
        %v5625 = vpop.f32.mrb[0].mxu0
        %v5626 = vadd.f32 0.0, %v5625
        %v5627 = vpop.f32.mrb[0].mxu0
        %v5628 = vpop.f32.mrb[0].mxu0
        %v5629 = vadd.f32 0.0, %v5628
        %v5630 = vpop.f32.mrb[0].mxu0
        %5631 = vmatprep.mubr.bf16.mxu0 0
        %5632 = vmatmul.mubr.bf16.gmra.mrb[0].mxu0 %v5497
        %v5633 = vpop.f32.mrb[0].mxu0
        %v5634 = vadd.f32 0.0, %v5633
        %v5635 = vpop.f32.mrb[0].mxu0
        %v5636 = vpop.f32.mrb[0].mxu0
        %v5637 = vadd.f32 0.0, %v5636
        %v5638 = vpop.f32.mrb[0].mxu0
        %5639 = vmatprep.mubr.bf16.mxu0 0
        %5640 = vmatmul.mubr.bf16.gmra.mrb[0].mxu0 %v5500
        %v5641 = vpop.f32.mrb[0].mxu0
        %v5642 = vadd.f32 0.0, %v5641
        %v5643 = vpop.f32.mrb[0].mxu0
        %v5644 = vpop.f32.mrb[0].mxu0
        %v5645 = vadd.f32 0.0, %v5644
        %v5646 = vpop.f32.mrb[0].mxu0
        %5647 = vmatprep.mubr.bf16.mxu0 0
        %5648 = vmatmul.mubr.bf16.gmra.mrb[0].mxu0 %v5503
        %v5649 = vpop.f32.mrb[0].mxu0
        %v5650 = vadd.f32 0.0, %v5649
        %v5651 = vpop.f32.mrb[0].mxu0
        %v5652 = vpop.f32.mrb[0].mxu0
        %v5653 = vadd.f32 0.0, %v5652
        %v5654 = vpop.f32.mrb[0].mxu0
        %5655 = vmatprep.mubr.bf16.mxu0 0
        %5656 = vmatmul.mubr.bf16.gmra.mrb[0].mxu0 %v5506
        %v5657 = vpop.f32.mrb[0].mxu0
        %v5658 = vadd.f32 0.0, %v5657
        %v5659 = vpop.f32.mrb[0].mxu0
        %v5660 = vpop.f32.mrb[0].mxu0
        %v5661 = vadd.f32 0.0, %v5660
        %v5662 = vpop.f32.mrb[0].mxu0
        %5663 = vmatprep.mubr.bf16.mxu0 0
        %5664 = vmatmul.mubr.bf16.gmra.mrb[0].mxu0 %v5509
        %v5665 = vpop.f32.mrb[0].mxu0
        %v5666 = vadd.f32 0.0, %v5665
        %v5667 = vpop.f32.mrb[0].mxu0
        %v5668 = vpop.f32.mrb[0].mxu0
        %v5669 = vadd.f32 0.0, %v5668
        %v5670 = vpop.f32.mrb[0].mxu0
        %5671 = vdwg.mxu0
        %v5672 = vpack.c.bf16 %v5549, %v5546
        %v5673 = vpack.c.bf16 %v5557, %v5554
        %v5674 = vpack.c.bf16 %v5565, %v5562
        %v5675 = vpack.c.bf16 %v5573, %v5570
        %v5676 = vpack.c.bf16 %v5581, %v5578
        %v5677 = vpack.c.bf16 %v5589, %v5586
        %v5678 = vpack.c.bf16 %v5597, %v5594
        %v5679 = vpack.c.bf16 %v5605, %v5602
        %v5680 = vpack.c.bf16 %v5613, %v5610
        %v5681 = vpack.c.bf16 %v5621, %v5618
        %v5682 = vpack.c.bf16 %v5629, %v5626
        %v5683 = vpack.c.bf16 %v5637, %v5634
        %v5684 = vpack.c.bf16 %v5645, %v5642
        %v5685 = vpack.c.bf16 %v5653, %v5650
        %v5686 = vpack.c.bf16 %v5661, %v5658
        %v5687 = vpack.c.bf16 %v5669, %v5666
        %s5688 = scalar_lea.vmem %s16, 384
        %v5689 = vld [vmem:[%s5688] sm:$0xf]
        %v5690 = vld [vmem:[%s5688 + $0x4] sm:$0xf]
        %v5691 = vld [vmem:[%s5688 + $0x8] sm:$0xf]
        %v5692 = vld [vmem:[%s5688 + $0xc] sm:$0xf]
        %v5693 = vld [vmem:[%s5688 + $0x10] sm:$0xf]
        %v5694 = vld [vmem:[%s5688 + $0x14] sm:$0xf]
        %v5695 = vld [vmem:[%s5688 + $0x18] sm:$0xf]
        %v5696 = vld [vmem:[%s5688 + $0x1c] sm:$0xf]
        %v5697 = vld [vmem:[%s5688 + $0x20] sm:$0xf]
        %v5698 = vld [vmem:[%s5688 + $0x24] sm:$0xf]
        %v5699 = vld [vmem:[%s5688 + $0x28] sm:$0xf]
        %v5700 = vld [vmem:[%s5688 + $0x2c] sm:$0xf]
        %v5701 = vld [vmem:[%s5688 + $0x30] sm:$0xf]
        %v5702 = vld [vmem:[%s5688 + $0x34] sm:$0xf]
        %v5703 = vld [vmem:[%s5688 + $0x38] sm:$0xf]
        %v5704 = vld [vmem:[%s5688 + $0x3c] sm:$0xf]
        %v5705 = vld [vmem:[%s5688 + $0x40] sm:$0xf]
        %v5706 = vld [vmem:[%s5688 + $0x44] sm:$0xf]
        %v5707 = vld [vmem:[%s5688 + $0x48] sm:$0xf]
        %v5708 = vld [vmem:[%s5688 + $0x4c] sm:$0xf]
        %v5709 = vld [vmem:[%s5688 + $0x50] sm:$0xf]
        %v5710 = vld [vmem:[%s5688 + $0x54] sm:$0xf]
        %v5711 = vld [vmem:[%s5688 + $0x58] sm:$0xf]
        %v5712 = vld [vmem:[%s5688 + $0x5c] sm:$0xf]
        %v5713 = vld [vmem:[%s5688 + $0x60] sm:$0xf]
        %v5714 = vld [vmem:[%s5688 + $0x64] sm:$0xf]
        %v5715 = vld [vmem:[%s5688 + $0x68] sm:$0xf]
        %v5716 = vld [vmem:[%s5688 + $0x6c] sm:$0xf]
        %v5717 = vld [vmem:[%s5688 + $0x70] sm:$0xf]
        %v5718 = vld [vmem:[%s5688 + $0x74] sm:$0xf]
        %v5719 = vld [vmem:[%s5688 + $0x78] sm:$0xf]
        %v5720 = vld [vmem:[%s5688 + $0x7c] sm:$0xf]
        %v5753 = vunpack.c.l.b16 %v5689
        %v5754 = vunpack.c.l.b16 %v5690
        %v5755 = vunpack.c.l.b16 %v5691
        %v5756 = vunpack.c.l.b16 %v5692
        %v5757 = vunpack.c.l.b16 %v5693
        %v5758 = vunpack.c.l.b16 %v5694
        %v5759 = vunpack.c.l.b16 %v5695
        %v5760 = vunpack.c.l.b16 %v5696
        %v5761 = vunpack.c.l.b16 %v5697
        %v5762 = vunpack.c.l.b16 %v5698
        %v5763 = vunpack.c.l.b16 %v5699
        %v5764 = vunpack.c.l.b16 %v5700
        %v5765 = vunpack.c.l.b16 %v5701
        %v5766 = vunpack.c.l.b16 %v5702
        %v5767 = vunpack.c.l.b16 %v5703
        %v5768 = vunpack.c.l.b16 %v5704
        %v5769 = vunpack.c.l.b16 %v5705
        %v5770 = vunpack.c.l.b16 %v5706
        %v5771 = vunpack.c.l.b16 %v5707
        %v5772 = vunpack.c.l.b16 %v5708
        %v5773 = vunpack.c.l.b16 %v5709
        %v5774 = vunpack.c.l.b16 %v5710
        %v5775 = vunpack.c.l.b16 %v5711
        %v5776 = vunpack.c.l.b16 %v5712
        %v5777 = vunpack.c.l.b16 %v5713
        %v5778 = vunpack.c.l.b16 %v5714
        %v5779 = vunpack.c.l.b16 %v5715
        %v5780 = vunpack.c.l.b16 %v5716
        %v5781 = vunpack.c.l.b16 %v5717
        %v5782 = vunpack.c.l.b16 %v5718
        %v5783 = vunpack.c.l.b16 %v5719
        %v5784 = vunpack.c.l.b16 %v5720
        %v5785 = vpack.c.b16 %v5754, %v5753
        %v5786 = vpack.c.b16 %v5756, %v5755
        %v5787 = vpack.c.b16 %v5758, %v5757
        %v5788 = vpack.c.b16 %v5760, %v5759
        %v5789 = vpack.c.b16 %v5762, %v5761
        %v5790 = vpack.c.b16 %v5764, %v5763
        %v5791 = vpack.c.b16 %v5766, %v5765
        %v5792 = vpack.c.b16 %v5768, %v5767
        %v5793 = vpack.c.b16 %v5770, %v5769
        %v5794 = vpack.c.b16 %v5772, %v5771
        %v5795 = vpack.c.b16 %v5774, %v5773
        %v5796 = vpack.c.b16 %v5776, %v5775
        %v5797 = vpack.c.b16 %v5778, %v5777
        %v5798 = vpack.c.b16 %v5780, %v5779
        %v5799 = vpack.c.b16 %v5782, %v5781
        %v5800 = vpack.c.b16 %v5784, %v5783
        %v5802 = vsel %vm2234, %v5785, 0
        %v5805 = vsel %vm2234, %v5786, 0
        %v5808 = vsel %vm2234, %v5787, 0
        %v5811 = vsel %vm2234, %v5788, 0
        %v5814 = vsel %vm2234, %v5789, 0
        %v5817 = vsel %vm2234, %v5790, 0
        %v5820 = vsel %vm2234, %v5791, 0
        %v5823 = vsel %vm2234, %v5792, 0
        %v5826 = vsel %vm2234, %v5793, 0
        %v5829 = vsel %vm2234, %v5794, 0
        %v5832 = vsel %vm2234, %v5795, 0
        %v5835 = vsel %vm2234, %v5796, 0
        %v5838 = vsel %vm2234, %v5797, 0
        %v5841 = vsel %vm2234, %v5798, 0
        %v5844 = vsel %vm2234, %v5799, 0
        %v5847 = vsel %vm2234, %v5800, 0
        %5849 = vmatprep.subr.bf16.mxu0 0
        %5850 = vmatpush1.bf16.msra.mxu0 %v4671
        %5851 = vmatprep.subr.bf16.mxu0 0
        %5852 = vmatpush1.bf16.msra.mxu0 %v4672
        %5853 = vmatprep.subr.bf16.mxu0 0
        %5854 = vmatpush1.bf16.msra.mxu0 %v4673
        %5855 = vmatprep.subr.bf16.mxu0 0
        %5856 = vmatpush1.bf16.msra.mxu0 %v4674
        %5857 = vmatprep.subr.bf16.mxu0 0
        %5858 = vmatpush1.bf16.msra.mxu0 0
        %5859 = vmatprep.subr.bf16.mxu0 0
        %5860 = vmatpush1.bf16.msra.mxu0 0
        %5861 = vmatprep.subr.bf16.mxu0 0
        %5862 = vmatpush1.bf16.msra.mxu0 0
        %5863 = vmatprep.subr.bf16.mxu0 0
        %5864 = vmatpush1.bf16.msra.mxu0 0
        %5865 = vmatprep.subr.bf16.mxu0 0
        %5866 = vmatpush1.bf16.msra.mxu0 0
        %5867 = vmatprep.subr.bf16.mxu0 0
        %5868 = vmatpush1.bf16.msra.mxu0 0
        %5869 = vmatprep.subr.bf16.mxu0 0
        %5870 = vmatpush1.bf16.msra.mxu0 0
        %5871 = vmatprep.subr.bf16.mxu0 0
        %5872 = vmatpush1.bf16.msra.mxu0 0
        %5873 = vmatprep.subr.bf16.mxu0 0
        %5874 = vmatpush1.bf16.msra.mxu0 0
        %5875 = vmatprep.subr.bf16.mxu0 0
        %5876 = vmatpush1.bf16.msra.mxu0 0
        %5877 = vmatprep.subr.bf16.mxu0 0
        %5878 = vmatpush1.bf16.msra.mxu0 0
        %5879 = vmatprep.subr.bf16.mxu0 0
        %5880 = vmatpush1.bf16.msra.mxu0 0
        %5881 = vmatprep.mubr.bf16.mxu0 0
        %5882 = vmatmul.mubr.bf16.gmra.mrb[0].mxu0 %v5802
        %v5883 = vpop.f32.mrb[0].mxu0
        %v5884 = vadd.f32 0.0, %v5883
        %v5885 = vpop.f32.mrb[0].mxu0
        %v5886 = vpop.f32.mrb[0].mxu0
        %v5887 = vadd.f32 0.0, %v5886
        %v5888 = vpop.f32.mrb[0].mxu0
        %5889 = vmatprep.mubr.bf16.mxu0 0
        %5890 = vmatmul.mubr.bf16.gmra.mrb[0].mxu0 %v5805
        %v5891 = vpop.f32.mrb[0].mxu0
        %v5892 = vadd.f32 0.0, %v5891
        %v5893 = vpop.f32.mrb[0].mxu0
        %v5894 = vpop.f32.mrb[0].mxu0
        %v5895 = vadd.f32 0.0, %v5894
        %v5896 = vpop.f32.mrb[0].mxu0
        %5897 = vmatprep.mubr.bf16.mxu0 0
        %5898 = vmatmul.mubr.bf16.gmra.mrb[0].mxu0 %v5808
        %v5899 = vpop.f32.mrb[0].mxu0
        %v5900 = vadd.f32 0.0, %v5899
        %v5901 = vpop.f32.mrb[0].mxu0
        %v5902 = vpop.f32.mrb[0].mxu0
        %v5903 = vadd.f32 0.0, %v5902
        %v5904 = vpop.f32.mrb[0].mxu0
        %5905 = vmatprep.mubr.bf16.mxu0 0
        %5906 = vmatmul.mubr.bf16.gmra.mrb[0].mxu0 %v5811
        %v5907 = vpop.f32.mrb[0].mxu0
        %v5908 = vadd.f32 0.0, %v5907
        %v5909 = vpop.f32.mrb[0].mxu0
        %v5910 = vpop.f32.mrb[0].mxu0
        %v5911 = vadd.f32 0.0, %v5910
        %v5912 = vpop.f32.mrb[0].mxu0
        %5913 = vmatprep.mubr.bf16.mxu0 0
        %5914 = vmatmul.mubr.bf16.gmra.mrb[0].mxu0 %v5814
        %v5915 = vpop.f32.mrb[0].mxu0
        %v5916 = vadd.f32 0.0, %v5915
        %v5917 = vpop.f32.mrb[0].mxu0
        %v5918 = vpop.f32.mrb[0].mxu0
        %v5919 = vadd.f32 0.0, %v5918
        %v5920 = vpop.f32.mrb[0].mxu0
        %5921 = vmatprep.mubr.bf16.mxu0 0
        %5922 = vmatmul.mubr.bf16.gmra.mrb[0].mxu0 %v5817
        %v5923 = vpop.f32.mrb[0].mxu0
        %v5924 = vadd.f32 0.0, %v5923
        %v5925 = vpop.f32.mrb[0].mxu0
        %v5926 = vpop.f32.mrb[0].mxu0
        %v5927 = vadd.f32 0.0, %v5926
        %v5928 = vpop.f32.mrb[0].mxu0
        %5929 = vmatprep.mubr.bf16.mxu0 0
        %5930 = vmatmul.mubr.bf16.gmra.mrb[0].mxu0 %v5820
        %v5931 = vpop.f32.mrb[0].mxu0
        %v5932 = vadd.f32 0.0, %v5931
        %v5933 = vpop.f32.mrb[0].mxu0
        %v5934 = vpop.f32.mrb[0].mxu0
        %v5935 = vadd.f32 0.0, %v5934
        %v5936 = vpop.f32.mrb[0].mxu0
        %5937 = vmatprep.mubr.bf16.mxu0 0
        %5938 = vmatmul.mubr.bf16.gmra.mrb[0].mxu0 %v5823
        %v5939 = vpop.f32.mrb[0].mxu0
        %v5940 = vadd.f32 0.0, %v5939
        %v5941 = vpop.f32.mrb[0].mxu0
        %v5942 = vpop.f32.mrb[0].mxu0
        %v5943 = vadd.f32 0.0, %v5942
        %v5944 = vpop.f32.mrb[0].mxu0
        %5945 = vmatprep.mubr.bf16.mxu0 0
        %5946 = vmatmul.mubr.bf16.gmra.mrb[0].mxu0 %v5826
        %v5947 = vpop.f32.mrb[0].mxu0
        %v5948 = vadd.f32 0.0, %v5947
        %v5949 = vpop.f32.mrb[0].mxu0
        %v5950 = vpop.f32.mrb[0].mxu0
        %v5951 = vadd.f32 0.0, %v5950
        %v5952 = vpop.f32.mrb[0].mxu0
        %5953 = vmatprep.mubr.bf16.mxu0 0
        %5954 = vmatmul.mubr.bf16.gmra.mrb[0].mxu0 %v5829
        %v5955 = vpop.f32.mrb[0].mxu0
        %v5956 = vadd.f32 0.0, %v5955
        %v5957 = vpop.f32.mrb[0].mxu0
        %v5958 = vpop.f32.mrb[0].mxu0
        %v5959 = vadd.f32 0.0, %v5958
        %v5960 = vpop.f32.mrb[0].mxu0
        %5961 = vmatprep.mubr.bf16.mxu0 0
        %5962 = vmatmul.mubr.bf16.gmra.mrb[0].mxu0 %v5832
        %v5963 = vpop.f32.mrb[0].mxu0
        %v5964 = vadd.f32 0.0, %v5963
        %v5965 = vpop.f32.mrb[0].mxu0
        %v5966 = vpop.f32.mrb[0].mxu0
        %v5967 = vadd.f32 0.0, %v5966
        %v5968 = vpop.f32.mrb[0].mxu0
        %5969 = vmatprep.mubr.bf16.mxu0 0
        %5970 = vmatmul.mubr.bf16.gmra.mrb[0].mxu0 %v5835
        %v5971 = vpop.f32.mrb[0].mxu0
        %v5972 = vadd.f32 0.0, %v5971
        %v5973 = vpop.f32.mrb[0].mxu0
        %v5974 = vpop.f32.mrb[0].mxu0
        %v5975 = vadd.f32 0.0, %v5974
        %v5976 = vpop.f32.mrb[0].mxu0
        %5977 = vmatprep.mubr.bf16.mxu0 0
        %5978 = vmatmul.mubr.bf16.gmra.mrb[0].mxu0 %v5838
        %v5979 = vpop.f32.mrb[0].mxu0
        %v5980 = vadd.f32 0.0, %v5979
        %v5981 = vpop.f32.mrb[0].mxu0
        %v5982 = vpop.f32.mrb[0].mxu0
        %v5983 = vadd.f32 0.0, %v5982
        %v5984 = vpop.f32.mrb[0].mxu0
        %5985 = vmatprep.mubr.bf16.mxu0 0
        %5986 = vmatmul.mubr.bf16.gmra.mrb[0].mxu0 %v5841
        %v5987 = vpop.f32.mrb[0].mxu0
        %v5988 = vadd.f32 0.0, %v5987
        %v5989 = vpop.f32.mrb[0].mxu0
        %v5990 = vpop.f32.mrb[0].mxu0
        %v5991 = vadd.f32 0.0, %v5990
        %v5992 = vpop.f32.mrb[0].mxu0
        %5993 = vmatprep.mubr.bf16.mxu0 0
        %5994 = vmatmul.mubr.bf16.gmra.mrb[0].mxu0 %v5844
        %v5995 = vpop.f32.mrb[0].mxu0
        %v5996 = vadd.f32 0.0, %v5995
        %v5997 = vpop.f32.mrb[0].mxu0
        %v5998 = vpop.f32.mrb[0].mxu0
        %v5999 = vadd.f32 0.0, %v5998
        %v6000 = vpop.f32.mrb[0].mxu0
        %6001 = vmatprep.mubr.bf16.mxu0 0
        %6002 = vmatmul.mubr.bf16.gmra.mrb[0].mxu0 %v5847
        %v6003 = vpop.f32.mrb[0].mxu0
        %v6004 = vadd.f32 0.0, %v6003
        %v6005 = vpop.f32.mrb[0].mxu0
        %v6006 = vpop.f32.mrb[0].mxu0
        %v6007 = vadd.f32 0.0, %v6006
        %v6008 = vpop.f32.mrb[0].mxu0
        %6009 = vdwg.mxu0
        %v6010 = vpack.c.bf16 %v5887, %v5884
        %v6011 = vpack.c.bf16 %v5895, %v5892
        %v6012 = vpack.c.bf16 %v5903, %v5900
        %v6013 = vpack.c.bf16 %v5911, %v5908
        %v6014 = vpack.c.bf16 %v5919, %v5916
        %v6015 = vpack.c.bf16 %v5927, %v5924
        %v6016 = vpack.c.bf16 %v5935, %v5932
        %v6017 = vpack.c.bf16 %v5943, %v5940
        %v6018 = vpack.c.bf16 %v5951, %v5948
        %v6019 = vpack.c.bf16 %v5959, %v5956
        %v6020 = vpack.c.bf16 %v5967, %v5964
        %v6021 = vpack.c.bf16 %v5975, %v5972
        %v6022 = vpack.c.bf16 %v5983, %v5980
        %v6023 = vpack.c.bf16 %v5991, %v5988
        %v6024 = vpack.c.bf16 %v5999, %v5996
        %v6025 = vpack.c.bf16 %v6007, %v6004
        %s6026 = scalar_lea.vmem %s16, 512
        %v6027 = vld [vmem:[%s6026] sm:$0xf]
        %v6028 = vld [vmem:[%s6026 + $0x4] sm:$0xf]
        %v6029 = vld [vmem:[%s6026 + $0x8] sm:$0xf]
        %v6030 = vld [vmem:[%s6026 + $0xc] sm:$0xf]
        %v6031 = vld [vmem:[%s6026 + $0x10] sm:$0xf]
        %v6032 = vld [vmem:[%s6026 + $0x14] sm:$0xf]
        %v6033 = vld [vmem:[%s6026 + $0x18] sm:$0xf]
        %v6034 = vld [vmem:[%s6026 + $0x1c] sm:$0xf]
        %v6035 = vld [vmem:[%s6026 + $0x20] sm:$0xf]
        %v6036 = vld [vmem:[%s6026 + $0x24] sm:$0xf]
        %v6037 = vld [vmem:[%s6026 + $0x28] sm:$0xf]
        %v6038 = vld [vmem:[%s6026 + $0x2c] sm:$0xf]
        %v6039 = vld [vmem:[%s6026 + $0x30] sm:$0xf]
        %v6040 = vld [vmem:[%s6026 + $0x34] sm:$0xf]
        %v6041 = vld [vmem:[%s6026 + $0x38] sm:$0xf]
        %v6042 = vld [vmem:[%s6026 + $0x3c] sm:$0xf]
        %v6043 = vld [vmem:[%s6026 + $0x40] sm:$0xf]
        %v6044 = vld [vmem:[%s6026 + $0x44] sm:$0xf]
        %v6045 = vld [vmem:[%s6026 + $0x48] sm:$0xf]
        %v6046 = vld [vmem:[%s6026 + $0x4c] sm:$0xf]
        %v6047 = vld [vmem:[%s6026 + $0x50] sm:$0xf]
        %v6048 = vld [vmem:[%s6026 + $0x54] sm:$0xf]
        %v6049 = vld [vmem:[%s6026 + $0x58] sm:$0xf]
        %v6050 = vld [vmem:[%s6026 + $0x5c] sm:$0xf]
        %v6051 = vld [vmem:[%s6026 + $0x60] sm:$0xf]
        %v6052 = vld [vmem:[%s6026 + $0x64] sm:$0xf]
        %v6053 = vld [vmem:[%s6026 + $0x68] sm:$0xf]
        %v6054 = vld [vmem:[%s6026 + $0x6c] sm:$0xf]
        %v6055 = vld [vmem:[%s6026 + $0x70] sm:$0xf]
        %v6056 = vld [vmem:[%s6026 + $0x74] sm:$0xf]
        %v6057 = vld [vmem:[%s6026 + $0x78] sm:$0xf]
        %v6058 = vld [vmem:[%s6026 + $0x7c] sm:$0xf]
        %v6091 = vunpack.c.l.b16 %v6027
        %v6092 = vunpack.c.l.b16 %v6028
        %v6093 = vunpack.c.l.b16 %v6029
        %v6094 = vunpack.c.l.b16 %v6030
        %v6095 = vunpack.c.l.b16 %v6031
        %v6096 = vunpack.c.l.b16 %v6032
        %v6097 = vunpack.c.l.b16 %v6033
        %v6098 = vunpack.c.l.b16 %v6034
        %v6099 = vunpack.c.l.b16 %v6035
        %v6100 = vunpack.c.l.b16 %v6036
        %v6101 = vunpack.c.l.b16 %v6037
        %v6102 = vunpack.c.l.b16 %v6038
        %v6103 = vunpack.c.l.b16 %v6039
        %v6104 = vunpack.c.l.b16 %v6040
        %v6105 = vunpack.c.l.b16 %v6041
        %v6106 = vunpack.c.l.b16 %v6042
        %v6107 = vunpack.c.l.b16 %v6043
        %v6108 = vunpack.c.l.b16 %v6044
        %v6109 = vunpack.c.l.b16 %v6045
        %v6110 = vunpack.c.l.b16 %v6046
        %v6111 = vunpack.c.l.b16 %v6047
        %v6112 = vunpack.c.l.b16 %v6048
        %v6113 = vunpack.c.l.b16 %v6049
        %v6114 = vunpack.c.l.b16 %v6050
        %v6115 = vunpack.c.l.b16 %v6051
        %v6116 = vunpack.c.l.b16 %v6052
        %v6117 = vunpack.c.l.b16 %v6053
        %v6118 = vunpack.c.l.b16 %v6054
        %v6119 = vunpack.c.l.b16 %v6055
        %v6120 = vunpack.c.l.b16 %v6056
        %v6121 = vunpack.c.l.b16 %v6057
        %v6122 = vunpack.c.l.b16 %v6058
        %v6123 = vpack.c.b16 %v6092, %v6091
        %v6124 = vpack.c.b16 %v6094, %v6093
        %v6125 = vpack.c.b16 %v6096, %v6095
        %v6126 = vpack.c.b16 %v6098, %v6097
        %v6127 = vpack.c.b16 %v6100, %v6099
        %v6128 = vpack.c.b16 %v6102, %v6101
        %v6129 = vpack.c.b16 %v6104, %v6103
        %v6130 = vpack.c.b16 %v6106, %v6105
        %v6131 = vpack.c.b16 %v6108, %v6107
        %v6132 = vpack.c.b16 %v6110, %v6109
        %v6133 = vpack.c.b16 %v6112, %v6111
        %v6134 = vpack.c.b16 %v6114, %v6113
        %v6135 = vpack.c.b16 %v6116, %v6115
        %v6136 = vpack.c.b16 %v6118, %v6117
        %v6137 = vpack.c.b16 %v6120, %v6119
        %v6138 = vpack.c.b16 %v6122, %v6121
        %v6140 = vsel %vm2234, %v6123, 0
        %v6143 = vsel %vm2234, %v6124, 0
        %v6146 = vsel %vm2234, %v6125, 0
        %v6149 = vsel %vm2234, %v6126, 0
        %v6152 = vsel %vm2234, %v6127, 0
        %v6155 = vsel %vm2234, %v6128, 0
        %v6158 = vsel %vm2234, %v6129, 0
        %v6161 = vsel %vm2234, %v6130, 0
        %v6164 = vsel %vm2234, %v6131, 0
        %v6167 = vsel %vm2234, %v6132, 0
        %v6170 = vsel %vm2234, %v6133, 0
        %v6173 = vsel %vm2234, %v6134, 0
        %v6176 = vsel %vm2234, %v6135, 0
        %v6179 = vsel %vm2234, %v6136, 0
        %v6182 = vsel %vm2234, %v6137, 0
        %v6185 = vsel %vm2234, %v6138, 0
        %6187 = vmatprep.subr.bf16.mxu0 0
        %6188 = vmatpush1.bf16.msra.mxu0 %v4671
        %6189 = vmatprep.subr.bf16.mxu0 0
        %6190 = vmatpush1.bf16.msra.mxu0 %v4672
        %6191 = vmatprep.subr.bf16.mxu0 0
        %6192 = vmatpush1.bf16.msra.mxu0 %v4673
        %6193 = vmatprep.subr.bf16.mxu0 0
        %6194 = vmatpush1.bf16.msra.mxu0 %v4674
        %6195 = vmatprep.subr.bf16.mxu0 0
        %6196 = vmatpush1.bf16.msra.mxu0 0
        %6197 = vmatprep.subr.bf16.mxu0 0
        %6198 = vmatpush1.bf16.msra.mxu0 0
        %6199 = vmatprep.subr.bf16.mxu0 0
        %6200 = vmatpush1.bf16.msra.mxu0 0
        %6201 = vmatprep.subr.bf16.mxu0 0
        %6202 = vmatpush1.bf16.msra.mxu0 0
        %6203 = vmatprep.subr.bf16.mxu0 0
        %6204 = vmatpush1.bf16.msra.mxu0 0
        %6205 = vmatprep.subr.bf16.mxu0 0
        %6206 = vmatpush1.bf16.msra.mxu0 0
        %6207 = vmatprep.subr.bf16.mxu0 0
        %6208 = vmatpush1.bf16.msra.mxu0 0
        %6209 = vmatprep.subr.bf16.mxu0 0
        %6210 = vmatpush1.bf16.msra.mxu0 0
        %6211 = vmatprep.subr.bf16.mxu0 0
        %6212 = vmatpush1.bf16.msra.mxu0 0
        %6213 = vmatprep.subr.bf16.mxu0 0
        %6214 = vmatpush1.bf16.msra.mxu0 0
        %6215 = vmatprep.subr.bf16.mxu0 0
        %6216 = vmatpush1.bf16.msra.mxu0 0
        %6217 = vmatprep.subr.bf16.mxu0 0
        %6218 = vmatpush1.bf16.msra.mxu0 0
        %6219 = vmatprep.mubr.bf16.mxu0 0
        %6220 = vmatmul.mubr.bf16.gmra.mrb[0].mxu0 %v6140
        %v6221 = vpop.f32.mrb[0].mxu0
        %v6222 = vadd.f32 0.0, %v6221
        %v6223 = vpop.f32.mrb[0].mxu0
        %v6224 = vpop.f32.mrb[0].mxu0
        %v6225 = vadd.f32 0.0, %v6224
        %v6226 = vpop.f32.mrb[0].mxu0
        %6227 = vmatprep.mubr.bf16.mxu0 0
        %6228 = vmatmul.mubr.bf16.gmra.mrb[0].mxu0 %v6143
        %v6229 = vpop.f32.mrb[0].mxu0
        %v6230 = vadd.f32 0.0, %v6229
        %v6231 = vpop.f32.mrb[0].mxu0
        %v6232 = vpop.f32.mrb[0].mxu0
        %v6233 = vadd.f32 0.0, %v6232
        %v6234 = vpop.f32.mrb[0].mxu0
        %6235 = vmatprep.mubr.bf16.mxu0 0
        %6236 = vmatmul.mubr.bf16.gmra.mrb[0].mxu0 %v6146
        %v6237 = vpop.f32.mrb[0].mxu0
        %v6238 = vadd.f32 0.0, %v6237
        %v6239 = vpop.f32.mrb[0].mxu0
        %v6240 = vpop.f32.mrb[0].mxu0
        %v6241 = vadd.f32 0.0, %v6240
        %v6242 = vpop.f32.mrb[0].mxu0
        %6243 = vmatprep.mubr.bf16.mxu0 0
        %6244 = vmatmul.mubr.bf16.gmra.mrb[0].mxu0 %v6149
        %v6245 = vpop.f32.mrb[0].mxu0
        %v6246 = vadd.f32 0.0, %v6245
        %v6247 = vpop.f32.mrb[0].mxu0
        %v6248 = vpop.f32.mrb[0].mxu0
        %v6249 = vadd.f32 0.0, %v6248
        %v6250 = vpop.f32.mrb[0].mxu0
        %6251 = vmatprep.mubr.bf16.mxu0 0
        %6252 = vmatmul.mubr.bf16.gmra.mrb[0].mxu0 %v6152
        %v6253 = vpop.f32.mrb[0].mxu0
        %v6254 = vadd.f32 0.0, %v6253
        %v6255 = vpop.f32.mrb[0].mxu0
        %v6256 = vpop.f32.mrb[0].mxu0
        %v6257 = vadd.f32 0.0, %v6256
        %v6258 = vpop.f32.mrb[0].mxu0
        %6259 = vmatprep.mubr.bf16.mxu0 0
        %6260 = vmatmul.mubr.bf16.gmra.mrb[0].mxu0 %v6155
        %v6261 = vpop.f32.mrb[0].mxu0
        %v6262 = vadd.f32 0.0, %v6261
        %v6263 = vpop.f32.mrb[0].mxu0
        %v6264 = vpop.f32.mrb[0].mxu0
        %v6265 = vadd.f32 0.0, %v6264
        %v6266 = vpop.f32.mrb[0].mxu0
        %6267 = vmatprep.mubr.bf16.mxu0 0
        %6268 = vmatmul.mubr.bf16.gmra.mrb[0].mxu0 %v6158
        %v6269 = vpop.f32.mrb[0].mxu0
        %v6270 = vadd.f32 0.0, %v6269
        %v6271 = vpop.f32.mrb[0].mxu0
        %v6272 = vpop.f32.mrb[0].mxu0
        %v6273 = vadd.f32 0.0, %v6272
        %v6274 = vpop.f32.mrb[0].mxu0
        %6275 = vmatprep.mubr.bf16.mxu0 0
        %6276 = vmatmul.mubr.bf16.gmra.mrb[0].mxu0 %v6161
        %v6277 = vpop.f32.mrb[0].mxu0
        %v6278 = vadd.f32 0.0, %v6277
        %v6279 = vpop.f32.mrb[0].mxu0
        %v6280 = vpop.f32.mrb[0].mxu0
        %v6281 = vadd.f32 0.0, %v6280
        %v6282 = vpop.f32.mrb[0].mxu0
        %6283 = vmatprep.mubr.bf16.mxu0 0
        %6284 = vmatmul.mubr.bf16.gmra.mrb[0].mxu0 %v6164
        %v6285 = vpop.f32.mrb[0].mxu0
        %v6286 = vadd.f32 0.0, %v6285
        %v6287 = vpop.f32.mrb[0].mxu0
        %v6288 = vpop.f32.mrb[0].mxu0
        %v6289 = vadd.f32 0.0, %v6288
        %v6290 = vpop.f32.mrb[0].mxu0
        %6291 = vmatprep.mubr.bf16.mxu0 0
        %6292 = vmatmul.mubr.bf16.gmra.mrb[0].mxu0 %v6167
        %v6293 = vpop.f32.mrb[0].mxu0
        %v6294 = vadd.f32 0.0, %v6293
        %v6295 = vpop.f32.mrb[0].mxu0
        %v6296 = vpop.f32.mrb[0].mxu0
        %v6297 = vadd.f32 0.0, %v6296
        %v6298 = vpop.f32.mrb[0].mxu0
        %6299 = vmatprep.mubr.bf16.mxu0 0
        %6300 = vmatmul.mubr.bf16.gmra.mrb[0].mxu0 %v6170
        %v6301 = vpop.f32.mrb[0].mxu0
        %v6302 = vadd.f32 0.0, %v6301
        %v6303 = vpop.f32.mrb[0].mxu0
        %v6304 = vpop.f32.mrb[0].mxu0
        %v6305 = vadd.f32 0.0, %v6304
        %v6306 = vpop.f32.mrb[0].mxu0
        %6307 = vmatprep.mubr.bf16.mxu0 0
        %6308 = vmatmul.mubr.bf16.gmra.mrb[0].mxu0 %v6173
        %v6309 = vpop.f32.mrb[0].mxu0
        %v6310 = vadd.f32 0.0, %v6309
        %v6311 = vpop.f32.mrb[0].mxu0
        %v6312 = vpop.f32.mrb[0].mxu0
        %v6313 = vadd.f32 0.0, %v6312
        %v6314 = vpop.f32.mrb[0].mxu0
        %6315 = vmatprep.mubr.bf16.mxu0 0
        %6316 = vmatmul.mubr.bf16.gmra.mrb[0].mxu0 %v6176
        %v6317 = vpop.f32.mrb[0].mxu0
        %v6318 = vadd.f32 0.0, %v6317
        %v6319 = vpop.f32.mrb[0].mxu0
        %v6320 = vpop.f32.mrb[0].mxu0
        %v6321 = vadd.f32 0.0, %v6320
        %v6322 = vpop.f32.mrb[0].mxu0
        %6323 = vmatprep.mubr.bf16.mxu0 0
        %6324 = vmatmul.mubr.bf16.gmra.mrb[0].mxu0 %v6179
        %v6325 = vpop.f32.mrb[0].mxu0
        %v6326 = vadd.f32 0.0, %v6325
        %v6327 = vpop.f32.mrb[0].mxu0
        %v6328 = vpop.f32.mrb[0].mxu0
        %v6329 = vadd.f32 0.0, %v6328
        %v6330 = vpop.f32.mrb[0].mxu0
        %6331 = vmatprep.mubr.bf16.mxu0 0
        %6332 = vmatmul.mubr.bf16.gmra.mrb[0].mxu0 %v6182
        %v6333 = vpop.f32.mrb[0].mxu0
        %v6334 = vadd.f32 0.0, %v6333
        %v6335 = vpop.f32.mrb[0].mxu0
        %v6336 = vpop.f32.mrb[0].mxu0
        %v6337 = vadd.f32 0.0, %v6336
        %v6338 = vpop.f32.mrb[0].mxu0
        %6339 = vmatprep.mubr.bf16.mxu0 0
        %6340 = vmatmul.mubr.bf16.gmra.mrb[0].mxu0 %v6185
        %v6341 = vpop.f32.mrb[0].mxu0
        %v6342 = vadd.f32 0.0, %v6341
        %v6343 = vpop.f32.mrb[0].mxu0
        %v6344 = vpop.f32.mrb[0].mxu0
        %v6345 = vadd.f32 0.0, %v6344
        %v6346 = vpop.f32.mrb[0].mxu0
        %6347 = vdwg.mxu0
        %v6348 = vpack.c.bf16 %v6225, %v6222
        %v6349 = vpack.c.bf16 %v6233, %v6230
        %v6350 = vpack.c.bf16 %v6241, %v6238
        %v6351 = vpack.c.bf16 %v6249, %v6246
        %v6352 = vpack.c.bf16 %v6257, %v6254
        %v6353 = vpack.c.bf16 %v6265, %v6262
        %v6354 = vpack.c.bf16 %v6273, %v6270
        %v6355 = vpack.c.bf16 %v6281, %v6278
        %v6356 = vpack.c.bf16 %v6289, %v6286
        %v6357 = vpack.c.bf16 %v6297, %v6294
        %v6358 = vpack.c.bf16 %v6305, %v6302
        %v6359 = vpack.c.bf16 %v6313, %v6310
        %v6360 = vpack.c.bf16 %v6321, %v6318
        %v6361 = vpack.c.bf16 %v6329, %v6326
        %v6362 = vpack.c.bf16 %v6337, %v6334
        %v6363 = vpack.c.bf16 %v6345, %v6342
        %s6364 = scalar_lea.vmem %s16, 640
        %v6365 = vld [vmem:[%s6364] sm:$0xf]
        %v6366 = vld [vmem:[%s6364 + $0x4] sm:$0xf]
        %v6367 = vld [vmem:[%s6364 + $0x8] sm:$0xf]
        %v6368 = vld [vmem:[%s6364 + $0xc] sm:$0xf]
        %v6369 = vld [vmem:[%s6364 + $0x10] sm:$0xf]
        %v6370 = vld [vmem:[%s6364 + $0x14] sm:$0xf]
        %v6371 = vld [vmem:[%s6364 + $0x18] sm:$0xf]
        %v6372 = vld [vmem:[%s6364 + $0x1c] sm:$0xf]
        %v6373 = vld [vmem:[%s6364 + $0x20] sm:$0xf]
        %v6374 = vld [vmem:[%s6364 + $0x24] sm:$0xf]
        %v6375 = vld [vmem:[%s6364 + $0x28] sm:$0xf]
        %v6376 = vld [vmem:[%s6364 + $0x2c] sm:$0xf]
        %v6377 = vld [vmem:[%s6364 + $0x30] sm:$0xf]
        %v6378 = vld [vmem:[%s6364 + $0x34] sm:$0xf]
        %v6379 = vld [vmem:[%s6364 + $0x38] sm:$0xf]
        %v6380 = vld [vmem:[%s6364 + $0x3c] sm:$0xf]
        %v6381 = vld [vmem:[%s6364 + $0x40] sm:$0xf]
        %v6382 = vld [vmem:[%s6364 + $0x44] sm:$0xf]
        %v6383 = vld [vmem:[%s6364 + $0x48] sm:$0xf]
        %v6384 = vld [vmem:[%s6364 + $0x4c] sm:$0xf]
        %v6385 = vld [vmem:[%s6364 + $0x50] sm:$0xf]
        %v6386 = vld [vmem:[%s6364 + $0x54] sm:$0xf]
        %v6387 = vld [vmem:[%s6364 + $0x58] sm:$0xf]
        %v6388 = vld [vmem:[%s6364 + $0x5c] sm:$0xf]
        %v6389 = vld [vmem:[%s6364 + $0x60] sm:$0xf]
        %v6390 = vld [vmem:[%s6364 + $0x64] sm:$0xf]
        %v6391 = vld [vmem:[%s6364 + $0x68] sm:$0xf]
        %v6392 = vld [vmem:[%s6364 + $0x6c] sm:$0xf]
        %v6393 = vld [vmem:[%s6364 + $0x70] sm:$0xf]
        %v6394 = vld [vmem:[%s6364 + $0x74] sm:$0xf]
        %v6395 = vld [vmem:[%s6364 + $0x78] sm:$0xf]
        %v6396 = vld [vmem:[%s6364 + $0x7c] sm:$0xf]
        %v6429 = vunpack.c.l.b16 %v6365
        %v6430 = vunpack.c.l.b16 %v6366
        %v6431 = vunpack.c.l.b16 %v6367
        %v6432 = vunpack.c.l.b16 %v6368
        %v6433 = vunpack.c.l.b16 %v6369
        %v6434 = vunpack.c.l.b16 %v6370
        %v6435 = vunpack.c.l.b16 %v6371
        %v6436 = vunpack.c.l.b16 %v6372
        %v6437 = vunpack.c.l.b16 %v6373
        %v6438 = vunpack.c.l.b16 %v6374
        %v6439 = vunpack.c.l.b16 %v6375
        %v6440 = vunpack.c.l.b16 %v6376
        %v6441 = vunpack.c.l.b16 %v6377
        %v6442 = vunpack.c.l.b16 %v6378
        %v6443 = vunpack.c.l.b16 %v6379
        %v6444 = vunpack.c.l.b16 %v6380
        %v6445 = vunpack.c.l.b16 %v6381
        %v6446 = vunpack.c.l.b16 %v6382
        %v6447 = vunpack.c.l.b16 %v6383
        %v6448 = vunpack.c.l.b16 %v6384
        %v6449 = vunpack.c.l.b16 %v6385
        %v6450 = vunpack.c.l.b16 %v6386
        %v6451 = vunpack.c.l.b16 %v6387
        %v6452 = vunpack.c.l.b16 %v6388
        %v6453 = vunpack.c.l.b16 %v6389
        %v6454 = vunpack.c.l.b16 %v6390
        %v6455 = vunpack.c.l.b16 %v6391
        %v6456 = vunpack.c.l.b16 %v6392
        %v6457 = vunpack.c.l.b16 %v6393
        %v6458 = vunpack.c.l.b16 %v6394
        %v6459 = vunpack.c.l.b16 %v6395
        %v6460 = vunpack.c.l.b16 %v6396
        %v6461 = vpack.c.b16 %v6430, %v6429
        %v6462 = vpack.c.b16 %v6432, %v6431
        %v6463 = vpack.c.b16 %v6434, %v6433
        %v6464 = vpack.c.b16 %v6436, %v6435
        %v6465 = vpack.c.b16 %v6438, %v6437
        %v6466 = vpack.c.b16 %v6440, %v6439
        %v6467 = vpack.c.b16 %v6442, %v6441
        %v6468 = vpack.c.b16 %v6444, %v6443
        %v6469 = vpack.c.b16 %v6446, %v6445
        %v6470 = vpack.c.b16 %v6448, %v6447
        %v6471 = vpack.c.b16 %v6450, %v6449
        %v6472 = vpack.c.b16 %v6452, %v6451
        %v6473 = vpack.c.b16 %v6454, %v6453
        %v6474 = vpack.c.b16 %v6456, %v6455
        %v6475 = vpack.c.b16 %v6458, %v6457
        %v6476 = vpack.c.b16 %v6460, %v6459
        %v6478 = vsel %vm2234, %v6461, 0
        %v6481 = vsel %vm2234, %v6462, 0
        %v6484 = vsel %vm2234, %v6463, 0
        %v6487 = vsel %vm2234, %v6464, 0
        %v6490 = vsel %vm2234, %v6465, 0
        %v6493 = vsel %vm2234, %v6466, 0
        %v6496 = vsel %vm2234, %v6467, 0
        %v6499 = vsel %vm2234, %v6468, 0
        %v6502 = vsel %vm2234, %v6469, 0
        %v6505 = vsel %vm2234, %v6470, 0
        %v6508 = vsel %vm2234, %v6471, 0
        %v6511 = vsel %vm2234, %v6472, 0
        %v6514 = vsel %vm2234, %v6473, 0
        %v6517 = vsel %vm2234, %v6474, 0
        %v6520 = vsel %vm2234, %v6475, 0
        %v6523 = vsel %vm2234, %v6476, 0
        %6525 = vmatprep.subr.bf16.mxu0 0
        %6526 = vmatpush1.bf16.msra.mxu0 %v4671
        %6527 = vmatprep.subr.bf16.mxu0 0
        %6528 = vmatpush1.bf16.msra.mxu0 %v4672
        %6529 = vmatprep.subr.bf16.mxu0 0
        %6530 = vmatpush1.bf16.msra.mxu0 %v4673
        %6531 = vmatprep.subr.bf16.mxu0 0
        %6532 = vmatpush1.bf16.msra.mxu0 %v4674
        %6533 = vmatprep.subr.bf16.mxu0 0
        %6534 = vmatpush1.bf16.msra.mxu0 0
        %6535 = vmatprep.subr.bf16.mxu0 0
        %6536 = vmatpush1.bf16.msra.mxu0 0
        %6537 = vmatprep.subr.bf16.mxu0 0
        %6538 = vmatpush1.bf16.msra.mxu0 0
        %6539 = vmatprep.subr.bf16.mxu0 0
        %6540 = vmatpush1.bf16.msra.mxu0 0
        %6541 = vmatprep.subr.bf16.mxu0 0
        %6542 = vmatpush1.bf16.msra.mxu0 0
        %6543 = vmatprep.subr.bf16.mxu0 0
        %6544 = vmatpush1.bf16.msra.mxu0 0
        %6545 = vmatprep.subr.bf16.mxu0 0
        %6546 = vmatpush1.bf16.msra.mxu0 0
        %6547 = vmatprep.subr.bf16.mxu0 0
        %6548 = vmatpush1.bf16.msra.mxu0 0
        %6549 = vmatprep.subr.bf16.mxu0 0
        %6550 = vmatpush1.bf16.msra.mxu0 0
        %6551 = vmatprep.subr.bf16.mxu0 0
        %6552 = vmatpush1.bf16.msra.mxu0 0
        %6553 = vmatprep.subr.bf16.mxu0 0
        %6554 = vmatpush1.bf16.msra.mxu0 0
        %6555 = vmatprep.subr.bf16.mxu0 0
        %6556 = vmatpush1.bf16.msra.mxu0 0
        %6557 = vmatprep.mubr.bf16.mxu0 0
        %6558 = vmatmul.mubr.bf16.gmra.mrb[0].mxu0 %v6478
        %v6559 = vpop.f32.mrb[0].mxu0
        %v6560 = vadd.f32 0.0, %v6559
        %v6561 = vpop.f32.mrb[0].mxu0
        %v6562 = vpop.f32.mrb[0].mxu0
        %v6563 = vadd.f32 0.0, %v6562
        %v6564 = vpop.f32.mrb[0].mxu0
        %6565 = vmatprep.mubr.bf16.mxu0 0
        %6566 = vmatmul.mubr.bf16.gmra.mrb[0].mxu0 %v6481
        %v6567 = vpop.f32.mrb[0].mxu0
        %v6568 = vadd.f32 0.0, %v6567
        %v6569 = vpop.f32.mrb[0].mxu0
        %v6570 = vpop.f32.mrb[0].mxu0
        %v6571 = vadd.f32 0.0, %v6570
        %v6572 = vpop.f32.mrb[0].mxu0
        %6573 = vmatprep.mubr.bf16.mxu0 0
        %6574 = vmatmul.mubr.bf16.gmra.mrb[0].mxu0 %v6484
        %v6575 = vpop.f32.mrb[0].mxu0
        %v6576 = vadd.f32 0.0, %v6575
        %v6577 = vpop.f32.mrb[0].mxu0
        %v6578 = vpop.f32.mrb[0].mxu0
        %v6579 = vadd.f32 0.0, %v6578
        %v6580 = vpop.f32.mrb[0].mxu0
        %6581 = vmatprep.mubr.bf16.mxu0 0
        %6582 = vmatmul.mubr.bf16.gmra.mrb[0].mxu0 %v6487
        %v6583 = vpop.f32.mrb[0].mxu0
        %v6584 = vadd.f32 0.0, %v6583
        %v6585 = vpop.f32.mrb[0].mxu0
        %v6586 = vpop.f32.mrb[0].mxu0
        %v6587 = vadd.f32 0.0, %v6586
        %v6588 = vpop.f32.mrb[0].mxu0
        %6589 = vmatprep.mubr.bf16.mxu0 0
        %6590 = vmatmul.mubr.bf16.gmra.mrb[0].mxu0 %v6490
        %v6591 = vpop.f32.mrb[0].mxu0
        %v6592 = vadd.f32 0.0, %v6591
        %v6593 = vpop.f32.mrb[0].mxu0
        %v6594 = vpop.f32.mrb[0].mxu0
        %v6595 = vadd.f32 0.0, %v6594
        %v6596 = vpop.f32.mrb[0].mxu0
        %6597 = vmatprep.mubr.bf16.mxu0 0
        %6598 = vmatmul.mubr.bf16.gmra.mrb[0].mxu0 %v6493
        %v6599 = vpop.f32.mrb[0].mxu0
        %v6600 = vadd.f32 0.0, %v6599
        %v6601 = vpop.f32.mrb[0].mxu0
        %v6602 = vpop.f32.mrb[0].mxu0
        %v6603 = vadd.f32 0.0, %v6602
        %v6604 = vpop.f32.mrb[0].mxu0
        %6605 = vmatprep.mubr.bf16.mxu0 0
        %6606 = vmatmul.mubr.bf16.gmra.mrb[0].mxu0 %v6496
        %v6607 = vpop.f32.mrb[0].mxu0
        %v6608 = vadd.f32 0.0, %v6607
        %v6609 = vpop.f32.mrb[0].mxu0
        %v6610 = vpop.f32.mrb[0].mxu0
        %v6611 = vadd.f32 0.0, %v6610
        %v6612 = vpop.f32.mrb[0].mxu0
        %6613 = vmatprep.mubr.bf16.mxu0 0
        %6614 = vmatmul.mubr.bf16.gmra.mrb[0].mxu0 %v6499
        %v6615 = vpop.f32.mrb[0].mxu0
        %v6616 = vadd.f32 0.0, %v6615
        %v6617 = vpop.f32.mrb[0].mxu0
        %v6618 = vpop.f32.mrb[0].mxu0
        %v6619 = vadd.f32 0.0, %v6618
        %v6620 = vpop.f32.mrb[0].mxu0
        %6621 = vmatprep.mubr.bf16.mxu0 0
        %6622 = vmatmul.mubr.bf16.gmra.mrb[0].mxu0 %v6502
        %v6623 = vpop.f32.mrb[0].mxu0
        %v6624 = vadd.f32 0.0, %v6623
        %v6625 = vpop.f32.mrb[0].mxu0
        %v6626 = vpop.f32.mrb[0].mxu0
        %v6627 = vadd.f32 0.0, %v6626
        %v6628 = vpop.f32.mrb[0].mxu0
        %6629 = vmatprep.mubr.bf16.mxu0 0
        %6630 = vmatmul.mubr.bf16.gmra.mrb[0].mxu0 %v6505
        %v6631 = vpop.f32.mrb[0].mxu0
        %v6632 = vadd.f32 0.0, %v6631
        %v6633 = vpop.f32.mrb[0].mxu0
        %v6634 = vpop.f32.mrb[0].mxu0
        %v6635 = vadd.f32 0.0, %v6634
        %v6636 = vpop.f32.mrb[0].mxu0
        %6637 = vmatprep.mubr.bf16.mxu0 0
        %6638 = vmatmul.mubr.bf16.gmra.mrb[0].mxu0 %v6508
        %v6639 = vpop.f32.mrb[0].mxu0
        %v6640 = vadd.f32 0.0, %v6639
        %v6641 = vpop.f32.mrb[0].mxu0
        %v6642 = vpop.f32.mrb[0].mxu0
        %v6643 = vadd.f32 0.0, %v6642
        %v6644 = vpop.f32.mrb[0].mxu0
        %6645 = vmatprep.mubr.bf16.mxu0 0
        %6646 = vmatmul.mubr.bf16.gmra.mrb[0].mxu0 %v6511
        %v6647 = vpop.f32.mrb[0].mxu0
        %v6648 = vadd.f32 0.0, %v6647
        %v6649 = vpop.f32.mrb[0].mxu0
        %v6650 = vpop.f32.mrb[0].mxu0
        %v6651 = vadd.f32 0.0, %v6650
        %v6652 = vpop.f32.mrb[0].mxu0
        %6653 = vmatprep.mubr.bf16.mxu0 0
        %6654 = vmatmul.mubr.bf16.gmra.mrb[0].mxu0 %v6514
        %v6655 = vpop.f32.mrb[0].mxu0
        %v6656 = vadd.f32 0.0, %v6655
        %v6657 = vpop.f32.mrb[0].mxu0
        %v6658 = vpop.f32.mrb[0].mxu0
        %v6659 = vadd.f32 0.0, %v6658
        %v6660 = vpop.f32.mrb[0].mxu0
        %6661 = vmatprep.mubr.bf16.mxu0 0
        %6662 = vmatmul.mubr.bf16.gmra.mrb[0].mxu0 %v6517
        %v6663 = vpop.f32.mrb[0].mxu0
        %v6664 = vadd.f32 0.0, %v6663
        %v6665 = vpop.f32.mrb[0].mxu0
        %v6666 = vpop.f32.mrb[0].mxu0
        %v6667 = vadd.f32 0.0, %v6666
        %v6668 = vpop.f32.mrb[0].mxu0
        %6669 = vmatprep.mubr.bf16.mxu0 0
        %6670 = vmatmul.mubr.bf16.gmra.mrb[0].mxu0 %v6520
        %v6671 = vpop.f32.mrb[0].mxu0
        %v6672 = vadd.f32 0.0, %v6671
        %v6673 = vpop.f32.mrb[0].mxu0
        %v6674 = vpop.f32.mrb[0].mxu0
        %v6675 = vadd.f32 0.0, %v6674
        %v6676 = vpop.f32.mrb[0].mxu0
        %6677 = vmatprep.mubr.bf16.mxu0 0
        %6678 = vmatmul.mubr.bf16.gmra.mrb[0].mxu0 %v6523
        %v6679 = vpop.f32.mrb[0].mxu0
        %v6680 = vadd.f32 0.0, %v6679
        %v6681 = vpop.f32.mrb[0].mxu0
        %v6682 = vpop.f32.mrb[0].mxu0
        %v6683 = vadd.f32 0.0, %v6682
        %v6684 = vpop.f32.mrb[0].mxu0
        %6685 = vdwg.mxu0
        %v6686 = vpack.c.bf16 %v6563, %v6560
        %v6687 = vpack.c.bf16 %v6571, %v6568
        %v6688 = vpack.c.bf16 %v6579, %v6576
        %v6689 = vpack.c.bf16 %v6587, %v6584
        %v6690 = vpack.c.bf16 %v6595, %v6592
        %v6691 = vpack.c.bf16 %v6603, %v6600
        %v6692 = vpack.c.bf16 %v6611, %v6608
        %v6693 = vpack.c.bf16 %v6619, %v6616
        %v6694 = vpack.c.bf16 %v6627, %v6624
        %v6695 = vpack.c.bf16 %v6635, %v6632
        %v6696 = vpack.c.bf16 %v6643, %v6640
        %v6697 = vpack.c.bf16 %v6651, %v6648
        %v6698 = vpack.c.bf16 %v6659, %v6656
        %v6699 = vpack.c.bf16 %v6667, %v6664
        %v6700 = vpack.c.bf16 %v6675, %v6672
        %v6701 = vpack.c.bf16 %v6683, %v6680
        %s6702 = scalar_lea.vmem %s16, 768
        %v6703 = vld [vmem:[%s6702] sm:$0xf]
        %v6704 = vld [vmem:[%s6702 + $0x4] sm:$0xf]
        %v6705 = vld [vmem:[%s6702 + $0x8] sm:$0xf]
        %v6706 = vld [vmem:[%s6702 + $0xc] sm:$0xf]
        %v6707 = vld [vmem:[%s6702 + $0x10] sm:$0xf]
        %v6708 = vld [vmem:[%s6702 + $0x14] sm:$0xf]
        %v6709 = vld [vmem:[%s6702 + $0x18] sm:$0xf]
        %v6710 = vld [vmem:[%s6702 + $0x1c] sm:$0xf]
        %v6711 = vld [vmem:[%s6702 + $0x20] sm:$0xf]
        %v6712 = vld [vmem:[%s6702 + $0x24] sm:$0xf]
        %v6713 = vld [vmem:[%s6702 + $0x28] sm:$0xf]
        %v6714 = vld [vmem:[%s6702 + $0x2c] sm:$0xf]
        %v6715 = vld [vmem:[%s6702 + $0x30] sm:$0xf]
        %v6716 = vld [vmem:[%s6702 + $0x34] sm:$0xf]
        %v6717 = vld [vmem:[%s6702 + $0x38] sm:$0xf]
        %v6718 = vld [vmem:[%s6702 + $0x3c] sm:$0xf]
        %v6719 = vld [vmem:[%s6702 + $0x40] sm:$0xf]
        %v6720 = vld [vmem:[%s6702 + $0x44] sm:$0xf]
        %v6721 = vld [vmem:[%s6702 + $0x48] sm:$0xf]
        %v6722 = vld [vmem:[%s6702 + $0x4c] sm:$0xf]
        %v6723 = vld [vmem:[%s6702 + $0x50] sm:$0xf]
        %v6724 = vld [vmem:[%s6702 + $0x54] sm:$0xf]
        %v6725 = vld [vmem:[%s6702 + $0x58] sm:$0xf]
        %v6726 = vld [vmem:[%s6702 + $0x5c] sm:$0xf]
        %v6727 = vld [vmem:[%s6702 + $0x60] sm:$0xf]
        %v6728 = vld [vmem:[%s6702 + $0x64] sm:$0xf]
        %v6729 = vld [vmem:[%s6702 + $0x68] sm:$0xf]
        %v6730 = vld [vmem:[%s6702 + $0x6c] sm:$0xf]
        %v6731 = vld [vmem:[%s6702 + $0x70] sm:$0xf]
        %v6732 = vld [vmem:[%s6702 + $0x74] sm:$0xf]
        %v6733 = vld [vmem:[%s6702 + $0x78] sm:$0xf]
        %v6734 = vld [vmem:[%s6702 + $0x7c] sm:$0xf]
        %v6767 = vunpack.c.l.b16 %v6703
        %v6768 = vunpack.c.l.b16 %v6704
        %v6769 = vunpack.c.l.b16 %v6705
        %v6770 = vunpack.c.l.b16 %v6706
        %v6771 = vunpack.c.l.b16 %v6707
        %v6772 = vunpack.c.l.b16 %v6708
        %v6773 = vunpack.c.l.b16 %v6709
        %v6774 = vunpack.c.l.b16 %v6710
        %v6775 = vunpack.c.l.b16 %v6711
        %v6776 = vunpack.c.l.b16 %v6712
        %v6777 = vunpack.c.l.b16 %v6713
        %v6778 = vunpack.c.l.b16 %v6714
        %v6779 = vunpack.c.l.b16 %v6715
        %v6780 = vunpack.c.l.b16 %v6716
        %v6781 = vunpack.c.l.b16 %v6717
        %v6782 = vunpack.c.l.b16 %v6718
        %v6783 = vunpack.c.l.b16 %v6719
        %v6784 = vunpack.c.l.b16 %v6720
        %v6785 = vunpack.c.l.b16 %v6721
        %v6786 = vunpack.c.l.b16 %v6722
        %v6787 = vunpack.c.l.b16 %v6723
        %v6788 = vunpack.c.l.b16 %v6724
        %v6789 = vunpack.c.l.b16 %v6725
        %v6790 = vunpack.c.l.b16 %v6726
        %v6791 = vunpack.c.l.b16 %v6727
        %v6792 = vunpack.c.l.b16 %v6728
        %v6793 = vunpack.c.l.b16 %v6729
        %v6794 = vunpack.c.l.b16 %v6730
        %v6795 = vunpack.c.l.b16 %v6731
        %v6796 = vunpack.c.l.b16 %v6732
        %v6797 = vunpack.c.l.b16 %v6733
        %v6798 = vunpack.c.l.b16 %v6734
        %v6799 = vpack.c.b16 %v6768, %v6767
        %v6800 = vpack.c.b16 %v6770, %v6769
        %v6801 = vpack.c.b16 %v6772, %v6771
        %v6802 = vpack.c.b16 %v6774, %v6773
        %v6803 = vpack.c.b16 %v6776, %v6775
        %v6804 = vpack.c.b16 %v6778, %v6777
        %v6805 = vpack.c.b16 %v6780, %v6779
        %v6806 = vpack.c.b16 %v6782, %v6781
        %v6807 = vpack.c.b16 %v6784, %v6783
        %v6808 = vpack.c.b16 %v6786, %v6785
        %v6809 = vpack.c.b16 %v6788, %v6787
        %v6810 = vpack.c.b16 %v6790, %v6789
        %v6811 = vpack.c.b16 %v6792, %v6791
        %v6812 = vpack.c.b16 %v6794, %v6793
        %v6813 = vpack.c.b16 %v6796, %v6795
        %v6814 = vpack.c.b16 %v6798, %v6797
        %v6816 = vsel %vm2234, %v6799, 0
        %v6819 = vsel %vm2234, %v6800, 0
        %v6822 = vsel %vm2234, %v6801, 0
        %v6825 = vsel %vm2234, %v6802, 0
        %v6828 = vsel %vm2234, %v6803, 0
        %v6831 = vsel %vm2234, %v6804, 0
        %v6834 = vsel %vm2234, %v6805, 0
        %v6837 = vsel %vm2234, %v6806, 0
        %v6840 = vsel %vm2234, %v6807, 0
        %v6843 = vsel %vm2234, %v6808, 0
        %v6846 = vsel %vm2234, %v6809, 0
        %v6849 = vsel %vm2234, %v6810, 0
        %v6852 = vsel %vm2234, %v6811, 0
        %v6855 = vsel %vm2234, %v6812, 0
        %v6858 = vsel %vm2234, %v6813, 0
        %v6861 = vsel %vm2234, %v6814, 0
        %6863 = vmatprep.subr.bf16.mxu0 0
        %6864 = vmatpush1.bf16.msra.mxu0 %v4671
        %6865 = vmatprep.subr.bf16.mxu0 0
        %6866 = vmatpush1.bf16.msra.mxu0 %v4672
        %6867 = vmatprep.subr.bf16.mxu0 0
        %6868 = vmatpush1.bf16.msra.mxu0 %v4673
        %6869 = vmatprep.subr.bf16.mxu0 0
        %6870 = vmatpush1.bf16.msra.mxu0 %v4674
        %6871 = vmatprep.subr.bf16.mxu0 0
        %6872 = vmatpush1.bf16.msra.mxu0 0
        %6873 = vmatprep.subr.bf16.mxu0 0
        %6874 = vmatpush1.bf16.msra.mxu0 0
        %6875 = vmatprep.subr.bf16.mxu0 0
        %6876 = vmatpush1.bf16.msra.mxu0 0
        %6877 = vmatprep.subr.bf16.mxu0 0
        %6878 = vmatpush1.bf16.msra.mxu0 0
        %6879 = vmatprep.subr.bf16.mxu0 0
        %6880 = vmatpush1.bf16.msra.mxu0 0
        %6881 = vmatprep.subr.bf16.mxu0 0
        %6882 = vmatpush1.bf16.msra.mxu0 0
        %6883 = vmatprep.subr.bf16.mxu0 0
        %6884 = vmatpush1.bf16.msra.mxu0 0
        %6885 = vmatprep.subr.bf16.mxu0 0
        %6886 = vmatpush1.bf16.msra.mxu0 0
        %6887 = vmatprep.subr.bf16.mxu0 0
        %6888 = vmatpush1.bf16.msra.mxu0 0
        %6889 = vmatprep.subr.bf16.mxu0 0
        %6890 = vmatpush1.bf16.msra.mxu0 0
        %6891 = vmatprep.subr.bf16.mxu0 0
        %6892 = vmatpush1.bf16.msra.mxu0 0
        %6893 = vmatprep.subr.bf16.mxu0 0
        %6894 = vmatpush1.bf16.msra.mxu0 0
        %6895 = vmatprep.mubr.bf16.mxu0 0
        %6896 = vmatmul.mubr.bf16.gmra.mrb[0].mxu0 %v6816
        %v6897 = vpop.f32.mrb[0].mxu0
        %v6898 = vadd.f32 0.0, %v6897
        %v6899 = vpop.f32.mrb[0].mxu0
        %v6900 = vpop.f32.mrb[0].mxu0
        %v6901 = vadd.f32 0.0, %v6900
        %v6902 = vpop.f32.mrb[0].mxu0
        %6903 = vmatprep.mubr.bf16.mxu0 0
        %6904 = vmatmul.mubr.bf16.gmra.mrb[0].mxu0 %v6819
        %v6905 = vpop.f32.mrb[0].mxu0
        %v6906 = vadd.f32 0.0, %v6905
        %v6907 = vpop.f32.mrb[0].mxu0
        %v6908 = vpop.f32.mrb[0].mxu0
        %v6909 = vadd.f32 0.0, %v6908
        %v6910 = vpop.f32.mrb[0].mxu0
        %6911 = vmatprep.mubr.bf16.mxu0 0
        %6912 = vmatmul.mubr.bf16.gmra.mrb[0].mxu0 %v6822
        %v6913 = vpop.f32.mrb[0].mxu0
        %v6914 = vadd.f32 0.0, %v6913
        %v6915 = vpop.f32.mrb[0].mxu0
        %v6916 = vpop.f32.mrb[0].mxu0
        %v6917 = vadd.f32 0.0, %v6916
        %v6918 = vpop.f32.mrb[0].mxu0
        %6919 = vmatprep.mubr.bf16.mxu0 0
        %6920 = vmatmul.mubr.bf16.gmra.mrb[0].mxu0 %v6825
        %v6921 = vpop.f32.mrb[0].mxu0
        %v6922 = vadd.f32 0.0, %v6921
        %v6923 = vpop.f32.mrb[0].mxu0
        %v6924 = vpop.f32.mrb[0].mxu0
        %v6925 = vadd.f32 0.0, %v6924
        %v6926 = vpop.f32.mrb[0].mxu0
        %6927 = vmatprep.mubr.bf16.mxu0 0
        %6928 = vmatmul.mubr.bf16.gmra.mrb[0].mxu0 %v6828
        %v6929 = vpop.f32.mrb[0].mxu0
        %v6930 = vadd.f32 0.0, %v6929
        %v6931 = vpop.f32.mrb[0].mxu0
        %v6932 = vpop.f32.mrb[0].mxu0
        %v6933 = vadd.f32 0.0, %v6932
        %v6934 = vpop.f32.mrb[0].mxu0
        %6935 = vmatprep.mubr.bf16.mxu0 0
        %6936 = vmatmul.mubr.bf16.gmra.mrb[0].mxu0 %v6831
        %v6937 = vpop.f32.mrb[0].mxu0
        %v6938 = vadd.f32 0.0, %v6937
        %v6939 = vpop.f32.mrb[0].mxu0
        %v6940 = vpop.f32.mrb[0].mxu0
        %v6941 = vadd.f32 0.0, %v6940
        %v6942 = vpop.f32.mrb[0].mxu0
        %6943 = vmatprep.mubr.bf16.mxu0 0
        %6944 = vmatmul.mubr.bf16.gmra.mrb[0].mxu0 %v6834
        %v6945 = vpop.f32.mrb[0].mxu0
        %v6946 = vadd.f32 0.0, %v6945
        %v6947 = vpop.f32.mrb[0].mxu0
        %v6948 = vpop.f32.mrb[0].mxu0
        %v6949 = vadd.f32 0.0, %v6948
        %v6950 = vpop.f32.mrb[0].mxu0
        %6951 = vmatprep.mubr.bf16.mxu0 0
        %6952 = vmatmul.mubr.bf16.gmra.mrb[0].mxu0 %v6837
        %v6953 = vpop.f32.mrb[0].mxu0
        %v6954 = vadd.f32 0.0, %v6953
        %v6955 = vpop.f32.mrb[0].mxu0
        %v6956 = vpop.f32.mrb[0].mxu0
        %v6957 = vadd.f32 0.0, %v6956
        %v6958 = vpop.f32.mrb[0].mxu0
        %6959 = vmatprep.mubr.bf16.mxu0 0
        %6960 = vmatmul.mubr.bf16.gmra.mrb[0].mxu0 %v6840
        %v6961 = vpop.f32.mrb[0].mxu0
        %v6962 = vadd.f32 0.0, %v6961
        %v6963 = vpop.f32.mrb[0].mxu0
        %v6964 = vpop.f32.mrb[0].mxu0
        %v6965 = vadd.f32 0.0, %v6964
        %v6966 = vpop.f32.mrb[0].mxu0
        %6967 = vmatprep.mubr.bf16.mxu0 0
        %6968 = vmatmul.mubr.bf16.gmra.mrb[0].mxu0 %v6843
        %v6969 = vpop.f32.mrb[0].mxu0
        %v6970 = vadd.f32 0.0, %v6969
        %v6971 = vpop.f32.mrb[0].mxu0
        %v6972 = vpop.f32.mrb[0].mxu0
        %v6973 = vadd.f32 0.0, %v6972
        %v6974 = vpop.f32.mrb[0].mxu0
        %6975 = vmatprep.mubr.bf16.mxu0 0
        %6976 = vmatmul.mubr.bf16.gmra.mrb[0].mxu0 %v6846
        %v6977 = vpop.f32.mrb[0].mxu0
        %v6978 = vadd.f32 0.0, %v6977
        %v6979 = vpop.f32.mrb[0].mxu0
        %v6980 = vpop.f32.mrb[0].mxu0
        %v6981 = vadd.f32 0.0, %v6980
        %v6982 = vpop.f32.mrb[0].mxu0
        %6983 = vmatprep.mubr.bf16.mxu0 0
        %6984 = vmatmul.mubr.bf16.gmra.mrb[0].mxu0 %v6849
        %v6985 = vpop.f32.mrb[0].mxu0
        %v6986 = vadd.f32 0.0, %v6985
        %v6987 = vpop.f32.mrb[0].mxu0
        %v6988 = vpop.f32.mrb[0].mxu0
        %v6989 = vadd.f32 0.0, %v6988
        %v6990 = vpop.f32.mrb[0].mxu0
        %6991 = vmatprep.mubr.bf16.mxu0 0
        %6992 = vmatmul.mubr.bf16.gmra.mrb[0].mxu0 %v6852
        %v6993 = vpop.f32.mrb[0].mxu0
        %v6994 = vadd.f32 0.0, %v6993
        %v6995 = vpop.f32.mrb[0].mxu0
        %v6996 = vpop.f32.mrb[0].mxu0
        %v6997 = vadd.f32 0.0, %v6996
        %v6998 = vpop.f32.mrb[0].mxu0
        %6999 = vmatprep.mubr.bf16.mxu0 0
        %7000 = vmatmul.mubr.bf16.gmra.mrb[0].mxu0 %v6855
        %v7001 = vpop.f32.mrb[0].mxu0
        %v7002 = vadd.f32 0.0, %v7001
        %v7003 = vpop.f32.mrb[0].mxu0
        %v7004 = vpop.f32.mrb[0].mxu0
        %v7005 = vadd.f32 0.0, %v7004
        %v7006 = vpop.f32.mrb[0].mxu0
        %7007 = vmatprep.mubr.bf16.mxu0 0
        %7008 = vmatmul.mubr.bf16.gmra.mrb[0].mxu0 %v6858
        %v7009 = vpop.f32.mrb[0].mxu0
        %v7010 = vadd.f32 0.0, %v7009
        %v7011 = vpop.f32.mrb[0].mxu0
        %v7012 = vpop.f32.mrb[0].mxu0
        %v7013 = vadd.f32 0.0, %v7012
        %v7014 = vpop.f32.mrb[0].mxu0
        %7015 = vmatprep.mubr.bf16.mxu0 0
        %7016 = vmatmul.mubr.bf16.gmra.mrb[0].mxu0 %v6861
        %v7017 = vpop.f32.mrb[0].mxu0
        %v7018 = vadd.f32 0.0, %v7017
        %v7019 = vpop.f32.mrb[0].mxu0
        %v7020 = vpop.f32.mrb[0].mxu0
        %v7021 = vadd.f32 0.0, %v7020
        %v7022 = vpop.f32.mrb[0].mxu0
        %7023 = vdwg.mxu0
        %v7024 = vpack.c.bf16 %v6901, %v6898
        %v7025 = vpack.c.bf16 %v6909, %v6906
        %v7026 = vpack.c.bf16 %v6917, %v6914
        %v7027 = vpack.c.bf16 %v6925, %v6922
        %v7028 = vpack.c.bf16 %v6933, %v6930
        %v7029 = vpack.c.bf16 %v6941, %v6938
        %v7030 = vpack.c.bf16 %v6949, %v6946
        %v7031 = vpack.c.bf16 %v6957, %v6954
        %v7032 = vpack.c.bf16 %v6965, %v6962
        %v7033 = vpack.c.bf16 %v6973, %v6970
        %v7034 = vpack.c.bf16 %v6981, %v6978
        %v7035 = vpack.c.bf16 %v6989, %v6986
        %v7036 = vpack.c.bf16 %v6997, %v6994
        %v7037 = vpack.c.bf16 %v7005, %v7002
        %v7038 = vpack.c.bf16 %v7013, %v7010
        %v7039 = vpack.c.bf16 %v7021, %v7018
        %s7040 = scalar_lea.vmem %s16, 896
        %v7041 = vld [vmem:[%s7040] sm:$0xf]
        %v7042 = vld [vmem:[%s7040 + $0x4] sm:$0xf]
        %v7043 = vld [vmem:[%s7040 + $0x8] sm:$0xf]
        %v7044 = vld [vmem:[%s7040 + $0xc] sm:$0xf]
        %v7045 = vld [vmem:[%s7040 + $0x10] sm:$0xf]
        %v7046 = vld [vmem:[%s7040 + $0x14] sm:$0xf]
        %v7047 = vld [vmem:[%s7040 + $0x18] sm:$0xf]
        %v7048 = vld [vmem:[%s7040 + $0x1c] sm:$0xf]
        %v7049 = vld [vmem:[%s7040 + $0x20] sm:$0xf]
        %v7050 = vld [vmem:[%s7040 + $0x24] sm:$0xf]
        %v7051 = vld [vmem:[%s7040 + $0x28] sm:$0xf]
        %v7052 = vld [vmem:[%s7040 + $0x2c] sm:$0xf]
        %v7053 = vld [vmem:[%s7040 + $0x30] sm:$0xf]
        %v7054 = vld [vmem:[%s7040 + $0x34] sm:$0xf]
        %v7055 = vld [vmem:[%s7040 + $0x38] sm:$0xf]
        %v7056 = vld [vmem:[%s7040 + $0x3c] sm:$0xf]
        %v7057 = vld [vmem:[%s7040 + $0x40] sm:$0xf]
        %v7058 = vld [vmem:[%s7040 + $0x44] sm:$0xf]
        %v7059 = vld [vmem:[%s7040 + $0x48] sm:$0xf]
        %v7060 = vld [vmem:[%s7040 + $0x4c] sm:$0xf]
        %v7061 = vld [vmem:[%s7040 + $0x50] sm:$0xf]
        %v7062 = vld [vmem:[%s7040 + $0x54] sm:$0xf]
        %v7063 = vld [vmem:[%s7040 + $0x58] sm:$0xf]
        %v7064 = vld [vmem:[%s7040 + $0x5c] sm:$0xf]
        %v7065 = vld [vmem:[%s7040 + $0x60] sm:$0xf]
        %v7066 = vld [vmem:[%s7040 + $0x64] sm:$0xf]
        %v7067 = vld [vmem:[%s7040 + $0x68] sm:$0xf]
        %v7068 = vld [vmem:[%s7040 + $0x6c] sm:$0xf]
        %v7069 = vld [vmem:[%s7040 + $0x70] sm:$0xf]
        %v7070 = vld [vmem:[%s7040 + $0x74] sm:$0xf]
        %v7071 = vld [vmem:[%s7040 + $0x78] sm:$0xf]
        %v7072 = vld [vmem:[%s7040 + $0x7c] sm:$0xf]
        %v7105 = vunpack.c.l.b16 %v7041
        %v7106 = vunpack.c.l.b16 %v7042
        %v7107 = vunpack.c.l.b16 %v7043
        %v7108 = vunpack.c.l.b16 %v7044
        %v7109 = vunpack.c.l.b16 %v7045
        %v7110 = vunpack.c.l.b16 %v7046
        %v7111 = vunpack.c.l.b16 %v7047
        %v7112 = vunpack.c.l.b16 %v7048
        %v7113 = vunpack.c.l.b16 %v7049
        %v7114 = vunpack.c.l.b16 %v7050
        %v7115 = vunpack.c.l.b16 %v7051
        %v7116 = vunpack.c.l.b16 %v7052
        %v7117 = vunpack.c.l.b16 %v7053
        %v7118 = vunpack.c.l.b16 %v7054
        %v7119 = vunpack.c.l.b16 %v7055
        %v7120 = vunpack.c.l.b16 %v7056
        %v7121 = vunpack.c.l.b16 %v7057
        %v7122 = vunpack.c.l.b16 %v7058
        %v7123 = vunpack.c.l.b16 %v7059
        %v7124 = vunpack.c.l.b16 %v7060
        %v7125 = vunpack.c.l.b16 %v7061
        %v7126 = vunpack.c.l.b16 %v7062
        %v7127 = vunpack.c.l.b16 %v7063
        %v7128 = vunpack.c.l.b16 %v7064
        %v7129 = vunpack.c.l.b16 %v7065
        %v7130 = vunpack.c.l.b16 %v7066
        %v7131 = vunpack.c.l.b16 %v7067
        %v7132 = vunpack.c.l.b16 %v7068
        %v7133 = vunpack.c.l.b16 %v7069
        %v7134 = vunpack.c.l.b16 %v7070
        %v7135 = vunpack.c.l.b16 %v7071
        %v7136 = vunpack.c.l.b16 %v7072
        %v7137 = vpack.c.b16 %v7106, %v7105
        %v7138 = vpack.c.b16 %v7108, %v7107
        %v7139 = vpack.c.b16 %v7110, %v7109
        %v7140 = vpack.c.b16 %v7112, %v7111
        %v7141 = vpack.c.b16 %v7114, %v7113
        %v7142 = vpack.c.b16 %v7116, %v7115
        %v7143 = vpack.c.b16 %v7118, %v7117
        %v7144 = vpack.c.b16 %v7120, %v7119
        %v7145 = vpack.c.b16 %v7122, %v7121
        %v7146 = vpack.c.b16 %v7124, %v7123
        %v7147 = vpack.c.b16 %v7126, %v7125
        %v7148 = vpack.c.b16 %v7128, %v7127
        %v7149 = vpack.c.b16 %v7130, %v7129
        %v7150 = vpack.c.b16 %v7132, %v7131
        %v7151 = vpack.c.b16 %v7134, %v7133
        %v7152 = vpack.c.b16 %v7136, %v7135
        %v7154 = vsel %vm2234, %v7137, 0
        %v7157 = vsel %vm2234, %v7138, 0
        %v7160 = vsel %vm2234, %v7139, 0
        %v7163 = vsel %vm2234, %v7140, 0
        %v7166 = vsel %vm2234, %v7141, 0
        %v7169 = vsel %vm2234, %v7142, 0
        %v7172 = vsel %vm2234, %v7143, 0
        %v7175 = vsel %vm2234, %v7144, 0
        %v7178 = vsel %vm2234, %v7145, 0
        %v7181 = vsel %vm2234, %v7146, 0
        %v7184 = vsel %vm2234, %v7147, 0
        %v7187 = vsel %vm2234, %v7148, 0
        %v7190 = vsel %vm2234, %v7149, 0
        %v7193 = vsel %vm2234, %v7150, 0
        %v7196 = vsel %vm2234, %v7151, 0
        %v7199 = vsel %vm2234, %v7152, 0
        %7201 = vmatprep.subr.bf16.mxu0 0
        %7202 = vmatpush1.bf16.msra.mxu0 %v4671
        %7203 = vmatprep.subr.bf16.mxu0 0
        %7204 = vmatpush1.bf16.msra.mxu0 %v4672
        %7205 = vmatprep.subr.bf16.mxu0 0
        %7206 = vmatpush1.bf16.msra.mxu0 %v4673
        %7207 = vmatprep.subr.bf16.mxu0 0
        %7208 = vmatpush1.bf16.msra.mxu0 %v4674
        %7209 = vmatprep.subr.bf16.mxu0 0
        %7210 = vmatpush1.bf16.msra.mxu0 0
        %7211 = vmatprep.subr.bf16.mxu0 0
        %7212 = vmatpush1.bf16.msra.mxu0 0
        %7213 = vmatprep.subr.bf16.mxu0 0
        %7214 = vmatpush1.bf16.msra.mxu0 0
        %7215 = vmatprep.subr.bf16.mxu0 0
        %7216 = vmatpush1.bf16.msra.mxu0 0
        %7217 = vmatprep.subr.bf16.mxu0 0
        %7218 = vmatpush1.bf16.msra.mxu0 0
        %7219 = vmatprep.subr.bf16.mxu0 0
        %7220 = vmatpush1.bf16.msra.mxu0 0
        %7221 = vmatprep.subr.bf16.mxu0 0
        %7222 = vmatpush1.bf16.msra.mxu0 0
        %7223 = vmatprep.subr.bf16.mxu0 0
        %7224 = vmatpush1.bf16.msra.mxu0 0
        %7225 = vmatprep.subr.bf16.mxu0 0
        %7226 = vmatpush1.bf16.msra.mxu0 0
        %7227 = vmatprep.subr.bf16.mxu0 0
        %7228 = vmatpush1.bf16.msra.mxu0 0
        %7229 = vmatprep.subr.bf16.mxu0 0
        %7230 = vmatpush1.bf16.msra.mxu0 0
        %7231 = vmatprep.subr.bf16.mxu0 0
        %7232 = vmatpush1.bf16.msra.mxu0 0
        %7233 = vmatprep.mubr.bf16.mxu0 0
        %7234 = vmatmul.mubr.bf16.gmra.mrb[0].mxu0 %v7154
        %v7235 = vpop.f32.mrb[0].mxu0
        %v7236 = vadd.f32 0.0, %v7235
        %v7237 = vpop.f32.mrb[0].mxu0
        %v7238 = vpop.f32.mrb[0].mxu0
        %v7239 = vadd.f32 0.0, %v7238
        %v7240 = vpop.f32.mrb[0].mxu0
        %7241 = vmatprep.mubr.bf16.mxu0 0
        %7242 = vmatmul.mubr.bf16.gmra.mrb[0].mxu0 %v7157
        %v7243 = vpop.f32.mrb[0].mxu0
        %v7244 = vadd.f32 0.0, %v7243
        %v7245 = vpop.f32.mrb[0].mxu0
        %v7246 = vpop.f32.mrb[0].mxu0
        %v7247 = vadd.f32 0.0, %v7246
        %v7248 = vpop.f32.mrb[0].mxu0
        %7249 = vmatprep.mubr.bf16.mxu0 0
        %7250 = vmatmul.mubr.bf16.gmra.mrb[0].mxu0 %v7160
        %v7251 = vpop.f32.mrb[0].mxu0
        %v7252 = vadd.f32 0.0, %v7251
        %v7253 = vpop.f32.mrb[0].mxu0
        %v7254 = vpop.f32.mrb[0].mxu0
        %v7255 = vadd.f32 0.0, %v7254
        %v7256 = vpop.f32.mrb[0].mxu0
        %7257 = vmatprep.mubr.bf16.mxu0 0
        %7258 = vmatmul.mubr.bf16.gmra.mrb[0].mxu0 %v7163
        %v7259 = vpop.f32.mrb[0].mxu0
        %v7260 = vadd.f32 0.0, %v7259
        %v7261 = vpop.f32.mrb[0].mxu0
        %v7262 = vpop.f32.mrb[0].mxu0
        %v7263 = vadd.f32 0.0, %v7262
        %v7264 = vpop.f32.mrb[0].mxu0
        %7265 = vmatprep.mubr.bf16.mxu0 0
        %7266 = vmatmul.mubr.bf16.gmra.mrb[0].mxu0 %v7166
        %v7267 = vpop.f32.mrb[0].mxu0
        %v7268 = vadd.f32 0.0, %v7267
        %v7269 = vpop.f32.mrb[0].mxu0
        %v7270 = vpop.f32.mrb[0].mxu0
        %v7271 = vadd.f32 0.0, %v7270
        %v7272 = vpop.f32.mrb[0].mxu0
        %7273 = vmatprep.mubr.bf16.mxu0 0
        %7274 = vmatmul.mubr.bf16.gmra.mrb[0].mxu0 %v7169
        %v7275 = vpop.f32.mrb[0].mxu0
        %v7276 = vadd.f32 0.0, %v7275
        %v7277 = vpop.f32.mrb[0].mxu0
        %v7278 = vpop.f32.mrb[0].mxu0
        %v7279 = vadd.f32 0.0, %v7278
        %v7280 = vpop.f32.mrb[0].mxu0
        %7281 = vmatprep.mubr.bf16.mxu0 0
        %7282 = vmatmul.mubr.bf16.gmra.mrb[0].mxu0 %v7172
        %v7283 = vpop.f32.mrb[0].mxu0
        %v7284 = vadd.f32 0.0, %v7283
        %v7285 = vpop.f32.mrb[0].mxu0
        %v7286 = vpop.f32.mrb[0].mxu0
        %v7287 = vadd.f32 0.0, %v7286
        %v7288 = vpop.f32.mrb[0].mxu0
        %7289 = vmatprep.mubr.bf16.mxu0 0
        %7290 = vmatmul.mubr.bf16.gmra.mrb[0].mxu0 %v7175
        %v7291 = vpop.f32.mrb[0].mxu0
        %v7292 = vadd.f32 0.0, %v7291
        %v7293 = vpop.f32.mrb[0].mxu0
        %v7294 = vpop.f32.mrb[0].mxu0
        %v7295 = vadd.f32 0.0, %v7294
        %v7296 = vpop.f32.mrb[0].mxu0
        %7297 = vmatprep.mubr.bf16.mxu0 0
        %7298 = vmatmul.mubr.bf16.gmra.mrb[0].mxu0 %v7178
        %v7299 = vpop.f32.mrb[0].mxu0
        %v7300 = vadd.f32 0.0, %v7299
        %v7301 = vpop.f32.mrb[0].mxu0
        %v7302 = vpop.f32.mrb[0].mxu0
        %v7303 = vadd.f32 0.0, %v7302
        %v7304 = vpop.f32.mrb[0].mxu0
        %7305 = vmatprep.mubr.bf16.mxu0 0
        %7306 = vmatmul.mubr.bf16.gmra.mrb[0].mxu0 %v7181
        %v7307 = vpop.f32.mrb[0].mxu0
        %v7308 = vadd.f32 0.0, %v7307
        %v7309 = vpop.f32.mrb[0].mxu0
        %v7310 = vpop.f32.mrb[0].mxu0
        %v7311 = vadd.f32 0.0, %v7310
        %v7312 = vpop.f32.mrb[0].mxu0
        %7313 = vmatprep.mubr.bf16.mxu0 0
        %7314 = vmatmul.mubr.bf16.gmra.mrb[0].mxu0 %v7184
        %v7315 = vpop.f32.mrb[0].mxu0
        %v7316 = vadd.f32 0.0, %v7315
        %v7317 = vpop.f32.mrb[0].mxu0
        %v7318 = vpop.f32.mrb[0].mxu0
        %v7319 = vadd.f32 0.0, %v7318
        %v7320 = vpop.f32.mrb[0].mxu0
        %7321 = vmatprep.mubr.bf16.mxu0 0
        %7322 = vmatmul.mubr.bf16.gmra.mrb[0].mxu0 %v7187
        %v7323 = vpop.f32.mrb[0].mxu0
        %v7324 = vadd.f32 0.0, %v7323
        %v7325 = vpop.f32.mrb[0].mxu0
        %v7326 = vpop.f32.mrb[0].mxu0
        %v7327 = vadd.f32 0.0, %v7326
        %v7328 = vpop.f32.mrb[0].mxu0
        %7329 = vmatprep.mubr.bf16.mxu0 0
        %7330 = vmatmul.mubr.bf16.gmra.mrb[0].mxu0 %v7190
        %v7331 = vpop.f32.mrb[0].mxu0
        %v7332 = vadd.f32 0.0, %v7331
        %v7333 = vpop.f32.mrb[0].mxu0
        %v7334 = vpop.f32.mrb[0].mxu0
        %v7335 = vadd.f32 0.0, %v7334
        %v7336 = vpop.f32.mrb[0].mxu0
        %7337 = vmatprep.mubr.bf16.mxu0 0
        %7338 = vmatmul.mubr.bf16.gmra.mrb[0].mxu0 %v7193
        %v7339 = vpop.f32.mrb[0].mxu0
        %v7340 = vadd.f32 0.0, %v7339
        %v7341 = vpop.f32.mrb[0].mxu0
        %v7342 = vpop.f32.mrb[0].mxu0
        %v7343 = vadd.f32 0.0, %v7342
        %v7344 = vpop.f32.mrb[0].mxu0
        %7345 = vmatprep.mubr.bf16.mxu0 0
        %7346 = vmatmul.mubr.bf16.gmra.mrb[0].mxu0 %v7196
        %v7347 = vpop.f32.mrb[0].mxu0
        %v7348 = vadd.f32 0.0, %v7347
        %v7349 = vpop.f32.mrb[0].mxu0
        %v7350 = vpop.f32.mrb[0].mxu0
        %v7351 = vadd.f32 0.0, %v7350
        %v7352 = vpop.f32.mrb[0].mxu0
        %7353 = vmatprep.mubr.bf16.mxu0 0
        %7354 = vmatmul.mubr.bf16.gmra.mrb[0].mxu0 %v7199
        %v7355 = vpop.f32.mrb[0].mxu0
        %v7356 = vadd.f32 0.0, %v7355
        %v7357 = vpop.f32.mrb[0].mxu0
        %v7358 = vpop.f32.mrb[0].mxu0
        %v7359 = vadd.f32 0.0, %v7358
        %v7360 = vpop.f32.mrb[0].mxu0
        %7361 = vdwg.mxu0
        %v7362 = vpack.c.bf16 %v7239, %v7236
        %v7363 = vpack.c.bf16 %v7247, %v7244
        %v7364 = vpack.c.bf16 %v7255, %v7252
        %v7365 = vpack.c.bf16 %v7263, %v7260
        %v7366 = vpack.c.bf16 %v7271, %v7268
        %v7367 = vpack.c.bf16 %v7279, %v7276
        %v7368 = vpack.c.bf16 %v7287, %v7284
        %v7369 = vpack.c.bf16 %v7295, %v7292
        %v7370 = vpack.c.bf16 %v7303, %v7300
        %v7371 = vpack.c.bf16 %v7311, %v7308
        %v7372 = vpack.c.bf16 %v7319, %v7316
        %v7373 = vpack.c.bf16 %v7327, %v7324
        %v7374 = vpack.c.bf16 %v7335, %v7332
        %v7375 = vpack.c.bf16 %v7343, %v7340
        %v7376 = vpack.c.bf16 %v7351, %v7348
        %v7377 = vpack.c.bf16 %v7359, %v7356
        %s7378 = scalar_lea.vmem %s16, 1024
        %v7379 = vld [vmem:[%s7378] sm:$0xf]
        %v7380 = vld [vmem:[%s7378 + $0x4] sm:$0xf]
        %v7381 = vld [vmem:[%s7378 + $0x8] sm:$0xf]
        %v7382 = vld [vmem:[%s7378 + $0xc] sm:$0xf]
        %v7383 = vld [vmem:[%s7378 + $0x10] sm:$0xf]
        %v7384 = vld [vmem:[%s7378 + $0x14] sm:$0xf]
        %v7385 = vld [vmem:[%s7378 + $0x18] sm:$0xf]
        %v7386 = vld [vmem:[%s7378 + $0x1c] sm:$0xf]
        %v7387 = vld [vmem:[%s7378 + $0x20] sm:$0xf]
        %v7388 = vld [vmem:[%s7378 + $0x24] sm:$0xf]
        %v7389 = vld [vmem:[%s7378 + $0x28] sm:$0xf]
        %v7390 = vld [vmem:[%s7378 + $0x2c] sm:$0xf]
        %v7391 = vld [vmem:[%s7378 + $0x30] sm:$0xf]
        %v7392 = vld [vmem:[%s7378 + $0x34] sm:$0xf]
        %v7393 = vld [vmem:[%s7378 + $0x38] sm:$0xf]
        %v7394 = vld [vmem:[%s7378 + $0x3c] sm:$0xf]
        %v7395 = vld [vmem:[%s7378 + $0x40] sm:$0xf]
        %v7396 = vld [vmem:[%s7378 + $0x44] sm:$0xf]
        %v7397 = vld [vmem:[%s7378 + $0x48] sm:$0xf]
        %v7398 = vld [vmem:[%s7378 + $0x4c] sm:$0xf]
        %v7399 = vld [vmem:[%s7378 + $0x50] sm:$0xf]
        %v7400 = vld [vmem:[%s7378 + $0x54] sm:$0xf]
        %v7401 = vld [vmem:[%s7378 + $0x58] sm:$0xf]
        %v7402 = vld [vmem:[%s7378 + $0x5c] sm:$0xf]
        %v7403 = vld [vmem:[%s7378 + $0x60] sm:$0xf]
        %v7404 = vld [vmem:[%s7378 + $0x64] sm:$0xf]
        %v7405 = vld [vmem:[%s7378 + $0x68] sm:$0xf]
        %v7406 = vld [vmem:[%s7378 + $0x6c] sm:$0xf]
        %v7407 = vld [vmem:[%s7378 + $0x70] sm:$0xf]
        %v7408 = vld [vmem:[%s7378 + $0x74] sm:$0xf]
        %v7409 = vld [vmem:[%s7378 + $0x78] sm:$0xf]
        %v7410 = vld [vmem:[%s7378 + $0x7c] sm:$0xf]
        %v7443 = vunpack.c.l.b16 %v7379
        %v7444 = vunpack.c.l.b16 %v7380
        %v7445 = vunpack.c.l.b16 %v7381
        %v7446 = vunpack.c.l.b16 %v7382
        %v7447 = vunpack.c.l.b16 %v7383
        %v7448 = vunpack.c.l.b16 %v7384
        %v7449 = vunpack.c.l.b16 %v7385
        %v7450 = vunpack.c.l.b16 %v7386
        %v7451 = vunpack.c.l.b16 %v7387
        %v7452 = vunpack.c.l.b16 %v7388
        %v7453 = vunpack.c.l.b16 %v7389
        %v7454 = vunpack.c.l.b16 %v7390
        %v7455 = vunpack.c.l.b16 %v7391
        %v7456 = vunpack.c.l.b16 %v7392
        %v7457 = vunpack.c.l.b16 %v7393
        %v7458 = vunpack.c.l.b16 %v7394
        %v7459 = vunpack.c.l.b16 %v7395
        %v7460 = vunpack.c.l.b16 %v7396
        %v7461 = vunpack.c.l.b16 %v7397
        %v7462 = vunpack.c.l.b16 %v7398
        %v7463 = vunpack.c.l.b16 %v7399
        %v7464 = vunpack.c.l.b16 %v7400
        %v7465 = vunpack.c.l.b16 %v7401
        %v7466 = vunpack.c.l.b16 %v7402
        %v7467 = vunpack.c.l.b16 %v7403
        %v7468 = vunpack.c.l.b16 %v7404
        %v7469 = vunpack.c.l.b16 %v7405
        %v7470 = vunpack.c.l.b16 %v7406
        %v7471 = vunpack.c.l.b16 %v7407
        %v7472 = vunpack.c.l.b16 %v7408
        %v7473 = vunpack.c.l.b16 %v7409
        %v7474 = vunpack.c.l.b16 %v7410
        %v7475 = vpack.c.b16 %v7444, %v7443
        %v7476 = vpack.c.b16 %v7446, %v7445
        %v7477 = vpack.c.b16 %v7448, %v7447
        %v7478 = vpack.c.b16 %v7450, %v7449
        %v7479 = vpack.c.b16 %v7452, %v7451
        %v7480 = vpack.c.b16 %v7454, %v7453
        %v7481 = vpack.c.b16 %v7456, %v7455
        %v7482 = vpack.c.b16 %v7458, %v7457
        %v7483 = vpack.c.b16 %v7460, %v7459
        %v7484 = vpack.c.b16 %v7462, %v7461
        %v7485 = vpack.c.b16 %v7464, %v7463
        %v7486 = vpack.c.b16 %v7466, %v7465
        %v7487 = vpack.c.b16 %v7468, %v7467
        %v7488 = vpack.c.b16 %v7470, %v7469
        %v7489 = vpack.c.b16 %v7472, %v7471
        %v7490 = vpack.c.b16 %v7474, %v7473
        %v7492 = vsel %vm2234, %v7475, 0
        %v7495 = vsel %vm2234, %v7476, 0
        %v7498 = vsel %vm2234, %v7477, 0
        %v7501 = vsel %vm2234, %v7478, 0
        %v7504 = vsel %vm2234, %v7479, 0
        %v7507 = vsel %vm2234, %v7480, 0
        %v7510 = vsel %vm2234, %v7481, 0
        %v7513 = vsel %vm2234, %v7482, 0
        %v7516 = vsel %vm2234, %v7483, 0
        %v7519 = vsel %vm2234, %v7484, 0
        %v7522 = vsel %vm2234, %v7485, 0
        %v7525 = vsel %vm2234, %v7486, 0
        %v7528 = vsel %vm2234, %v7487, 0
        %v7531 = vsel %vm2234, %v7488, 0
        %v7534 = vsel %vm2234, %v7489, 0
        %v7537 = vsel %vm2234, %v7490, 0
        %7539 = vmatprep.subr.bf16.mxu0 0
        %7540 = vmatpush1.bf16.msra.mxu0 %v4671
        %7541 = vmatprep.subr.bf16.mxu0 0
        %7542 = vmatpush1.bf16.msra.mxu0 %v4672
        %7543 = vmatprep.subr.bf16.mxu0 0
        %7544 = vmatpush1.bf16.msra.mxu0 %v4673
        %7545 = vmatprep.subr.bf16.mxu0 0
        %7546 = vmatpush1.bf16.msra.mxu0 %v4674
        %7547 = vmatprep.subr.bf16.mxu0 0
        %7548 = vmatpush1.bf16.msra.mxu0 0
        %7549 = vmatprep.subr.bf16.mxu0 0
        %7550 = vmatpush1.bf16.msra.mxu0 0
        %7551 = vmatprep.subr.bf16.mxu0 0
        %7552 = vmatpush1.bf16.msra.mxu0 0
        %7553 = vmatprep.subr.bf16.mxu0 0
        %7554 = vmatpush1.bf16.msra.mxu0 0
        %7555 = vmatprep.subr.bf16.mxu0 0
        %7556 = vmatpush1.bf16.msra.mxu0 0
        %7557 = vmatprep.subr.bf16.mxu0 0
        %7558 = vmatpush1.bf16.msra.mxu0 0
        %7559 = vmatprep.subr.bf16.mxu0 0
        %7560 = vmatpush1.bf16.msra.mxu0 0
        %7561 = vmatprep.subr.bf16.mxu0 0
        %7562 = vmatpush1.bf16.msra.mxu0 0
        %7563 = vmatprep.subr.bf16.mxu0 0
        %7564 = vmatpush1.bf16.msra.mxu0 0
        %7565 = vmatprep.subr.bf16.mxu0 0
        %7566 = vmatpush1.bf16.msra.mxu0 0
        %7567 = vmatprep.subr.bf16.mxu0 0
        %7568 = vmatpush1.bf16.msra.mxu0 0
        %7569 = vmatprep.subr.bf16.mxu0 0
        %7570 = vmatpush1.bf16.msra.mxu0 0
        %7571 = vmatprep.mubr.bf16.mxu0 0
        %7572 = vmatmul.mubr.bf16.gmra.mrb[0].mxu0 %v7492
        %v7573 = vpop.f32.mrb[0].mxu0
        %v7574 = vadd.f32 0.0, %v7573
        %v7575 = vpop.f32.mrb[0].mxu0
        %v7576 = vpop.f32.mrb[0].mxu0
        %v7577 = vadd.f32 0.0, %v7576
        %v7578 = vpop.f32.mrb[0].mxu0
        %7579 = vmatprep.mubr.bf16.mxu0 0
        %7580 = vmatmul.mubr.bf16.gmra.mrb[0].mxu0 %v7495
        %v7581 = vpop.f32.mrb[0].mxu0
        %v7582 = vadd.f32 0.0, %v7581
        %v7583 = vpop.f32.mrb[0].mxu0
        %v7584 = vpop.f32.mrb[0].mxu0
        %v7585 = vadd.f32 0.0, %v7584
        %v7586 = vpop.f32.mrb[0].mxu0
        %7587 = vmatprep.mubr.bf16.mxu0 0
        %7588 = vmatmul.mubr.bf16.gmra.mrb[0].mxu0 %v7498
        %v7589 = vpop.f32.mrb[0].mxu0
        %v7590 = vadd.f32 0.0, %v7589
        %v7591 = vpop.f32.mrb[0].mxu0
        %v7592 = vpop.f32.mrb[0].mxu0
        %v7593 = vadd.f32 0.0, %v7592
        %v7594 = vpop.f32.mrb[0].mxu0
        %7595 = vmatprep.mubr.bf16.mxu0 0
        %7596 = vmatmul.mubr.bf16.gmra.mrb[0].mxu0 %v7501
        %v7597 = vpop.f32.mrb[0].mxu0
        %v7598 = vadd.f32 0.0, %v7597
        %v7599 = vpop.f32.mrb[0].mxu0
        %v7600 = vpop.f32.mrb[0].mxu0
        %v7601 = vadd.f32 0.0, %v7600
        %v7602 = vpop.f32.mrb[0].mxu0
        %7603 = vmatprep.mubr.bf16.mxu0 0
        %7604 = vmatmul.mubr.bf16.gmra.mrb[0].mxu0 %v7504
        %v7605 = vpop.f32.mrb[0].mxu0
        %v7606 = vadd.f32 0.0, %v7605
        %v7607 = vpop.f32.mrb[0].mxu0
        %v7608 = vpop.f32.mrb[0].mxu0
        %v7609 = vadd.f32 0.0, %v7608
        %v7610 = vpop.f32.mrb[0].mxu0
        %7611 = vmatprep.mubr.bf16.mxu0 0
        %7612 = vmatmul.mubr.bf16.gmra.mrb[0].mxu0 %v7507
        %v7613 = vpop.f32.mrb[0].mxu0
        %v7614 = vadd.f32 0.0, %v7613
        %v7615 = vpop.f32.mrb[0].mxu0
        %v7616 = vpop.f32.mrb[0].mxu0
        %v7617 = vadd.f32 0.0, %v7616
        %v7618 = vpop.f32.mrb[0].mxu0
        %7619 = vmatprep.mubr.bf16.mxu0 0
        %7620 = vmatmul.mubr.bf16.gmra.mrb[0].mxu0 %v7510
        %v7621 = vpop.f32.mrb[0].mxu0
        %v7622 = vadd.f32 0.0, %v7621
        %v7623 = vpop.f32.mrb[0].mxu0
        %v7624 = vpop.f32.mrb[0].mxu0
        %v7625 = vadd.f32 0.0, %v7624
        %v7626 = vpop.f32.mrb[0].mxu0
        %7627 = vmatprep.mubr.bf16.mxu0 0
        %7628 = vmatmul.mubr.bf16.gmra.mrb[0].mxu0 %v7513
        %v7629 = vpop.f32.mrb[0].mxu0
        %v7630 = vadd.f32 0.0, %v7629
        %v7631 = vpop.f32.mrb[0].mxu0
        %v7632 = vpop.f32.mrb[0].mxu0
        %v7633 = vadd.f32 0.0, %v7632
        %v7634 = vpop.f32.mrb[0].mxu0
        %7635 = vmatprep.mubr.bf16.mxu0 0
        %7636 = vmatmul.mubr.bf16.gmra.mrb[0].mxu0 %v7516
        %v7637 = vpop.f32.mrb[0].mxu0
        %v7638 = vadd.f32 0.0, %v7637
        %v7639 = vpop.f32.mrb[0].mxu0
        %v7640 = vpop.f32.mrb[0].mxu0
        %v7641 = vadd.f32 0.0, %v7640
        %v7642 = vpop.f32.mrb[0].mxu0
        %7643 = vmatprep.mubr.bf16.mxu0 0
        %7644 = vmatmul.mubr.bf16.gmra.mrb[0].mxu0 %v7519
        %v7645 = vpop.f32.mrb[0].mxu0
        %v7646 = vadd.f32 0.0, %v7645
        %v7647 = vpop.f32.mrb[0].mxu0
        %v7648 = vpop.f32.mrb[0].mxu0
        %v7649 = vadd.f32 0.0, %v7648
        %v7650 = vpop.f32.mrb[0].mxu0
        %7651 = vmatprep.mubr.bf16.mxu0 0
        %7652 = vmatmul.mubr.bf16.gmra.mrb[0].mxu0 %v7522
        %v7653 = vpop.f32.mrb[0].mxu0
        %v7654 = vadd.f32 0.0, %v7653
        %v7655 = vpop.f32.mrb[0].mxu0
        %v7656 = vpop.f32.mrb[0].mxu0
        %v7657 = vadd.f32 0.0, %v7656
        %v7658 = vpop.f32.mrb[0].mxu0
        %7659 = vmatprep.mubr.bf16.mxu0 0
        %7660 = vmatmul.mubr.bf16.gmra.mrb[0].mxu0 %v7525
        %v7661 = vpop.f32.mrb[0].mxu0
        %v7662 = vadd.f32 0.0, %v7661
        %v7663 = vpop.f32.mrb[0].mxu0
        %v7664 = vpop.f32.mrb[0].mxu0
        %v7665 = vadd.f32 0.0, %v7664
        %v7666 = vpop.f32.mrb[0].mxu0
        %7667 = vmatprep.mubr.bf16.mxu0 0
        %7668 = vmatmul.mubr.bf16.gmra.mrb[0].mxu0 %v7528
        %v7669 = vpop.f32.mrb[0].mxu0
        %v7670 = vadd.f32 0.0, %v7669
        %v7671 = vpop.f32.mrb[0].mxu0
        %v7672 = vpop.f32.mrb[0].mxu0
        %v7673 = vadd.f32 0.0, %v7672
        %v7674 = vpop.f32.mrb[0].mxu0
        %7675 = vmatprep.mubr.bf16.mxu0 0
        %7676 = vmatmul.mubr.bf16.gmra.mrb[0].mxu0 %v7531
        %v7677 = vpop.f32.mrb[0].mxu0
        %v7678 = vadd.f32 0.0, %v7677
        %v7679 = vpop.f32.mrb[0].mxu0
        %v7680 = vpop.f32.mrb[0].mxu0
        %v7681 = vadd.f32 0.0, %v7680
        %v7682 = vpop.f32.mrb[0].mxu0
        %7683 = vmatprep.mubr.bf16.mxu0 0
        %7684 = vmatmul.mubr.bf16.gmra.mrb[0].mxu0 %v7534
        %v7685 = vpop.f32.mrb[0].mxu0
        %v7686 = vadd.f32 0.0, %v7685
        %v7687 = vpop.f32.mrb[0].mxu0
        %v7688 = vpop.f32.mrb[0].mxu0
        %v7689 = vadd.f32 0.0, %v7688
        %v7690 = vpop.f32.mrb[0].mxu0
        %7691 = vmatprep.mubr.bf16.mxu0 0
        %7692 = vmatmul.mubr.bf16.gmra.mrb[0].mxu0 %v7537
        %v7693 = vpop.f32.mrb[0].mxu0
        %v7694 = vadd.f32 0.0, %v7693
        %v7695 = vpop.f32.mrb[0].mxu0
        %v7696 = vpop.f32.mrb[0].mxu0
        %v7697 = vadd.f32 0.0, %v7696
        %v7698 = vpop.f32.mrb[0].mxu0
        %7699 = vdwg.mxu0
        %v7700 = vpack.c.bf16 %v7577, %v7574
        %v7701 = vpack.c.bf16 %v7585, %v7582
        %v7702 = vpack.c.bf16 %v7593, %v7590
        %v7703 = vpack.c.bf16 %v7601, %v7598
        %v7704 = vpack.c.bf16 %v7609, %v7606
        %v7705 = vpack.c.bf16 %v7617, %v7614
        %v7706 = vpack.c.bf16 %v7625, %v7622
        %v7707 = vpack.c.bf16 %v7633, %v7630
        %v7708 = vpack.c.bf16 %v7641, %v7638
        %v7709 = vpack.c.bf16 %v7649, %v7646
        %v7710 = vpack.c.bf16 %v7657, %v7654
        %v7711 = vpack.c.bf16 %v7665, %v7662
        %v7712 = vpack.c.bf16 %v7673, %v7670
        %v7713 = vpack.c.bf16 %v7681, %v7678
        %v7714 = vpack.c.bf16 %v7689, %v7686
        %v7715 = vpack.c.bf16 %v7697, %v7694
        %7732 = vrot.lane.b32.xlu0 %v5334, 16
        %v7733 = vpop.permute.xlu0 %7732
        %7734 = vrot.lane.b32.xlu0 %v5335, 16
        %v7735 = vpop.permute.xlu0 %7734
        %7736 = vrot.lane.b32.xlu0 %v5336, 16
        %v7737 = vpop.permute.xlu0 %7736
        %7738 = vrot.lane.b32.xlu0 %v5337, 16
        %v7739 = vpop.permute.xlu0 %7738
        %7740 = vrot.lane.b32.xlu0 %v5338, 16
        %v7741 = vpop.permute.xlu0 %7740
        %7742 = vrot.lane.b32.xlu0 %v5339, 16
        %v7743 = vpop.permute.xlu0 %7742
        %7744 = vrot.lane.b32.xlu0 %v5340, 16
        %v7745 = vpop.permute.xlu0 %7744
        %7746 = vrot.lane.b32.xlu0 %v5341, 16
        %v7747 = vpop.permute.xlu0 %7746
        %7748 = vrot.lane.b32.xlu0 %v5342, 16
        %v7749 = vpop.permute.xlu0 %7748
        %7750 = vrot.lane.b32.xlu0 %v5343, 16
        %v7751 = vpop.permute.xlu0 %7750
        %7752 = vrot.lane.b32.xlu0 %v5344, 16
        %v7753 = vpop.permute.xlu0 %7752
        %7754 = vrot.lane.b32.xlu0 %v5345, 16
        %v7755 = vpop.permute.xlu0 %7754
        %7756 = vrot.lane.b32.xlu0 %v5346, 16
        %v7757 = vpop.permute.xlu0 %7756
        %7758 = vrot.lane.b32.xlu0 %v5347, 16
        %v7759 = vpop.permute.xlu0 %7758
        %7760 = vrot.lane.b32.xlu0 %v5348, 16
        %v7761 = vpop.permute.xlu0 %7760
        %7762 = vrot.lane.b32.xlu0 %v5349, 16
        %v7763 = vpop.permute.xlu0 %7762
        %7780 = vrot.lane.b32.xlu0 %v5672, 32
        %v7781 = vpop.permute.xlu0 %7780
        %7782 = vrot.lane.b32.xlu0 %v5673, 32
        %v7783 = vpop.permute.xlu0 %7782
        %7784 = vrot.lane.b32.xlu0 %v5674, 32
        %v7785 = vpop.permute.xlu0 %7784
        %7786 = vrot.lane.b32.xlu0 %v5675, 32
        %v7787 = vpop.permute.xlu0 %7786
        %7788 = vrot.lane.b32.xlu0 %v5676, 32
        %v7789 = vpop.permute.xlu0 %7788
        %7790 = vrot.lane.b32.xlu0 %v5677, 32
        %v7791 = vpop.permute.xlu0 %7790
        %7792 = vrot.lane.b32.xlu0 %v5678, 32
        %v7793 = vpop.permute.xlu0 %7792
        %7794 = vrot.lane.b32.xlu0 %v5679, 32
        %v7795 = vpop.permute.xlu0 %7794
        %7796 = vrot.lane.b32.xlu0 %v5680, 32
        %v7797 = vpop.permute.xlu0 %7796
        %7798 = vrot.lane.b32.xlu0 %v5681, 32
        %v7799 = vpop.permute.xlu0 %7798
        %7800 = vrot.lane.b32.xlu0 %v5682, 32
        %v7801 = vpop.permute.xlu0 %7800
        %7802 = vrot.lane.b32.xlu0 %v5683, 32
        %v7803 = vpop.permute.xlu0 %7802
        %7804 = vrot.lane.b32.xlu0 %v5684, 32
        %v7805 = vpop.permute.xlu0 %7804
        %7806 = vrot.lane.b32.xlu0 %v5685, 32
        %v7807 = vpop.permute.xlu0 %7806
        %7808 = vrot.lane.b32.xlu0 %v5686, 32
        %v7809 = vpop.permute.xlu0 %7808
        %7810 = vrot.lane.b32.xlu0 %v5687, 32
        %v7811 = vpop.permute.xlu0 %7810
        %7828 = vrot.lane.b32.xlu0 %v6010, 48
        %v7829 = vpop.permute.xlu0 %7828
        %7830 = vrot.lane.b32.xlu0 %v6011, 48
        %v7831 = vpop.permute.xlu0 %7830
        %7832 = vrot.lane.b32.xlu0 %v6012, 48
        %v7833 = vpop.permute.xlu0 %7832
        %7834 = vrot.lane.b32.xlu0 %v6013, 48
        %v7835 = vpop.permute.xlu0 %7834
        %7836 = vrot.lane.b32.xlu0 %v6014, 48
        %v7837 = vpop.permute.xlu0 %7836
        %7838 = vrot.lane.b32.xlu0 %v6015, 48
        %v7839 = vpop.permute.xlu0 %7838
        %7840 = vrot.lane.b32.xlu0 %v6016, 48
        %v7841 = vpop.permute.xlu0 %7840
        %7842 = vrot.lane.b32.xlu0 %v6017, 48
        %v7843 = vpop.permute.xlu0 %7842
        %7844 = vrot.lane.b32.xlu0 %v6018, 48
        %v7845 = vpop.permute.xlu0 %7844
        %7846 = vrot.lane.b32.xlu0 %v6019, 48
        %v7847 = vpop.permute.xlu0 %7846
        %7848 = vrot.lane.b32.xlu0 %v6020, 48
        %v7849 = vpop.permute.xlu0 %7848
        %7850 = vrot.lane.b32.xlu0 %v6021, 48
        %v7851 = vpop.permute.xlu0 %7850
        %7852 = vrot.lane.b32.xlu0 %v6022, 48
        %v7853 = vpop.permute.xlu0 %7852
        %7854 = vrot.lane.b32.xlu0 %v6023, 48
        %v7855 = vpop.permute.xlu0 %7854
        %7856 = vrot.lane.b32.xlu0 %v6024, 48
        %v7857 = vpop.permute.xlu0 %7856
        %7858 = vrot.lane.b32.xlu0 %v6025, 48
        %v7859 = vpop.permute.xlu0 %7858
        %7876 = vrot.lane.b32.xlu0 %v6348, 64
        %v7877 = vpop.permute.xlu0 %7876
        %7878 = vrot.lane.b32.xlu0 %v6349, 64
        %v7879 = vpop.permute.xlu0 %7878
        %7880 = vrot.lane.b32.xlu0 %v6350, 64
        %v7881 = vpop.permute.xlu0 %7880
        %7882 = vrot.lane.b32.xlu0 %v6351, 64
        %v7883 = vpop.permute.xlu0 %7882
        %7884 = vrot.lane.b32.xlu0 %v6352, 64
        %v7885 = vpop.permute.xlu0 %7884
        %7886 = vrot.lane.b32.xlu0 %v6353, 64
        %v7887 = vpop.permute.xlu0 %7886
        %7888 = vrot.lane.b32.xlu0 %v6354, 64
        %v7889 = vpop.permute.xlu0 %7888
        %7890 = vrot.lane.b32.xlu0 %v6355, 64
        %v7891 = vpop.permute.xlu0 %7890
        %7892 = vrot.lane.b32.xlu0 %v6356, 64
        %v7893 = vpop.permute.xlu0 %7892
        %7894 = vrot.lane.b32.xlu0 %v6357, 64
        %v7895 = vpop.permute.xlu0 %7894
        %7896 = vrot.lane.b32.xlu0 %v6358, 64
        %v7897 = vpop.permute.xlu0 %7896
        %7898 = vrot.lane.b32.xlu0 %v6359, 64
        %v7899 = vpop.permute.xlu0 %7898
        %7900 = vrot.lane.b32.xlu0 %v6360, 64
        %v7901 = vpop.permute.xlu0 %7900
        %7902 = vrot.lane.b32.xlu0 %v6361, 64
        %v7903 = vpop.permute.xlu0 %7902
        %7904 = vrot.lane.b32.xlu0 %v6362, 64
        %v7905 = vpop.permute.xlu0 %7904
        %7906 = vrot.lane.b32.xlu0 %v6363, 64
        %v7907 = vpop.permute.xlu0 %7906
        %7924 = vrot.lane.b32.xlu0 %v6686, 80
        %v7925 = vpop.permute.xlu0 %7924
        %7926 = vrot.lane.b32.xlu0 %v6687, 80
        %v7927 = vpop.permute.xlu0 %7926
        %7928 = vrot.lane.b32.xlu0 %v6688, 80
        %v7929 = vpop.permute.xlu0 %7928
        %7930 = vrot.lane.b32.xlu0 %v6689, 80
        %v7931 = vpop.permute.xlu0 %7930
        %7932 = vrot.lane.b32.xlu0 %v6690, 80
        %v7933 = vpop.permute.xlu0 %7932
        %7934 = vrot.lane.b32.xlu0 %v6691, 80
        %v7935 = vpop.permute.xlu0 %7934
        %7936 = vrot.lane.b32.xlu0 %v6692, 80
        %v7937 = vpop.permute.xlu0 %7936
        %7938 = vrot.lane.b32.xlu0 %v6693, 80
        %v7939 = vpop.permute.xlu0 %7938
        %7940 = vrot.lane.b32.xlu0 %v6694, 80
        %v7941 = vpop.permute.xlu0 %7940
        %7942 = vrot.lane.b32.xlu0 %v6695, 80
        %v7943 = vpop.permute.xlu0 %7942
        %7944 = vrot.lane.b32.xlu0 %v6696, 80
        %v7945 = vpop.permute.xlu0 %7944
        %7946 = vrot.lane.b32.xlu0 %v6697, 80
        %v7947 = vpop.permute.xlu0 %7946
        %7948 = vrot.lane.b32.xlu0 %v6698, 80
        %v7949 = vpop.permute.xlu0 %7948
        %7950 = vrot.lane.b32.xlu0 %v6699, 80
        %v7951 = vpop.permute.xlu0 %7950
        %7952 = vrot.lane.b32.xlu0 %v6700, 80
        %v7953 = vpop.permute.xlu0 %7952
        %7954 = vrot.lane.b32.xlu0 %v6701, 80
        %v7955 = vpop.permute.xlu0 %7954
        %7972 = vrot.lane.b32.xlu0 %v7024, 96
        %v7973 = vpop.permute.xlu0 %7972
        %7974 = vrot.lane.b32.xlu0 %v7025, 96
        %v7975 = vpop.permute.xlu0 %7974
        %7976 = vrot.lane.b32.xlu0 %v7026, 96
        %v7977 = vpop.permute.xlu0 %7976
        %7978 = vrot.lane.b32.xlu0 %v7027, 96
        %v7979 = vpop.permute.xlu0 %7978
        %7980 = vrot.lane.b32.xlu0 %v7028, 96
        %v7981 = vpop.permute.xlu0 %7980
        %7982 = vrot.lane.b32.xlu0 %v7029, 96
        %v7983 = vpop.permute.xlu0 %7982
        %7984 = vrot.lane.b32.xlu0 %v7030, 96
        %v7985 = vpop.permute.xlu0 %7984
        %7986 = vrot.lane.b32.xlu0 %v7031, 96
        %v7987 = vpop.permute.xlu0 %7986
        %7988 = vrot.lane.b32.xlu0 %v7032, 96
        %v7989 = vpop.permute.xlu0 %7988
        %7990 = vrot.lane.b32.xlu0 %v7033, 96
        %v7991 = vpop.permute.xlu0 %7990
        %7992 = vrot.lane.b32.xlu0 %v7034, 96
        %v7993 = vpop.permute.xlu0 %7992
        %7994 = vrot.lane.b32.xlu0 %v7035, 96
        %v7995 = vpop.permute.xlu0 %7994
        %7996 = vrot.lane.b32.xlu0 %v7036, 96
        %v7997 = vpop.permute.xlu0 %7996
        %7998 = vrot.lane.b32.xlu0 %v7037, 96
        %v7999 = vpop.permute.xlu0 %7998
        %8000 = vrot.lane.b32.xlu0 %v7038, 96
        %v8001 = vpop.permute.xlu0 %8000
        %8002 = vrot.lane.b32.xlu0 %v7039, 96
        %v8003 = vpop.permute.xlu0 %8002
        %8020 = vrot.lane.b32.xlu0 %v7362, 112
        %v8021 = vpop.permute.xlu0 %8020
        %8022 = vrot.lane.b32.xlu0 %v7363, 112
        %v8023 = vpop.permute.xlu0 %8022
        %8024 = vrot.lane.b32.xlu0 %v7364, 112
        %v8025 = vpop.permute.xlu0 %8024
        %8026 = vrot.lane.b32.xlu0 %v7365, 112
        %v8027 = vpop.permute.xlu0 %8026
        %8028 = vrot.lane.b32.xlu0 %v7366, 112
        %v8029 = vpop.permute.xlu0 %8028
        %8030 = vrot.lane.b32.xlu0 %v7367, 112
        %v8031 = vpop.permute.xlu0 %8030
        %8032 = vrot.lane.b32.xlu0 %v7368, 112
        %v8033 = vpop.permute.xlu0 %8032
        %8034 = vrot.lane.b32.xlu0 %v7369, 112
        %v8035 = vpop.permute.xlu0 %8034
        %8036 = vrot.lane.b32.xlu0 %v7370, 112
        %v8037 = vpop.permute.xlu0 %8036
        %8038 = vrot.lane.b32.xlu0 %v7371, 112
        %v8039 = vpop.permute.xlu0 %8038
        %8040 = vrot.lane.b32.xlu0 %v7372, 112
        %v8041 = vpop.permute.xlu0 %8040
        %8042 = vrot.lane.b32.xlu0 %v7373, 112
        %v8043 = vpop.permute.xlu0 %8042
        %8044 = vrot.lane.b32.xlu0 %v7374, 112
        %v8045 = vpop.permute.xlu0 %8044
        %8046 = vrot.lane.b32.xlu0 %v7375, 112
        %v8047 = vpop.permute.xlu0 %8046
        %8048 = vrot.lane.b32.xlu0 %v7376, 112
        %v8049 = vpop.permute.xlu0 %8048
        %8050 = vrot.lane.b32.xlu0 %v7377, 112
        %v8051 = vpop.permute.xlu0 %8050
        %v8054 = vsel %vm2065, %v4996, %v7733
        %v8057 = vsel %vm2065, %v4997, %v7735
        %v8060 = vsel %vm2065, %v4998, %v7737
        %v8063 = vsel %vm2065, %v4999, %v7739
        %v8066 = vsel %vm2065, %v5000, %v7741
        %v8069 = vsel %vm2065, %v5001, %v7743
        %v8072 = vsel %vm2065, %v5002, %v7745
        %v8075 = vsel %vm2065, %v5003, %v7747
        %v8078 = vsel %vm2065, %v5004, %v7749
        %v8081 = vsel %vm2065, %v5005, %v7751
        %v8084 = vsel %vm2065, %v5006, %v7753
        %v8087 = vsel %vm2065, %v5007, %v7755
        %v8090 = vsel %vm2065, %v5008, %v7757
        %v8093 = vsel %vm2065, %v5009, %v7759
        %v8096 = vsel %vm2065, %v5010, %v7761
        %v8099 = vsel %vm2065, %v5011, %v7763
        %v8101 = vsel %vm2101, %v8054, %v7781
        %v8103 = vsel %vm2101, %v8057, %v7783
        %v8105 = vsel %vm2101, %v8060, %v7785
        %v8107 = vsel %vm2101, %v8063, %v7787
        %v8109 = vsel %vm2101, %v8066, %v7789
        %v8111 = vsel %vm2101, %v8069, %v7791
        %v8113 = vsel %vm2101, %v8072, %v7793
        %v8115 = vsel %vm2101, %v8075, %v7795
        %v8117 = vsel %vm2101, %v8078, %v7797
        %v8119 = vsel %vm2101, %v8081, %v7799
        %v8121 = vsel %vm2101, %v8084, %v7801
        %v8123 = vsel %vm2101, %v8087, %v7803
        %v8125 = vsel %vm2101, %v8090, %v7805
        %v8127 = vsel %vm2101, %v8093, %v7807
        %v8129 = vsel %vm2101, %v8096, %v7809
        %v8131 = vsel %vm2101, %v8099, %v7811
        %v8133 = vsel %vm2730, %v8101, %v7829
        %v8135 = vsel %vm2730, %v8103, %v7831
        %v8137 = vsel %vm2730, %v8105, %v7833
        %v8139 = vsel %vm2730, %v8107, %v7835
        %v8141 = vsel %vm2730, %v8109, %v7837
        %v8143 = vsel %vm2730, %v8111, %v7839
        %v8145 = vsel %vm2730, %v8113, %v7841
        %v8147 = vsel %vm2730, %v8115, %v7843
        %v8149 = vsel %vm2730, %v8117, %v7845
        %v8151 = vsel %vm2730, %v8119, %v7847
        %v8153 = vsel %vm2730, %v8121, %v7849
        %v8155 = vsel %vm2730, %v8123, %v7851
        %v8157 = vsel %vm2730, %v8125, %v7853
        %v8159 = vsel %vm2730, %v8127, %v7855
        %v8161 = vsel %vm2730, %v8129, %v7857
        %v8163 = vsel %vm2730, %v8131, %v7859
        %v8165 = vsel %vm2234, %v8133, %v7877
        %v8167 = vsel %vm2234, %v8135, %v7879
        %v8169 = vsel %vm2234, %v8137, %v7881
        %v8171 = vsel %vm2234, %v8139, %v7883
        %v8173 = vsel %vm2234, %v8141, %v7885
        %v8175 = vsel %vm2234, %v8143, %v7887
        %v8177 = vsel %vm2234, %v8145, %v7889
        %v8179 = vsel %vm2234, %v8147, %v7891
        %v8181 = vsel %vm2234, %v8149, %v7893
        %v8183 = vsel %vm2234, %v8151, %v7895
        %v8185 = vsel %vm2234, %v8153, %v7897
        %v8187 = vsel %vm2234, %v8155, %v7899
        %v8189 = vsel %vm2234, %v8157, %v7901
        %v8191 = vsel %vm2234, %v8159, %v7903
        %v8193 = vsel %vm2234, %v8161, %v7905
        %v8195 = vsel %vm2234, %v8163, %v7907
        %v8197 = vsel %vm2735, %v8165, %v7925
        %v8199 = vsel %vm2735, %v8167, %v7927
        %v8201 = vsel %vm2735, %v8169, %v7929
        %v8203 = vsel %vm2735, %v8171, %v7931
        %v8205 = vsel %vm2735, %v8173, %v7933
        %v8207 = vsel %vm2735, %v8175, %v7935
        %v8209 = vsel %vm2735, %v8177, %v7937
        %v8211 = vsel %vm2735, %v8179, %v7939
        %v8213 = vsel %vm2735, %v8181, %v7941
        %v8215 = vsel %vm2735, %v8183, %v7943
        %v8217 = vsel %vm2735, %v8185, %v7945
        %v8219 = vsel %vm2735, %v8187, %v7947
        %v8221 = vsel %vm2735, %v8189, %v7949
        %v8223 = vsel %vm2735, %v8191, %v7951
        %v8225 = vsel %vm2735, %v8193, %v7953
        %v8227 = vsel %vm2735, %v8195, %v7955
        %v8229 = vsel %vm2738, %v8197, %v7973
        %v8231 = vsel %vm2738, %v8199, %v7975
        %v8233 = vsel %vm2738, %v8201, %v7977
        %v8235 = vsel %vm2738, %v8203, %v7979
        %v8237 = vsel %vm2738, %v8205, %v7981
        %v8239 = vsel %vm2738, %v8207, %v7983
        %v8241 = vsel %vm2738, %v8209, %v7985
        %v8243 = vsel %vm2738, %v8211, %v7987
        %v8245 = vsel %vm2738, %v8213, %v7989
        %v8247 = vsel %vm2738, %v8215, %v7991
        %v8249 = vsel %vm2738, %v8217, %v7993
        %v8251 = vsel %vm2738, %v8219, %v7995
        %v8253 = vsel %vm2738, %v8221, %v7997
        %v8255 = vsel %vm2738, %v8223, %v7999
        %v8257 = vsel %vm2738, %v8225, %v8001
        %v8259 = vsel %vm2738, %v8227, %v8003
        %v8261 = vsel %vm2741, %v8229, %v8021
        %v8264 = vsel %vm2741, %v8231, %v8023
        %v8267 = vsel %vm2741, %v8233, %v8025
        %v8270 = vsel %vm2741, %v8235, %v8027
        %v8273 = vsel %vm2741, %v8237, %v8029
        %v8276 = vsel %vm2741, %v8239, %v8031
        %v8279 = vsel %vm2741, %v8241, %v8033
        %v8282 = vsel %vm2741, %v8243, %v8035
        %v8285 = vsel %vm2741, %v8245, %v8037
        %v8288 = vsel %vm2741, %v8247, %v8039
        %v8291 = vsel %vm2741, %v8249, %v8041
        %v8294 = vsel %vm2741, %v8251, %v8043
        %v8297 = vsel %vm2741, %v8253, %v8045
        %v8300 = vsel %vm2741, %v8255, %v8047
        %v8303 = vsel %vm2741, %v8257, %v8049
        %v8306 = vsel %vm2741, %v8259, %v8051
        %v8308 = vld [vmem:[%s17] sm:$0xf]
        %v8309 = vld [vmem:[#allocation13] sm:$0xf]
        %8311 = vset.pattern.permute.xlu0 0
        %8312 = vperm.xlu0 %8311, %v8309
        %v8313 = vpop.permute.xlu0 %8312
        %v8317 = vunpack.c.l.s4 1983009808
        %v8318 = vunpack.c.0.s8 %v8317
        %v8319 = vlaneseq
        %v8320 = vshrl.u32 %v8319, 7
        %v8321 = vsub.s32 %v8318, %v8320
        %v8322 = vrot.slane %v8308, %v8321
        %v8323 = vcombine.high %v8322, %v8322
        %v8326 = vsel %vm2065, %v8323, 0
        %v8329 = vsel %vm2065, %v7700, 0
        %v8332 = vsel %vm2065, %v7701, 0
        %v8335 = vsel %vm2065, %v7702, 0
        %v8338 = vsel %vm2065, %v7703, 0
        %v8341 = vsel %vm2065, %v7704, 0
        %v8344 = vsel %vm2065, %v7705, 0
        %v8347 = vsel %vm2065, %v7706, 0
        %v8350 = vsel %vm2065, %v7707, 0
        %v8353 = vsel %vm2065, %v7708, 0
        %v8356 = vsel %vm2065, %v7709, 0
        %v8359 = vsel %vm2065, %v7710, 0
        %v8362 = vsel %vm2065, %v7711, 0
        %v8365 = vsel %vm2065, %v7712, 0
        %v8368 = vsel %vm2065, %v7713, 0
        %v8371 = vsel %vm2065, %v7714, 0
        %v8374 = vsel %vm2065, %v7715, 0
        %8376 = vmatprep.subr.bf16.mxu0 %v8329
        %8377 = vmatpush1.bf16.xpose.msra.mxu0 %v8261
        %8378 = vmatprep.subr.bf16.mxu0 %v8332
        %8379 = vmatpush1.bf16.xpose.msra.mxu0 %v8264
        %8380 = vmatprep.subr.bf16.mxu0 %v8335
        %8381 = vmatpush1.bf16.xpose.msra.mxu0 %v8267
        %8382 = vmatprep.subr.bf16.mxu0 %v8338
        %8383 = vmatpush1.bf16.xpose.msra.mxu0 %v8270
        %8384 = vmatprep.subr.bf16.mxu0 %v8341
        %8385 = vmatpush1.bf16.xpose.msra.mxu0 %v8273
        %8386 = vmatprep.subr.bf16.mxu0 %v8344
        %8387 = vmatpush1.bf16.xpose.msra.mxu0 %v8276
        %8388 = vmatprep.subr.bf16.mxu0 %v8347
        %8389 = vmatpush1.bf16.xpose.msra.mxu0 %v8279
        %8390 = vmatprep.subr.bf16.mxu0 %v8350
        %8391 = vmatpush1.bf16.xpose.msra.mxu0 %v8282
        %8392 = vmatprep.subr.bf16.mxu0 %v8353
        %8393 = vmatpush1.bf16.xpose.msra.mxu0 %v8285
        %8394 = vmatprep.subr.bf16.mxu0 %v8356
        %8395 = vmatpush1.bf16.xpose.msra.mxu0 %v8288
        %8396 = vmatprep.subr.bf16.mxu0 %v8359
        %8397 = vmatpush1.bf16.xpose.msra.mxu0 %v8291
        %8398 = vmatprep.subr.bf16.mxu0 %v8362
        %8399 = vmatpush1.bf16.xpose.msra.mxu0 %v8294
        %8400 = vmatprep.subr.bf16.mxu0 %v8365
        %8401 = vmatpush1.bf16.xpose.msra.mxu0 %v8297
        %8402 = vmatprep.subr.bf16.mxu0 %v8368
        %8403 = vmatpush1.bf16.xpose.msra.mxu0 %v8300
        %8404 = vmatprep.subr.bf16.mxu0 %v8371
        %8405 = vmatpush1.bf16.xpose.msra.mxu0 %v8303
        %8406 = vmatprep.subr.bf16.mxu0 %v8374
        %8407 = vmatpush1.bf16.xpose.msra.mxu0 %v8306
        %8408 = vmatprep.mubr.bf16.mxu0 %v8326
        %8409 = vmatmul.mubr.bf16.gmra.mrb[0].mxu0 %v8322
        %v8410 = vpop.f32.mrb[0].mxu0
        %v8411 = vadd.f32 %v8313, %v8410
        %v8412 = vpop.f32.mrb[0].mxu0
        %v8413 = vadd.f32 %v8313, %v8412
        %v8414 = vpop.f32.mrb[0].mxu0
        %v8415 = vpop.f32.mrb[0].mxu0
        %8416 = vdwg.mxu0
        %v8419 = vcombine.low %v8411, %v8413
        %8421 = vst [vmem:[%s742] sm:$0xff] %v8419
        %v8422 = vsel %vm2101, %v3158, %v3075
        %v8423 = vsel %vm2101, %v3163, %v3078
        %v8424 = vsel %vm2234, %v8422, %v3172
        %v8425 = vsel %vm2234, %v8423, %v3175
        %v8426 = vsel %vm2738, %v8424, 0.0
        %v8427 = vsel %vm2738, %v8425, 0.0
        %8428 = vst [vmem:[%s747] sm:$0xff] %v8426
        %8429 = vst [vmem:[%s747 + $0x8] sm:$0xff] %v8427
        %p8430 = scmp.lt.s32.totalorder %s37, 1
        %s8431 = scalar_select %p8430, %s37, 1
        %s8432 = smul.addr %s8431, 2
        %s8433 = smul.addr %s8432, 4
        %s8434 = scalar_lea.vmem %s19, %s8433
        %p8435 = scmp.lt.s32.totalorder %s37, 1
        %s8436 = scalar_select %p8435, %s37, 1
        %s8437 = smul.addr %s8436, 2
        %s8438 = smul.addr %s8437, 8
        %s8439 = scalar_lea.vmem %s20, %s8438
        // Predicated region
        $region129: #{vqvae_forward.1} parent=95 // pred_check
          %p8440 = pneg %p459
        $region130: #{vqvae_forward.1} parent=95 // pred_check_branch
          %8442 = sbr.rel (%p8440) target = $region132
        $region131: #{vqvae_forward.1} parent=95 // pred_region
          _
        $region132: #{vqvae_forward.1} parent=95 // pred_fallthru
          _
        // Predicated region
        $region133: #{vqvae_forward.1} parent=95 // pred_check
          %p8443 = pneg %p485
        $region134: #{vqvae_forward.1} parent=95 // pred_check_branch
          %8445 = sbr.rel (%p8443) target = $region136
        $region135: #{vqvae_forward.1} parent=95 // pred_region
          _
        $region136: #{vqvae_forward.1} parent=95 // pred_fallthru
          _
      $region96: #{vqvae_forward.1} parent=5 // pred_fallthru
        _
      %p8446 = scmp.le.s32.totalorder 2, %s32
      // Predicated region
      $region137: #{vqvae_forward.1} parent=5 // pred_check
        %p8447 = pneg %p8446
      $region138: #{vqvae_forward.1} parent=5 // pred_check_branch
        %8449 = sbr.rel (%p8447) target = $region140
      $region139: #{vqvae_forward.1} parent=5 // pred_region
        %s8450 = ssub.s32 %s32, 2
        // Predicated region
        $region141: #{vqvae_forward.1} parent=139 // pred_check
          %p8451 = pneg %p465
        $region142: #{vqvae_forward.1} parent=139 // pred_check_branch
          %8453 = sbr.rel (%p8451) target = $region144
        $region143: #{vqvae_forward.1} parent=139 // pred_region
          %p8454 = scmp.lt.s32.totalorder %s38, 1
          %s8455 = scalar_select %p8454, %s38, 1
          %s8456 = smul.addr %s8455, 2
          %s8457 = smul.addr %s8456, 4
          %s8458 = scalar_lea.vmem %s19, %s8457
        $region144: #{vqvae_forward.1} parent=139 // pred_fallthru
          _
        // Predicated region
        $region145: #{vqvae_forward.1} parent=139 // pred_check
          %p8459 = pneg %p491
        $region146: #{vqvae_forward.1} parent=139 // pred_check_branch
          %8461 = sbr.rel (%p8459) target = $region148
        $region147: #{vqvae_forward.1} parent=139 // pred_region
          %p8462 = scmp.lt.s32.totalorder %s38, 1
          %s8463 = scalar_select %p8462, %s38, 1
          %s8464 = smul.addr %s8463, 2
          %s8465 = smul.addr %s8464, 8
          %s8466 = scalar_lea.vmem %s20, %s8465
        $region148: #{vqvae_forward.1} parent=139 // pred_fallthru
          _
      $region140: #{vqvae_forward.1} parent=5 // pred_fallthru
        _
    $region6: #{vqvae_forward.1} parent=1 // loop_footer
      %s36 = sadd.s32 1, %s32
    $region7: #{vqvae_forward.1} parent=1 // loop_footer_branch
      %31 = sbr.rel target = $region3
    $region8: #{vqvae_forward.1} parent=1 // loop_exit
      _
    %8467 = vsyncpa [#allocation3], 1
    %s8468 = scalar_lea.sflag [#allocation3], 1
    %8469 = vsyncpa %s8468, 1
    %8470 = vsyncpa [#allocation5], 1
    %8471 = vsyncpa [#allocation8], 1
    %8472 = vsyncpa [#allocation11], 1
    %8473 = vsyncpa [#allocation14], 1

</llo_original>
